<compile_context>
chip_gen: v7x
topology: tpu7x:2x2x1
jax: 0.10.0
libtpu: 0.0.40
codegen_flags: <defaults>
</compile_context>

<pallas_src>
import functools

import numpy as np
import jax
import jax.numpy as jnp
from jax.experimental import pallas as pl
from jax.experimental.pallas import tpu as pltpu

_VMEM_LIMIT = 32 * 1024 * 1024  # safe on v5e/v6e/v7x; toy config uses well under 1 MiB.


# ----------------------------------------------------------------------------
# In-kernel helpers ((C, L) layout: channels on sublanes, pixels on lanes)
# ----------------------------------------------------------------------------

def _leaky(x, slope=0.01):
    return jnp.where(x >= 0.0, x, jnp.float32(slope) * x)


def _ln(x, g, b, eps=1e-6):
    """channels_first LayerNorm: normalize over the channel (sublane) axis.
    x: (C, L) f32, g/b: (C, 1)."""
    mu = jnp.mean(x, axis=0, keepdims=True)
    xc = x - mu
    var = jnp.mean(xc * xc, axis=0, keepdims=True)
    return xc * jax.lax.rsqrt(var + eps) * g + b


def _mm(w, x, b=None):
    """1x1 conv / linear: (Cout, Cin) @ (Cin, L); bf16 MXU operands, f32 accumulation."""
    out = jnp.dot(w.astype(jnp.bfloat16), x.astype(jnp.bfloat16),
                  preferred_element_type=jnp.float32)
    if b is not None:
        out = out + b
    return out


# ----------------------------------------------------------------------------
# Fused per-level kernel: down hyperConv -> res blocks -> attention -> deep / up
# ----------------------------------------------------------------------------

def _level_kernel(*refs, cfg):
    n_in, n_out = cfg['n_in'], cfg['n_out']
    out_refs = refs[n_in:n_in + n_out]
    pad_ref = refs[n_in + n_out]          # VMEM scratch (Cmax, P + L + P) f32
    it = iter(refs[:n_in])

    H, W, L = cfg['H'], cfg['W'], cfg['L']
    latent, ce = cfg['latent'], cfg['ce']
    kr, pr = cfg['k_res'], cfg['p_res']
    P = cfg['pcol']                       # lane-aligned halo width (multiple of 128)

    # Column index (w) along the flattened pixel/lane axis — shared by all conv masks.
    lane = jax.lax.broadcasted_iota(jnp.int32, (1, L), 1)
    w_idx = lane % W

    # Zero the two halo strips ONCE; every conv only rewrites the (aligned) interior.
    n_rows = pad_ref.shape[0]
    pad_ref[:, 0:P] = jnp.zeros((n_rows, P), jnp.float32)
    pad_ref[:, P + L:P + L + P] = jnp.zeros((n_rows, P), jnp.float32)

    def conv_from_pad(cin, w_bf, b, K, pad):
        """Same-size KxK conv on the image already stored in pad_ref[0:cin, P:P+L].

        Builds the im2col operand (K*K*cin, L) from K*K static lane-offset window
        reads (+ a per-column validity mask), then ONE weights-stationary matmul:
            (Cout, K*K*cin) @ (K*K*cin, L)   bf16 operands, f32 accumulation.
        Row h out-of-range reads land in the zeroed halos; only the w-mask is needed.
        """
        rows = []
        for dy in range(K):
            for dx in range(K):
                sy, sx = dy - pad, dx - pad
                off = P + sy * W + sx
                win = pad_ref[0:cin, off:off + L]
                if sx == 0:
                    rows.append(win)
                else:
                    wmask = (w_idx + sx >= 0) & (w_idx + sx < W)
                    rows.append(jnp.where(wmask, win, 0.0))
        col = jnp.concatenate(rows, axis=0).astype(jnp.bfloat16)
        out = jnp.dot(w_bf, col, preferred_element_type=jnp.float32)
        return out + b

    def conv(x, cin, w_bf, b, K, pad):
        pad_ref[0:cin, P:P + L] = x       # lane-aligned interior write
        return conv_from_pad(cin, w_bf, b, K, pad)

    # ---- down: hyperConv 3x3 pad 1 on channel-concat([z, x_prev]) -------------------
    # Channel concat is free: the two channel groups are written into adjacent
    # sublane rows of the scratch interior.
    cin_dn = latent + (ce if cfg['has_prev'] else 0)
    z_ref = next(it)
    pad_ref[0:latent, P:P + L] = z_ref[0].astype(jnp.float32)
    if cfg['has_prev']:
        xp_ref = next(it)
        pad_ref[latent:cin_dn, P:P + L] = xp_ref[0].astype(jnp.float32)
    dw_ref, db_ref = next(it), next(it)
    x = conv_from_pad(cin_dn, dw_ref[0], db_ref[0], 3, 1)        # (ce, L) f32

    # ---- hyper residual blocks: LN -> hyperConv -> LeakyReLU -> hyperConv ----------
    for _ in range(cfg['n_res']):
        g_ref, b_ref = next(it), next(it)
        w1_ref, b1_ref, w2_ref, b2_ref, gam_ref = (next(it) for _ in range(5))
        y = _ln(x, g_ref[...], b_ref[...])
        y = _leaky(conv(y, ce, w1_ref[0], b1_ref[0], kr, pr))
        y = conv(y, ce, w2_ref[0], b2_ref[0], kr, pr)
        x = x + gam_ref[...] * y

    # ---- spatial self-attention block (only when up_scale >= 4) --------------------
    if cfg['use_attn']:
        g_ref, b_ref = next(it), next(it)
        wq, bq, wk, bk, wv, bv, wo, bo, gam_ref = (next(it) for _ in range(9))
        y = _ln(x, g_ref[...], b_ref[...])
        q = _mm(wq[...], y, bq[...])                              # (ce, L)
        k = _mm(wk[...], y, bk[...])
        v = _mm(wv[...], y, bv[...])
        # scores s[l1, l2] = sum_c q[c, l1] k[c, l2] / sqrt(ce)  -> (L, L), lane-dense
        s = jax.lax.dot_general(q.astype(jnp.bfloat16), k.astype(jnp.bfloat16),
                                (((0,), (0,)), ((), ())),
                                preferred_element_type=jnp.float32)
        s = s * jnp.float32(1.0 / np.sqrt(ce))
        s = s - jnp.max(s, axis=-1, keepdims=True)
        p = jnp.exp(s)
        p = p / jnp.sum(p, axis=-1, keepdims=True)                # exact normalization
        # o[c, l1] = sum_l2 v[c, l2] p[l1, l2]   (kept in f32 for accuracy)
        o = jax.lax.dot_general(v, p, (((1,), (1,)), ((), ())),
                                preferred_element_type=jnp.float32)
        o = _mm(wo[...], o, bo[...])
        x = x + gam_ref[...] * o

    # ---- deep head: LN -> conv3x3 -> LeakyReLU (lane-dense (c_out, L) store) --------
    g_ref, b_ref, wd_ref, bd_ref = (next(it) for _ in range(4))
    y = _ln(x, g_ref[...], b_ref[...])
    y = _leaky(conv(y, ce, wd_ref[...].astype(jnp.bfloat16), bd_ref[...], 3, 1))
    out_refs[0][0] = y.astype(out_refs[0].dtype)

    # ---- up branch (pre-upsample): LN -> conv3x3 -------------------------------------
    if cfg['has_up']:
        g_ref, b_ref, wu_ref, bu_ref = (next(it) for _ in range(4))
        y = _ln(x, g_ref[...], b_ref[...])
        y = conv(y, ce, wu_ref[...].astype(jnp.bfloat16), bu_ref[...], 3, 1)
        out_refs[1][0] = y.astype(out_refs[1].dtype)


# ----------------------------------------------------------------------------
# Fused image_fusion + image_fusion_inv (two 1x1 convs + LeakyReLU), (C, L) layout
# ----------------------------------------------------------------------------

def _fusion_kernel(z_ref, w1_ref, b1_ref, w2_ref, b2_ref, o1_ref, o2_ref):
    z = z_ref[0].astype(jnp.float32)                       # (latent, L)
    y1 = _leaky(_mm(w1_ref[...], z, b1_ref[...]))          # (3, L)
    o1_ref[0] = y1.astype(o1_ref.dtype)
    y2 = _mm(w2_ref[...], y1, b2_ref[...])                 # (latent, L)
    o2_ref[0] = y2.astype(o2_ref.dtype)


# ----------------------------------------------------------------------------
# BlockSpec helpers / host-side wrappers
# ----------------------------------------------------------------------------

def _per_sample_map(ndim):
    zeros = (0,) * (ndim - 1)

    def imap(n):
        return (n,) + zeros
    return imap


def _shared_map(ndim):
    zeros = (0,) * ndim

    def imap(n):
        return zeros
    return imap


def _hyper_weights(hp, s, K, cin, cout):
    """hyperConv: style vector -> per-sample conv weights.

    Returns w: (N, Cout, K*K*Cin) bf16  (lane axis = K*K*Cin, per review),
            b: (N, Cout, 1) f32.
    """
    h = s @ hp['fc_w'] + hp['fc_b'][None, :]                        # (N, hyper_dim)
    w = (h @ hp['pw']).reshape(s.shape[0], cout, K * K * cin)
    b = (h @ hp['pb']).reshape(s.shape[0], cout, 1)
    return w.astype(jnp.bfloat16), b


def level_forward(params, i, z, x_prev, s, *, H, W, ce, c_out, c_next, k_res, p_res,
                  n_res, use_attn, has_up, latent):
    """One fused pallas_call for decoder level i.  z: (N, latent, H*W) lane-dense."""
    N = z.shape[0]
    L = H * W
    has_prev = x_prev is not None
    cin_dn = latent + (ce if has_prev else 0)

    inputs, in_specs = [], []

    def add(arr, per_sample):
        inputs.append(arr)
        if per_sample:
            in_specs.append(pl.BlockSpec((1,) + arr.shape[1:],
                                         _per_sample_map(arr.ndim)))
        else:  # shared across the batch: invariant block index -> loaded once
            in_specs.append(pl.BlockSpec(arr.shape, _shared_map(arr.ndim)))

    # down hyperConv (per-sample generated weights, bf16, KKC on lanes)
    dw, db = _hyper_weights(params['down'][i], s, 3, cin_dn, ce)
    add(z, True)
    if has_prev:
        add(x_prev, True)
    add(dw, True)
    add(db, True)

    # hyper residual blocks
    for blk in params['mid'][i]['blocks']:
        add(blk['ln_g'], False)
        add(blk['ln_b'], False)
        w1, b1 = _hyper_weights(blk['hc1'], s, k_res, ce, ce)
        w2, b2 = _hyper_weights(blk['hc2'], s, k_res, ce, ce)
        add(w1, True); add(b1, True); add(w2, True); add(b2, True)
        add(blk['gamma'], False)

    if use_attn:
        a = params['mid'][i]['attn']
        add(a['ln_g'], False)
        add(a['ln_b'], False)
        for nm in ('q', 'k', 'v', 'o'):
            add(a[nm]['w'], False)
            add(a[nm]['b'], False)
        add(a['gamma'], False)

    d = params['deep'][i]
    add(d['ln_g'], False); add(d['ln_b'], False)
    add(d['conv']['w'], False); add(d['conv']['b'], False)

    if has_up:
        u = params['up'][i]
        add(u['ln_g'], False); add(u['ln_b'], False)
        add(u['conv']['w'], False); add(u['conv']['b'], False)

    # Lane-dense outputs: (N, C, H*W) with H*W on lanes.
    out_shapes = [jax.ShapeDtypeStruct((N, c_out, L), jnp.float32)]
    out_specs = [pl.BlockSpec((1, c_out, L), lambda n: (n, 0, 0))]
    if has_up:
        out_shapes.append(jax.ShapeDtypeStruct((N, c_next, L), jnp.float32))
        out_specs.append(pl.BlockSpec((1, c_next, L), lambda n: (n, 0, 0)))

    # Scratch: interior at lane-aligned offset PCOL; halos zeroed once in-kernel.
    maxpad = max(1, p_res)
    pcol = max(128, ((maxpad * (W + 1) + 127) // 128) * 128)
    cmax = max(cin_dn, ce)
    cmax = ((cmax + 7) // 8) * 8
    scratch = [pltpu.VMEM((cmax, pcol + L + pcol), jnp.float32)]

    cfg = dict(n_in=len(inputs), n_out=len(out_shapes), H=H, W=W, L=L, latent=latent,
               ce=ce, k_res=k_res, p_res=p_res, n_res=n_res, use_attn=use_attn,
               has_prev=has_prev, has_up=has_up, pcol=pcol)

    # Advisory cost estimate so XLA can overlap this call with surrounding ops.
    flops = 2 * ce * (9 * cin_dn) * L
    flops += n_res * 2 * (2 * ce * (k_res * k_res * ce) * L)
    if use_attn:
        flops += 4 * 2 * ce * ce * L + 2 * 2 * L * L * ce
    flops += 2 * c_out * (9 * ce) * L
    if has_up:
        flops += 2 * c_next * (9 * ce) * L
    flops *= N
    transc = N * L * L if use_attn else 0
    bytes_acc = sum(int(np.prod(a.shape)) * a.dtype.itemsize for a in inputs)
    bytes_acc += sum(int(np.prod(o.shape)) * 4 for o in out_shapes)
    cost = pl.CostEstimate(flops=int(flops), transcendentals=int(transc),
                           bytes_accessed=int(bytes_acc))

    out = pl.pallas_call(
        functools.partial(_level_kernel, cfg=cfg),
        out_shape=tuple(out_shapes) if has_up else out_shapes[0],
        grid=(N,),
        in_specs=in_specs,
        out_specs=tuple(out_specs) if has_up else out_specs[0],
        scratch_shapes=scratch,
        compiler_params=pltpu.CompilerParams(
            dimension_semantics=("parallel",),
            vmem_limit_bytes=_VMEM_LIMIT),
        cost_estimate=cost,
    )(*inputs)

    if has_up:
        return out[0], out[1]
    return out, None


def fusion_forward(pf, pfi, z_flat):
    """image_fusion (1x1 conv + LeakyReLU) + image_fusion_inv (1x1 conv), fused."""
    N, latent, L = z_flat.shape
    c1 = pf['w'].shape[0]
    cost = pl.CostEstimate(
        flops=int(N * (2 * c1 * latent * L + 2 * latent * c1 * L)),
        transcendentals=0,
        bytes_accessed=int(z_flat.size * 4 + N * (c1 + latent) * L * 4))
    out1, out2 = pl.pallas_call(
        _fusion_kernel,
        out_shape=(jax.ShapeDtypeStruct((N, c1, L), jnp.float32),
                   jax.ShapeDtypeStruct((N, latent, L), jnp.float32)),
        grid=(N,),
        in_specs=[
            pl.BlockSpec((1, latent, L), _per_sample_map(3)),
            pl.BlockSpec(pf['w'].shape, _shared_map(2)),
            pl.BlockSpec(pf['b'].shape, _shared_map(2)),
            pl.BlockSpec(pfi['w'].shape, _shared_map(2)),
            pl.BlockSpec(pfi['b'].shape, _shared_map(2)),
        ],
        out_specs=(pl.BlockSpec((1, c1, L), lambda n: (n, 0, 0)),
                   pl.BlockSpec((1, latent, L), lambda n: (n, 0, 0))),
        compiler_params=pltpu.CompilerParams(
            dimension_semantics=("parallel",),
            vmem_limit_bytes=_VMEM_LIMIT),
        cost_estimate=cost,
    )(z_flat, pf['w'], pf['b'], pfi['w'], pfi['b'])
    return out1, out2


# ----------------------------------------------------------------------------
# Parameter init (deterministic, synthetic)
# ----------------------------------------------------------------------------

def init_params(key, args):
    c_enc = args['conv_channels']
    s_enc = args['conv_stride']
    n_res = args['resblock_n']
    k_res = args['resblock_kernel']
    latent = args['latent_space_dim']
    style = args['style_dim']
    hyper = args['hyper_conv_dim']
    c_out = args['out_channels']
    ls_init = args['layer_scale_init_value']

    keys = iter(jax.random.split(key, 512))

    def nrm(shape, scale):
        return scale * jax.random.normal(next(keys), shape, jnp.float32)

    def hyper_params(cin, cout, k):
        fan = cin * k * k
        return dict(
            fc_w=nrm((style, hyper), 1.0 / np.sqrt(style)),
            fc_b=nrm((hyper,), 0.01),
            pw=nrm((hyper, cout * k * k * cin), 1.0 / np.sqrt(hyper * fan)),
            pb=nrm((hyper, cout), 0.01),
        )

    def conv_params(cin, cout, k):
        # weights stored flat (cout, k*k*cin), column order (dy, dx, cin)
        return dict(w=nrm((cout, k * k * cin), 1.0 / np.sqrt(cin * k * k)),
                    b=jnp.zeros((cout, 1), jnp.float32))

    def ln_params(c):
        return dict(ln_g=jnp.ones((c, 1), jnp.float32),
                    ln_b=jnp.zeros((c, 1), jnp.float32))

    params = dict(down=[], mid=[], deep=[], up=[])
    use_attn_flags = []
    up_scale = int(np.prod(s_enc))
    for i, ce in enumerate(c_enc):
        cin = latent if i == 0 else latent + ce
        params['down'].append(hyper_params(cin, ce, 3))

        use_attn = up_scale >= 4
        use_attn_flags.append(use_attn)
        blocks = []
        for _ in range(n_res[i]):
            blk = ln_params(ce)
            blk.update(hc1=hyper_params(ce, ce, k_res[i]),
                       hc2=hyper_params(ce, ce, k_res[i]),
                       gamma=jnp.full((ce, 1), ls_init, jnp.float32))
            blocks.append(blk)
        mid = dict(blocks=blocks)
        if use_attn:
            attn = ln_params(ce)
            attn.update(q=conv_params(ce, ce, 1), k=conv_params(ce, ce, 1),
                        v=conv_params(ce, ce, 1), o=conv_params(ce, ce, 1),
                        gamma=jnp.full((ce, 1), ls_init, jnp.float32))
            mid['attn'] = attn
        params['mid'].append(mid)

        deep = ln_params(ce)
        deep['conv'] = conv_params(ce, c_out, 3)
        params['deep'].append(deep)

        if i < len(c_enc) - 1:
            up = ln_params(ce)
            up['conv'] = conv_params(ce, c_enc[i + 1], 3)
            params['up'].append(up)
            up_scale //= s_enc[i]
        else:
            params['up'].append(None)   # nn.Identity()

    params['fusion'] = conv_params(latent, 3, 1)
    params['fusion_inv'] = conv_params(3, latent, 1)
    return params, use_attn_flags


# ----------------------------------------------------------------------------
# HyperImageDecoder forward (NCHW end-to-end, matching the PyTorch module)
# ----------------------------------------------------------------------------

def hyper_image_decoder(params, use_attn_flags, zqs, s, args):
    c_enc = args['conv_channels']
    s_enc = args['conv_stride']
    k_res = args['resblock_kernel']
    p_res = args['resblock_padding']
    n_res = args['resblock_n']
    latent = args['latent_space_dim']
    c_out = args['out_channels']
    assert args['focal_mode'] == 'dispersion'   # zid == 0: each level uses its latent

    outputs = []
    x = None                                    # (N, c_enc[i], H_i*W_i) lane-dense
    for i, ce in enumerate(c_enc):
        is_last = (i == len(c_enc) - 1)
        c_next = c_enc[i + 1] if not is_last else 0
        N, _, H, W = zqs[i].shape
        z_flat = zqs[i].reshape(N, latent, H * W)
        deep_o, pre_up = level_forward(
            params, i, z_flat, x, s, H=H, W=W, ce=ce, c_out=c_out, c_next=c_next,
            k_res=k_res[i], p_res=p_res[i], n_res=n_res[i],
            use_attn=use_attn_flags[i], has_up=not is_last, latent=latent)
        outputs.append(deep_o.reshape(N, c_out, H, W))
        if not is_last:
            se = s_enc[i]
            y = pre_up.reshape(N, c_next, H, W)
            # TODO(synk): nearest upsample left as one XLA op between fused level kernels.
            y = jnp.repeat(jnp.repeat(y, se, axis=2), se, axis=3)
            x = y.reshape(N, c_next, H * se * W * se)

    outputs = outputs[::-1]
    zlast = jax.lax.stop_gradient(zqs[-1])      # .detach()
    Nl, _, Hl, Wl = zlast.shape
    f1, f2 = fusion_forward(params['fusion'], params['fusion_inv'],
                            zlast.reshape(Nl, latent, Hl * Wl))
    image_fusion = f1.reshape(Nl, -1, Hl, Wl)
    latent_inv = f2.reshape(Nl, latent, Hl, Wl)
    if not args['deep_supervision']:
        return outputs[0], [image_fusion, latent_inv]
    return outputs, [image_fusion, latent_inv]


# ----------------------------------------------------------------------------
# Main
# ----------------------------------------------------------------------------

if __name__ == "__main__":
    args = dict(
        out_channels=2,
        conv_channels=[16, 8],
        conv_kernel=[3, 3],
        conv_stride=[2, 2],
        resblock_n=[1, 1],
        resblock_kernel=[3, 3],
        resblock_padding=[1, 1],
        layer_scale_init_value=1e-2,
        hyper_conv_dim=4,
        latent_space_dim=8,
        style_dim=16,
        deep_supervision=True,
        focal_mode='dispersion',
    )

    key = jax.random.PRNGKey(0)
    pkey, zk0, zk1, skey = jax.random.split(key, 4)
    params, use_attn_flags = init_params(pkey, args)

    N = 2
    # zqs: one latent per decoder level (NCHW); spatial doubles per level (stride 2).
    zqs = [
        jax.random.normal(zk0, (N, args['latent_space_dim'], 8, 8), jnp.float32),
        jax.random.normal(zk1, (N, args['latent_space_dim'], 16, 16), jnp.float32),
    ]
    s = jax.random.normal(skey, (N, args['style_dim']), jnp.float32)

    fwd = jax.jit(lambda p, z, st: hyper_image_decoder(p, use_attn_flags, z, st, args))
    outputs, fusion = fwd(params, zqs, s)
    jax.block_until_ready(outputs)
    jax.block_until_ready(fusion)
    print("KERNEL_OK")
</pallas_src>

<mosaic_0001>
module attributes {stable_mosaic.version = 11 : i64} {
  func.func @_level_kernel(%arg0: i32, %arg1: memref<1x8x64xf32, #tpu.memory_space<vmem>>, %arg2: memref<1x16x72xbf16, #tpu.memory_space<vmem>>, %arg3: memref<1x16x1xf32, #tpu.memory_space<vmem>>, %arg4: memref<16x1xf32, #tpu.memory_space<vmem>>, %arg5: memref<16x1xf32, #tpu.memory_space<vmem>>, %arg6: memref<1x16x144xbf16, #tpu.memory_space<vmem>>, %arg7: memref<1x16x1xf32, #tpu.memory_space<vmem>>, %arg8: memref<1x16x144xbf16, #tpu.memory_space<vmem>>, %arg9: memref<1x16x1xf32, #tpu.memory_space<vmem>>, %arg10: memref<16x1xf32, #tpu.memory_space<vmem>>, %arg11: memref<16x1xf32, #tpu.memory_space<vmem>>, %arg12: memref<16x1xf32, #tpu.memory_space<vmem>>, %arg13: memref<16x16xf32, #tpu.memory_space<vmem>>, %arg14: memref<16x1xf32, #tpu.memory_space<vmem>>, %arg15: memref<16x16xf32, #tpu.memory_space<vmem>>, %arg16: memref<16x1xf32, #tpu.memory_space<vmem>>, %arg17: memref<16x16xf32, #tpu.memory_space<vmem>>, %arg18: memref<16x1xf32, #tpu.memory_space<vmem>>, %arg19: memref<16x16xf32, #tpu.memory_space<vmem>>, %arg20: memref<16x1xf32, #tpu.memory_space<vmem>>, %arg21: memref<16x1xf32, #tpu.memory_space<vmem>>, %arg22: memref<16x1xf32, #tpu.memory_space<vmem>>, %arg23: memref<16x1xf32, #tpu.memory_space<vmem>>, %arg24: memref<2x144xf32, #tpu.memory_space<vmem>>, %arg25: memref<2x1xf32, #tpu.memory_space<vmem>>, %arg26: memref<16x1xf32, #tpu.memory_space<vmem>>, %arg27: memref<16x1xf32, #tpu.memory_space<vmem>>, %arg28: memref<8x144xf32, #tpu.memory_space<vmem>>, %arg29: memref<8x1xf32, #tpu.memory_space<vmem>>, %arg30: memref<1x2x64xf32, #tpu.memory_space<vmem>>, %arg31: memref<1x8x64xf32, #tpu.memory_space<vmem>>, %arg32: memref<16x320xf32, #tpu.memory_space<vmem>>) attributes {dimension_semantics = [#tpu.dimension_semantics<parallel>], iteration_bounds = array<i64: 2>, scalar_prefetch = 0 : i64, scratch_operands = 1 : i64, tpu.core_type = #tpu.core_type<tc>, window_params = [{transform_indices = @transform_0, window_bounds = array<i64: 1, 8, 64>}, {transform_indices = @transform_1, window_bounds = array<i64: 1, 16, 72>}, {transform_indices = @transform_2, window_bounds = array<i64: 1, 16, 1>}, {pipeline_mode = #tpu.pipeline_mode<synchronous>, transform_indices = @transform_3, window_bounds = array<i64: 16, 1>}, {pipeline_mode = #tpu.pipeline_mode<synchronous>, transform_indices = @transform_4, window_bounds = array<i64: 16, 1>}, {transform_indices = @transform_5, window_bounds = array<i64: 1, 16, 144>}, {transform_indices = @transform_6, window_bounds = array<i64: 1, 16, 1>}, {transform_indices = @transform_7, window_bounds = array<i64: 1, 16, 144>}, {transform_indices = @transform_8, window_bounds = array<i64: 1, 16, 1>}, {pipeline_mode = #tpu.pipeline_mode<synchronous>, transform_indices = @transform_9, window_bounds = array<i64: 16, 1>}, {pipeline_mode = #tpu.pipeline_mode<synchronous>, transform_indices = @transform_10, window_bounds = array<i64: 16, 1>}, {pipeline_mode = #tpu.pipeline_mode<synchronous>, transform_indices = @transform_11, window_bounds = array<i64: 16, 1>}, {pipeline_mode = #tpu.pipeline_mode<synchronous>, transform_indices = @transform_12, window_bounds = array<i64: 16, 16>}, {pipeline_mode = #tpu.pipeline_mode<synchronous>, transform_indices = @transform_13, window_bounds = array<i64: 16, 1>}, {pipeline_mode = #tpu.pipeline_mode<synchronous>, transform_indices = @transform_14, window_bounds = array<i64: 16, 16>}, {pipeline_mode = #tpu.pipeline_mode<synchronous>, transform_indices = @transform_15, window_bounds = array<i64: 16, 1>}, {pipeline_mode = #tpu.pipeline_mode<synchronous>, transform_indices = @transform_16, window_bounds = array<i64: 16, 16>}, {pipeline_mode = #tpu.pipeline_mode<synchronous>, transform_indices = @transform_17, window_bounds = array<i64: 16, 1>}, {pipeline_mode = #tpu.pipeline_mode<synchronous>, transform_indices = @transform_18, window_bounds = array<i64: 16, 16>}, {pipeline_mode = #tpu.pipeline_mode<synchronous>, transform_indices = @transform_19, window_bounds = array<i64: 16, 1>}, {pipeline_mode = #tpu.pipeline_mode<synchronous>, transform_indices = @transform_20, window_bounds = array<i64: 16, 1>}, {pipeline_mode = #tpu.pipeline_mode<synchronous>, transform_indices = @transform_21, window_bounds = array<i64: 16, 1>}, {pipeline_mode = #tpu.pipeline_mode<synchronous>, transform_indices = @transform_22, window_bounds = array<i64: 16, 1>}, {pipeline_mode = #tpu.pipeline_mode<synchronous>, transform_indices = @transform_23, window_bounds = array<i64: 2, 144>}, {pipeline_mode = #tpu.pipeline_mode<synchronous>, transform_indices = @transform_24, window_bounds = array<i64: 2, 1>}, {pipeline_mode = #tpu.pipeline_mode<synchronous>, transform_indices = @transform_25, window_bounds = array<i64: 16, 1>}, {pipeline_mode = #tpu.pipeline_mode<synchronous>, transform_indices = @transform_26, window_bounds = array<i64: 16, 1>}, {pipeline_mode = #tpu.pipeline_mode<synchronous>, transform_indices = @transform_27, window_bounds = array<i64: 8, 144>}, {pipeline_mode = #tpu.pipeline_mode<synchronous>, transform_indices = @transform_28, window_bounds = array<i64: 8, 1>}, {transform_indices = @transform_29, window_bounds = array<i64: 1, 2, 64>}, {transform_indices = @transform_30, window_bounds = array<i64: 1, 8, 64>}]} {
    %0 = tpu.iota {dimensions = array<i32: 1>} : vector<1x64xi32>
    %c8_i32 = arith.constant 8 : i32
    %c0_i32 = arith.constant 0 : i32
    %1 = arith.cmpi eq, %c8_i32, %c0_i32 : i32
    %c1_i32 = arith.constant 1 : i32
    %2 = arith.select %1, %c1_i32, %c8_i32 : i32
    %3 = vector.broadcast %2 : i32 to vector<1x64xi32>
    %4 = arith.remsi %0, %3 : vector<1x64xi32>
    %c0_i32_0 = arith.constant 0 : i32
    %5 = vector.broadcast %c0_i32_0 : i32 to vector<1x64xi32>
    %6 = arith.cmpi ne, %4, %5 : vector<1x64xi32>
    %c0_i32_1 = arith.constant 0 : i32
    %7 = vector.broadcast %c0_i32_1 : i32 to vector<1x64xi32>
    %8 = arith.cmpi slt, %4, %7 : vector<1x64xi32>
    %c0_i32_2 = arith.constant 0 : i32
    %9 = arith.cmpi slt, %2, %c0_i32_2 : i32
    %10 = vector.broadcast %9 : i1 to vector<1x64xi1>
    %11 = vector.broadcast %10 : vector<1x64xi1> to vector<1x64xi1>
    %12 = arith.xori %8, %11 : vector<1x64xi1>
    %13 = arith.andi %12, %6 : vector<1x64xi1>
    %14 = vector.broadcast %2 : i32 to vector<1x64xi32>
    %15 = arith.addi %4, %14 : vector<1x64xi32>
    %16 = arith.select %13, %15, %4 : vector<1x64xi1>, vector<1x64xi32>
    %cst = arith.constant 0.000000e+00 : f32
    %17 = vector.broadcast %cst : f32 to vector<16x128xf32>
    %c0 = arith.constant 0 : index
    %c0_3 = arith.constant 0 : index
    %18 = vector.load %arg32[%c0, %c0_3] : memref<16x320xf32, #tpu.memory_space<vmem>>, vector<16x128xf32>
    tpu.vector_store %arg32[%c0, %c0_3], %17 {strides = array<i32>} : memref<16x320xf32, #tpu.memory_space<vmem>>, vector<16x128xf32>,
    %cst_4 = arith.constant 0.000000e+00 : f32
    %19 = vector.broadcast %cst_4 : f32 to vector<16x128xf32>
    %c0_5 = arith.constant 0 : index
    %c192 = arith.constant 192 : index
    %20 = vector.load %arg32[%c0_5, %c192] : memref<16x320xf32, #tpu.memory_space<vmem>>, vector<16x128xf32>
    tpu.vector_store %arg32[%c0_5, %c192], %19 {strides = array<i32>} : memref<16x320xf32, #tpu.memory_space<vmem>>, vector<16x128xf32>,
    %c0_6 = arith.constant 0 : index
    %c0_7 = arith.constant 0 : index
    %c0_8 = arith.constant 0 : index
    %21 = vector.load %arg1[%c0_6, %c0_7, %c0_8] : memref<1x8x64xf32, #tpu.memory_space<vmem>>, vector<1x8x64xf32>
    %22 = vector.shape_cast %21 : vector<1x8x64xf32> to vector<8x64xf32>
    %c0_9 = arith.constant 0 : index
    %c128 = arith.constant 128 : index
    %23 = vector.load %arg32[%c0_9, %c128] : memref<16x320xf32, #tpu.memory_space<vmem>>, vector<8x64xf32>
    tpu.vector_store %arg32[%c0_9, %c128], %22 {strides = array<i32>} : memref<16x320xf32, #tpu.memory_space<vmem>>, vector<8x64xf32>,
    %c0_10 = arith.constant 0 : index
    %c0_11 = arith.constant 0 : index
    %c0_12 = arith.constant 0 : index
    %24 = vector.load %arg2[%c0_10, %c0_11, %c0_12] : memref<1x16x72xbf16, #tpu.memory_space<vmem>>, vector<1x16x72xbf16>
    %25 = vector.shape_cast %24 : vector<1x16x72xbf16> to vector<16x72xbf16>
    %c0_13 = arith.constant 0 : index
    %c0_14 = arith.constant 0 : index
    %c0_15 = arith.constant 0 : index
    %26 = vector.load %arg3[%c0_13, %c0_14, %c0_15] : memref<1x16x1xf32, #tpu.memory_space<vmem>>, vector<1x16x1xf32>
    %27 = vector.shape_cast %26 : vector<1x16x1xf32> to vector<16x1xf32>
    %c0_16 = arith.constant 0 : index
    %c119 = arith.constant 119 : index
    %28 = vector.load %arg32[%c0_16, %c119] : memref<16x320xf32, #tpu.memory_space<vmem>>, vector<8x64xf32>
    %c-1_i32 = arith.constant -1 : i32
    %29 = vector.broadcast %c-1_i32 : i32 to vector<1x64xi32>
    %30 = arith.addi %16, %29 : vector<1x64xi32>
    %c0_i32_17 = arith.constant 0 : i32
    %31 = vector.broadcast %c0_i32_17 : i32 to vector<1x64xi32>
    %32 = arith.cmpi sge, %30, %31 : vector<1x64xi32>
    %c-1_i32_18 = arith.constant -1 : i32
    %33 = vector.broadcast %c-1_i32_18 : i32 to vector<1x64xi32>
    %34 = arith.addi %16, %33 : vector<1x64xi32>
    %c8_i32_19 = arith.constant 8 : i32
    %35 = vector.broadcast %c8_i32_19 : i32 to vector<1x64xi32>
    %36 = arith.cmpi slt, %34, %35 : vector<1x64xi32>
    %37 = arith.andi %32, %36 : vector<1x64xi1>
    %cst_20 = arith.constant 0.000000e+00 : f32
    %38 = vector.shape_cast %37 : vector<1x64xi1> to vector<1x64xi1>
    %39 = vector.broadcast %38 : vector<1x64xi1> to vector<8x64xi1>
    %40 = vector.broadcast %cst_20 : f32 to vector<8x64xf32>
    %41 = arith.select %39, %28, %40 : vector<8x64xi1>, vector<8x64xf32>
    %c0_21 = arith.constant 0 : index
    %c120 = arith.constant 120 : index
    %42 = vector.load %arg32[%c0_21, %c120] : memref<16x320xf32, #tpu.memory_space<vmem>>, vector<8x64xf32>
    %c0_22 = arith.constant 0 : index
    %c121 = arith.constant 121 : index
    %43 = vector.load %arg32[%c0_22, %c121] : memref<16x320xf32, #tpu.memory_space<vmem>>, vector<8x64xf32>
    %c1_i32_23 = arith.constant 1 : i32
    %44 = vector.broadcast %c1_i32_23 : i32 to vector<1x64xi32>
    %45 = arith.addi %16, %44 : vector<1x64xi32>
    %c0_i32_24 = arith.constant 0 : i32
    %46 = vector.broadcast %c0_i32_24 : i32 to vector<1x64xi32>
    %47 = arith.cmpi sge, %45, %46 : vector<1x64xi32>
    %c1_i32_25 = arith.constant 1 : i32
    %48 = vector.broadcast %c1_i32_25 : i32 to vector<1x64xi32>
    %49 = arith.addi %16, %48 : vector<1x64xi32>
    %c8_i32_26 = arith.constant 8 : i32
    %50 = vector.broadcast %c8_i32_26 : i32 to vector<1x64xi32>
    %51 = arith.cmpi slt, %49, %50 : vector<1x64xi32>
    %52 = arith.andi %47, %51 : vector<1x64xi1>
    %cst_27 = arith.constant 0.000000e+00 : f32
    %53 = vector.shape_cast %52 : vector<1x64xi1> to vector<1x64xi1>
    %54 = vector.broadcast %53 : vector<1x64xi1> to vector<8x64xi1>
    %55 = vector.broadcast %cst_27 : f32 to vector<8x64xf32>
    %56 = arith.select %54, %43, %55 : vector<8x64xi1>, vector<8x64xf32>
    %c0_28 = arith.constant 0 : index
    %c127 = arith.constant 127 : index
    %57 = vector.load %arg32[%c0_28, %c127] : memref<16x320xf32, #tpu.memory_space<vmem>>, vector<8x64xf32>
    %c-1_i32_29 = arith.constant -1 : i32
    %58 = vector.broadcast %c-1_i32_29 : i32 to vector<1x64xi32>
    %59 = arith.addi %16, %58 : vector<1x64xi32>
    %c0_i32_30 = arith.constant 0 : i32
    %60 = vector.broadcast %c0_i32_30 : i32 to vector<1x64xi32>
    %61 = arith.cmpi sge, %59, %60 : vector<1x64xi32>
    %c-1_i32_31 = arith.constant -1 : i32
    %62 = vector.broadcast %c-1_i32_31 : i32 to vector<1x64xi32>
    %63 = arith.addi %16, %62 : vector<1x64xi32>
    %c8_i32_32 = arith.constant 8 : i32
    %64 = vector.broadcast %c8_i32_32 : i32 to vector<1x64xi32>
    %65 = arith.cmpi slt, %63, %64 : vector<1x64xi32>
    %66 = arith.andi %61, %65 : vector<1x64xi1>
    %cst_33 = arith.constant 0.000000e+00 : f32
    %67 = vector.shape_cast %66 : vector<1x64xi1> to vector<1x64xi1>
    %68 = vector.broadcast %67 : vector<1x64xi1> to vector<8x64xi1>
    %69 = vector.broadcast %cst_33 : f32 to vector<8x64xf32>
    %70 = arith.select %68, %57, %69 : vector<8x64xi1>, vector<8x64xf32>
    %c0_34 = arith.constant 0 : index
    %c128_35 = arith.constant 128 : index
    %71 = vector.load %arg32[%c0_34, %c128_35] : memref<16x320xf32, #tpu.memory_space<vmem>>, vector<8x64xf32>
    %c0_36 = arith.constant 0 : index
    %c129 = arith.constant 129 : index
    %72 = vector.load %arg32[%c0_36, %c129] : memref<16x320xf32, #tpu.memory_space<vmem>>, vector<8x64xf32>
    %c1_i32_37 = arith.constant 1 : i32
    %73 = vector.broadcast %c1_i32_37 : i32 to vector<1x64xi32>
    %74 = arith.addi %16, %73 : vector<1x64xi32>
    %c0_i32_38 = arith.constant 0 : i32
    %75 = vector.broadcast %c0_i32_38 : i32 to vector<1x64xi32>
    %76 = arith.cmpi sge, %74, %75 : vector<1x64xi32>
    %c1_i32_39 = arith.constant 1 : i32
    %77 = vector.broadcast %c1_i32_39 : i32 to vector<1x64xi32>
    %78 = arith.addi %16, %77 : vector<1x64xi32>
    %c8_i32_40 = arith.constant 8 : i32
    %79 = vector.broadcast %c8_i32_40 : i32 to vector<1x64xi32>
    %80 = arith.cmpi slt, %78, %79 : vector<1x64xi32>
    %81 = arith.andi %76, %80 : vector<1x64xi1>
    %cst_41 = arith.constant 0.000000e+00 : f32
    %82 = vector.shape_cast %81 : vector<1x64xi1> to vector<1x64xi1>
    %83 = vector.broadcast %82 : vector<1x64xi1> to vector<8x64xi1>
    %84 = vector.broadcast %cst_41 : f32 to vector<8x64xf32>
    %85 = arith.select %83, %72, %84 : vector<8x64xi1>, vector<8x64xf32>
    %c0_42 = arith.constant 0 : index
    %c135 = arith.constant 135 : index
    %86 = vector.load %arg32[%c0_42, %c135] : memref<16x320xf32, #tpu.memory_space<vmem>>, vector<8x64xf32>
    %c-1_i32_43 = arith.constant -1 : i32
    %87 = vector.broadcast %c-1_i32_43 : i32 to vector<1x64xi32>
    %88 = arith.addi %16, %87 : vector<1x64xi32>
    %c0_i32_44 = arith.constant 0 : i32
    %89 = vector.broadcast %c0_i32_44 : i32 to vector<1x64xi32>
    %90 = arith.cmpi sge, %88, %89 : vector<1x64xi32>
    %c-1_i32_45 = arith.constant -1 : i32
    %91 = vector.broadcast %c-1_i32_45 : i32 to vector<1x64xi32>
    %92 = arith.addi %16, %91 : vector<1x64xi32>
    %c8_i32_46 = arith.constant 8 : i32
    %93 = vector.broadcast %c8_i32_46 : i32 to vector<1x64xi32>
    %94 = arith.cmpi slt, %92, %93 : vector<1x64xi32>
    %95 = arith.andi %90, %94 : vector<1x64xi1>
    %cst_47 = arith.constant 0.000000e+00 : f32
    %96 = vector.shape_cast %95 : vector<1x64xi1> to vector<1x64xi1>
    %97 = vector.broadcast %96 : vector<1x64xi1> to vector<8x64xi1>
    %98 = vector.broadcast %cst_47 : f32 to vector<8x64xf32>
    %99 = arith.select %97, %86, %98 : vector<8x64xi1>, vector<8x64xf32>
    %c0_48 = arith.constant 0 : index
    %c136 = arith.constant 136 : index
    %100 = vector.load %arg32[%c0_48, %c136] : memref<16x320xf32, #tpu.memory_space<vmem>>, vector<8x64xf32>
    %c0_49 = arith.constant 0 : index
    %c137 = arith.constant 137 : index
    %101 = vector.load %arg32[%c0_49, %c137] : memref<16x320xf32, #tpu.memory_space<vmem>>, vector<8x64xf32>
    %c1_i32_50 = arith.constant 1 : i32
    %102 = vector.broadcast %c1_i32_50 : i32 to vector<1x64xi32>
    %103 = arith.addi %16, %102 : vector<1x64xi32>
    %c0_i32_51 = arith.constant 0 : i32
    %104 = vector.broadcast %c0_i32_51 : i32 to vector<1x64xi32>
    %105 = arith.cmpi sge, %103, %104 : vector<1x64xi32>
    %c1_i32_52 = arith.constant 1 : i32
    %106 = vector.broadcast %c1_i32_52 : i32 to vector<1x64xi32>
    %107 = arith.addi %16, %106 : vector<1x64xi32>
    %c8_i32_53 = arith.constant 8 : i32
    %108 = vector.broadcast %c8_i32_53 : i32 to vector<1x64xi32>
    %109 = arith.cmpi slt, %107, %108 : vector<1x64xi32>
    %110 = arith.andi %105, %109 : vector<1x64xi1>
    %cst_54 = arith.constant 0.000000e+00 : f32
    %111 = vector.shape_cast %110 : vector<1x64xi1> to vector<1x64xi1>
    %112 = vector.broadcast %111 : vector<1x64xi1> to vector<8x64xi1>
    %113 = vector.broadcast %cst_54 : f32 to vector<8x64xf32>
    %114 = arith.select %112, %101, %113 : vector<8x64xi1>, vector<8x64xf32>
    %115 = tpu.concatenate %41, %42, %56, %70, %71, %85, %99, %100, %114 in 0 : vector<8x64xf32>, vector<8x64xf32>, vector<8x64xf32>, vector<8x64xf32>, vector<8x64xf32>, vector<8x64xf32>, vector<8x64xf32>, vector<8x64xf32>, vector<8x64xf32> -> vector<72x64xf32>
    %116 = arith.truncf %115 : vector<72x64xf32> to vector<72x64xbf16>
    %cst_55 = arith.constant dense<0.000000e+00> : vector<16x64xf32>
    %117 = tpu.matmul %25, %116, %cst_55 {dimension_numbers = #tpu.dot_dimension_numbers<[1], [0], [0], [1], [0, 0, 1, 1], [], []>} : vector<16x72xbf16>, vector<72x64xbf16>, vector<16x64xf32> -> vector<16x64xf32>
    %118 = vector.broadcast %27 : vector<16x1xf32> to vector<16x64xf32>
    %119 = arith.addf %117, %118 : vector<16x64xf32>
    %c0_56 = arith.constant 0 : index
    %c0_57 = arith.constant 0 : index
    %120 = vector.load %arg4[%c0_56, %c0_57] : memref<16x1xf32, #tpu.memory_space<vmem>>, vector<16x1xf32>
    %c0_58 = arith.constant 0 : index
    %c0_59 = arith.constant 0 : index
    %121 = vector.load %arg5[%c0_58, %c0_59] : memref<16x1xf32, #tpu.memory_space<vmem>>, vector<16x1xf32>
    %cst_60 = arith.constant dense<0.000000e+00> : vector<64xf32>
    %122 = vector.multi_reduction <add>, %119, %cst_60 [0] : vector<16x64xf32> to vector<64xf32>
    %123 = vector.shape_cast %122 : vector<64xf32> to vector<1x64xf32>
    %cst_61 = arith.constant 1.600000e+01 : f32
    %124 = vector.broadcast %cst_61 : f32 to vector<1x64xf32>
    %125 = arith.divf %123, %124 : vector<1x64xf32>
    %126 = vector.broadcast %125 : vector<1x64xf32> to vector<16x64xf32>
    %127 = arith.subf %119, %126 : vector<16x64xf32>
    %128 = arith.mulf %127, %127 : vector<16x64xf32>
    %cst_62 = arith.constant dense<0.000000e+00> : vector<64xf32>
    %129 = vector.multi_reduction <add>, %128, %cst_62 [0] : vector<16x64xf32> to vector<64xf32>
    %130 = vector.shape_cast %129 : vector<64xf32> to vector<1x64xf32>
    %cst_63 = arith.constant 1.600000e+01 : f32
    %131 = vector.broadcast %cst_63 : f32 to vector<1x64xf32>
    %132 = arith.divf %130, %131 : vector<1x64xf32>
    %cst_64 = arith.constant 9.99999997E-7 : f32
    %133 = vector.broadcast %cst_64 : f32 to vector<1x64xf32>
    %134 = arith.addf %132, %133 : vector<1x64xf32>
    %135 = math.rsqrt %134 : vector<1x64xf32>
    %136 = vector.broadcast %135 : vector<1x64xf32> to vector<16x64xf32>
    %137 = arith.mulf %127, %136 : vector<16x64xf32>
    %138 = vector.broadcast %120 : vector<16x1xf32> to vector<16x64xf32>
    %139 = arith.mulf %137, %138 : vector<16x64xf32>
    %140 = vector.broadcast %121 : vector<16x1xf32> to vector<16x64xf32>
    %141 = arith.addf %139, %140 : vector<16x64xf32>
    %c0_65 = arith.constant 0 : index
    %c0_66 = arith.constant 0 : index
    %c0_67 = arith.constant 0 : index
    %142 = vector.load %arg6[%c0_65, %c0_66, %c0_67] : memref<1x16x144xbf16, #tpu.memory_space<vmem>>, vector<1x16x144xbf16>
    %143 = vector.shape_cast %142 : vector<1x16x144xbf16> to vector<16x144xbf16>
    %c0_68 = arith.constant 0 : index
    %c0_69 = arith.constant 0 : index
    %c0_70 = arith.constant 0 : index
    %144 = vector.load %arg7[%c0_68, %c0_69, %c0_70] : memref<1x16x1xf32, #tpu.memory_space<vmem>>, vector<1x16x1xf32>
    %145 = vector.shape_cast %144 : vector<1x16x1xf32> to vector<16x1xf32>
    %c0_71 = arith.constant 0 : index
    %c128_72 = arith.constant 128 : index
    %146 = vector.load %arg32[%c0_71, %c128_72] : memref<16x320xf32, #tpu.memory_space<vmem>>, vector<16x64xf32>
    tpu.vector_store %arg32[%c0_71, %c128_72], %141 {strides = array<i32>} : memref<16x320xf32, #tpu.memory_space<vmem>>, vector<16x64xf32>,
    %c0_73 = arith.constant 0 : index
    %c119_74 = arith.constant 119 : index
    %147 = vector.load %arg32[%c0_73, %c119_74] : memref<16x320xf32, #tpu.memory_space<vmem>>, vector<16x64xf32>
    %c-1_i32_75 = arith.constant -1 : i32
    %148 = vector.broadcast %c-1_i32_75 : i32 to vector<1x64xi32>
    %149 = arith.addi %16, %148 : vector<1x64xi32>
    %c0_i32_76 = arith.constant 0 : i32
    %150 = vector.broadcast %c0_i32_76 : i32 to vector<1x64xi32>
    %151 = arith.cmpi sge, %149, %150 : vector<1x64xi32>
    %c-1_i32_77 = arith.constant -1 : i32
    %152 = vector.broadcast %c-1_i32_77 : i32 to vector<1x64xi32>
    %153 = arith.addi %16, %152 : vector<1x64xi32>
    %c8_i32_78 = arith.constant 8 : i32
    %154 = vector.broadcast %c8_i32_78 : i32 to vector<1x64xi32>
    %155 = arith.cmpi slt, %153, %154 : vector<1x64xi32>
    %156 = arith.andi %151, %155 : vector<1x64xi1>
    %cst_79 = arith.constant 0.000000e+00 : f32
    %157 = vector.shape_cast %156 : vector<1x64xi1> to vector<1x64xi1>
    %158 = vector.broadcast %157 : vector<1x64xi1> to vector<16x64xi1>
    %159 = vector.broadcast %cst_79 : f32 to vector<16x64xf32>
    %160 = arith.select %158, %147, %159 : vector<16x64xi1>, vector<16x64xf32>
    %c0_80 = arith.constant 0 : index
    %c120_81 = arith.constant 120 : index
    %161 = vector.load %arg32[%c0_80, %c120_81] : memref<16x320xf32, #tpu.memory_space<vmem>>, vector<16x64xf32>
    %c0_82 = arith.constant 0 : index
    %c121_83 = arith.constant 121 : index
    %162 = vector.load %arg32[%c0_82, %c121_83] : memref<16x320xf32, #tpu.memory_space<vmem>>, vector<16x64xf32>
    %c1_i32_84 = arith.constant 1 : i32
    %163 = vector.broadcast %c1_i32_84 : i32 to vector<1x64xi32>
    %164 = arith.addi %16, %163 : vector<1x64xi32>
    %c0_i32_85 = arith.constant 0 : i32
    %165 = vector.broadcast %c0_i32_85 : i32 to vector<1x64xi32>
    %166 = arith.cmpi sge, %164, %165 : vector<1x64xi32>
    %c1_i32_86 = arith.constant 1 : i32
    %167 = vector.broadcast %c1_i32_86 : i32 to vector<1x64xi32>
    %168 = arith.addi %16, %167 : vector<1x64xi32>
    %c8_i32_87 = arith.constant 8 : i32
    %169 = vector.broadcast %c8_i32_87 : i32 to vector<1x64xi32>
    %170 = arith.cmpi slt, %168, %169 : vector<1x64xi32>
    %171 = arith.andi %166, %170 : vector<1x64xi1>
    %cst_88 = arith.constant 0.000000e+00 : f32
    %172 = vector.shape_cast %171 : vector<1x64xi1> to vector<1x64xi1>
    %173 = vector.broadcast %172 : vector<1x64xi1> to vector<16x64xi1>
    %174 = vector.broadcast %cst_88 : f32 to vector<16x64xf32>
    %175 = arith.select %173, %162, %174 : vector<16x64xi1>, vector<16x64xf32>
    %c0_89 = arith.constant 0 : index
    %c127_90 = arith.constant 127 : index
    %176 = vector.load %arg32[%c0_89, %c127_90] : memref<16x320xf32, #tpu.memory_space<vmem>>, vector<16x64xf32>
    %c-1_i32_91 = arith.constant -1 : i32
    %177 = vector.broadcast %c-1_i32_91 : i32 to vector<1x64xi32>
    %178 = arith.addi %16, %177 : vector<1x64xi32>
    %c0_i32_92 = arith.constant 0 : i32
    %179 = vector.broadcast %c0_i32_92 : i32 to vector<1x64xi32>
    %180 = arith.cmpi sge, %178, %179 : vector<1x64xi32>
    %c-1_i32_93 = arith.constant -1 : i32
    %181 = vector.broadcast %c-1_i32_93 : i32 to vector<1x64xi32>
    %182 = arith.addi %16, %181 : vector<1x64xi32>
    %c8_i32_94 = arith.constant 8 : i32
    %183 = vector.broadcast %c8_i32_94 : i32 to vector<1x64xi32>
    %184 = arith.cmpi slt, %182, %183 : vector<1x64xi32>
    %185 = arith.andi %180, %184 : vector<1x64xi1>
    %cst_95 = arith.constant 0.000000e+00 : f32
    %186 = vector.shape_cast %185 : vector<1x64xi1> to vector<1x64xi1>
    %187 = vector.broadcast %186 : vector<1x64xi1> to vector<16x64xi1>
    %188 = vector.broadcast %cst_95 : f32 to vector<16x64xf32>
    %189 = arith.select %187, %176, %188 : vector<16x64xi1>, vector<16x64xf32>
    %c0_96 = arith.constant 0 : index
    %c128_97 = arith.constant 128 : index
    %190 = vector.load %arg32[%c0_96, %c128_97] : memref<16x320xf32, #tpu.memory_space<vmem>>, vector<16x64xf32>
    %c0_98 = arith.constant 0 : index
    %c129_99 = arith.constant 129 : index
    %191 = vector.load %arg32[%c0_98, %c129_99] : memref<16x320xf32, #tpu.memory_space<vmem>>, vector<16x64xf32>
    %c1_i32_100 = arith.constant 1 : i32
    %192 = vector.broadcast %c1_i32_100 : i32 to vector<1x64xi32>
    %193 = arith.addi %16, %192 : vector<1x64xi32>
    %c0_i32_101 = arith.constant 0 : i32
    %194 = vector.broadcast %c0_i32_101 : i32 to vector<1x64xi32>
    %195 = arith.cmpi sge, %193, %194 : vector<1x64xi32>
    %c1_i32_102 = arith.constant 1 : i32
    %196 = vector.broadcast %c1_i32_102 : i32 to vector<1x64xi32>
    %197 = arith.addi %16, %196 : vector<1x64xi32>
    %c8_i32_103 = arith.constant 8 : i32
    %198 = vector.broadcast %c8_i32_103 : i32 to vector<1x64xi32>
    %199 = arith.cmpi slt, %197, %198 : vector<1x64xi32>
    %200 = arith.andi %195, %199 : vector<1x64xi1>
    %cst_104 = arith.constant 0.000000e+00 : f32
    %201 = vector.shape_cast %200 : vector<1x64xi1> to vector<1x64xi1>
    %202 = vector.broadcast %201 : vector<1x64xi1> to vector<16x64xi1>
    %203 = vector.broadcast %cst_104 : f32 to vector<16x64xf32>
    %204 = arith.select %202, %191, %203 : vector<16x64xi1>, vector<16x64xf32>
    %c0_105 = arith.constant 0 : index
    %c135_106 = arith.constant 135 : index
    %205 = vector.load %arg32[%c0_105, %c135_106] : memref<16x320xf32, #tpu.memory_space<vmem>>, vector<16x64xf32>
    %c-1_i32_107 = arith.constant -1 : i32
    %206 = vector.broadcast %c-1_i32_107 : i32 to vector<1x64xi32>
    %207 = arith.addi %16, %206 : vector<1x64xi32>
    %c0_i32_108 = arith.constant 0 : i32
    %208 = vector.broadcast %c0_i32_108 : i32 to vector<1x64xi32>
    %209 = arith.cmpi sge, %207, %208 : vector<1x64xi32>
    %c-1_i32_109 = arith.constant -1 : i32
    %210 = vector.broadcast %c-1_i32_109 : i32 to vector<1x64xi32>
    %211 = arith.addi %16, %210 : vector<1x64xi32>
    %c8_i32_110 = arith.constant 8 : i32
    %212 = vector.broadcast %c8_i32_110 : i32 to vector<1x64xi32>
    %213 = arith.cmpi slt, %211, %212 : vector<1x64xi32>
    %214 = arith.andi %209, %213 : vector<1x64xi1>
    %cst_111 = arith.constant 0.000000e+00 : f32
    %215 = vector.shape_cast %214 : vector<1x64xi1> to vector<1x64xi1>
    %216 = vector.broadcast %215 : vector<1x64xi1> to vector<16x64xi1>
    %217 = vector.broadcast %cst_111 : f32 to vector<16x64xf32>
    %218 = arith.select %216, %205, %217 : vector<16x64xi1>, vector<16x64xf32>
    %c0_112 = arith.constant 0 : index
    %c136_113 = arith.constant 136 : index
    %219 = vector.load %arg32[%c0_112, %c136_113] : memref<16x320xf32, #tpu.memory_space<vmem>>, vector<16x64xf32>
    %c0_114 = arith.constant 0 : index
    %c137_115 = arith.constant 137 : index
    %220 = vector.load %arg32[%c0_114, %c137_115] : memref<16x320xf32, #tpu.memory_space<vmem>>, vector<16x64xf32>
    %c1_i32_116 = arith.constant 1 : i32
    %221 = vector.broadcast %c1_i32_116 : i32 to vector<1x64xi32>
    %222 = arith.addi %16, %221 : vector<1x64xi32>
    %c0_i32_117 = arith.constant 0 : i32
    %223 = vector.broadcast %c0_i32_117 : i32 to vector<1x64xi32>
    %224 = arith.cmpi sge, %222, %223 : vector<1x64xi32>
    %c1_i32_118 = arith.constant 1 : i32
    %225 = vector.broadcast %c1_i32_118 : i32 to vector<1x64xi32>
    %226 = arith.addi %16, %225 : vector<1x64xi32>
    %c8_i32_119 = arith.constant 8 : i32
    %227 = vector.broadcast %c8_i32_119 : i32 to vector<1x64xi32>
    %228 = arith.cmpi slt, %226, %227 : vector<1x64xi32>
    %229 = arith.andi %224, %228 : vector<1x64xi1>
    %cst_120 = arith.constant 0.000000e+00 : f32
    %230 = vector.shape_cast %229 : vector<1x64xi1> to vector<1x64xi1>
    %231 = vector.broadcast %230 : vector<1x64xi1> to vector<16x64xi1>
    %232 = vector.broadcast %cst_120 : f32 to vector<16x64xf32>
    %233 = arith.select %231, %220, %232 : vector<16x64xi1>, vector<16x64xf32>
    %234 = tpu.concatenate %160, %161, %175, %189, %190, %204, %218, %219, %233 in 0 : vector<16x64xf32>, vector<16x64xf32>, vector<16x64xf32>, vector<16x64xf32>, vector<16x64xf32>, vector<16x64xf32>, vector<16x64xf32>, vector<16x64xf32>, vector<16x64xf32> -> vector<144x64xf32>
    %235 = arith.truncf %234 : vector<144x64xf32> to vector<144x64xbf16>
    %cst_121 = arith.constant dense<0.000000e+00> : vector<16x64xf32>
    %236 = tpu.matmul %143, %235, %cst_121 {dimension_numbers = #tpu.dot_dimension_numbers<[1], [0], [0], [1], [0, 0, 1, 1], [], []>} : vector<16x144xbf16>, vector<144x64xbf16>, vector<16x64xf32> -> vector<16x64xf32>
    %237 = vector.broadcast %145 : vector<16x1xf32> to vector<16x64xf32>
    %238 = arith.addf %236, %237 : vector<16x64xf32>
    %cst_122 = arith.constant 0.000000e+00 : f32
    %239 = vector.broadcast %cst_122 : f32 to vector<16x64xf32>
    %240 = arith.cmpf oge, %238, %239 : vector<16x64xf32>
    %cst_123 = arith.constant 0.00999999977 : f32
    %241 = vector.broadcast %cst_123 : f32 to vector<16x64xf32>
    %242 = arith.mulf %241, %238 : vector<16x64xf32>
    %243 = arith.select %240, %238, %242 : vector<16x64xi1>, vector<16x64xf32>
    %c0_124 = arith.constant 0 : index
    %c0_125 = arith.constant 0 : index
    %c0_126 = arith.constant 0 : index
    %244 = vector.load %arg8[%c0_124, %c0_125, %c0_126] : memref<1x16x144xbf16, #tpu.memory_space<vmem>>, vector<1x16x144xbf16>
    %245 = vector.shape_cast %244 : vector<1x16x144xbf16> to vector<16x144xbf16>
    %c0_127 = arith.constant 0 : index
    %c0_128 = arith.constant 0 : index
    %c0_129 = arith.constant 0 : index
    %246 = vector.load %arg9[%c0_127, %c0_128, %c0_129] : memref<1x16x1xf32, #tpu.memory_space<vmem>>, vector<1x16x1xf32>
    %247 = vector.shape_cast %246 : vector<1x16x1xf32> to vector<16x1xf32>
    %c0_130 = arith.constant 0 : index
    %c128_131 = arith.constant 128 : index
    %248 = vector.load %arg32[%c0_130, %c128_131] : memref<16x320xf32, #tpu.memory_space<vmem>>, vector<16x64xf32>
    tpu.vector_store %arg32[%c0_130, %c128_131], %243 {strides = array<i32>} : memref<16x320xf32, #tpu.memory_space<vmem>>, vector<16x64xf32>,
    %c0_132 = arith.constant 0 : index
    %c119_133 = arith.constant 119 : index
    %249 = vector.load %arg32[%c0_132, %c119_133] : memref<16x320xf32, #tpu.memory_space<vmem>>, vector<16x64xf32>
    %c-1_i32_134 = arith.constant -1 : i32
    %250 = vector.broadcast %c-1_i32_134 : i32 to vector<1x64xi32>
    %251 = arith.addi %16, %250 : vector<1x64xi32>
    %c0_i32_135 = arith.constant 0 : i32
    %252 = vector.broadcast %c0_i32_135 : i32 to vector<1x64xi32>
    %253 = arith.cmpi sge, %251, %252 : vector<1x64xi32>
    %c-1_i32_136 = arith.constant -1 : i32
    %254 = vector.broadcast %c-1_i32_136 : i32 to vector<1x64xi32>
    %255 = arith.addi %16, %254 : vector<1x64xi32>
    %c8_i32_137 = arith.constant 8 : i32
    %256 = vector.broadcast %c8_i32_137 : i32 to vector<1x64xi32>
    %257 = arith.cmpi slt, %255, %256 : vector<1x64xi32>
    %258 = arith.andi %253, %257 : vector<1x64xi1>
    %cst_138 = arith.constant 0.000000e+00 : f32
    %259 = vector.shape_cast %258 : vector<1x64xi1> to vector<1x64xi1>
    %260 = vector.broadcast %259 : vector<1x64xi1> to vector<16x64xi1>
    %261 = vector.broadcast %cst_138 : f32 to vector<16x64xf32>
    %262 = arith.select %260, %249, %261 : vector<16x64xi1>, vector<16x64xf32>
    %c0_139 = arith.constant 0 : index
    %c120_140 = arith.constant 120 : index
    %263 = vector.load %arg32[%c0_139, %c120_140] : memref<16x320xf32, #tpu.memory_space<vmem>>, vector<16x64xf32>
    %c0_141 = arith.constant 0 : index
    %c121_142 = arith.constant 121 : index
    %264 = vector.load %arg32[%c0_141, %c121_142] : memref<16x320xf32, #tpu.memory_space<vmem>>, vector<16x64xf32>
    %c1_i32_143 = arith.constant 1 : i32
    %265 = vector.broadcast %c1_i32_143 : i32 to vector<1x64xi32>
    %266 = arith.addi %16, %265 : vector<1x64xi32>
    %c0_i32_144 = arith.constant 0 : i32
    %267 = vector.broadcast %c0_i32_144 : i32 to vector<1x64xi32>
    %268 = arith.cmpi sge, %266, %267 : vector<1x64xi32>
    %c1_i32_145 = arith.constant 1 : i32
    %269 = vector.broadcast %c1_i32_145 : i32 to vector<1x64xi32>
    %270 = arith.addi %16, %269 : vector<1x64xi32>
    %c8_i32_146 = arith.constant 8 : i32
    %271 = vector.broadcast %c8_i32_146 : i32 to vector<1x64xi32>
    %272 = arith.cmpi slt, %270, %271 : vector<1x64xi32>
    %273 = arith.andi %268, %272 : vector<1x64xi1>
    %cst_147 = arith.constant 0.000000e+00 : f32
    %274 = vector.shape_cast %273 : vector<1x64xi1> to vector<1x64xi1>
    %275 = vector.broadcast %274 : vector<1x64xi1> to vector<16x64xi1>
    %276 = vector.broadcast %cst_147 : f32 to vector<16x64xf32>
    %277 = arith.select %275, %264, %276 : vector<16x64xi1>, vector<16x64xf32>
    %c0_148 = arith.constant 0 : index
    %c127_149 = arith.constant 127 : index
    %278 = vector.load %arg32[%c0_148, %c127_149] : memref<16x320xf32, #tpu.memory_space<vmem>>, vector<16x64xf32>
    %c-1_i32_150 = arith.constant -1 : i32
    %279 = vector.broadcast %c-1_i32_150 : i32 to vector<1x64xi32>
    %280 = arith.addi %16, %279 : vector<1x64xi32>
    %c0_i32_151 = arith.constant 0 : i32
    %281 = vector.broadcast %c0_i32_151 : i32 to vector<1x64xi32>
    %282 = arith.cmpi sge, %280, %281 : vector<1x64xi32>
    %c-1_i32_152 = arith.constant -1 : i32
    %283 = vector.broadcast %c-1_i32_152 : i32 to vector<1x64xi32>
    %284 = arith.addi %16, %283 : vector<1x64xi32>
    %c8_i32_153 = arith.constant 8 : i32
    %285 = vector.broadcast %c8_i32_153 : i32 to vector<1x64xi32>
    %286 = arith.cmpi slt, %284, %285 : vector<1x64xi32>
    %287 = arith.andi %282, %286 : vector<1x64xi1>
    %cst_154 = arith.constant 0.000000e+00 : f32
    %288 = vector.shape_cast %287 : vector<1x64xi1> to vector<1x64xi1>
    %289 = vector.broadcast %288 : vector<1x64xi1> to vector<16x64xi1>
    %290 = vector.broadcast %cst_154 : f32 to vector<16x64xf32>
    %291 = arith.select %289, %278, %290 : vector<16x64xi1>, vector<16x64xf32>
    %c0_155 = arith.constant 0 : index
    %c128_156 = arith.constant 128 : index
    %292 = vector.load %arg32[%c0_155, %c128_156] : memref<16x320xf32, #tpu.memory_space<vmem>>, vector<16x64xf32>
    %c0_157 = arith.constant 0 : index
    %c129_158 = arith.constant 129 : index
    %293 = vector.load %arg32[%c0_157, %c129_158] : memref<16x320xf32, #tpu.memory_space<vmem>>, vector<16x64xf32>
    %c1_i32_159 = arith.constant 1 : i32
    %294 = vector.broadcast %c1_i32_159 : i32 to vector<1x64xi32>
    %295 = arith.addi %16, %294 : vector<1x64xi32>
    %c0_i32_160 = arith.constant 0 : i32
    %296 = vector.broadcast %c0_i32_160 : i32 to vector<1x64xi32>
    %297 = arith.cmpi sge, %295, %296 : vector<1x64xi32>
    %c1_i32_161 = arith.constant 1 : i32
    %298 = vector.broadcast %c1_i32_161 : i32 to vector<1x64xi32>
    %299 = arith.addi %16, %298 : vector<1x64xi32>
    %c8_i32_162 = arith.constant 8 : i32
    %300 = vector.broadcast %c8_i32_162 : i32 to vector<1x64xi32>
    %301 = arith.cmpi slt, %299, %300 : vector<1x64xi32>
    %302 = arith.andi %297, %301 : vector<1x64xi1>
    %cst_163 = arith.constant 0.000000e+00 : f32
    %303 = vector.shape_cast %302 : vector<1x64xi1> to vector<1x64xi1>
    %304 = vector.broadcast %303 : vector<1x64xi1> to vector<16x64xi1>
    %305 = vector.broadcast %cst_163 : f32 to vector<16x64xf32>
    %306 = arith.select %304, %293, %305 : vector<16x64xi1>, vector<16x64xf32>
    %c0_164 = arith.constant 0 : index
    %c135_165 = arith.constant 135 : index
    %307 = vector.load %arg32[%c0_164, %c135_165] : memref<16x320xf32, #tpu.memory_space<vmem>>, vector<16x64xf32>
    %c-1_i32_166 = arith.constant -1 : i32
    %308 = vector.broadcast %c-1_i32_166 : i32 to vector<1x64xi32>
    %309 = arith.addi %16, %308 : vector<1x64xi32>
    %c0_i32_167 = arith.constant 0 : i32
    %310 = vector.broadcast %c0_i32_167 : i32 to vector<1x64xi32>
    %311 = arith.cmpi sge, %309, %310 : vector<1x64xi32>
    %c-1_i32_168 = arith.constant -1 : i32
    %312 = vector.broadcast %c-1_i32_168 : i32 to vector<1x64xi32>
    %313 = arith.addi %16, %312 : vector<1x64xi32>
    %c8_i32_169 = arith.constant 8 : i32
    %314 = vector.broadcast %c8_i32_169 : i32 to vector<1x64xi32>
    %315 = arith.cmpi slt, %313, %314 : vector<1x64xi32>
    %316 = arith.andi %311, %315 : vector<1x64xi1>
    %cst_170 = arith.constant 0.000000e+00 : f32
    %317 = vector.shape_cast %316 : vector<1x64xi1> to vector<1x64xi1>
    %318 = vector.broadcast %317 : vector<1x64xi1> to vector<16x64xi1>
    %319 = vector.broadcast %cst_170 : f32 to vector<16x64xf32>
    %320 = arith.select %318, %307, %319 : vector<16x64xi1>, vector<16x64xf32>
    %c0_171 = arith.constant 0 : index
    %c136_172 = arith.constant 136 : index
    %321 = vector.load %arg32[%c0_171, %c136_172] : memref<16x320xf32, #tpu.memory_space<vmem>>, vector<16x64xf32>
    %c0_173 = arith.constant 0 : index
    %c137_174 = arith.constant 137 : index
    %322 = vector.load %arg32[%c0_173, %c137_174] : memref<16x320xf32, #tpu.memory_space<vmem>>, vector<16x64xf32>
    %c1_i32_175 = arith.constant 1 : i32
    %323 = vector.broadcast %c1_i32_175 : i32 to vector<1x64xi32>
    %324 = arith.addi %16, %323 : vector<1x64xi32>
    %c0_i32_176 = arith.constant 0 : i32
    %325 = vector.broadcast %c0_i32_176 : i32 to vector<1x64xi32>
    %326 = arith.cmpi sge, %324, %325 : vector<1x64xi32>
    %c1_i32_177 = arith.constant 1 : i32
    %327 = vector.broadcast %c1_i32_177 : i32 to vector<1x64xi32>
    %328 = arith.addi %16, %327 : vector<1x64xi32>
    %c8_i32_178 = arith.constant 8 : i32
    %329 = vector.broadcast %c8_i32_178 : i32 to vector<1x64xi32>
    %330 = arith.cmpi slt, %328, %329 : vector<1x64xi32>
    %331 = arith.andi %326, %330 : vector<1x64xi1>
    %cst_179 = arith.constant 0.000000e+00 : f32
    %332 = vector.shape_cast %331 : vector<1x64xi1> to vector<1x64xi1>
    %333 = vector.broadcast %332 : vector<1x64xi1> to vector<16x64xi1>
    %334 = vector.broadcast %cst_179 : f32 to vector<16x64xf32>
    %335 = arith.select %333, %322, %334 : vector<16x64xi1>, vector<16x64xf32>
    %336 = tpu.concatenate %262, %263, %277, %291, %292, %306, %320, %321, %335 in 0 : vector<16x64xf32>, vector<16x64xf32>, vector<16x64xf32>, vector<16x64xf32>, vector<16x64xf32>, vector<16x64xf32>, vector<16x64xf32>, vector<16x64xf32>, vector<16x64xf32> -> vector<144x64xf32>
    %337 = arith.truncf %336 : vector<144x64xf32> to vector<144x64xbf16>
    %cst_180 = arith.constant dense<0.000000e+00> : vector<16x64xf32>
    %338 = tpu.matmul %245, %337, %cst_180 {dimension_numbers = #tpu.dot_dimension_numbers<[1], [0], [0], [1], [0, 0, 1, 1], [], []>} : vector<16x144xbf16>, vector<144x64xbf16>, vector<16x64xf32> -> vector<16x64xf32>
    %339 = vector.broadcast %247 : vector<16x1xf32> to vector<16x64xf32>
    %340 = arith.addf %338, %339 : vector<16x64xf32>
    %c0_181 = arith.constant 0 : index
    %c0_182 = arith.constant 0 : index
    %341 = vector.load %arg10[%c0_181, %c0_182] : memref<16x1xf32, #tpu.memory_space<vmem>>, vector<16x1xf32>
    %342 = vector.broadcast %341 : vector<16x1xf32> to vector<16x64xf32>
    %343 = arith.mulf %342, %340 : vector<16x64xf32>
    %344 = arith.addf %119, %343 : vector<16x64xf32>
    %c0_183 = arith.constant 0 : index
    %c0_184 = arith.constant 0 : index
    %345 = vector.load %arg11[%c0_183, %c0_184] : memref<16x1xf32, #tpu.memory_space<vmem>>, vector<16x1xf32>
    %c0_185 = arith.constant 0 : index
    %c0_186 = arith.constant 0 : index
    %346 = vector.load %arg12[%c0_185, %c0_186] : memref<16x1xf32, #tpu.memory_space<vmem>>, vector<16x1xf32>
    %cst_187 = arith.constant dense<0.000000e+00> : vector<64xf32>
    %347 = vector.multi_reduction <add>, %344, %cst_187 [0] : vector<16x64xf32> to vector<64xf32>
    %348 = vector.shape_cast %347 : vector<64xf32> to vector<1x64xf32>
    %cst_188 = arith.constant 1.600000e+01 : f32
    %349 = vector.broadcast %cst_188 : f32 to vector<1x64xf32>
    %350 = arith.divf %348, %349 : vector<1x64xf32>
    %351 = vector.broadcast %350 : vector<1x64xf32> to vector<16x64xf32>
    %352 = arith.subf %344, %351 : vector<16x64xf32>
    %353 = arith.mulf %352, %352 : vector<16x64xf32>
    %cst_189 = arith.constant dense<0.000000e+00> : vector<64xf32>
    %354 = vector.multi_reduction <add>, %353, %cst_189 [0] : vector<16x64xf32> to vector<64xf32>
    %355 = vector.shape_cast %354 : vector<64xf32> to vector<1x64xf32>
    %cst_190 = arith.constant 1.600000e+01 : f32
    %356 = vector.broadcast %cst_190 : f32 to vector<1x64xf32>
    %357 = arith.divf %355, %356 : vector<1x64xf32>
    %cst_191 = arith.constant 9.99999997E-7 : f32
    %358 = vector.broadcast %cst_191 : f32 to vector<1x64xf32>
    %359 = arith.addf %357, %358 : vector<1x64xf32>
    %360 = math.rsqrt %359 : vector<1x64xf32>
    %361 = vector.broadcast %360 : vector<1x64xf32> to vector<16x64xf32>
    %362 = arith.mulf %352, %361 : vector<16x64xf32>
    %363 = vector.broadcast %345 : vector<16x1xf32> to vector<16x64xf32>
    %364 = arith.mulf %362, %363 : vector<16x64xf32>
    %365 = vector.broadcast %346 : vector<16x1xf32> to vector<16x64xf32>
    %366 = arith.addf %364, %365 : vector<16x64xf32>
    %c0_192 = arith.constant 0 : index
    %c0_193 = arith.constant 0 : index
    %367 = vector.load %arg13[%c0_192, %c0_193] : memref<16x16xf32, #tpu.memory_space<vmem>>, vector<16x16xf32>
    %c0_194 = arith.constant 0 : index
    %c0_195 = arith.constant 0 : index
    %368 = vector.load %arg14[%c0_194, %c0_195] : memref<16x1xf32, #tpu.memory_space<vmem>>, vector<16x1xf32>
    %369 = arith.truncf %367 : vector<16x16xf32> to vector<16x16xbf16>
    %370 = arith.truncf %366 : vector<16x64xf32> to vector<16x64xbf16>
    %cst_196 = arith.constant dense<0.000000e+00> : vector<16x64xf32>
    %371 = tpu.matmul %369, %370, %cst_196 {dimension_numbers = #tpu.dot_dimension_numbers<[1], [0], [0], [1], [0, 0, 1, 1], [], []>} : vector<16x16xbf16>, vector<16x64xbf16>, vector<16x64xf32> -> vector<16x64xf32>
    %372 = vector.broadcast %368 : vector<16x1xf32> to vector<16x64xf32>
    %373 = arith.addf %371, %372 : vector<16x64xf32>
    %c0_197 = arith.constant 0 : index
    %c0_198 = arith.constant 0 : index
    %374 = vector.load %arg15[%c0_197, %c0_198] : memref<16x16xf32, #tpu.memory_space<vmem>>, vector<16x16xf32>
    %c0_199 = arith.constant 0 : index
    %c0_200 = arith.constant 0 : index
    %375 = vector.load %arg16[%c0_199, %c0_200] : memref<16x1xf32, #tpu.memory_space<vmem>>, vector<16x1xf32>
    %376 = arith.truncf %374 : vector<16x16xf32> to vector<16x16xbf16>
    %377 = arith.truncf %366 : vector<16x64xf32> to vector<16x64xbf16>
    %cst_201 = arith.constant dense<0.000000e+00> : vector<16x64xf32>
    %378 = tpu.matmul %376, %377, %cst_201 {dimension_numbers = #tpu.dot_dimension_numbers<[1], [0], [0], [1], [0, 0, 1, 1], [], []>} : vector<16x16xbf16>, vector<16x64xbf16>, vector<16x64xf32> -> vector<16x64xf32>
    %379 = vector.broadcast %375 : vector<16x1xf32> to vector<16x64xf32>
    %380 = arith.addf %378, %379 : vector<16x64xf32>
    %c0_202 = arith.constant 0 : index
    %c0_203 = arith.constant 0 : index
    %381 = vector.load %arg17[%c0_202, %c0_203] : memref<16x16xf32, #tpu.memory_space<vmem>>, vector<16x16xf32>
    %c0_204 = arith.constant 0 : index
    %c0_205 = arith.constant 0 : index
    %382 = vector.load %arg18[%c0_204, %c0_205] : memref<16x1xf32, #tpu.memory_space<vmem>>, vector<16x1xf32>
    %383 = arith.truncf %381 : vector<16x16xf32> to vector<16x16xbf16>
    %384 = arith.truncf %366 : vector<16x64xf32> to vector<16x64xbf16>
    %cst_206 = arith.constant dense<0.000000e+00> : vector<16x64xf32>
    %385 = tpu.matmul %383, %384, %cst_206 {dimension_numbers = #tpu.dot_dimension_numbers<[1], [0], [0], [1], [0, 0, 1, 1], [], []>} : vector<16x16xbf16>, vector<16x64xbf16>, vector<16x64xf32> -> vector<16x64xf32>
    %386 = vector.broadcast %382 : vector<16x1xf32> to vector<16x64xf32>
    %387 = arith.addf %385, %386 : vector<16x64xf32>
    %388 = arith.truncf %373 : vector<16x64xf32> to vector<16x64xbf16>
    %389 = arith.truncf %380 : vector<16x64xf32> to vector<16x64xbf16>
    %cst_207 = arith.constant dense<0.000000e+00> : vector<64x64xf32>
    %390 = tpu.matmul %388, %389, %cst_207 {dimension_numbers = #tpu.dot_dimension_numbers<[0], [0], [1], [1], [0, 1, 1, 1], [], []>} : vector<16x64xbf16>, vector<16x64xbf16>, vector<64x64xf32> -> vector<64x64xf32>
    %cst_208 = arith.constant 2.500000e-01 : f32
    %391 = vector.broadcast %cst_208 : f32 to vector<64x64xf32>
    %392 = arith.mulf %390, %391 : vector<64x64xf32>
    %cst_209 = arith.constant dense<0xFF800000> : vector<64xf32>
    %393 = vector.multi_reduction <maximumf>, %392, %cst_209 [1] : vector<64x64xf32> to vector<64xf32>
    %394 = vector.shape_cast %393 : vector<64xf32> to vector<64x1xf32>
    %395 = vector.broadcast %394 : vector<64x1xf32> to vector<64x64xf32>
    %396 = arith.subf %392, %395 : vector<64x64xf32>
    %397 = math.exp %396 : vector<64x64xf32>
    %cst_210 = arith.constant dense<0.000000e+00> : vector<64xf32>
    %398 = vector.multi_reduction <add>, %397, %cst_210 [1] : vector<64x64xf32> to vector<64xf32>
    %399 = vector.shape_cast %398 : vector<64xf32> to vector<64x1xf32>
    %400 = vector.broadcast %399 : vector<64x1xf32> to vector<64x64xf32>
    %401 = arith.divf %397, %400 : vector<64x64xf32>
    %cst_211 = arith.constant dense<0.000000e+00> : vector<16x64xf32>
    %402 = tpu.matmul %387, %401, %cst_211 {dimension_numbers = #tpu.dot_dimension_numbers<[1], [1], [0], [0], [0, 0, 1, 0], [], []>} : vector<16x64xf32>, vector<64x64xf32>, vector<16x64xf32> -> vector<16x64xf32>
    %c0_212 = arith.constant 0 : index
    %c0_213 = arith.constant 0 : index
    %403 = vector.load %arg19[%c0_212, %c0_213] : memref<16x16xf32, #tpu.memory_space<vmem>>, vector<16x16xf32>
    %c0_214 = arith.constant 0 : index
    %c0_215 = arith.constant 0 : index
    %404 = vector.load %arg20[%c0_214, %c0_215] : memref<16x1xf32, #tpu.memory_space<vmem>>, vector<16x1xf32>
    %405 = arith.truncf %403 : vector<16x16xf32> to vector<16x16xbf16>
    %406 = arith.truncf %402 : vector<16x64xf32> to vector<16x64xbf16>
    %cst_216 = arith.constant dense<0.000000e+00> : vector<16x64xf32>
    %407 = tpu.matmul %405, %406, %cst_216 {dimension_numbers = #tpu.dot_dimension_numbers<[1], [0], [0], [1], [0, 0, 1, 1], [], []>} : vector<16x16xbf16>, vector<16x64xbf16>, vector<16x64xf32> -> vector<16x64xf32>
    %408 = vector.broadcast %404 : vector<16x1xf32> to vector<16x64xf32>
    %409 = arith.addf %407, %408 : vector<16x64xf32>
    %c0_217 = arith.constant 0 : index
    %c0_218 = arith.constant 0 : index
    %410 = vector.load %arg21[%c0_217, %c0_218] : memref<16x1xf32, #tpu.memory_space<vmem>>, vector<16x1xf32>
    %411 = vector.broadcast %410 : vector<16x1xf32> to vector<16x64xf32>
    %412 = arith.mulf %411, %409 : vector<16x64xf32>
    %413 = arith.addf %344, %412 : vector<16x64xf32>
    %c0_219 = arith.constant 0 : index
    %c0_220 = arith.constant 0 : index
    %414 = vector.load %arg22[%c0_219, %c0_220] : memref<16x1xf32, #tpu.memory_space<vmem>>, vector<16x1xf32>
    %c0_221 = arith.constant 0 : index
    %c0_222 = arith.constant 0 : index
    %415 = vector.load %arg23[%c0_221, %c0_222] : memref<16x1xf32, #tpu.memory_space<vmem>>, vector<16x1xf32>
    %cst_223 = arith.constant dense<0.000000e+00> : vector<64xf32>
    %416 = vector.multi_reduction <add>, %413, %cst_223 [0] : vector<16x64xf32> to vector<64xf32>
    %417 = vector.shape_cast %416 : vector<64xf32> to vector<1x64xf32>
    %cst_224 = arith.constant 1.600000e+01 : f32
    %418 = vector.broadcast %cst_224 : f32 to vector<1x64xf32>
    %419 = arith.divf %417, %418 : vector<1x64xf32>
    %420 = vector.broadcast %419 : vector<1x64xf32> to vector<16x64xf32>
    %421 = arith.subf %413, %420 : vector<16x64xf32>
    %422 = arith.mulf %421, %421 : vector<16x64xf32>
    %cst_225 = arith.constant dense<0.000000e+00> : vector<64xf32>
    %423 = vector.multi_reduction <add>, %422, %cst_225 [0] : vector<16x64xf32> to vector<64xf32>
    %424 = vector.shape_cast %423 : vector<64xf32> to vector<1x64xf32>
    %cst_226 = arith.constant 1.600000e+01 : f32
    %425 = vector.broadcast %cst_226 : f32 to vector<1x64xf32>
    %426 = arith.divf %424, %425 : vector<1x64xf32>
    %cst_227 = arith.constant 9.99999997E-7 : f32
    %427 = vector.broadcast %cst_227 : f32 to vector<1x64xf32>
    %428 = arith.addf %426, %427 : vector<1x64xf32>
    %429 = math.rsqrt %428 : vector<1x64xf32>
    %430 = vector.broadcast %429 : vector<1x64xf32> to vector<16x64xf32>
    %431 = arith.mulf %421, %430 : vector<16x64xf32>
    %432 = vector.broadcast %414 : vector<16x1xf32> to vector<16x64xf32>
    %433 = arith.mulf %431, %432 : vector<16x64xf32>
    %434 = vector.broadcast %415 : vector<16x1xf32> to vector<16x64xf32>
    %435 = arith.addf %433, %434 : vector<16x64xf32>
    %c0_228 = arith.constant 0 : index
    %c0_229 = arith.constant 0 : index
    %436 = vector.load %arg24[%c0_228, %c0_229] : memref<2x144xf32, #tpu.memory_space<vmem>>, vector<2x144xf32>
    %437 = arith.truncf %436 : vector<2x144xf32> to vector<2x144xbf16>
    %c0_230 = arith.constant 0 : index
    %c0_231 = arith.constant 0 : index
    %438 = vector.load %arg25[%c0_230, %c0_231] : memref<2x1xf32, #tpu.memory_space<vmem>>, vector<2x1xf32>
    %c0_232 = arith.constant 0 : index
    %c128_233 = arith.constant 128 : index
    %439 = vector.load %arg32[%c0_232, %c128_233] : memref<16x320xf32, #tpu.memory_space<vmem>>, vector<16x64xf32>
    tpu.vector_store %arg32[%c0_232, %c128_233], %435 {strides = array<i32>} : memref<16x320xf32, #tpu.memory_space<vmem>>, vector<16x64xf32>,
    %c0_234 = arith.constant 0 : index
    %c119_235 = arith.constant 119 : index
    %440 = vector.load %arg32[%c0_234, %c119_235] : memref<16x320xf32, #tpu.memory_space<vmem>>, vector<16x64xf32>
    %c-1_i32_236 = arith.constant -1 : i32
    %441 = vector.broadcast %c-1_i32_236 : i32 to vector<1x64xi32>
    %442 = arith.addi %16, %441 : vector<1x64xi32>
    %c0_i32_237 = arith.constant 0 : i32
    %443 = vector.broadcast %c0_i32_237 : i32 to vector<1x64xi32>
    %444 = arith.cmpi sge, %442, %443 : vector<1x64xi32>
    %c-1_i32_238 = arith.constant -1 : i32
    %445 = vector.broadcast %c-1_i32_238 : i32 to vector<1x64xi32>
    %446 = arith.addi %16, %445 : vector<1x64xi32>
    %c8_i32_239 = arith.constant 8 : i32
    %447 = vector.broadcast %c8_i32_239 : i32 to vector<1x64xi32>
    %448 = arith.cmpi slt, %446, %447 : vector<1x64xi32>
    %449 = arith.andi %444, %448 : vector<1x64xi1>
    %cst_240 = arith.constant 0.000000e+00 : f32
    %450 = vector.shape_cast %449 : vector<1x64xi1> to vector<1x64xi1>
    %451 = vector.broadcast %450 : vector<1x64xi1> to vector<16x64xi1>
    %452 = vector.broadcast %cst_240 : f32 to vector<16x64xf32>
    %453 = arith.select %451, %440, %452 : vector<16x64xi1>, vector<16x64xf32>
    %c0_241 = arith.constant 0 : index
    %c120_242 = arith.constant 120 : index
    %454 = vector.load %arg32[%c0_241, %c120_242] : memref<16x320xf32, #tpu.memory_space<vmem>>, vector<16x64xf32>
    %c0_243 = arith.constant 0 : index
    %c121_244 = arith.constant 121 : index
    %455 = vector.load %arg32[%c0_243, %c121_244] : memref<16x320xf32, #tpu.memory_space<vmem>>, vector<16x64xf32>
    %c1_i32_245 = arith.constant 1 : i32
    %456 = vector.broadcast %c1_i32_245 : i32 to vector<1x64xi32>
    %457 = arith.addi %16, %456 : vector<1x64xi32>
    %c0_i32_246 = arith.constant 0 : i32
    %458 = vector.broadcast %c0_i32_246 : i32 to vector<1x64xi32>
    %459 = arith.cmpi sge, %457, %458 : vector<1x64xi32>
    %c1_i32_247 = arith.constant 1 : i32
    %460 = vector.broadcast %c1_i32_247 : i32 to vector<1x64xi32>
    %461 = arith.addi %16, %460 : vector<1x64xi32>
    %c8_i32_248 = arith.constant 8 : i32
    %462 = vector.broadcast %c8_i32_248 : i32 to vector<1x64xi32>
    %463 = arith.cmpi slt, %461, %462 : vector<1x64xi32>
    %464 = arith.andi %459, %463 : vector<1x64xi1>
    %cst_249 = arith.constant 0.000000e+00 : f32
    %465 = vector.shape_cast %464 : vector<1x64xi1> to vector<1x64xi1>
    %466 = vector.broadcast %465 : vector<1x64xi1> to vector<16x64xi1>
    %467 = vector.broadcast %cst_249 : f32 to vector<16x64xf32>
    %468 = arith.select %466, %455, %467 : vector<16x64xi1>, vector<16x64xf32>
    %c0_250 = arith.constant 0 : index
    %c127_251 = arith.constant 127 : index
    %469 = vector.load %arg32[%c0_250, %c127_251] : memref<16x320xf32, #tpu.memory_space<vmem>>, vector<16x64xf32>
    %c-1_i32_252 = arith.constant -1 : i32
    %470 = vector.broadcast %c-1_i32_252 : i32 to vector<1x64xi32>
    %471 = arith.addi %16, %470 : vector<1x64xi32>
    %c0_i32_253 = arith.constant 0 : i32
    %472 = vector.broadcast %c0_i32_253 : i32 to vector<1x64xi32>
    %473 = arith.cmpi sge, %471, %472 : vector<1x64xi32>
    %c-1_i32_254 = arith.constant -1 : i32
    %474 = vector.broadcast %c-1_i32_254 : i32 to vector<1x64xi32>
    %475 = arith.addi %16, %474 : vector<1x64xi32>
    %c8_i32_255 = arith.constant 8 : i32
    %476 = vector.broadcast %c8_i32_255 : i32 to vector<1x64xi32>
    %477 = arith.cmpi slt, %475, %476 : vector<1x64xi32>
    %478 = arith.andi %473, %477 : vector<1x64xi1>
    %cst_256 = arith.constant 0.000000e+00 : f32
    %479 = vector.shape_cast %478 : vector<1x64xi1> to vector<1x64xi1>
    %480 = vector.broadcast %479 : vector<1x64xi1> to vector<16x64xi1>
    %481 = vector.broadcast %cst_256 : f32 to vector<16x64xf32>
    %482 = arith.select %480, %469, %481 : vector<16x64xi1>, vector<16x64xf32>
    %c0_257 = arith.constant 0 : index
    %c128_258 = arith.constant 128 : index
    %483 = vector.load %arg32[%c0_257, %c128_258] : memref<16x320xf32, #tpu.memory_space<vmem>>, vector<16x64xf32>
    %c0_259 = arith.constant 0 : index
    %c129_260 = arith.constant 129 : index
    %484 = vector.load %arg32[%c0_259, %c129_260] : memref<16x320xf32, #tpu.memory_space<vmem>>, vector<16x64xf32>
    %c1_i32_261 = arith.constant 1 : i32
    %485 = vector.broadcast %c1_i32_261 : i32 to vector<1x64xi32>
    %486 = arith.addi %16, %485 : vector<1x64xi32>
    %c0_i32_262 = arith.constant 0 : i32
    %487 = vector.broadcast %c0_i32_262 : i32 to vector<1x64xi32>
    %488 = arith.cmpi sge, %486, %487 : vector<1x64xi32>
    %c1_i32_263 = arith.constant 1 : i32
    %489 = vector.broadcast %c1_i32_263 : i32 to vector<1x64xi32>
    %490 = arith.addi %16, %489 : vector<1x64xi32>
    %c8_i32_264 = arith.constant 8 : i32
    %491 = vector.broadcast %c8_i32_264 : i32 to vector<1x64xi32>
    %492 = arith.cmpi slt, %490, %491 : vector<1x64xi32>
    %493 = arith.andi %488, %492 : vector<1x64xi1>
    %cst_265 = arith.constant 0.000000e+00 : f32
    %494 = vector.shape_cast %493 : vector<1x64xi1> to vector<1x64xi1>
    %495 = vector.broadcast %494 : vector<1x64xi1> to vector<16x64xi1>
    %496 = vector.broadcast %cst_265 : f32 to vector<16x64xf32>
    %497 = arith.select %495, %484, %496 : vector<16x64xi1>, vector<16x64xf32>
    %c0_266 = arith.constant 0 : index
    %c135_267 = arith.constant 135 : index
    %498 = vector.load %arg32[%c0_266, %c135_267] : memref<16x320xf32, #tpu.memory_space<vmem>>, vector<16x64xf32>
    %c-1_i32_268 = arith.constant -1 : i32
    %499 = vector.broadcast %c-1_i32_268 : i32 to vector<1x64xi32>
    %500 = arith.addi %16, %499 : vector<1x64xi32>
    %c0_i32_269 = arith.constant 0 : i32
    %501 = vector.broadcast %c0_i32_269 : i32 to vector<1x64xi32>
    %502 = arith.cmpi sge, %500, %501 : vector<1x64xi32>
    %c-1_i32_270 = arith.constant -1 : i32
    %503 = vector.broadcast %c-1_i32_270 : i32 to vector<1x64xi32>
    %504 = arith.addi %16, %503 : vector<1x64xi32>
    %c8_i32_271 = arith.constant 8 : i32
    %505 = vector.broadcast %c8_i32_271 : i32 to vector<1x64xi32>
    %506 = arith.cmpi slt, %504, %505 : vector<1x64xi32>
    %507 = arith.andi %502, %506 : vector<1x64xi1>
    %cst_272 = arith.constant 0.000000e+00 : f32
    %508 = vector.shape_cast %507 : vector<1x64xi1> to vector<1x64xi1>
    %509 = vector.broadcast %508 : vector<1x64xi1> to vector<16x64xi1>
    %510 = vector.broadcast %cst_272 : f32 to vector<16x64xf32>
    %511 = arith.select %509, %498, %510 : vector<16x64xi1>, vector<16x64xf32>
    %c0_273 = arith.constant 0 : index
    %c136_274 = arith.constant 136 : index
    %512 = vector.load %arg32[%c0_273, %c136_274] : memref<16x320xf32, #tpu.memory_space<vmem>>, vector<16x64xf32>
    %c0_275 = arith.constant 0 : index
    %c137_276 = arith.constant 137 : index
    %513 = vector.load %arg32[%c0_275, %c137_276] : memref<16x320xf32, #tpu.memory_space<vmem>>, vector<16x64xf32>
    %c1_i32_277 = arith.constant 1 : i32
    %514 = vector.broadcast %c1_i32_277 : i32 to vector<1x64xi32>
    %515 = arith.addi %16, %514 : vector<1x64xi32>
    %c0_i32_278 = arith.constant 0 : i32
    %516 = vector.broadcast %c0_i32_278 : i32 to vector<1x64xi32>
    %517 = arith.cmpi sge, %515, %516 : vector<1x64xi32>
    %c1_i32_279 = arith.constant 1 : i32
    %518 = vector.broadcast %c1_i32_279 : i32 to vector<1x64xi32>
    %519 = arith.addi %16, %518 : vector<1x64xi32>
    %c8_i32_280 = arith.constant 8 : i32
    %520 = vector.broadcast %c8_i32_280 : i32 to vector<1x64xi32>
    %521 = arith.cmpi slt, %519, %520 : vector<1x64xi32>
    %522 = arith.andi %517, %521 : vector<1x64xi1>
    %cst_281 = arith.constant 0.000000e+00 : f32
    %523 = vector.shape_cast %522 : vector<1x64xi1> to vector<1x64xi1>
    %524 = vector.broadcast %523 : vector<1x64xi1> to vector<16x64xi1>
    %525 = vector.broadcast %cst_281 : f32 to vector<16x64xf32>
    %526 = arith.select %524, %513, %525 : vector<16x64xi1>, vector<16x64xf32>
    %527 = tpu.concatenate %453, %454, %468, %482, %483, %497, %511, %512, %526 in 0 : vector<16x64xf32>, vector<16x64xf32>, vector<16x64xf32>, vector<16x64xf32>, vector<16x64xf32>, vector<16x64xf32>, vector<16x64xf32>, vector<16x64xf32>, vector<16x64xf32> -> vector<144x64xf32>
    %528 = arith.truncf %527 : vector<144x64xf32> to vector<144x64xbf16>
    %cst_282 = arith.constant dense<0.000000e+00> : vector<2x64xf32>
    %529 = tpu.matmul %437, %528, %cst_282 {dimension_numbers = #tpu.dot_dimension_numbers<[1], [0], [0], [1], [0, 0, 1, 1], [], []>} : vector<2x144xbf16>, vector<144x64xbf16>, vector<2x64xf32> -> vector<2x64xf32>
    %530 = vector.broadcast %438 : vector<2x1xf32> to vector<2x64xf32>
    %531 = arith.addf %529, %530 : vector<2x64xf32>
    %cst_283 = arith.constant 0.000000e+00 : f32
    %532 = vector.broadcast %cst_283 : f32 to vector<2x64xf32>
    %533 = arith.cmpf oge, %531, %532 : vector<2x64xf32>
    %cst_284 = arith.constant 0.00999999977 : f32
    %534 = vector.broadcast %cst_284 : f32 to vector<2x64xf32>
    %535 = arith.mulf %534, %531 : vector<2x64xf32>
    %536 = arith.select %533, %531, %535 : vector<2x64xi1>, vector<2x64xf32>
    %c0_285 = arith.constant 0 : index
    %c0_286 = arith.constant 0 : index
    %c0_287 = arith.constant 0 : index
    %537 = vector.load %arg30[%c0_285, %c0_286, %c0_287] : memref<1x2x64xf32, #tpu.memory_space<vmem>>, vector<1x2x64xf32>
    %538 = vector.shape_cast %537 : vector<1x2x64xf32> to vector<2x64xf32>
    %539 = vector.shape_cast %536 : vector<2x64xf32> to vector<1x2x64xf32>
    tpu.vector_store %arg30[%c0_285, %c0_286, %c0_287], %539 {strides = array<i32>} : memref<1x2x64xf32, #tpu.memory_space<vmem>>, vector<1x2x64xf32>,
    %c0_288 = arith.constant 0 : index
    %c0_289 = arith.constant 0 : index
    %540 = vector.load %arg26[%c0_288, %c0_289] : memref<16x1xf32, #tpu.memory_space<vmem>>, vector<16x1xf32>
    %c0_290 = arith.constant 0 : index
    %c0_291 = arith.constant 0 : index
    %541 = vector.load %arg27[%c0_290, %c0_291] : memref<16x1xf32, #tpu.memory_space<vmem>>, vector<16x1xf32>
    %cst_292 = arith.constant dense<0.000000e+00> : vector<64xf32>
    %542 = vector.multi_reduction <add>, %413, %cst_292 [0] : vector<16x64xf32> to vector<64xf32>
    %543 = vector.shape_cast %542 : vector<64xf32> to vector<1x64xf32>
    %cst_293 = arith.constant 1.600000e+01 : f32
    %544 = vector.broadcast %cst_293 : f32 to vector<1x64xf32>
    %545 = arith.divf %543, %544 : vector<1x64xf32>
    %546 = vector.broadcast %545 : vector<1x64xf32> to vector<16x64xf32>
    %547 = arith.subf %413, %546 : vector<16x64xf32>
    %548 = arith.mulf %547, %547 : vector<16x64xf32>
    %cst_294 = arith.constant dense<0.000000e+00> : vector<64xf32>
    %549 = vector.multi_reduction <add>, %548, %cst_294 [0] : vector<16x64xf32> to vector<64xf32>
    %550 = vector.shape_cast %549 : vector<64xf32> to vector<1x64xf32>
    %cst_295 = arith.constant 1.600000e+01 : f32
    %551 = vector.broadcast %cst_295 : f32 to vector<1x64xf32>
    %552 = arith.divf %550, %551 : vector<1x64xf32>
    %cst_296 = arith.constant 9.99999997E-7 : f32
    %553 = vector.broadcast %cst_296 : f32 to vector<1x64xf32>
    %554 = arith.addf %552, %553 : vector<1x64xf32>
    %555 = math.rsqrt %554 : vector<1x64xf32>
    %556 = vector.broadcast %555 : vector<1x64xf32> to vector<16x64xf32>
    %557 = arith.mulf %547, %556 : vector<16x64xf32>
    %558 = vector.broadcast %540 : vector<16x1xf32> to vector<16x64xf32>
    %559 = arith.mulf %557, %558 : vector<16x64xf32>
    %560 = vector.broadcast %541 : vector<16x1xf32> to vector<16x64xf32>
    %561 = arith.addf %559, %560 : vector<16x64xf32>
    %c0_297 = arith.constant 0 : index
    %c0_298 = arith.constant 0 : index
    %562 = vector.load %arg28[%c0_297, %c0_298] : memref<8x144xf32, #tpu.memory_space<vmem>>, vector<8x144xf32>
    %563 = arith.truncf %562 : vector<8x144xf32> to vector<8x144xbf16>
    %c0_299 = arith.constant 0 : index
    %c0_300 = arith.constant 0 : index
    %564 = vector.load %arg29[%c0_299, %c0_300] : memref<8x1xf32, #tpu.memory_space<vmem>>, vector<8x1xf32>
    %c0_301 = arith.constant 0 : index
    %c128_302 = arith.constant 128 : index
    %565 = vector.load %arg32[%c0_301, %c128_302] : memref<16x320xf32, #tpu.memory_space<vmem>>, vector<16x64xf32>
    tpu.vector_store %arg32[%c0_301, %c128_302], %561 {strides = array<i32>} : memref<16x320xf32, #tpu.memory_space<vmem>>, vector<16x64xf32>,
    %c0_303 = arith.constant 0 : index
    %c119_304 = arith.constant 119 : index
    %566 = vector.load %arg32[%c0_303, %c119_304] : memref<16x320xf32, #tpu.memory_space<vmem>>, vector<16x64xf32>
    %c-1_i32_305 = arith.constant -1 : i32
    %567 = vector.broadcast %c-1_i32_305 : i32 to vector<1x64xi32>
    %568 = arith.addi %16, %567 : vector<1x64xi32>
    %c0_i32_306 = arith.constant 0 : i32
    %569 = vector.broadcast %c0_i32_306 : i32 to vector<1x64xi32>
    %570 = arith.cmpi sge, %568, %569 : vector<1x64xi32>
    %c-1_i32_307 = arith.constant -1 : i32
    %571 = vector.broadcast %c-1_i32_307 : i32 to vector<1x64xi32>
    %572 = arith.addi %16, %571 : vector<1x64xi32>
    %c8_i32_308 = arith.constant 8 : i32
    %573 = vector.broadcast %c8_i32_308 : i32 to vector<1x64xi32>
    %574 = arith.cmpi slt, %572, %573 : vector<1x64xi32>
    %575 = arith.andi %570, %574 : vector<1x64xi1>
    %cst_309 = arith.constant 0.000000e+00 : f32
    %576 = vector.shape_cast %575 : vector<1x64xi1> to vector<1x64xi1>
    %577 = vector.broadcast %576 : vector<1x64xi1> to vector<16x64xi1>
    %578 = vector.broadcast %cst_309 : f32 to vector<16x64xf32>
    %579 = arith.select %577, %566, %578 : vector<16x64xi1>, vector<16x64xf32>
    %c0_310 = arith.constant 0 : index
    %c120_311 = arith.constant 120 : index
    %580 = vector.load %arg32[%c0_310, %c120_311] : memref<16x320xf32, #tpu.memory_space<vmem>>, vector<16x64xf32>
    %c0_312 = arith.constant 0 : index
    %c121_313 = arith.constant 121 : index
    %581 = vector.load %arg32[%c0_312, %c121_313] : memref<16x320xf32, #tpu.memory_space<vmem>>, vector<16x64xf32>
    %c1_i32_314 = arith.constant 1 : i32
    %582 = vector.broadcast %c1_i32_314 : i32 to vector<1x64xi32>
    %583 = arith.addi %16, %582 : vector<1x64xi32>
    %c0_i32_315 = arith.constant 0 : i32
    %584 = vector.broadcast %c0_i32_315 : i32 to vector<1x64xi32>
    %585 = arith.cmpi sge, %583, %584 : vector<1x64xi32>
    %c1_i32_316 = arith.constant 1 : i32
    %586 = vector.broadcast %c1_i32_316 : i32 to vector<1x64xi32>
    %587 = arith.addi %16, %586 : vector<1x64xi32>
    %c8_i32_317 = arith.constant 8 : i32
    %588 = vector.broadcast %c8_i32_317 : i32 to vector<1x64xi32>
    %589 = arith.cmpi slt, %587, %588 : vector<1x64xi32>
    %590 = arith.andi %585, %589 : vector<1x64xi1>
    %cst_318 = arith.constant 0.000000e+00 : f32
    %591 = vector.shape_cast %590 : vector<1x64xi1> to vector<1x64xi1>
    %592 = vector.broadcast %591 : vector<1x64xi1> to vector<16x64xi1>
    %593 = vector.broadcast %cst_318 : f32 to vector<16x64xf32>
    %594 = arith.select %592, %581, %593 : vector<16x64xi1>, vector<16x64xf32>
    %c0_319 = arith.constant 0 : index
    %c127_320 = arith.constant 127 : index
    %595 = vector.load %arg32[%c0_319, %c127_320] : memref<16x320xf32, #tpu.memory_space<vmem>>, vector<16x64xf32>
    %c-1_i32_321 = arith.constant -1 : i32
    %596 = vector.broadcast %c-1_i32_321 : i32 to vector<1x64xi32>
    %597 = arith.addi %16, %596 : vector<1x64xi32>
    %c0_i32_322 = arith.constant 0 : i32
    %598 = vector.broadcast %c0_i32_322 : i32 to vector<1x64xi32>
    %599 = arith.cmpi sge, %597, %598 : vector<1x64xi32>
    %c-1_i32_323 = arith.constant -1 : i32
    %600 = vector.broadcast %c-1_i32_323 : i32 to vector<1x64xi32>
    %601 = arith.addi %16, %600 : vector<1x64xi32>
    %c8_i32_324 = arith.constant 8 : i32
    %602 = vector.broadcast %c8_i32_324 : i32 to vector<1x64xi32>
    %603 = arith.cmpi slt, %601, %602 : vector<1x64xi32>
    %604 = arith.andi %599, %603 : vector<1x64xi1>
    %cst_325 = arith.constant 0.000000e+00 : f32
    %605 = vector.shape_cast %604 : vector<1x64xi1> to vector<1x64xi1>
    %606 = vector.broadcast %605 : vector<1x64xi1> to vector<16x64xi1>
    %607 = vector.broadcast %cst_325 : f32 to vector<16x64xf32>
    %608 = arith.select %606, %595, %607 : vector<16x64xi1>, vector<16x64xf32>
    %c0_326 = arith.constant 0 : index
    %c128_327 = arith.constant 128 : index
    %609 = vector.load %arg32[%c0_326, %c128_327] : memref<16x320xf32, #tpu.memory_space<vmem>>, vector<16x64xf32>
    %c0_328 = arith.constant 0 : index
    %c129_329 = arith.constant 129 : index
    %610 = vector.load %arg32[%c0_328, %c129_329] : memref<16x320xf32, #tpu.memory_space<vmem>>, vector<16x64xf32>
    %c1_i32_330 = arith.constant 1 : i32
    %611 = vector.broadcast %c1_i32_330 : i32 to vector<1x64xi32>
    %612 = arith.addi %16, %611 : vector<1x64xi32>
    %c0_i32_331 = arith.constant 0 : i32
    %613 = vector.broadcast %c0_i32_331 : i32 to vector<1x64xi32>
    %614 = arith.cmpi sge, %612, %613 : vector<1x64xi32>
    %c1_i32_332 = arith.constant 1 : i32
    %615 = vector.broadcast %c1_i32_332 : i32 to vector<1x64xi32>
    %616 = arith.addi %16, %615 : vector<1x64xi32>
    %c8_i32_333 = arith.constant 8 : i32
    %617 = vector.broadcast %c8_i32_333 : i32 to vector<1x64xi32>
    %618 = arith.cmpi slt, %616, %617 : vector<1x64xi32>
    %619 = arith.andi %614, %618 : vector<1x64xi1>
    %cst_334 = arith.constant 0.000000e+00 : f32
    %620 = vector.shape_cast %619 : vector<1x64xi1> to vector<1x64xi1>
    %621 = vector.broadcast %620 : vector<1x64xi1> to vector<16x64xi1>
    %622 = vector.broadcast %cst_334 : f32 to vector<16x64xf32>
    %623 = arith.select %621, %610, %622 : vector<16x64xi1>, vector<16x64xf32>
    %c0_335 = arith.constant 0 : index
    %c135_336 = arith.constant 135 : index
    %624 = vector.load %arg32[%c0_335, %c135_336] : memref<16x320xf32, #tpu.memory_space<vmem>>, vector<16x64xf32>
    %c-1_i32_337 = arith.constant -1 : i32
    %625 = vector.broadcast %c-1_i32_337 : i32 to vector<1x64xi32>
    %626 = arith.addi %16, %625 : vector<1x64xi32>
    %c0_i32_338 = arith.constant 0 : i32
    %627 = vector.broadcast %c0_i32_338 : i32 to vector<1x64xi32>
    %628 = arith.cmpi sge, %626, %627 : vector<1x64xi32>
    %c-1_i32_339 = arith.constant -1 : i32
    %629 = vector.broadcast %c-1_i32_339 : i32 to vector<1x64xi32>
    %630 = arith.addi %16, %629 : vector<1x64xi32>
    %c8_i32_340 = arith.constant 8 : i32
    %631 = vector.broadcast %c8_i32_340 : i32 to vector<1x64xi32>
    %632 = arith.cmpi slt, %630, %631 : vector<1x64xi32>
    %633 = arith.andi %628, %632 : vector<1x64xi1>
    %cst_341 = arith.constant 0.000000e+00 : f32
    %634 = vector.shape_cast %633 : vector<1x64xi1> to vector<1x64xi1>
    %635 = vector.broadcast %634 : vector<1x64xi1> to vector<16x64xi1>
    %636 = vector.broadcast %cst_341 : f32 to vector<16x64xf32>
    %637 = arith.select %635, %624, %636 : vector<16x64xi1>, vector<16x64xf32>
    %c0_342 = arith.constant 0 : index
    %c136_343 = arith.constant 136 : index
    %638 = vector.load %arg32[%c0_342, %c136_343] : memref<16x320xf32, #tpu.memory_space<vmem>>, vector<16x64xf32>
    %c0_344 = arith.constant 0 : index
    %c137_345 = arith.constant 137 : index
    %639 = vector.load %arg32[%c0_344, %c137_345] : memref<16x320xf32, #tpu.memory_space<vmem>>, vector<16x64xf32>
    %c1_i32_346 = arith.constant 1 : i32
    %640 = vector.broadcast %c1_i32_346 : i32 to vector<1x64xi32>
    %641 = arith.addi %16, %640 : vector<1x64xi32>
    %c0_i32_347 = arith.constant 0 : i32
    %642 = vector.broadcast %c0_i32_347 : i32 to vector<1x64xi32>
    %643 = arith.cmpi sge, %641, %642 : vector<1x64xi32>
    %c1_i32_348 = arith.constant 1 : i32
    %644 = vector.broadcast %c1_i32_348 : i32 to vector<1x64xi32>
    %645 = arith.addi %16, %644 : vector<1x64xi32>
    %c8_i32_349 = arith.constant 8 : i32
    %646 = vector.broadcast %c8_i32_349 : i32 to vector<1x64xi32>
    %647 = arith.cmpi slt, %645, %646 : vector<1x64xi32>
    %648 = arith.andi %643, %647 : vector<1x64xi1>
    %cst_350 = arith.constant 0.000000e+00 : f32
    %649 = vector.shape_cast %648 : vector<1x64xi1> to vector<1x64xi1>
    %650 = vector.broadcast %649 : vector<1x64xi1> to vector<16x64xi1>
    %651 = vector.broadcast %cst_350 : f32 to vector<16x64xf32>
    %652 = arith.select %650, %639, %651 : vector<16x64xi1>, vector<16x64xf32>
    %653 = tpu.concatenate %579, %580, %594, %608, %609, %623, %637, %638, %652 in 0 : vector<16x64xf32>, vector<16x64xf32>, vector<16x64xf32>, vector<16x64xf32>, vector<16x64xf32>, vector<16x64xf32>, vector<16x64xf32>, vector<16x64xf32>, vector<16x64xf32> -> vector<144x64xf32>
    %654 = arith.truncf %653 : vector<144x64xf32> to vector<144x64xbf16>
    %cst_351 = arith.constant dense<0.000000e+00> : vector<8x64xf32>
    %655 = tpu.matmul %563, %654, %cst_351 {dimension_numbers = #tpu.dot_dimension_numbers<[1], [0], [0], [1], [0, 0, 1, 1], [], []>} : vector<8x144xbf16>, vector<144x64xbf16>, vector<8x64xf32> -> vector<8x64xf32>
    %656 = vector.broadcast %564 : vector<8x1xf32> to vector<8x64xf32>
    %657 = arith.addf %655, %656 : vector<8x64xf32>
    %c0_352 = arith.constant 0 : index
    %c0_353 = arith.constant 0 : index
    %c0_354 = arith.constant 0 : index
    %658 = vector.load %arg31[%c0_352, %c0_353, %c0_354] : memref<1x8x64xf32, #tpu.memory_space<vmem>>, vector<1x8x64xf32>
    %659 = vector.shape_cast %658 : vector<1x8x64xf32> to vector<8x64xf32>
    %660 = vector.shape_cast %657 : vector<8x64xf32> to vector<1x8x64xf32>
    tpu.vector_store %arg31[%c0_352, %c0_353, %c0_354], %660 {strides = array<i32>} : memref<1x8x64xf32, #tpu.memory_space<vmem>>, vector<1x8x64xf32>,
    return
  }
  func.func @transform_0(%arg0: i32) -> (i32, i32, i32) {
    %c0_i32 = arith.constant 0 : i32
    %c0_i32_0 = arith.constant 0 : i32
    %c0_i32_1 = arith.constant 0 : i32
    return %arg0, %c0_i32, %c0_i32_0 : i32, i32, i32
  }
  func.func @transform_1(%arg0: i32) -> (i32, i32, i32) {
    %c0_i32 = arith.constant 0 : i32
    %c0_i32_0 = arith.constant 0 : i32
    %c0_i32_1 = arith.constant 0 : i32
    return %arg0, %c0_i32, %c0_i32_0 : i32, i32, i32
  }
  func.func @transform_2(%arg0: i32) -> (i32, i32, i32) {
    %c0_i32 = arith.constant 0 : i32
    %c0_i32_0 = arith.constant 0 : i32
    %c0_i32_1 = arith.constant 0 : i32
    return %arg0, %c0_i32, %c0_i32_0 : i32, i32, i32
  }
  func.func @transform_3(%arg0: i32) -> (i32, i32) {
    %c0_i32 = arith.constant 0 : i32
    %c0_i32_0 = arith.constant 0 : i32
    %c0_i32_1 = arith.constant 0 : i32
    return %c0_i32, %c0_i32_0 : i32, i32
  }
  func.func @transform_4(%arg0: i32) -> (i32, i32) {
    %c0_i32 = arith.constant 0 : i32
    %c0_i32_0 = arith.constant 0 : i32
    %c0_i32_1 = arith.constant 0 : i32
    return %c0_i32, %c0_i32_0 : i32, i32
  }
  func.func @transform_5(%arg0: i32) -> (i32, i32, i32) {
    %c0_i32 = arith.constant 0 : i32
    %c0_i32_0 = arith.constant 0 : i32
    %c0_i32_1 = arith.constant 0 : i32
    return %arg0, %c0_i32, %c0_i32_0 : i32, i32, i32
  }
  func.func @transform_6(%arg0: i32) -> (i32, i32, i32) {
    %c0_i32 = arith.constant 0 : i32
    %c0_i32_0 = arith.constant 0 : i32
    %c0_i32_1 = arith.constant 0 : i32
    return %arg0, %c0_i32, %c0_i32_0 : i32, i32, i32
  }
  func.func @transform_7(%arg0: i32) -> (i32, i32, i32) {
    %c0_i32 = arith.constant 0 : i32
    %c0_i32_0 = arith.constant 0 : i32
    %c0_i32_1 = arith.constant 0 : i32
    return %arg0, %c0_i32, %c0_i32_0 : i32, i32, i32
  }
  func.func @transform_8(%arg0: i32) -> (i32, i32, i32) {
    %c0_i32 = arith.constant 0 : i32
    %c0_i32_0 = arith.constant 0 : i32
    %c0_i32_1 = arith.constant 0 : i32
    return %arg0, %c0_i32, %c0_i32_0 : i32, i32, i32
  }
  func.func @transform_9(%arg0: i32) -> (i32, i32) {
    %c0_i32 = arith.constant 0 : i32
    %c0_i32_0 = arith.constant 0 : i32
    %c0_i32_1 = arith.constant 0 : i32
    return %c0_i32, %c0_i32_0 : i32, i32
  }
  func.func @transform_10(%arg0: i32) -> (i32, i32) {
    %c0_i32 = arith.constant 0 : i32
    %c0_i32_0 = arith.constant 0 : i32
    %c0_i32_1 = arith.constant 0 : i32
    return %c0_i32, %c0_i32_0 : i32, i32
  }
  func.func @transform_11(%arg0: i32) -> (i32, i32) {
    %c0_i32 = arith.constant 0 : i32
    %c0_i32_0 = arith.constant 0 : i32
    %c0_i32_1 = arith.constant 0 : i32
    return %c0_i32, %c0_i32_0 : i32, i32
  }
  func.func @transform_12(%arg0: i32) -> (i32, i32) {
    %c0_i32 = arith.constant 0 : i32
    %c0_i32_0 = arith.constant 0 : i32
    %c0_i32_1 = arith.constant 0 : i32
    return %c0_i32, %c0_i32_0 : i32, i32
  }
  func.func @transform_13(%arg0: i32) -> (i32, i32) {
    %c0_i32 = arith.constant 0 : i32
    %c0_i32_0 = arith.constant 0 : i32
    %c0_i32_1 = arith.constant 0 : i32
    return %c0_i32, %c0_i32_0 : i32, i32
  }
  func.func @transform_14(%arg0: i32) -> (i32, i32) {
    %c0_i32 = arith.constant 0 : i32
    %c0_i32_0 = arith.constant 0 : i32
    %c0_i32_1 = arith.constant 0 : i32
    return %c0_i32, %c0_i32_0 : i32, i32
  }
  func.func @transform_15(%arg0: i32) -> (i32, i32) {
    %c0_i32 = arith.constant 0 : i32
    %c0_i32_0 = arith.constant 0 : i32
    %c0_i32_1 = arith.constant 0 : i32
    return %c0_i32, %c0_i32_0 : i32, i32
  }
  func.func @transform_16(%arg0: i32) -> (i32, i32) {
    %c0_i32 = arith.constant 0 : i32
    %c0_i32_0 = arith.constant 0 : i32
    %c0_i32_1 = arith.constant 0 : i32
    return %c0_i32, %c0_i32_0 : i32, i32
  }
  func.func @transform_17(%arg0: i32) -> (i32, i32) {
    %c0_i32 = arith.constant 0 : i32
    %c0_i32_0 = arith.constant 0 : i32
    %c0_i32_1 = arith.constant 0 : i32
    return %c0_i32, %c0_i32_0 : i32, i32
  }
  func.func @transform_18(%arg0: i32) -> (i32, i32) {
    %c0_i32 = arith.constant 0 : i32
    %c0_i32_0 = arith.constant 0 : i32
    %c0_i32_1 = arith.constant 0 : i32
    return %c0_i32, %c0_i32_0 : i32, i32
  }
  func.func @transform_19(%arg0: i32) -> (i32, i32) {
    %c0_i32 = arith.constant 0 : i32
    %c0_i32_0 = arith.constant 0 : i32
    %c0_i32_1 = arith.constant 0 : i32
    return %c0_i32, %c0_i32_0 : i32, i32
  }
  func.func @transform_20(%arg0: i32) -> (i32, i32) {
    %c0_i32 = arith.constant 0 : i32
    %c0_i32_0 = arith.constant 0 : i32
    %c0_i32_1 = arith.constant 0 : i32
    return %c0_i32, %c0_i32_0 : i32, i32
  }
  func.func @transform_21(%arg0: i32) -> (i32, i32) {
    %c0_i32 = arith.constant 0 : i32
    %c0_i32_0 = arith.constant 0 : i32
    %c0_i32_1 = arith.constant 0 : i32
    return %c0_i32, %c0_i32_0 : i32, i32
  }
  func.func @transform_22(%arg0: i32) -> (i32, i32) {
    %c0_i32 = arith.constant 0 : i32
    %c0_i32_0 = arith.constant 0 : i32
    %c0_i32_1 = arith.constant 0 : i32
    return %c0_i32, %c0_i32_0 : i32, i32
  }
  func.func @transform_23(%arg0: i32) -> (i32, i32) {
    %c0_i32 = arith.constant 0 : i32
    %c0_i32_0 = arith.constant 0 : i32
    %c0_i32_1 = arith.constant 0 : i32
    return %c0_i32, %c0_i32_0 : i32, i32
  }
  func.func @transform_24(%arg0: i32) -> (i32, i32) {
    %c0_i32 = arith.constant 0 : i32
    %c0_i32_0 = arith.constant 0 : i32
    %c0_i32_1 = arith.constant 0 : i32
    return %c0_i32, %c0_i32_0 : i32, i32
  }
  func.func @transform_25(%arg0: i32) -> (i32, i32) {
    %c0_i32 = arith.constant 0 : i32
    %c0_i32_0 = arith.constant 0 : i32
    %c0_i32_1 = arith.constant 0 : i32
    return %c0_i32, %c0_i32_0 : i32, i32
  }
  func.func @transform_26(%arg0: i32) -> (i32, i32) {
    %c0_i32 = arith.constant 0 : i32
    %c0_i32_0 = arith.constant 0 : i32
    %c0_i32_1 = arith.constant 0 : i32
    return %c0_i32, %c0_i32_0 : i32, i32
  }
  func.func @transform_27(%arg0: i32) -> (i32, i32) {
    %c0_i32 = arith.constant 0 : i32
    %c0_i32_0 = arith.constant 0 : i32
    %c0_i32_1 = arith.constant 0 : i32
    return %c0_i32, %c0_i32_0 : i32, i32
  }
  func.func @transform_28(%arg0: i32) -> (i32, i32) {
    %c0_i32 = arith.constant 0 : i32
    %c0_i32_0 = arith.constant 0 : i32
    %c0_i32_1 = arith.constant 0 : i32
    return %c0_i32, %c0_i32_0 : i32, i32
  }
  func.func @transform_29(%arg0: i32) -> (i32, i32, i32) {
    %c0_i32 = arith.constant 0 : i32
    %c0_i32_0 = arith.constant 0 : i32
    %c0_i32_1 = arith.constant 0 : i32
    return %arg0, %c0_i32, %c0_i32_0 : i32, i32, i32
  }
  func.func @transform_30(%arg0: i32) -> (i32, i32, i32) {
    %c0_i32 = arith.constant 0 : i32
    %c0_i32_0 = arith.constant 0 : i32
    %c0_i32_1 = arith.constant 0 : i32
    return %arg0, %c0_i32, %c0_i32_0 : i32, i32, i32
  }
}

module attributes {stable_mosaic.version = 11 : i64} {
  func.func @_level_kernel(%arg0: i32, %arg1: memref<1x8x256xf32, #tpu.memory_space<vmem>>, %arg2: memref<1x8x256xf32, #tpu.memory_space<vmem>>, %arg3: memref<1x8x144xbf16, #tpu.memory_space<vmem>>, %arg4: memref<1x8x1xf32, #tpu.memory_space<vmem>>, %arg5: memref<8x1xf32, #tpu.memory_space<vmem>>, %arg6: memref<8x1xf32, #tpu.memory_space<vmem>>, %arg7: memref<1x8x72xbf16, #tpu.memory_space<vmem>>, %arg8: memref<1x8x1xf32, #tpu.memory_space<vmem>>, %arg9: memref<1x8x72xbf16, #tpu.memory_space<vmem>>, %arg10: memref<1x8x1xf32, #tpu.memory_space<vmem>>, %arg11: memref<8x1xf32, #tpu.memory_space<vmem>>, %arg12: memref<8x1xf32, #tpu.memory_space<vmem>>, %arg13: memref<8x1xf32, #tpu.memory_space<vmem>>, %arg14: memref<2x72xf32, #tpu.memory_space<vmem>>, %arg15: memref<2x1xf32, #tpu.memory_space<vmem>>, %arg16: memref<1x2x256xf32, #tpu.memory_space<vmem>>, %arg17: memref<16x512xf32, #tpu.memory_space<vmem>>) attributes {dimension_semantics = [#tpu.dimension_semantics<parallel>], iteration_bounds = array<i64: 2>, scalar_prefetch = 0 : i64, scratch_operands = 1 : i64, tpu.core_type = #tpu.core_type<tc>, window_params = [{transform_indices = @transform_0, window_bounds = array<i64: 1, 8, 256>}, {transform_indices = @transform_1, window_bounds = array<i64: 1, 8, 256>}, {transform_indices = @transform_2, window_bounds = array<i64: 1, 8, 144>}, {transform_indices = @transform_3, window_bounds = array<i64: 1, 8, 1>}, {pipeline_mode = #tpu.pipeline_mode<synchronous>, transform_indices = @transform_4, window_bounds = array<i64: 8, 1>}, {pipeline_mode = #tpu.pipeline_mode<synchronous>, transform_indices = @transform_5, window_bounds = array<i64: 8, 1>}, {transform_indices = @transform_6, window_bounds = array<i64: 1, 8, 72>}, {transform_indices = @transform_7, window_bounds = array<i64: 1, 8, 1>}, {transform_indices = @transform_8, window_bounds = array<i64: 1, 8, 72>}, {transform_indices = @transform_9, window_bounds = array<i64: 1, 8, 1>}, {pipeline_mode = #tpu.pipeline_mode<synchronous>, transform_indices = @transform_10, window_bounds = array<i64: 8, 1>}, {pipeline_mode = #tpu.pipeline_mode<synchronous>, transform_indices = @transform_11, window_bounds = array<i64: 8, 1>}, {pipeline_mode = #tpu.pipeline_mode<synchronous>, transform_indices = @transform_12, window_bounds = array<i64: 8, 1>}, {pipeline_mode = #tpu.pipeline_mode<synchronous>, transform_indices = @transform_13, window_bounds = array<i64: 2, 72>}, {pipeline_mode = #tpu.pipeline_mode<synchronous>, transform_indices = @transform_14, window_bounds = array<i64: 2, 1>}, {transform_indices = @transform_15, window_bounds = array<i64: 1, 2, 256>}]} {
    %0 = tpu.iota {dimensions = array<i32: 1>} : vector<1x256xi32>
    %c16_i32 = arith.constant 16 : i32
    %c0_i32 = arith.constant 0 : i32
    %1 = arith.cmpi eq, %c16_i32, %c0_i32 : i32
    %c1_i32 = arith.constant 1 : i32
    %2 = arith.select %1, %c1_i32, %c16_i32 : i32
    %3 = vector.broadcast %2 : i32 to vector<1x256xi32>
    %4 = arith.remsi %0, %3 : vector<1x256xi32>
    %c0_i32_0 = arith.constant 0 : i32
    %5 = vector.broadcast %c0_i32_0 : i32 to vector<1x256xi32>
    %6 = arith.cmpi ne, %4, %5 : vector<1x256xi32>
    %c0_i32_1 = arith.constant 0 : i32
    %7 = vector.broadcast %c0_i32_1 : i32 to vector<1x256xi32>
    %8 = arith.cmpi slt, %4, %7 : vector<1x256xi32>
    %c0_i32_2 = arith.constant 0 : i32
    %9 = arith.cmpi slt, %2, %c0_i32_2 : i32
    %10 = vector.broadcast %9 : i1 to vector<1x256xi1>
    %11 = vector.broadcast %10 : vector<1x256xi1> to vector<1x256xi1>
    %12 = arith.xori %8, %11 : vector<1x256xi1>
    %13 = arith.andi %12, %6 : vector<1x256xi1>
    %14 = vector.broadcast %2 : i32 to vector<1x256xi32>
    %15 = arith.addi %4, %14 : vector<1x256xi32>
    %16 = arith.select %13, %15, %4 : vector<1x256xi1>, vector<1x256xi32>
    %cst = arith.constant 0.000000e+00 : f32
    %17 = vector.broadcast %cst : f32 to vector<16x128xf32>
    %c0 = arith.constant 0 : index
    %c0_3 = arith.constant 0 : index
    %18 = vector.load %arg17[%c0, %c0_3] : memref<16x512xf32, #tpu.memory_space<vmem>>, vector<16x128xf32>
    tpu.vector_store %arg17[%c0, %c0_3], %17 {strides = array<i32>} : memref<16x512xf32, #tpu.memory_space<vmem>>, vector<16x128xf32>,
    %cst_4 = arith.constant 0.000000e+00 : f32
    %19 = vector.broadcast %cst_4 : f32 to vector<16x128xf32>
    %c0_5 = arith.constant 0 : index
    %c384 = arith.constant 384 : index
    %20 = vector.load %arg17[%c0_5, %c384] : memref<16x512xf32, #tpu.memory_space<vmem>>, vector<16x128xf32>
    tpu.vector_store %arg17[%c0_5, %c384], %19 {strides = array<i32>} : memref<16x512xf32, #tpu.memory_space<vmem>>, vector<16x128xf32>,
    %c0_6 = arith.constant 0 : index
    %c0_7 = arith.constant 0 : index
    %c0_8 = arith.constant 0 : index
    %21 = vector.load %arg1[%c0_6, %c0_7, %c0_8] : memref<1x8x256xf32, #tpu.memory_space<vmem>>, vector<1x8x256xf32>
    %22 = vector.shape_cast %21 : vector<1x8x256xf32> to vector<8x256xf32>
    %c0_9 = arith.constant 0 : index
    %c128 = arith.constant 128 : index
    %23 = vector.load %arg17[%c0_9, %c128] : memref<16x512xf32, #tpu.memory_space<vmem>>, vector<8x256xf32>
    tpu.vector_store %arg17[%c0_9, %c128], %22 {strides = array<i32>} : memref<16x512xf32, #tpu.memory_space<vmem>>, vector<8x256xf32>,
    %c0_10 = arith.constant 0 : index
    %c0_11 = arith.constant 0 : index
    %c0_12 = arith.constant 0 : index
    %24 = vector.load %arg2[%c0_10, %c0_11, %c0_12] : memref<1x8x256xf32, #tpu.memory_space<vmem>>, vector<1x8x256xf32>
    %25 = vector.shape_cast %24 : vector<1x8x256xf32> to vector<8x256xf32>
    %c8 = arith.constant 8 : index
    %c128_13 = arith.constant 128 : index
    %26 = vector.load %arg17[%c8, %c128_13] : memref<16x512xf32, #tpu.memory_space<vmem>>, vector<8x256xf32>
    tpu.vector_store %arg17[%c8, %c128_13], %25 {strides = array<i32>} : memref<16x512xf32, #tpu.memory_space<vmem>>, vector<8x256xf32>,
    %c0_14 = arith.constant 0 : index
    %c0_15 = arith.constant 0 : index
    %c0_16 = arith.constant 0 : index
    %27 = vector.load %arg3[%c0_14, %c0_15, %c0_16] : memref<1x8x144xbf16, #tpu.memory_space<vmem>>, vector<1x8x144xbf16>
    %28 = vector.shape_cast %27 : vector<1x8x144xbf16> to vector<8x144xbf16>
    %c0_17 = arith.constant 0 : index
    %c0_18 = arith.constant 0 : index
    %c0_19 = arith.constant 0 : index
    %29 = vector.load %arg4[%c0_17, %c0_18, %c0_19] : memref<1x8x1xf32, #tpu.memory_space<vmem>>, vector<1x8x1xf32>
    %30 = vector.shape_cast %29 : vector<1x8x1xf32> to vector<8x1xf32>
    %c0_20 = arith.constant 0 : index
    %c111 = arith.constant 111 : index
    %31 = vector.load %arg17[%c0_20, %c111] : memref<16x512xf32, #tpu.memory_space<vmem>>, vector<16x256xf32>
    %c-1_i32 = arith.constant -1 : i32
    %32 = vector.broadcast %c-1_i32 : i32 to vector<1x256xi32>
    %33 = arith.addi %16, %32 : vector<1x256xi32>
    %c0_i32_21 = arith.constant 0 : i32
    %34 = vector.broadcast %c0_i32_21 : i32 to vector<1x256xi32>
    %35 = arith.cmpi sge, %33, %34 : vector<1x256xi32>
    %c-1_i32_22 = arith.constant -1 : i32
    %36 = vector.broadcast %c-1_i32_22 : i32 to vector<1x256xi32>
    %37 = arith.addi %16, %36 : vector<1x256xi32>
    %c16_i32_23 = arith.constant 16 : i32
    %38 = vector.broadcast %c16_i32_23 : i32 to vector<1x256xi32>
    %39 = arith.cmpi slt, %37, %38 : vector<1x256xi32>
    %40 = arith.andi %35, %39 : vector<1x256xi1>
    %cst_24 = arith.constant 0.000000e+00 : f32
    %41 = vector.shape_cast %40 : vector<1x256xi1> to vector<1x256xi1>
    %42 = vector.broadcast %41 : vector<1x256xi1> to vector<16x256xi1>
    %43 = vector.broadcast %cst_24 : f32 to vector<16x256xf32>
    %44 = arith.select %42, %31, %43 : vector<16x256xi1>, vector<16x256xf32>
    %c0_25 = arith.constant 0 : index
    %c112 = arith.constant 112 : index
    %45 = vector.load %arg17[%c0_25, %c112] : memref<16x512xf32, #tpu.memory_space<vmem>>, vector<16x256xf32>
    %c0_26 = arith.constant 0 : index
    %c113 = arith.constant 113 : index
    %46 = vector.load %arg17[%c0_26, %c113] : memref<16x512xf32, #tpu.memory_space<vmem>>, vector<16x256xf32>
    %c1_i32_27 = arith.constant 1 : i32
    %47 = vector.broadcast %c1_i32_27 : i32 to vector<1x256xi32>
    %48 = arith.addi %16, %47 : vector<1x256xi32>
    %c0_i32_28 = arith.constant 0 : i32
    %49 = vector.broadcast %c0_i32_28 : i32 to vector<1x256xi32>
    %50 = arith.cmpi sge, %48, %49 : vector<1x256xi32>
    %c1_i32_29 = arith.constant 1 : i32
    %51 = vector.broadcast %c1_i32_29 : i32 to vector<1x256xi32>
    %52 = arith.addi %16, %51 : vector<1x256xi32>
    %c16_i32_30 = arith.constant 16 : i32
    %53 = vector.broadcast %c16_i32_30 : i32 to vector<1x256xi32>
    %54 = arith.cmpi slt, %52, %53 : vector<1x256xi32>
    %55 = arith.andi %50, %54 : vector<1x256xi1>
    %cst_31 = arith.constant 0.000000e+00 : f32
    %56 = vector.shape_cast %55 : vector<1x256xi1> to vector<1x256xi1>
    %57 = vector.broadcast %56 : vector<1x256xi1> to vector<16x256xi1>
    %58 = vector.broadcast %cst_31 : f32 to vector<16x256xf32>
    %59 = arith.select %57, %46, %58 : vector<16x256xi1>, vector<16x256xf32>
    %c0_32 = arith.constant 0 : index
    %c127 = arith.constant 127 : index
    %60 = vector.load %arg17[%c0_32, %c127] : memref<16x512xf32, #tpu.memory_space<vmem>>, vector<16x256xf32>
    %c-1_i32_33 = arith.constant -1 : i32
    %61 = vector.broadcast %c-1_i32_33 : i32 to vector<1x256xi32>
    %62 = arith.addi %16, %61 : vector<1x256xi32>
    %c0_i32_34 = arith.constant 0 : i32
    %63 = vector.broadcast %c0_i32_34 : i32 to vector<1x256xi32>
    %64 = arith.cmpi sge, %62, %63 : vector<1x256xi32>
    %c-1_i32_35 = arith.constant -1 : i32
    %65 = vector.broadcast %c-1_i32_35 : i32 to vector<1x256xi32>
    %66 = arith.addi %16, %65 : vector<1x256xi32>
    %c16_i32_36 = arith.constant 16 : i32
    %67 = vector.broadcast %c16_i32_36 : i32 to vector<1x256xi32>
    %68 = arith.cmpi slt, %66, %67 : vector<1x256xi32>
    %69 = arith.andi %64, %68 : vector<1x256xi1>
    %cst_37 = arith.constant 0.000000e+00 : f32
    %70 = vector.shape_cast %69 : vector<1x256xi1> to vector<1x256xi1>
    %71 = vector.broadcast %70 : vector<1x256xi1> to vector<16x256xi1>
    %72 = vector.broadcast %cst_37 : f32 to vector<16x256xf32>
    %73 = arith.select %71, %60, %72 : vector<16x256xi1>, vector<16x256xf32>
    %c0_38 = arith.constant 0 : index
    %c128_39 = arith.constant 128 : index
    %74 = vector.load %arg17[%c0_38, %c128_39] : memref<16x512xf32, #tpu.memory_space<vmem>>, vector<16x256xf32>
    %c0_40 = arith.constant 0 : index
    %c129 = arith.constant 129 : index
    %75 = vector.load %arg17[%c0_40, %c129] : memref<16x512xf32, #tpu.memory_space<vmem>>, vector<16x256xf32>
    %c1_i32_41 = arith.constant 1 : i32
    %76 = vector.broadcast %c1_i32_41 : i32 to vector<1x256xi32>
    %77 = arith.addi %16, %76 : vector<1x256xi32>
    %c0_i32_42 = arith.constant 0 : i32
    %78 = vector.broadcast %c0_i32_42 : i32 to vector<1x256xi32>
    %79 = arith.cmpi sge, %77, %78 : vector<1x256xi32>
    %c1_i32_43 = arith.constant 1 : i32
    %80 = vector.broadcast %c1_i32_43 : i32 to vector<1x256xi32>
    %81 = arith.addi %16, %80 : vector<1x256xi32>
    %c16_i32_44 = arith.constant 16 : i32
    %82 = vector.broadcast %c16_i32_44 : i32 to vector<1x256xi32>
    %83 = arith.cmpi slt, %81, %82 : vector<1x256xi32>
    %84 = arith.andi %79, %83 : vector<1x256xi1>
    %cst_45 = arith.constant 0.000000e+00 : f32
    %85 = vector.shape_cast %84 : vector<1x256xi1> to vector<1x256xi1>
    %86 = vector.broadcast %85 : vector<1x256xi1> to vector<16x256xi1>
    %87 = vector.broadcast %cst_45 : f32 to vector<16x256xf32>
    %88 = arith.select %86, %75, %87 : vector<16x256xi1>, vector<16x256xf32>
    %c0_46 = arith.constant 0 : index
    %c143 = arith.constant 143 : index
    %89 = vector.load %arg17[%c0_46, %c143] : memref<16x512xf32, #tpu.memory_space<vmem>>, vector<16x256xf32>
    %c-1_i32_47 = arith.constant -1 : i32
    %90 = vector.broadcast %c-1_i32_47 : i32 to vector<1x256xi32>
    %91 = arith.addi %16, %90 : vector<1x256xi32>
    %c0_i32_48 = arith.constant 0 : i32
    %92 = vector.broadcast %c0_i32_48 : i32 to vector<1x256xi32>
    %93 = arith.cmpi sge, %91, %92 : vector<1x256xi32>
    %c-1_i32_49 = arith.constant -1 : i32
    %94 = vector.broadcast %c-1_i32_49 : i32 to vector<1x256xi32>
    %95 = arith.addi %16, %94 : vector<1x256xi32>
    %c16_i32_50 = arith.constant 16 : i32
    %96 = vector.broadcast %c16_i32_50 : i32 to vector<1x256xi32>
    %97 = arith.cmpi slt, %95, %96 : vector<1x256xi32>
    %98 = arith.andi %93, %97 : vector<1x256xi1>
    %cst_51 = arith.constant 0.000000e+00 : f32
    %99 = vector.shape_cast %98 : vector<1x256xi1> to vector<1x256xi1>
    %100 = vector.broadcast %99 : vector<1x256xi1> to vector<16x256xi1>
    %101 = vector.broadcast %cst_51 : f32 to vector<16x256xf32>
    %102 = arith.select %100, %89, %101 : vector<16x256xi1>, vector<16x256xf32>
    %c0_52 = arith.constant 0 : index
    %c144 = arith.constant 144 : index
    %103 = vector.load %arg17[%c0_52, %c144] : memref<16x512xf32, #tpu.memory_space<vmem>>, vector<16x256xf32>
    %c0_53 = arith.constant 0 : index
    %c145 = arith.constant 145 : index
    %104 = vector.load %arg17[%c0_53, %c145] : memref<16x512xf32, #tpu.memory_space<vmem>>, vector<16x256xf32>
    %c1_i32_54 = arith.constant 1 : i32
    %105 = vector.broadcast %c1_i32_54 : i32 to vector<1x256xi32>
    %106 = arith.addi %16, %105 : vector<1x256xi32>
    %c0_i32_55 = arith.constant 0 : i32
    %107 = vector.broadcast %c0_i32_55 : i32 to vector<1x256xi32>
    %108 = arith.cmpi sge, %106, %107 : vector<1x256xi32>
    %c1_i32_56 = arith.constant 1 : i32
    %109 = vector.broadcast %c1_i32_56 : i32 to vector<1x256xi32>
    %110 = arith.addi %16, %109 : vector<1x256xi32>
    %c16_i32_57 = arith.constant 16 : i32
    %111 = vector.broadcast %c16_i32_57 : i32 to vector<1x256xi32>
    %112 = arith.cmpi slt, %110, %111 : vector<1x256xi32>
    %113 = arith.andi %108, %112 : vector<1x256xi1>
    %cst_58 = arith.constant 0.000000e+00 : f32
    %114 = vector.shape_cast %113 : vector<1x256xi1> to vector<1x256xi1>
    %115 = vector.broadcast %114 : vector<1x256xi1> to vector<16x256xi1>
    %116 = vector.broadcast %cst_58 : f32 to vector<16x256xf32>
    %117 = arith.select %115, %104, %116 : vector<16x256xi1>, vector<16x256xf32>
    %118 = tpu.concatenate %44, %45, %59, %73, %74, %88, %102, %103, %117 in 0 : vector<16x256xf32>, vector<16x256xf32>, vector<16x256xf32>, vector<16x256xf32>, vector<16x256xf32>, vector<16x256xf32>, vector<16x256xf32>, vector<16x256xf32>, vector<16x256xf32> -> vector<144x256xf32>
    %119 = arith.truncf %118 : vector<144x256xf32> to vector<144x256xbf16>
    %cst_59 = arith.constant dense<0.000000e+00> : vector<8x256xf32>
    %120 = tpu.matmul %28, %119, %cst_59 {dimension_numbers = #tpu.dot_dimension_numbers<[1], [0], [0], [1], [0, 0, 1, 1], [], []>} : vector<8x144xbf16>, vector<144x256xbf16>, vector<8x256xf32> -> vector<8x256xf32>
    %121 = vector.broadcast %30 : vector<8x1xf32> to vector<8x256xf32>
    %122 = arith.addf %120, %121 : vector<8x256xf32>
    %c0_60 = arith.constant 0 : index
    %c0_61 = arith.constant 0 : index
    %123 = vector.load %arg5[%c0_60, %c0_61] : memref<8x1xf32, #tpu.memory_space<vmem>>, vector<8x1xf32>
    %c0_62 = arith.constant 0 : index
    %c0_63 = arith.constant 0 : index
    %124 = vector.load %arg6[%c0_62, %c0_63] : memref<8x1xf32, #tpu.memory_space<vmem>>, vector<8x1xf32>
    %cst_64 = arith.constant dense<0.000000e+00> : vector<256xf32>
    %125 = vector.multi_reduction <add>, %122, %cst_64 [0] : vector<8x256xf32> to vector<256xf32>
    %126 = vector.shape_cast %125 : vector<256xf32> to vector<1x256xf32>
    %cst_65 = arith.constant 8.000000e+00 : f32
    %127 = vector.broadcast %cst_65 : f32 to vector<1x256xf32>
    %128 = arith.divf %126, %127 : vector<1x256xf32>
    %129 = vector.broadcast %128 : vector<1x256xf32> to vector<8x256xf32>
    %130 = arith.subf %122, %129 : vector<8x256xf32>
    %131 = arith.mulf %130, %130 : vector<8x256xf32>
    %cst_66 = arith.constant dense<0.000000e+00> : vector<256xf32>
    %132 = vector.multi_reduction <add>, %131, %cst_66 [0] : vector<8x256xf32> to vector<256xf32>
    %133 = vector.shape_cast %132 : vector<256xf32> to vector<1x256xf32>
    %cst_67 = arith.constant 8.000000e+00 : f32
    %134 = vector.broadcast %cst_67 : f32 to vector<1x256xf32>
    %135 = arith.divf %133, %134 : vector<1x256xf32>
    %cst_68 = arith.constant 9.99999997E-7 : f32
    %136 = vector.broadcast %cst_68 : f32 to vector<1x256xf32>
    %137 = arith.addf %135, %136 : vector<1x256xf32>
    %138 = math.rsqrt %137 : vector<1x256xf32>
    %139 = vector.broadcast %138 : vector<1x256xf32> to vector<8x256xf32>
    %140 = arith.mulf %130, %139 : vector<8x256xf32>
    %141 = vector.broadcast %123 : vector<8x1xf32> to vector<8x256xf32>
    %142 = arith.mulf %140, %141 : vector<8x256xf32>
    %143 = vector.broadcast %124 : vector<8x1xf32> to vector<8x256xf32>
    %144 = arith.addf %142, %143 : vector<8x256xf32>
    %c0_69 = arith.constant 0 : index
    %c0_70 = arith.constant 0 : index
    %c0_71 = arith.constant 0 : index
    %145 = vector.load %arg7[%c0_69, %c0_70, %c0_71] : memref<1x8x72xbf16, #tpu.memory_space<vmem>>, vector<1x8x72xbf16>
    %146 = vector.shape_cast %145 : vector<1x8x72xbf16> to vector<8x72xbf16>
    %c0_72 = arith.constant 0 : index
    %c0_73 = arith.constant 0 : index
    %c0_74 = arith.constant 0 : index
    %147 = vector.load %arg8[%c0_72, %c0_73, %c0_74] : memref<1x8x1xf32, #tpu.memory_space<vmem>>, vector<1x8x1xf32>
    %148 = vector.shape_cast %147 : vector<1x8x1xf32> to vector<8x1xf32>
    %c0_75 = arith.constant 0 : index
    %c128_76 = arith.constant 128 : index
    %149 = vector.load %arg17[%c0_75, %c128_76] : memref<16x512xf32, #tpu.memory_space<vmem>>, vector<8x256xf32>
    tpu.vector_store %arg17[%c0_75, %c128_76], %144 {strides = array<i32>} : memref<16x512xf32, #tpu.memory_space<vmem>>, vector<8x256xf32>,
    %c0_77 = arith.constant 0 : index
    %c111_78 = arith.constant 111 : index
    %150 = vector.load %arg17[%c0_77, %c111_78] : memref<16x512xf32, #tpu.memory_space<vmem>>, vector<8x256xf32>
    %c-1_i32_79 = arith.constant -1 : i32
    %151 = vector.broadcast %c-1_i32_79 : i32 to vector<1x256xi32>
    %152 = arith.addi %16, %151 : vector<1x256xi32>
    %c0_i32_80 = arith.constant 0 : i32
    %153 = vector.broadcast %c0_i32_80 : i32 to vector<1x256xi32>
    %154 = arith.cmpi sge, %152, %153 : vector<1x256xi32>
    %c-1_i32_81 = arith.constant -1 : i32
    %155 = vector.broadcast %c-1_i32_81 : i32 to vector<1x256xi32>
    %156 = arith.addi %16, %155 : vector<1x256xi32>
    %c16_i32_82 = arith.constant 16 : i32
    %157 = vector.broadcast %c16_i32_82 : i32 to vector<1x256xi32>
    %158 = arith.cmpi slt, %156, %157 : vector<1x256xi32>
    %159 = arith.andi %154, %158 : vector<1x256xi1>
    %cst_83 = arith.constant 0.000000e+00 : f32
    %160 = vector.shape_cast %159 : vector<1x256xi1> to vector<1x256xi1>
    %161 = vector.broadcast %160 : vector<1x256xi1> to vector<8x256xi1>
    %162 = vector.broadcast %cst_83 : f32 to vector<8x256xf32>
    %163 = arith.select %161, %150, %162 : vector<8x256xi1>, vector<8x256xf32>
    %c0_84 = arith.constant 0 : index
    %c112_85 = arith.constant 112 : index
    %164 = vector.load %arg17[%c0_84, %c112_85] : memref<16x512xf32, #tpu.memory_space<vmem>>, vector<8x256xf32>
    %c0_86 = arith.constant 0 : index
    %c113_87 = arith.constant 113 : index
    %165 = vector.load %arg17[%c0_86, %c113_87] : memref<16x512xf32, #tpu.memory_space<vmem>>, vector<8x256xf32>
    %c1_i32_88 = arith.constant 1 : i32
    %166 = vector.broadcast %c1_i32_88 : i32 to vector<1x256xi32>
    %167 = arith.addi %16, %166 : vector<1x256xi32>
    %c0_i32_89 = arith.constant 0 : i32
    %168 = vector.broadcast %c0_i32_89 : i32 to vector<1x256xi32>
    %169 = arith.cmpi sge, %167, %168 : vector<1x256xi32>
    %c1_i32_90 = arith.constant 1 : i32
    %170 = vector.broadcast %c1_i32_90 : i32 to vector<1x256xi32>
    %171 = arith.addi %16, %170 : vector<1x256xi32>
    %c16_i32_91 = arith.constant 16 : i32
    %172 = vector.broadcast %c16_i32_91 : i32 to vector<1x256xi32>
    %173 = arith.cmpi slt, %171, %172 : vector<1x256xi32>
    %174 = arith.andi %169, %173 : vector<1x256xi1>
    %cst_92 = arith.constant 0.000000e+00 : f32
    %175 = vector.shape_cast %174 : vector<1x256xi1> to vector<1x256xi1>
    %176 = vector.broadcast %175 : vector<1x256xi1> to vector<8x256xi1>
    %177 = vector.broadcast %cst_92 : f32 to vector<8x256xf32>
    %178 = arith.select %176, %165, %177 : vector<8x256xi1>, vector<8x256xf32>
    %c0_93 = arith.constant 0 : index
    %c127_94 = arith.constant 127 : index
    %179 = vector.load %arg17[%c0_93, %c127_94] : memref<16x512xf32, #tpu.memory_space<vmem>>, vector<8x256xf32>
    %c-1_i32_95 = arith.constant -1 : i32
    %180 = vector.broadcast %c-1_i32_95 : i32 to vector<1x256xi32>
    %181 = arith.addi %16, %180 : vector<1x256xi32>
    %c0_i32_96 = arith.constant 0 : i32
    %182 = vector.broadcast %c0_i32_96 : i32 to vector<1x256xi32>
    %183 = arith.cmpi sge, %181, %182 : vector<1x256xi32>
    %c-1_i32_97 = arith.constant -1 : i32
    %184 = vector.broadcast %c-1_i32_97 : i32 to vector<1x256xi32>
    %185 = arith.addi %16, %184 : vector<1x256xi32>
    %c16_i32_98 = arith.constant 16 : i32
    %186 = vector.broadcast %c16_i32_98 : i32 to vector<1x256xi32>
    %187 = arith.cmpi slt, %185, %186 : vector<1x256xi32>
    %188 = arith.andi %183, %187 : vector<1x256xi1>
    %cst_99 = arith.constant 0.000000e+00 : f32
    %189 = vector.shape_cast %188 : vector<1x256xi1> to vector<1x256xi1>
    %190 = vector.broadcast %189 : vector<1x256xi1> to vector<8x256xi1>
    %191 = vector.broadcast %cst_99 : f32 to vector<8x256xf32>
    %192 = arith.select %190, %179, %191 : vector<8x256xi1>, vector<8x256xf32>
    %c0_100 = arith.constant 0 : index
    %c128_101 = arith.constant 128 : index
    %193 = vector.load %arg17[%c0_100, %c128_101] : memref<16x512xf32, #tpu.memory_space<vmem>>, vector<8x256xf32>
    %c0_102 = arith.constant 0 : index
    %c129_103 = arith.constant 129 : index
    %194 = vector.load %arg17[%c0_102, %c129_103] : memref<16x512xf32, #tpu.memory_space<vmem>>, vector<8x256xf32>
    %c1_i32_104 = arith.constant 1 : i32
    %195 = vector.broadcast %c1_i32_104 : i32 to vector<1x256xi32>
    %196 = arith.addi %16, %195 : vector<1x256xi32>
    %c0_i32_105 = arith.constant 0 : i32
    %197 = vector.broadcast %c0_i32_105 : i32 to vector<1x256xi32>
    %198 = arith.cmpi sge, %196, %197 : vector<1x256xi32>
    %c1_i32_106 = arith.constant 1 : i32
    %199 = vector.broadcast %c1_i32_106 : i32 to vector<1x256xi32>
    %200 = arith.addi %16, %199 : vector<1x256xi32>
    %c16_i32_107 = arith.constant 16 : i32
    %201 = vector.broadcast %c16_i32_107 : i32 to vector<1x256xi32>
    %202 = arith.cmpi slt, %200, %201 : vector<1x256xi32>
    %203 = arith.andi %198, %202 : vector<1x256xi1>
    %cst_108 = arith.constant 0.000000e+00 : f32
    %204 = vector.shape_cast %203 : vector<1x256xi1> to vector<1x256xi1>
    %205 = vector.broadcast %204 : vector<1x256xi1> to vector<8x256xi1>
    %206 = vector.broadcast %cst_108 : f32 to vector<8x256xf32>
    %207 = arith.select %205, %194, %206 : vector<8x256xi1>, vector<8x256xf32>
    %c0_109 = arith.constant 0 : index
    %c143_110 = arith.constant 143 : index
    %208 = vector.load %arg17[%c0_109, %c143_110] : memref<16x512xf32, #tpu.memory_space<vmem>>, vector<8x256xf32>
    %c-1_i32_111 = arith.constant -1 : i32
    %209 = vector.broadcast %c-1_i32_111 : i32 to vector<1x256xi32>
    %210 = arith.addi %16, %209 : vector<1x256xi32>
    %c0_i32_112 = arith.constant 0 : i32
    %211 = vector.broadcast %c0_i32_112 : i32 to vector<1x256xi32>
    %212 = arith.cmpi sge, %210, %211 : vector<1x256xi32>
    %c-1_i32_113 = arith.constant -1 : i32
    %213 = vector.broadcast %c-1_i32_113 : i32 to vector<1x256xi32>
    %214 = arith.addi %16, %213 : vector<1x256xi32>
    %c16_i32_114 = arith.constant 16 : i32
    %215 = vector.broadcast %c16_i32_114 : i32 to vector<1x256xi32>
    %216 = arith.cmpi slt, %214, %215 : vector<1x256xi32>
    %217 = arith.andi %212, %216 : vector<1x256xi1>
    %cst_115 = arith.constant 0.000000e+00 : f32
    %218 = vector.shape_cast %217 : vector<1x256xi1> to vector<1x256xi1>
    %219 = vector.broadcast %218 : vector<1x256xi1> to vector<8x256xi1>
    %220 = vector.broadcast %cst_115 : f32 to vector<8x256xf32>
    %221 = arith.select %219, %208, %220 : vector<8x256xi1>, vector<8x256xf32>
    %c0_116 = arith.constant 0 : index
    %c144_117 = arith.constant 144 : index
    %222 = vector.load %arg17[%c0_116, %c144_117] : memref<16x512xf32, #tpu.memory_space<vmem>>, vector<8x256xf32>
    %c0_118 = arith.constant 0 : index
    %c145_119 = arith.constant 145 : index
    %223 = vector.load %arg17[%c0_118, %c145_119] : memref<16x512xf32, #tpu.memory_space<vmem>>, vector<8x256xf32>
    %c1_i32_120 = arith.constant 1 : i32
    %224 = vector.broadcast %c1_i32_120 : i32 to vector<1x256xi32>
    %225 = arith.addi %16, %224 : vector<1x256xi32>
    %c0_i32_121 = arith.constant 0 : i32
    %226 = vector.broadcast %c0_i32_121 : i32 to vector<1x256xi32>
    %227 = arith.cmpi sge, %225, %226 : vector<1x256xi32>
    %c1_i32_122 = arith.constant 1 : i32
    %228 = vector.broadcast %c1_i32_122 : i32 to vector<1x256xi32>
    %229 = arith.addi %16, %228 : vector<1x256xi32>
    %c16_i32_123 = arith.constant 16 : i32
    %230 = vector.broadcast %c16_i32_123 : i32 to vector<1x256xi32>
    %231 = arith.cmpi slt, %229, %230 : vector<1x256xi32>
    %232 = arith.andi %227, %231 : vector<1x256xi1>
    %cst_124 = arith.constant 0.000000e+00 : f32
    %233 = vector.shape_cast %232 : vector<1x256xi1> to vector<1x256xi1>
    %234 = vector.broadcast %233 : vector<1x256xi1> to vector<8x256xi1>
    %235 = vector.broadcast %cst_124 : f32 to vector<8x256xf32>
    %236 = arith.select %234, %223, %235 : vector<8x256xi1>, vector<8x256xf32>
    %237 = tpu.concatenate %163, %164, %178, %192, %193, %207, %221, %222, %236 in 0 : vector<8x256xf32>, vector<8x256xf32>, vector<8x256xf32>, vector<8x256xf32>, vector<8x256xf32>, vector<8x256xf32>, vector<8x256xf32>, vector<8x256xf32>, vector<8x256xf32> -> vector<72x256xf32>
    %238 = arith.truncf %237 : vector<72x256xf32> to vector<72x256xbf16>
    %cst_125 = arith.constant dense<0.000000e+00> : vector<8x256xf32>
    %239 = tpu.matmul %146, %238, %cst_125 {dimension_numbers = #tpu.dot_dimension_numbers<[1], [0], [0], [1], [0, 0, 1, 1], [], []>} : vector<8x72xbf16>, vector<72x256xbf16>, vector<8x256xf32> -> vector<8x256xf32>
    %240 = vector.broadcast %148 : vector<8x1xf32> to vector<8x256xf32>
    %241 = arith.addf %239, %240 : vector<8x256xf32>
    %cst_126 = arith.constant 0.000000e+00 : f32
    %242 = vector.broadcast %cst_126 : f32 to vector<8x256xf32>
    %243 = arith.cmpf oge, %241, %242 : vector<8x256xf32>
    %cst_127 = arith.constant 0.00999999977 : f32
    %244 = vector.broadcast %cst_127 : f32 to vector<8x256xf32>
    %245 = arith.mulf %244, %241 : vector<8x256xf32>
    %246 = arith.select %243, %241, %245 : vector<8x256xi1>, vector<8x256xf32>
    %c0_128 = arith.constant 0 : index
    %c0_129 = arith.constant 0 : index
    %c0_130 = arith.constant 0 : index
    %247 = vector.load %arg9[%c0_128, %c0_129, %c0_130] : memref<1x8x72xbf16, #tpu.memory_space<vmem>>, vector<1x8x72xbf16>
    %248 = vector.shape_cast %247 : vector<1x8x72xbf16> to vector<8x72xbf16>
    %c0_131 = arith.constant 0 : index
    %c0_132 = arith.constant 0 : index
    %c0_133 = arith.constant 0 : index
    %249 = vector.load %arg10[%c0_131, %c0_132, %c0_133] : memref<1x8x1xf32, #tpu.memory_space<vmem>>, vector<1x8x1xf32>
    %250 = vector.shape_cast %249 : vector<1x8x1xf32> to vector<8x1xf32>
    %c0_134 = arith.constant 0 : index
    %c128_135 = arith.constant 128 : index
    %251 = vector.load %arg17[%c0_134, %c128_135] : memref<16x512xf32, #tpu.memory_space<vmem>>, vector<8x256xf32>
    tpu.vector_store %arg17[%c0_134, %c128_135], %246 {strides = array<i32>} : memref<16x512xf32, #tpu.memory_space<vmem>>, vector<8x256xf32>,
    %c0_136 = arith.constant 0 : index
    %c111_137 = arith.constant 111 : index
    %252 = vector.load %arg17[%c0_136, %c111_137] : memref<16x512xf32, #tpu.memory_space<vmem>>, vector<8x256xf32>
    %c-1_i32_138 = arith.constant -1 : i32
    %253 = vector.broadcast %c-1_i32_138 : i32 to vector<1x256xi32>
    %254 = arith.addi %16, %253 : vector<1x256xi32>
    %c0_i32_139 = arith.constant 0 : i32
    %255 = vector.broadcast %c0_i32_139 : i32 to vector<1x256xi32>
    %256 = arith.cmpi sge, %254, %255 : vector<1x256xi32>
    %c-1_i32_140 = arith.constant -1 : i32
    %257 = vector.broadcast %c-1_i32_140 : i32 to vector<1x256xi32>
    %258 = arith.addi %16, %257 : vector<1x256xi32>
    %c16_i32_141 = arith.constant 16 : i32
    %259 = vector.broadcast %c16_i32_141 : i32 to vector<1x256xi32>
    %260 = arith.cmpi slt, %258, %259 : vector<1x256xi32>
    %261 = arith.andi %256, %260 : vector<1x256xi1>
    %cst_142 = arith.constant 0.000000e+00 : f32
    %262 = vector.shape_cast %261 : vector<1x256xi1> to vector<1x256xi1>
    %263 = vector.broadcast %262 : vector<1x256xi1> to vector<8x256xi1>
    %264 = vector.broadcast %cst_142 : f32 to vector<8x256xf32>
    %265 = arith.select %263, %252, %264 : vector<8x256xi1>, vector<8x256xf32>
    %c0_143 = arith.constant 0 : index
    %c112_144 = arith.constant 112 : index
    %266 = vector.load %arg17[%c0_143, %c112_144] : memref<16x512xf32, #tpu.memory_space<vmem>>, vector<8x256xf32>
    %c0_145 = arith.constant 0 : index
    %c113_146 = arith.constant 113 : index
    %267 = vector.load %arg17[%c0_145, %c113_146] : memref<16x512xf32, #tpu.memory_space<vmem>>, vector<8x256xf32>
    %c1_i32_147 = arith.constant 1 : i32
    %268 = vector.broadcast %c1_i32_147 : i32 to vector<1x256xi32>
    %269 = arith.addi %16, %268 : vector<1x256xi32>
    %c0_i32_148 = arith.constant 0 : i32
    %270 = vector.broadcast %c0_i32_148 : i32 to vector<1x256xi32>
    %271 = arith.cmpi sge, %269, %270 : vector<1x256xi32>
    %c1_i32_149 = arith.constant 1 : i32
    %272 = vector.broadcast %c1_i32_149 : i32 to vector<1x256xi32>
    %273 = arith.addi %16, %272 : vector<1x256xi32>
    %c16_i32_150 = arith.constant 16 : i32
    %274 = vector.broadcast %c16_i32_150 : i32 to vector<1x256xi32>
    %275 = arith.cmpi slt, %273, %274 : vector<1x256xi32>
    %276 = arith.andi %271, %275 : vector<1x256xi1>
    %cst_151 = arith.constant 0.000000e+00 : f32
    %277 = vector.shape_cast %276 : vector<1x256xi1> to vector<1x256xi1>
    %278 = vector.broadcast %277 : vector<1x256xi1> to vector<8x256xi1>
    %279 = vector.broadcast %cst_151 : f32 to vector<8x256xf32>
    %280 = arith.select %278, %267, %279 : vector<8x256xi1>, vector<8x256xf32>
    %c0_152 = arith.constant 0 : index
    %c127_153 = arith.constant 127 : index
    %281 = vector.load %arg17[%c0_152, %c127_153] : memref<16x512xf32, #tpu.memory_space<vmem>>, vector<8x256xf32>
    %c-1_i32_154 = arith.constant -1 : i32
    %282 = vector.broadcast %c-1_i32_154 : i32 to vector<1x256xi32>
    %283 = arith.addi %16, %282 : vector<1x256xi32>
    %c0_i32_155 = arith.constant 0 : i32
    %284 = vector.broadcast %c0_i32_155 : i32 to vector<1x256xi32>
    %285 = arith.cmpi sge, %283, %284 : vector<1x256xi32>
    %c-1_i32_156 = arith.constant -1 : i32
    %286 = vector.broadcast %c-1_i32_156 : i32 to vector<1x256xi32>
    %287 = arith.addi %16, %286 : vector<1x256xi32>
    %c16_i32_157 = arith.constant 16 : i32
    %288 = vector.broadcast %c16_i32_157 : i32 to vector<1x256xi32>
    %289 = arith.cmpi slt, %287, %288 : vector<1x256xi32>
    %290 = arith.andi %285, %289 : vector<1x256xi1>
    %cst_158 = arith.constant 0.000000e+00 : f32
    %291 = vector.shape_cast %290 : vector<1x256xi1> to vector<1x256xi1>
    %292 = vector.broadcast %291 : vector<1x256xi1> to vector<8x256xi1>
    %293 = vector.broadcast %cst_158 : f32 to vector<8x256xf32>
    %294 = arith.select %292, %281, %293 : vector<8x256xi1>, vector<8x256xf32>
    %c0_159 = arith.constant 0 : index
    %c128_160 = arith.constant 128 : index
    %295 = vector.load %arg17[%c0_159, %c128_160] : memref<16x512xf32, #tpu.memory_space<vmem>>, vector<8x256xf32>
    %c0_161 = arith.constant 0 : index
    %c129_162 = arith.constant 129 : index
    %296 = vector.load %arg17[%c0_161, %c129_162] : memref<16x512xf32, #tpu.memory_space<vmem>>, vector<8x256xf32>
    %c1_i32_163 = arith.constant 1 : i32
    %297 = vector.broadcast %c1_i32_163 : i32 to vector<1x256xi32>
    %298 = arith.addi %16, %297 : vector<1x256xi32>
    %c0_i32_164 = arith.constant 0 : i32
    %299 = vector.broadcast %c0_i32_164 : i32 to vector<1x256xi32>
    %300 = arith.cmpi sge, %298, %299 : vector<1x256xi32>
    %c1_i32_165 = arith.constant 1 : i32
    %301 = vector.broadcast %c1_i32_165 : i32 to vector<1x256xi32>
    %302 = arith.addi %16, %301 : vector<1x256xi32>
    %c16_i32_166 = arith.constant 16 : i32
    %303 = vector.broadcast %c16_i32_166 : i32 to vector<1x256xi32>
    %304 = arith.cmpi slt, %302, %303 : vector<1x256xi32>
    %305 = arith.andi %300, %304 : vector<1x256xi1>
    %cst_167 = arith.constant 0.000000e+00 : f32
    %306 = vector.shape_cast %305 : vector<1x256xi1> to vector<1x256xi1>
    %307 = vector.broadcast %306 : vector<1x256xi1> to vector<8x256xi1>
    %308 = vector.broadcast %cst_167 : f32 to vector<8x256xf32>
    %309 = arith.select %307, %296, %308 : vector<8x256xi1>, vector<8x256xf32>
    %c0_168 = arith.constant 0 : index
    %c143_169 = arith.constant 143 : index
    %310 = vector.load %arg17[%c0_168, %c143_169] : memref<16x512xf32, #tpu.memory_space<vmem>>, vector<8x256xf32>
    %c-1_i32_170 = arith.constant -1 : i32
    %311 = vector.broadcast %c-1_i32_170 : i32 to vector<1x256xi32>
    %312 = arith.addi %16, %311 : vector<1x256xi32>
    %c0_i32_171 = arith.constant 0 : i32
    %313 = vector.broadcast %c0_i32_171 : i32 to vector<1x256xi32>
    %314 = arith.cmpi sge, %312, %313 : vector<1x256xi32>
    %c-1_i32_172 = arith.constant -1 : i32
    %315 = vector.broadcast %c-1_i32_172 : i32 to vector<1x256xi32>
    %316 = arith.addi %16, %315 : vector<1x256xi32>
    %c16_i32_173 = arith.constant 16 : i32
    %317 = vector.broadcast %c16_i32_173 : i32 to vector<1x256xi32>
    %318 = arith.cmpi slt, %316, %317 : vector<1x256xi32>
    %319 = arith.andi %314, %318 : vector<1x256xi1>
    %cst_174 = arith.constant 0.000000e+00 : f32
    %320 = vector.shape_cast %319 : vector<1x256xi1> to vector<1x256xi1>
    %321 = vector.broadcast %320 : vector<1x256xi1> to vector<8x256xi1>
    %322 = vector.broadcast %cst_174 : f32 to vector<8x256xf32>
    %323 = arith.select %321, %310, %322 : vector<8x256xi1>, vector<8x256xf32>
    %c0_175 = arith.constant 0 : index
    %c144_176 = arith.constant 144 : index
    %324 = vector.load %arg17[%c0_175, %c144_176] : memref<16x512xf32, #tpu.memory_space<vmem>>, vector<8x256xf32>
    %c0_177 = arith.constant 0 : index
    %c145_178 = arith.constant 145 : index
    %325 = vector.load %arg17[%c0_177, %c145_178] : memref<16x512xf32, #tpu.memory_space<vmem>>, vector<8x256xf32>
    %c1_i32_179 = arith.constant 1 : i32
    %326 = vector.broadcast %c1_i32_179 : i32 to vector<1x256xi32>
    %327 = arith.addi %16, %326 : vector<1x256xi32>
    %c0_i32_180 = arith.constant 0 : i32
    %328 = vector.broadcast %c0_i32_180 : i32 to vector<1x256xi32>
    %329 = arith.cmpi sge, %327, %328 : vector<1x256xi32>
    %c1_i32_181 = arith.constant 1 : i32
    %330 = vector.broadcast %c1_i32_181 : i32 to vector<1x256xi32>
    %331 = arith.addi %16, %330 : vector<1x256xi32>
    %c16_i32_182 = arith.constant 16 : i32
    %332 = vector.broadcast %c16_i32_182 : i32 to vector<1x256xi32>
    %333 = arith.cmpi slt, %331, %332 : vector<1x256xi32>
    %334 = arith.andi %329, %333 : vector<1x256xi1>
    %cst_183 = arith.constant 0.000000e+00 : f32
    %335 = vector.shape_cast %334 : vector<1x256xi1> to vector<1x256xi1>
    %336 = vector.broadcast %335 : vector<1x256xi1> to vector<8x256xi1>
    %337 = vector.broadcast %cst_183 : f32 to vector<8x256xf32>
    %338 = arith.select %336, %325, %337 : vector<8x256xi1>, vector<8x256xf32>
    %339 = tpu.concatenate %265, %266, %280, %294, %295, %309, %323, %324, %338 in 0 : vector<8x256xf32>, vector<8x256xf32>, vector<8x256xf32>, vector<8x256xf32>, vector<8x256xf32>, vector<8x256xf32>, vector<8x256xf32>, vector<8x256xf32>, vector<8x256xf32> -> vector<72x256xf32>
    %340 = arith.truncf %339 : vector<72x256xf32> to vector<72x256xbf16>
    %cst_184 = arith.constant dense<0.000000e+00> : vector<8x256xf32>
    %341 = tpu.matmul %248, %340, %cst_184 {dimension_numbers = #tpu.dot_dimension_numbers<[1], [0], [0], [1], [0, 0, 1, 1], [], []>} : vector<8x72xbf16>, vector<72x256xbf16>, vector<8x256xf32> -> vector<8x256xf32>
    %342 = vector.broadcast %250 : vector<8x1xf32> to vector<8x256xf32>
    %343 = arith.addf %341, %342 : vector<8x256xf32>
    %c0_185 = arith.constant 0 : index
    %c0_186 = arith.constant 0 : index
    %344 = vector.load %arg11[%c0_185, %c0_186] : memref<8x1xf32, #tpu.memory_space<vmem>>, vector<8x1xf32>
    %345 = vector.broadcast %344 : vector<8x1xf32> to vector<8x256xf32>
    %346 = arith.mulf %345, %343 : vector<8x256xf32>
    %347 = arith.addf %122, %346 : vector<8x256xf32>
    %c0_187 = arith.constant 0 : index
    %c0_188 = arith.constant 0 : index
    %348 = vector.load %arg12[%c0_187, %c0_188] : memref<8x1xf32, #tpu.memory_space<vmem>>, vector<8x1xf32>
    %c0_189 = arith.constant 0 : index
    %c0_190 = arith.constant 0 : index
    %349 = vector.load %arg13[%c0_189, %c0_190] : memref<8x1xf32, #tpu.memory_space<vmem>>, vector<8x1xf32>
    %cst_191 = arith.constant dense<0.000000e+00> : vector<256xf32>
    %350 = vector.multi_reduction <add>, %347, %cst_191 [0] : vector<8x256xf32> to vector<256xf32>
    %351 = vector.shape_cast %350 : vector<256xf32> to vector<1x256xf32>
    %cst_192 = arith.constant 8.000000e+00 : f32
    %352 = vector.broadcast %cst_192 : f32 to vector<1x256xf32>
    %353 = arith.divf %351, %352 : vector<1x256xf32>
    %354 = vector.broadcast %353 : vector<1x256xf32> to vector<8x256xf32>
    %355 = arith.subf %347, %354 : vector<8x256xf32>
    %356 = arith.mulf %355, %355 : vector<8x256xf32>
    %cst_193 = arith.constant dense<0.000000e+00> : vector<256xf32>
    %357 = vector.multi_reduction <add>, %356, %cst_193 [0] : vector<8x256xf32> to vector<256xf32>
    %358 = vector.shape_cast %357 : vector<256xf32> to vector<1x256xf32>
    %cst_194 = arith.constant 8.000000e+00 : f32
    %359 = vector.broadcast %cst_194 : f32 to vector<1x256xf32>
    %360 = arith.divf %358, %359 : vector<1x256xf32>
    %cst_195 = arith.constant 9.99999997E-7 : f32
    %361 = vector.broadcast %cst_195 : f32 to vector<1x256xf32>
    %362 = arith.addf %360, %361 : vector<1x256xf32>
    %363 = math.rsqrt %362 : vector<1x256xf32>
    %364 = vector.broadcast %363 : vector<1x256xf32> to vector<8x256xf32>
    %365 = arith.mulf %355, %364 : vector<8x256xf32>
    %366 = vector.broadcast %348 : vector<8x1xf32> to vector<8x256xf32>
    %367 = arith.mulf %365, %366 : vector<8x256xf32>
    %368 = vector.broadcast %349 : vector<8x1xf32> to vector<8x256xf32>
    %369 = arith.addf %367, %368 : vector<8x256xf32>
    %c0_196 = arith.constant 0 : index
    %c0_197 = arith.constant 0 : index
    %370 = vector.load %arg14[%c0_196, %c0_197] : memref<2x72xf32, #tpu.memory_space<vmem>>, vector<2x72xf32>
    %371 = arith.truncf %370 : vector<2x72xf32> to vector<2x72xbf16>
    %c0_198 = arith.constant 0 : index
    %c0_199 = arith.constant 0 : index
    %372 = vector.load %arg15[%c0_198, %c0_199] : memref<2x1xf32, #tpu.memory_space<vmem>>, vector<2x1xf32>
    %c0_200 = arith.constant 0 : index
    %c128_201 = arith.constant 128 : index
    %373 = vector.load %arg17[%c0_200, %c128_201] : memref<16x512xf32, #tpu.memory_space<vmem>>, vector<8x256xf32>
    tpu.vector_store %arg17[%c0_200, %c128_201], %369 {strides = array<i32>} : memref<16x512xf32, #tpu.memory_space<vmem>>, vector<8x256xf32>,
    %c0_202 = arith.constant 0 : index
    %c111_203 = arith.constant 111 : index
    %374 = vector.load %arg17[%c0_202, %c111_203] : memref<16x512xf32, #tpu.memory_space<vmem>>, vector<8x256xf32>
    %c-1_i32_204 = arith.constant -1 : i32
    %375 = vector.broadcast %c-1_i32_204 : i32 to vector<1x256xi32>
    %376 = arith.addi %16, %375 : vector<1x256xi32>
    %c0_i32_205 = arith.constant 0 : i32
    %377 = vector.broadcast %c0_i32_205 : i32 to vector<1x256xi32>
    %378 = arith.cmpi sge, %376, %377 : vector<1x256xi32>
    %c-1_i32_206 = arith.constant -1 : i32
    %379 = vector.broadcast %c-1_i32_206 : i32 to vector<1x256xi32>
    %380 = arith.addi %16, %379 : vector<1x256xi32>
    %c16_i32_207 = arith.constant 16 : i32
    %381 = vector.broadcast %c16_i32_207 : i32 to vector<1x256xi32>
    %382 = arith.cmpi slt, %380, %381 : vector<1x256xi32>
    %383 = arith.andi %378, %382 : vector<1x256xi1>
    %cst_208 = arith.constant 0.000000e+00 : f32
    %384 = vector.shape_cast %383 : vector<1x256xi1> to vector<1x256xi1>
    %385 = vector.broadcast %384 : vector<1x256xi1> to vector<8x256xi1>
    %386 = vector.broadcast %cst_208 : f32 to vector<8x256xf32>
    %387 = arith.select %385, %374, %386 : vector<8x256xi1>, vector<8x256xf32>
    %c0_209 = arith.constant 0 : index
    %c112_210 = arith.constant 112 : index
    %388 = vector.load %arg17[%c0_209, %c112_210] : memref<16x512xf32, #tpu.memory_space<vmem>>, vector<8x256xf32>
    %c0_211 = arith.constant 0 : index
    %c113_212 = arith.constant 113 : index
    %389 = vector.load %arg17[%c0_211, %c113_212] : memref<16x512xf32, #tpu.memory_space<vmem>>, vector<8x256xf32>
    %c1_i32_213 = arith.constant 1 : i32
    %390 = vector.broadcast %c1_i32_213 : i32 to vector<1x256xi32>
    %391 = arith.addi %16, %390 : vector<1x256xi32>
    %c0_i32_214 = arith.constant 0 : i32
    %392 = vector.broadcast %c0_i32_214 : i32 to vector<1x256xi32>
    %393 = arith.cmpi sge, %391, %392 : vector<1x256xi32>
    %c1_i32_215 = arith.constant 1 : i32
    %394 = vector.broadcast %c1_i32_215 : i32 to vector<1x256xi32>
    %395 = arith.addi %16, %394 : vector<1x256xi32>
    %c16_i32_216 = arith.constant 16 : i32
    %396 = vector.broadcast %c16_i32_216 : i32 to vector<1x256xi32>
    %397 = arith.cmpi slt, %395, %396 : vector<1x256xi32>
    %398 = arith.andi %393, %397 : vector<1x256xi1>
    %cst_217 = arith.constant 0.000000e+00 : f32
    %399 = vector.shape_cast %398 : vector<1x256xi1> to vector<1x256xi1>
    %400 = vector.broadcast %399 : vector<1x256xi1> to vector<8x256xi1>
    %401 = vector.broadcast %cst_217 : f32 to vector<8x256xf32>
    %402 = arith.select %400, %389, %401 : vector<8x256xi1>, vector<8x256xf32>
    %c0_218 = arith.constant 0 : index
    %c127_219 = arith.constant 127 : index
    %403 = vector.load %arg17[%c0_218, %c127_219] : memref<16x512xf32, #tpu.memory_space<vmem>>, vector<8x256xf32>
    %c-1_i32_220 = arith.constant -1 : i32
    %404 = vector.broadcast %c-1_i32_220 : i32 to vector<1x256xi32>
    %405 = arith.addi %16, %404 : vector<1x256xi32>
    %c0_i32_221 = arith.constant 0 : i32
    %406 = vector.broadcast %c0_i32_221 : i32 to vector<1x256xi32>
    %407 = arith.cmpi sge, %405, %406 : vector<1x256xi32>
    %c-1_i32_222 = arith.constant -1 : i32
    %408 = vector.broadcast %c-1_i32_222 : i32 to vector<1x256xi32>
    %409 = arith.addi %16, %408 : vector<1x256xi32>
    %c16_i32_223 = arith.constant 16 : i32
    %410 = vector.broadcast %c16_i32_223 : i32 to vector<1x256xi32>
    %411 = arith.cmpi slt, %409, %410 : vector<1x256xi32>
    %412 = arith.andi %407, %411 : vector<1x256xi1>
    %cst_224 = arith.constant 0.000000e+00 : f32
    %413 = vector.shape_cast %412 : vector<1x256xi1> to vector<1x256xi1>
    %414 = vector.broadcast %413 : vector<1x256xi1> to vector<8x256xi1>
    %415 = vector.broadcast %cst_224 : f32 to vector<8x256xf32>
    %416 = arith.select %414, %403, %415 : vector<8x256xi1>, vector<8x256xf32>
    %c0_225 = arith.constant 0 : index
    %c128_226 = arith.constant 128 : index
    %417 = vector.load %arg17[%c0_225, %c128_226] : memref<16x512xf32, #tpu.memory_space<vmem>>, vector<8x256xf32>
    %c0_227 = arith.constant 0 : index
    %c129_228 = arith.constant 129 : index
    %418 = vector.load %arg17[%c0_227, %c129_228] : memref<16x512xf32, #tpu.memory_space<vmem>>, vector<8x256xf32>
    %c1_i32_229 = arith.constant 1 : i32
    %419 = vector.broadcast %c1_i32_229 : i32 to vector<1x256xi32>
    %420 = arith.addi %16, %419 : vector<1x256xi32>
    %c0_i32_230 = arith.constant 0 : i32
    %421 = vector.broadcast %c0_i32_230 : i32 to vector<1x256xi32>
    %422 = arith.cmpi sge, %420, %421 : vector<1x256xi32>
    %c1_i32_231 = arith.constant 1 : i32
    %423 = vector.broadcast %c1_i32_231 : i32 to vector<1x256xi32>
    %424 = arith.addi %16, %423 : vector<1x256xi32>
    %c16_i32_232 = arith.constant 16 : i32
    %425 = vector.broadcast %c16_i32_232 : i32 to vector<1x256xi32>
    %426 = arith.cmpi slt, %424, %425 : vector<1x256xi32>
    %427 = arith.andi %422, %426 : vector<1x256xi1>
    %cst_233 = arith.constant 0.000000e+00 : f32
    %428 = vector.shape_cast %427 : vector<1x256xi1> to vector<1x256xi1>
    %429 = vector.broadcast %428 : vector<1x256xi1> to vector<8x256xi1>
    %430 = vector.broadcast %cst_233 : f32 to vector<8x256xf32>
    %431 = arith.select %429, %418, %430 : vector<8x256xi1>, vector<8x256xf32>
    %c0_234 = arith.constant 0 : index
    %c143_235 = arith.constant 143 : index
    %432 = vector.load %arg17[%c0_234, %c143_235] : memref<16x512xf32, #tpu.memory_space<vmem>>, vector<8x256xf32>
    %c-1_i32_236 = arith.constant -1 : i32
    %433 = vector.broadcast %c-1_i32_236 : i32 to vector<1x256xi32>
    %434 = arith.addi %16, %433 : vector<1x256xi32>
    %c0_i32_237 = arith.constant 0 : i32
    %435 = vector.broadcast %c0_i32_237 : i32 to vector<1x256xi32>
    %436 = arith.cmpi sge, %434, %435 : vector<1x256xi32>
    %c-1_i32_238 = arith.constant -1 : i32
    %437 = vector.broadcast %c-1_i32_238 : i32 to vector<1x256xi32>
    %438 = arith.addi %16, %437 : vector<1x256xi32>
    %c16_i32_239 = arith.constant 16 : i32
    %439 = vector.broadcast %c16_i32_239 : i32 to vector<1x256xi32>
    %440 = arith.cmpi slt, %438, %439 : vector<1x256xi32>
    %441 = arith.andi %436, %440 : vector<1x256xi1>
    %cst_240 = arith.constant 0.000000e+00 : f32
    %442 = vector.shape_cast %441 : vector<1x256xi1> to vector<1x256xi1>
    %443 = vector.broadcast %442 : vector<1x256xi1> to vector<8x256xi1>
    %444 = vector.broadcast %cst_240 : f32 to vector<8x256xf32>
    %445 = arith.select %443, %432, %444 : vector<8x256xi1>, vector<8x256xf32>
    %c0_241 = arith.constant 0 : index
    %c144_242 = arith.constant 144 : index
    %446 = vector.load %arg17[%c0_241, %c144_242] : memref<16x512xf32, #tpu.memory_space<vmem>>, vector<8x256xf32>
    %c0_243 = arith.constant 0 : index
    %c145_244 = arith.constant 145 : index
    %447 = vector.load %arg17[%c0_243, %c145_244] : memref<16x512xf32, #tpu.memory_space<vmem>>, vector<8x256xf32>
    %c1_i32_245 = arith.constant 1 : i32
    %448 = vector.broadcast %c1_i32_245 : i32 to vector<1x256xi32>
    %449 = arith.addi %16, %448 : vector<1x256xi32>
    %c0_i32_246 = arith.constant 0 : i32
    %450 = vector.broadcast %c0_i32_246 : i32 to vector<1x256xi32>
    %451 = arith.cmpi sge, %449, %450 : vector<1x256xi32>
    %c1_i32_247 = arith.constant 1 : i32
    %452 = vector.broadcast %c1_i32_247 : i32 to vector<1x256xi32>
    %453 = arith.addi %16, %452 : vector<1x256xi32>
    %c16_i32_248 = arith.constant 16 : i32
    %454 = vector.broadcast %c16_i32_248 : i32 to vector<1x256xi32>
    %455 = arith.cmpi slt, %453, %454 : vector<1x256xi32>
    %456 = arith.andi %451, %455 : vector<1x256xi1>
    %cst_249 = arith.constant 0.000000e+00 : f32
    %457 = vector.shape_cast %456 : vector<1x256xi1> to vector<1x256xi1>
    %458 = vector.broadcast %457 : vector<1x256xi1> to vector<8x256xi1>
    %459 = vector.broadcast %cst_249 : f32 to vector<8x256xf32>
    %460 = arith.select %458, %447, %459 : vector<8x256xi1>, vector<8x256xf32>
    %461 = tpu.concatenate %387, %388, %402, %416, %417, %431, %445, %446, %460 in 0 : vector<8x256xf32>, vector<8x256xf32>, vector<8x256xf32>, vector<8x256xf32>, vector<8x256xf32>, vector<8x256xf32>, vector<8x256xf32>, vector<8x256xf32>, vector<8x256xf32> -> vector<72x256xf32>
    %462 = arith.truncf %461 : vector<72x256xf32> to vector<72x256xbf16>
    %cst_250 = arith.constant dense<0.000000e+00> : vector<2x256xf32>
    %463 = tpu.matmul %371, %462, %cst_250 {dimension_numbers = #tpu.dot_dimension_numbers<[1], [0], [0], [1], [0, 0, 1, 1], [], []>} : vector<2x72xbf16>, vector<72x256xbf16>, vector<2x256xf32> -> vector<2x256xf32>
    %464 = vector.broadcast %372 : vector<2x1xf32> to vector<2x256xf32>
    %465 = arith.addf %463, %464 : vector<2x256xf32>
    %cst_251 = arith.constant 0.000000e+00 : f32
    %466 = vector.broadcast %cst_251 : f32 to vector<2x256xf32>
    %467 = arith.cmpf oge, %465, %466 : vector<2x256xf32>
    %cst_252 = arith.constant 0.00999999977 : f32
    %468 = vector.broadcast %cst_252 : f32 to vector<2x256xf32>
    %469 = arith.mulf %468, %465 : vector<2x256xf32>
    %470 = arith.select %467, %465, %469 : vector<2x256xi1>, vector<2x256xf32>
    %c0_253 = arith.constant 0 : index
    %c0_254 = arith.constant 0 : index
    %c0_255 = arith.constant 0 : index
    %471 = vector.load %arg16[%c0_253, %c0_254, %c0_255] : memref<1x2x256xf32, #tpu.memory_space<vmem>>, vector<1x2x256xf32>
    %472 = vector.shape_cast %471 : vector<1x2x256xf32> to vector<2x256xf32>
    %473 = vector.shape_cast %470 : vector<2x256xf32> to vector<1x2x256xf32>
    tpu.vector_store %arg16[%c0_253, %c0_254, %c0_255], %473 {strides = array<i32>} : memref<1x2x256xf32, #tpu.memory_space<vmem>>, vector<1x2x256xf32>,
    return
  }
  func.func @transform_0(%arg0: i32) -> (i32, i32, i32) {
    %c0_i32 = arith.constant 0 : i32
    %c0_i32_0 = arith.constant 0 : i32
    %c0_i32_1 = arith.constant 0 : i32
    return %arg0, %c0_i32, %c0_i32_0 : i32, i32, i32
  }
  func.func @transform_1(%arg0: i32) -> (i32, i32, i32) {
    %c0_i32 = arith.constant 0 : i32
    %c0_i32_0 = arith.constant 0 : i32
    %c0_i32_1 = arith.constant 0 : i32
    return %arg0, %c0_i32, %c0_i32_0 : i32, i32, i32
  }
  func.func @transform_2(%arg0: i32) -> (i32, i32, i32) {
    %c0_i32 = arith.constant 0 : i32
    %c0_i32_0 = arith.constant 0 : i32
    %c0_i32_1 = arith.constant 0 : i32
    return %arg0, %c0_i32, %c0_i32_0 : i32, i32, i32
  }
  func.func @transform_3(%arg0: i32) -> (i32, i32, i32) {
    %c0_i32 = arith.constant 0 : i32
    %c0_i32_0 = arith.constant 0 : i32
    %c0_i32_1 = arith.constant 0 : i32
    return %arg0, %c0_i32, %c0_i32_0 : i32, i32, i32
  }
  func.func @transform_4(%arg0: i32) -> (i32, i32) {
    %c0_i32 = arith.constant 0 : i32
    %c0_i32_0 = arith.constant 0 : i32
    %c0_i32_1 = arith.constant 0 : i32
    return %c0_i32, %c0_i32_0 : i32, i32
  }
  func.func @transform_5(%arg0: i32) -> (i32, i32) {
    %c0_i32 = arith.constant 0 : i32
    %c0_i32_0 = arith.constant 0 : i32
    %c0_i32_1 = arith.constant 0 : i32
    return %c0_i32, %c0_i32_0 : i32, i32
  }
  func.func @transform_6(%arg0: i32) -> (i32, i32, i32) {
    %c0_i32 = arith.constant 0 : i32
    %c0_i32_0 = arith.constant 0 : i32
    %c0_i32_1 = arith.constant 0 : i32
    return %arg0, %c0_i32, %c0_i32_0 : i32, i32, i32
  }
  func.func @transform_7(%arg0: i32) -> (i32, i32, i32) {
    %c0_i32 = arith.constant 0 : i32
    %c0_i32_0 = arith.constant 0 : i32
    %c0_i32_1 = arith.constant 0 : i32
    return %arg0, %c0_i32, %c0_i32_0 : i32, i32, i32
  }
  func.func @transform_8(%arg0: i32) -> (i32, i32, i32) {
    %c0_i32 = arith.constant 0 : i32
    %c0_i32_0 = arith.constant 0 : i32
    %c0_i32_1 = arith.constant 0 : i32
    return %arg0, %c0_i32, %c0_i32_0 : i32, i32, i32
  }
  func.func @transform_9(%arg0: i32) -> (i32, i32, i32) {
    %c0_i32 = arith.constant 0 : i32
    %c0_i32_0 = arith.constant 0 : i32
    %c0_i32_1 = arith.constant 0 : i32
    return %arg0, %c0_i32, %c0_i32_0 : i32, i32, i32
  }
  func.func @transform_10(%arg0: i32) -> (i32, i32) {
    %c0_i32 = arith.constant 0 : i32
    %c0_i32_0 = arith.constant 0 : i32
    %c0_i32_1 = arith.constant 0 : i32
    return %c0_i32, %c0_i32_0 : i32, i32
  }
  func.func @transform_11(%arg0: i32) -> (i32, i32) {
    %c0_i32 = arith.constant 0 : i32
    %c0_i32_0 = arith.constant 0 : i32
    %c0_i32_1 = arith.constant 0 : i32
    return %c0_i32, %c0_i32_0 : i32, i32
  }
  func.func @transform_12(%arg0: i32) -> (i32, i32) {
    %c0_i32 = arith.constant 0 : i32
    %c0_i32_0 = arith.constant 0 : i32
    %c0_i32_1 = arith.constant 0 : i32
    return %c0_i32, %c0_i32_0 : i32, i32
  }
  func.func @transform_13(%arg0: i32) -> (i32, i32) {
    %c0_i32 = arith.constant 0 : i32
    %c0_i32_0 = arith.constant 0 : i32
    %c0_i32_1 = arith.constant 0 : i32
    return %c0_i32, %c0_i32_0 : i32, i32
  }
  func.func @transform_14(%arg0: i32) -> (i32, i32) {
    %c0_i32 = arith.constant 0 : i32
    %c0_i32_0 = arith.constant 0 : i32
    %c0_i32_1 = arith.constant 0 : i32
    return %c0_i32, %c0_i32_0 : i32, i32
  }
  func.func @transform_15(%arg0: i32) -> (i32, i32, i32) {
    %c0_i32 = arith.constant 0 : i32
    %c0_i32_0 = arith.constant 0 : i32
    %c0_i32_1 = arith.constant 0 : i32
    return %arg0, %c0_i32, %c0_i32_0 : i32, i32, i32
  }
}

module attributes {stable_mosaic.version = 11 : i64} {
  func.func @_fusion_kernel(%arg0: i32, %arg1: memref<1x8x256xf32, #tpu.memory_space<vmem>>, %arg2: memref<3x8xf32, #tpu.memory_space<vmem>>, %arg3: memref<3x1xf32, #tpu.memory_space<vmem>>, %arg4: memref<8x3xf32, #tpu.memory_space<vmem>>, %arg5: memref<8x1xf32, #tpu.memory_space<vmem>>, %arg6: memref<1x3x256xf32, #tpu.memory_space<vmem>>, %arg7: memref<1x8x256xf32, #tpu.memory_space<vmem>>) attributes {dimension_semantics = [#tpu.dimension_semantics<parallel>], iteration_bounds = array<i64: 2>, scalar_prefetch = 0 : i64, scratch_operands = 0 : i64, tpu.core_type = #tpu.core_type<tc>, window_params = [{transform_indices = @transform_0, window_bounds = array<i64: 1, 8, 256>}, {pipeline_mode = #tpu.pipeline_mode<synchronous>, transform_indices = @transform_1, window_bounds = array<i64: 3, 8>}, {pipeline_mode = #tpu.pipeline_mode<synchronous>, transform_indices = @transform_2, window_bounds = array<i64: 3, 1>}, {pipeline_mode = #tpu.pipeline_mode<synchronous>, transform_indices = @transform_3, window_bounds = array<i64: 8, 3>}, {pipeline_mode = #tpu.pipeline_mode<synchronous>, transform_indices = @transform_4, window_bounds = array<i64: 8, 1>}, {transform_indices = @transform_5, window_bounds = array<i64: 1, 3, 256>}, {transform_indices = @transform_6, window_bounds = array<i64: 1, 8, 256>}]} {
    %c0 = arith.constant 0 : index
    %c0_0 = arith.constant 0 : index
    %c0_1 = arith.constant 0 : index
    %0 = vector.load %arg1[%c0, %c0_0, %c0_1] : memref<1x8x256xf32, #tpu.memory_space<vmem>>, vector<1x8x256xf32>
    %1 = vector.shape_cast %0 : vector<1x8x256xf32> to vector<8x256xf32>
    %c0_2 = arith.constant 0 : index
    %c0_3 = arith.constant 0 : index
    %2 = vector.load %arg2[%c0_2, %c0_3] : memref<3x8xf32, #tpu.memory_space<vmem>>, vector<3x8xf32>
    %c0_4 = arith.constant 0 : index
    %c0_5 = arith.constant 0 : index
    %3 = vector.load %arg3[%c0_4, %c0_5] : memref<3x1xf32, #tpu.memory_space<vmem>>, vector<3x1xf32>
    %4 = arith.truncf %2 : vector<3x8xf32> to vector<3x8xbf16>
    %5 = arith.truncf %1 : vector<8x256xf32> to vector<8x256xbf16>
    %cst = arith.constant dense<0.000000e+00> : vector<3x256xf32>
    %6 = tpu.matmul %4, %5, %cst {dimension_numbers = #tpu.dot_dimension_numbers<[1], [0], [0], [1], [0, 0, 1, 1], [], []>} : vector<3x8xbf16>, vector<8x256xbf16>, vector<3x256xf32> -> vector<3x256xf32>
    %7 = vector.broadcast %3 : vector<3x1xf32> to vector<3x256xf32>
    %8 = arith.addf %6, %7 : vector<3x256xf32>
    %cst_6 = arith.constant 0.000000e+00 : f32
    %9 = vector.broadcast %cst_6 : f32 to vector<3x256xf32>
    %10 = arith.cmpf oge, %8, %9 : vector<3x256xf32>
    %cst_7 = arith.constant 0.00999999977 : f32
    %11 = vector.broadcast %cst_7 : f32 to vector<3x256xf32>
    %12 = arith.mulf %11, %8 : vector<3x256xf32>
    %13 = arith.select %10, %8, %12 : vector<3x256xi1>, vector<3x256xf32>
    %c0_8 = arith.constant 0 : index
    %c0_9 = arith.constant 0 : index
    %c0_10 = arith.constant 0 : index
    %14 = vector.load %arg6[%c0_8, %c0_9, %c0_10] : memref<1x3x256xf32, #tpu.memory_space<vmem>>, vector<1x3x256xf32>
    %15 = vector.shape_cast %14 : vector<1x3x256xf32> to vector<3x256xf32>
    %16 = vector.shape_cast %13 : vector<3x256xf32> to vector<1x3x256xf32>
    tpu.vector_store %arg6[%c0_8, %c0_9, %c0_10], %16 {strides = array<i32>} : memref<1x3x256xf32, #tpu.memory_space<vmem>>, vector<1x3x256xf32>,
    %c0_11 = arith.constant 0 : index
    %c0_12 = arith.constant 0 : index
    %17 = vector.load %arg4[%c0_11, %c0_12] : memref<8x3xf32, #tpu.memory_space<vmem>>, vector<8x3xf32>
    %c0_13 = arith.constant 0 : index
    %c0_14 = arith.constant 0 : index
    %18 = vector.load %arg5[%c0_13, %c0_14] : memref<8x1xf32, #tpu.memory_space<vmem>>, vector<8x1xf32>
    %19 = arith.truncf %17 : vector<8x3xf32> to vector<8x3xbf16>
    %20 = arith.truncf %13 : vector<3x256xf32> to vector<3x256xbf16>
    %cst_15 = arith.constant dense<0.000000e+00> : vector<8x256xf32>
    %21 = tpu.matmul %19, %20, %cst_15 {dimension_numbers = #tpu.dot_dimension_numbers<[1], [0], [0], [1], [0, 0, 1, 1], [], []>} : vector<8x3xbf16>, vector<3x256xbf16>, vector<8x256xf32> -> vector<8x256xf32>
    %22 = vector.broadcast %18 : vector<8x1xf32> to vector<8x256xf32>
    %23 = arith.addf %21, %22 : vector<8x256xf32>
    %c0_16 = arith.constant 0 : index
    %c0_17 = arith.constant 0 : index
    %c0_18 = arith.constant 0 : index
    %24 = vector.load %arg7[%c0_16, %c0_17, %c0_18] : memref<1x8x256xf32, #tpu.memory_space<vmem>>, vector<1x8x256xf32>
    %25 = vector.shape_cast %24 : vector<1x8x256xf32> to vector<8x256xf32>
    %26 = vector.shape_cast %23 : vector<8x256xf32> to vector<1x8x256xf32>
    tpu.vector_store %arg7[%c0_16, %c0_17, %c0_18], %26 {strides = array<i32>} : memref<1x8x256xf32, #tpu.memory_space<vmem>>, vector<1x8x256xf32>,
    return
  }
  func.func @transform_0(%arg0: i32) -> (i32, i32, i32) {
    %c0_i32 = arith.constant 0 : i32
    %c0_i32_0 = arith.constant 0 : i32
    %c0_i32_1 = arith.constant 0 : i32
    return %arg0, %c0_i32, %c0_i32_0 : i32, i32, i32
  }
  func.func @transform_1(%arg0: i32) -> (i32, i32) {
    %c0_i32 = arith.constant 0 : i32
    %c0_i32_0 = arith.constant 0 : i32
    %c0_i32_1 = arith.constant 0 : i32
    return %c0_i32, %c0_i32_0 : i32, i32
  }
  func.func @transform_2(%arg0: i32) -> (i32, i32) {
    %c0_i32 = arith.constant 0 : i32
    %c0_i32_0 = arith.constant 0 : i32
    %c0_i32_1 = arith.constant 0 : i32
    return %c0_i32, %c0_i32_0 : i32, i32
  }
  func.func @transform_3(%arg0: i32) -> (i32, i32) {
    %c0_i32 = arith.constant 0 : i32
    %c0_i32_0 = arith.constant 0 : i32
    %c0_i32_1 = arith.constant 0 : i32
    return %c0_i32, %c0_i32_0 : i32, i32
  }
  func.func @transform_4(%arg0: i32) -> (i32, i32) {
    %c0_i32 = arith.constant 0 : i32
    %c0_i32_0 = arith.constant 0 : i32
    %c0_i32_1 = arith.constant 0 : i32
    return %c0_i32, %c0_i32_0 : i32, i32
  }
  func.func @transform_5(%arg0: i32) -> (i32, i32, i32) {
    %c0_i32 = arith.constant 0 : i32
    %c0_i32_0 = arith.constant 0 : i32
    %c0_i32_1 = arith.constant 0 : i32
    return %arg0, %c0_i32, %c0_i32_0 : i32, i32, i32
  }
  func.func @transform_6(%arg0: i32) -> (i32, i32, i32) {
    %c0_i32 = arith.constant 0 : i32
    %c0_i32_0 = arith.constant 0 : i32
    %c0_i32_1 = arith.constant 0 : i32
    return %arg0, %c0_i32, %c0_i32_0 : i32, i32, i32
  }
}

</mosaic_0001>

<llo_original>
// kernel: _lambda_.5
$region0: #{_lambda_.5}
  #allocation0 [shape = 'u32[]', space=smem, size = 0x4, offset = 0x4, fixed_abs, tag = 'smem constant byte address 0x4 - core index']
  #allocation1 [shape = 'u32[144,128]{1,0:T(1,128)}', space=vmem, size = 0x12000, scoped, tag = 'internal scratch']
  %s0 = inlined_call_operand.vmem [shape: f32[2,8,256], index: 0, kind: input, shape index: {}]
  %s1 = inlined_call_operand.vmem [shape: f32[3,8], index: 1, kind: input, shape index: {}]
  %s2 = inlined_call_operand.vmem [shape: f32[3,1], index: 2, kind: input, shape index: {}]
  %s3 = inlined_call_operand.vmem [shape: f32[8,3], index: 3, kind: input, shape index: {}]
  %s4 = inlined_call_operand.vmem [shape: f32[8,1], index: 4, kind: input, shape index: {}]
  %s5 = inlined_call_operand.vmem [shape: f32[2,3,256], index: 5, kind: output, shape index: {0}]
  %s6 = inlined_call_operand.vmem [shape: f32[2,8,256], index: 6, kind: output, shape index: {1}]
  %7 = xla_tuple %s5, %s6
  %s8 = sld [smem:[#allocation0]]
  $region61: #{_lambda_.5} parent=0
    _
  %s10 = ssub.s32 1, %s8
  %s11 = scalar_select 0, %s10, %s8
  loop: start=0, step=1, limit=4
  $region2: #{_lambda_.5} parent=0 // loop_pre_header
    _
  $region3: #{_lambda_.5} parent=0 // loop_header
    %s13 = sphi 0, %s17
    %p14 = scmp.ge.s32.totalorder %s13, 4
    %s23 = sphi 0, %s25
    %s26 = sphi 0, %s23
    %s27 = sphi 0, %s26
    %s43 = sphi 0, %s27
    %s47 = sphi 0, %s47
    %s49 = sphi 0, %s47
    %s50 = sphi 0, %s49
    %s64 = sphi 0, %s50
    %s68 = sphi 0, %s68
    %s70 = sphi 0, %s68
    %s71 = sphi 0, %s70
    %s85 = sphi 0, %s71
    %s89 = sphi 0, %s89
    %s91 = sphi 0, %s89
    %s92 = sphi 0, %s91
    %s106 = sphi 0, %s92
    %s110 = sphi 0, %s110
    %s112 = sphi 0, %s110
    %s113 = sphi 0, %s112
    %s127 = sphi 0, %s113
    %s133 = sphi 0, %s135
    %s136 = sphi 0, %s133
    %s137 = sphi 0, %s136
    %s153 = sphi 0, %s137
    %s159 = sphi 0, %s161
    %s162 = sphi 0, %s159
    %s163 = sphi 0, %s162
    %s179 = sphi 0, %s163
  $region4: #{_lambda_.5} parent=0 // loop_header_branch
    %16 = sbr.rel (%p14) target = $region8
  $region5: #{_lambda_.5} parent=0 // loop_body
    %s18 = ssub.s32 %s13, 1
    %s19 = ssub.s32 %s13, 2
    %s20 = sadd.s32 %s13, 1
    %s21 = ssub.s32 %s13, %s20
    %p22 = scmp.eq.s32.totalorder %s21, 0
    %s24 = sadd.s32 %s23, 1
    %s25 = scalar_select %p22, %s23, %s24
    %p28 = pneg %p22
    %p29 = scmp.eq.s32.totalorder %s13, 1
    %p30 = por %p28, %p29
    %p31 = scmp.ne.s32.totalorder %s23, %s26
    %p32 = scmp.eq.s32.totalorder %s13, 0
    %p33 = por %p31, %p32
    %p34 = scmp.ne.s32.totalorder %s23, %s26
    %p35 = scmp.eq.s32.totalorder %s18, 1
    %p36 = por %p34, %p35
    %p37 = scmp.ne.s32.totalorder %s26, %s27
    %p38 = scmp.eq.s32.totalorder %s18, 0
    %p39 = por %p37, %p38
    %p40 = scmp.ne.s32.totalorder %s26, %s27
    %p41 = scmp.eq.s32.totalorder %s19, 1
    %p42 = por %p40, %p41
    %p44 = scmp.ne.s32.totalorder %s27, %s43
    %p45 = scmp.eq.s32.totalorder %s19, 0
    %p46 = por %p44, %p45
    %s48 = sadd.s32 %s47, 1
    %p51 = scmp.eq.s32.totalorder %s13, 1
    %p52 = scmp.ne.s32.totalorder %s47, %s49
    %p53 = scmp.eq.s32.totalorder %s13, 0
    %p54 = por %p52, %p53
    %p55 = scmp.ne.s32.totalorder %s47, %s49
    %p56 = scmp.eq.s32.totalorder %s18, 1
    %p57 = por %p55, %p56
    %p58 = scmp.ne.s32.totalorder %s49, %s50
    %p59 = scmp.eq.s32.totalorder %s18, 0
    %p60 = por %p58, %p59
    %p61 = scmp.ne.s32.totalorder %s49, %s50
    %p62 = scmp.eq.s32.totalorder %s19, 1
    %p63 = por %p61, %p62
    %p65 = scmp.ne.s32.totalorder %s50, %s64
    %p66 = scmp.eq.s32.totalorder %s19, 0
    %p67 = por %p65, %p66
    %s69 = sadd.s32 %s68, 1
    %p72 = scmp.eq.s32.totalorder %s13, 1
    %p73 = scmp.ne.s32.totalorder %s68, %s70
    %p74 = scmp.eq.s32.totalorder %s13, 0
    %p75 = por %p73, %p74
    %p76 = scmp.ne.s32.totalorder %s68, %s70
    %p77 = scmp.eq.s32.totalorder %s18, 1
    %p78 = por %p76, %p77
    %p79 = scmp.ne.s32.totalorder %s70, %s71
    %p80 = scmp.eq.s32.totalorder %s18, 0
    %p81 = por %p79, %p80
    %p82 = scmp.ne.s32.totalorder %s70, %s71
    %p83 = scmp.eq.s32.totalorder %s19, 1
    %p84 = por %p82, %p83
    %p86 = scmp.ne.s32.totalorder %s71, %s85
    %p87 = scmp.eq.s32.totalorder %s19, 0
    %p88 = por %p86, %p87
    %s90 = sadd.s32 %s89, 1
    %p93 = scmp.eq.s32.totalorder %s13, 1
    %p94 = scmp.ne.s32.totalorder %s89, %s91
    %p95 = scmp.eq.s32.totalorder %s13, 0
    %p96 = por %p94, %p95
    %p97 = scmp.ne.s32.totalorder %s89, %s91
    %p98 = scmp.eq.s32.totalorder %s18, 1
    %p99 = por %p97, %p98
    %p100 = scmp.ne.s32.totalorder %s91, %s92
    %p101 = scmp.eq.s32.totalorder %s18, 0
    %p102 = por %p100, %p101
    %p103 = scmp.ne.s32.totalorder %s91, %s92
    %p104 = scmp.eq.s32.totalorder %s19, 1
    %p105 = por %p103, %p104
    %p107 = scmp.ne.s32.totalorder %s92, %s106
    %p108 = scmp.eq.s32.totalorder %s19, 0
    %p109 = por %p107, %p108
    %s111 = sadd.s32 %s110, 1
    %p114 = scmp.eq.s32.totalorder %s13, 1
    %p115 = scmp.ne.s32.totalorder %s110, %s112
    %p116 = scmp.eq.s32.totalorder %s13, 0
    %p117 = por %p115, %p116
    %p118 = scmp.ne.s32.totalorder %s110, %s112
    %p119 = scmp.eq.s32.totalorder %s18, 1
    %p120 = por %p118, %p119
    %p121 = scmp.ne.s32.totalorder %s112, %s113
    %p122 = scmp.eq.s32.totalorder %s18, 0
    %p123 = por %p121, %p122
    %p124 = scmp.ne.s32.totalorder %s112, %s113
    %p125 = scmp.eq.s32.totalorder %s19, 1
    %p126 = por %p124, %p125
    %p128 = scmp.ne.s32.totalorder %s113, %s127
    %p129 = scmp.eq.s32.totalorder %s19, 0
    %p130 = por %p128, %p129
    %s131 = ssub.s32 %s13, %s20
    %p132 = scmp.eq.s32.totalorder %s131, 0
    %s134 = sadd.s32 %s133, 1
    %s135 = scalar_select %p132, %s133, %s134
    %p138 = pneg %p132
    %p139 = scmp.eq.s32.totalorder %s13, 1
    %p140 = por %p138, %p139
    %p141 = scmp.ne.s32.totalorder %s133, %s136
    %p142 = scmp.eq.s32.totalorder %s13, 0
    %p143 = por %p141, %p142
    %p144 = scmp.ne.s32.totalorder %s133, %s136
    %p145 = scmp.eq.s32.totalorder %s18, 1
    %p146 = por %p144, %p145
    %p147 = scmp.ne.s32.totalorder %s136, %s137
    %p148 = scmp.eq.s32.totalorder %s18, 0
    %p149 = por %p147, %p148
    %p150 = scmp.ne.s32.totalorder %s136, %s137
    %p151 = scmp.eq.s32.totalorder %s19, 1
    %p152 = por %p150, %p151
    %p154 = scmp.ne.s32.totalorder %s137, %s153
    %p155 = scmp.eq.s32.totalorder %s19, 0
    %p156 = por %p154, %p155
    %s157 = ssub.s32 %s13, %s20
    %p158 = scmp.eq.s32.totalorder %s157, 0
    %s160 = sadd.s32 %s159, 1
    %s161 = scalar_select %p158, %s159, %s160
    %p164 = pneg %p158
    %p165 = scmp.eq.s32.totalorder %s13, 1
    %p166 = por %p164, %p165
    %p167 = scmp.ne.s32.totalorder %s159, %s162
    %p168 = scmp.eq.s32.totalorder %s13, 0
    %p169 = por %p167, %p168
    %p170 = scmp.ne.s32.totalorder %s159, %s162
    %p171 = scmp.eq.s32.totalorder %s18, 1
    %p172 = por %p170, %p171
    %p173 = scmp.ne.s32.totalorder %s162, %s163
    %p174 = scmp.eq.s32.totalorder %s18, 0
    %p175 = por %p173, %p174
    %p176 = scmp.ne.s32.totalorder %s162, %s163
    %p177 = scmp.eq.s32.totalorder %s19, 1
    %p178 = por %p176, %p177
    %p180 = scmp.ne.s32.totalorder %s163, %s179
    %p181 = scmp.eq.s32.totalorder %s19, 0
    %p182 = por %p180, %p181
    %p183 = scmp.le.s32.totalorder 1, %s13
    %p184 = scmp.lt.s32.totalorder %s13, 3
    %p185 = pnand %p183, %p184
    %p186 = pneg %p185
    // Predicated region
    $region9: #{_lambda_.5} parent=5 // pred_check
      _
    $region10: #{_lambda_.5} parent=5 // pred_check_branch
      %188 = sbr.rel (%p185) target = $region12
    $region11: #{_lambda_.5} parent=5 // pred_region
      %s189 = ssub.s32 %s13, 1
      // Predicated region
      $region13: #{_lambda_.5} parent=11 // pred_check
        %p190 = pneg %p60
      $region14: #{_lambda_.5} parent=11 // pred_check_branch
        %192 = sbr.rel (%p190) target = $region16
      $region15: #{_lambda_.5} parent=11 // pred_region
        _
      $region16: #{_lambda_.5} parent=11 // pred_fallthru
        _
      // Predicated region
      $region17: #{_lambda_.5} parent=11 // pred_check
        %p193 = pneg %p81
      $region18: #{_lambda_.5} parent=11 // pred_check_branch
        %195 = sbr.rel (%p193) target = $region20
      $region19: #{_lambda_.5} parent=11 // pred_region
        _
      $region20: #{_lambda_.5} parent=11 // pred_fallthru
        _
      // Predicated region
      $region21: #{_lambda_.5} parent=11 // pred_check
        %p196 = pneg %p102
      $region22: #{_lambda_.5} parent=11 // pred_check_branch
        %198 = sbr.rel (%p196) target = $region24
      $region23: #{_lambda_.5} parent=11 // pred_region
        _
      $region24: #{_lambda_.5} parent=11 // pred_fallthru
        _
      // Predicated region
      $region25: #{_lambda_.5} parent=11 // pred_check
        %p199 = pneg %p123
      $region26: #{_lambda_.5} parent=11 // pred_check_branch
        %201 = sbr.rel (%p199) target = $region28
      $region27: #{_lambda_.5} parent=11 // pred_region
        _
      $region28: #{_lambda_.5} parent=11 // pred_fallthru
        _
    $region12: #{_lambda_.5} parent=5 // pred_fallthru
      _
    %p202 = scmp.lt.s32.totalorder %s13, 2
    // Predicated region
    $region29: #{_lambda_.5} parent=5 // pred_check
      %p203 = pneg %p202
    $region30: #{_lambda_.5} parent=5 // pred_check_branch
      %205 = sbr.rel (%p203) target = $region32
    $region31: #{_lambda_.5} parent=5 // pred_region
      // Predicated region
      $region33: #{_lambda_.5} parent=31 // pred_check
        %p206 = pneg %p33
      $region34: #{_lambda_.5} parent=31 // pred_check_branch
        %208 = sbr.rel (%p206) target = $region36
      $region35: #{_lambda_.5} parent=31 // pred_region
        %p209 = scmp.lt.s32.totalorder %s13, 1
        %s210 = scalar_select %p209, %s13, 1
        %s211 = smul.addr %s210, 2
        %s212 = smul.addr %s211, 8
        %s213 = scalar_lea.vmem %s0, %s212
      $region36: #{_lambda_.5} parent=31 // pred_fallthru
        _
    $region32: #{_lambda_.5} parent=5 // pred_fallthru
      _
    %p214 = scmp.le.s32.totalorder 1, %s13
    %p215 = scmp.lt.s32.totalorder %s13, 3
    %p216 = pnand %p214, %p215
    %p217 = pneg %p216
    // Predicated region
    $region37: #{_lambda_.5} parent=5 // pred_check
      _
    $region38: #{_lambda_.5} parent=5 // pred_check_branch
      %219 = sbr.rel (%p216) target = $region40
    $region39: #{_lambda_.5} parent=5 // pred_region
      %s220 = ssub.s32 %s13, 1
      %p221 = scmp.lt.s32.totalorder %s18, 1
      %s222 = scalar_select %p221, %s18, 1
      %s223 = smul.addr %s222, 2
      %s224 = smul.addr %s223, 8
      %s225 = scalar_lea.vmem %s0, %s224
      %p226 = pneg %p39
      %p227 = pneg %p36
      %p228 = pneg %p60
      %p229 = pneg %p57
      %p230 = pneg %p81
      %p231 = pneg %p78
      %p232 = pneg %p102
      %p233 = pneg %p99
      %p234 = pneg %p123
      %p235 = pneg %p120
      %p236 = pneg %p149
      %p237 = pneg %p146
      %p238 = scmp.lt.s32.totalorder %s18, 1
      %s239 = scalar_select %p238, %s18, 1
      %s240 = smul.addr %s239, 2
      %s241 = smul.addr %s240, 4
      %s242 = scalar_lea.vmem %s5, %s241
      %p243 = pneg %p175
      %p244 = pneg %p172
      %p245 = scmp.lt.s32.totalorder %s18, 1
      %s246 = scalar_select %p245, %s18, 1
      %s247 = smul.addr %s246, 2
      %s248 = smul.addr %s247, 8
      %s249 = scalar_lea.vmem %s6, %s248
      %p250 = scmp.lt.s32.totalorder %s18, 1
      %s251 = scalar_select %p250, %s18, 1
      %s252 = smul.addr %s251, 2
      %s253 = smul.addr %s252, 8
      %s254 = scalar_lea.vmem %s0, %s253
      %p255 = scmp.lt.s32.totalorder %s18, 1
      %s256 = scalar_select %p255, %s18, 1
      %s257 = smul.addr %s256, 2
      %s258 = smul.addr %s257, 4
      %s259 = scalar_lea.vmem %s5, %s258
      %p260 = scmp.lt.s32.totalorder %s18, 1
      %s261 = scalar_select %p260, %s18, 1
      %s262 = smul.addr %s261, 2
      %s263 = smul.addr %s262, 8
      %s264 = scalar_lea.vmem %s6, %s263
      %v266 = vld [vmem:[%s254] sm:$0xff]
      %v267 = vld [vmem:[%s254 + $0x8] sm:$0xff]
      %v268 = vld [vmem:[%s1] sm:$0x7]
      %v269 = vld [vmem:[%s2] sm:$0x7]
      %v270 = vpack.c.bf16 %v268, %v268
      %v271 = vpack.c.bf16 %v266, %v266
      %v272 = vpack.c.bf16 %v267, %v267
      %274 = vset.pattern.permute.xlu0 0
      %275 = vperm.xlu0 %274, %v269
      %v276 = vpop.permute.xlu0 %275
      %vm278 = vcmask 64512
      %v280 = vsel %vm278, %v270, 0
      %vm282 = vcmask 1043456
      %v284 = vsel %vm282, %v271, 0
      %v287 = vsel %vm282, %v272, 0
      %289 = vmatprep.subr.bf16.mxu0 %v287
      %290 = vmatpush1.bf16.msra.mxu0 %v284
      %291 = vmatprep.subr.bf16.mxu0 0
      %292 = vmatpush1.bf16.msra.mxu0 0
      %293 = vmatprep.subr.bf16.mxu0 0
      %294 = vmatpush1.bf16.msra.mxu0 0
      %295 = vmatprep.subr.bf16.mxu0 0
      %296 = vmatpush1.bf16.msra.mxu0 0
      %297 = vmatprep.subr.bf16.mxu0 0
      %298 = vmatpush1.bf16.msra.mxu0 0
      %299 = vmatprep.subr.bf16.mxu0 0
      %300 = vmatpush1.bf16.msra.mxu0 0
      %301 = vmatprep.subr.bf16.mxu0 0
      %302 = vmatpush1.bf16.msra.mxu0 0
      %303 = vmatprep.subr.bf16.mxu0 0
      %304 = vmatpush1.bf16.msra.mxu0 0
      %305 = vmatprep.subr.bf16.mxu0 0
      %306 = vmatpush1.bf16.msra.mxu0 0
      %307 = vmatprep.subr.bf16.mxu0 0
      %308 = vmatpush1.bf16.msra.mxu0 0
      %309 = vmatprep.subr.bf16.mxu0 0
      %310 = vmatpush1.bf16.msra.mxu0 0
      %311 = vmatprep.subr.bf16.mxu0 0
      %312 = vmatpush1.bf16.msra.mxu0 0
      %313 = vmatprep.subr.bf16.mxu0 0
      %314 = vmatpush1.bf16.msra.mxu0 0
      %315 = vmatprep.subr.bf16.mxu0 0
      %316 = vmatpush1.bf16.msra.mxu0 0
      %317 = vmatprep.subr.bf16.mxu0 0
      %318 = vmatpush1.bf16.msra.mxu0 0
      %319 = vmatprep.subr.bf16.mxu0 0
      %320 = vmatpush1.bf16.msra.mxu0 0
      %321 = vmatprep.mubr.bf16.mxu0 0
      %322 = vmatmul.mubr.bf16.gmra.mrb[0].mxu0 %v280
      %v323 = vpop.f32.mrb[0].mxu0
      %v324 = vadd.f32 %v276, %v323
      %v325 = vpop.f32.mrb[0].mxu0
      %v326 = vadd.f32 %v276, %v325
      %v327 = vpop.f32.mrb[0].mxu0
      %v328 = vpop.f32.mrb[0].mxu0
      %329 = vdwg.mxu0
      %vm330 = vcmp.ge.f32.partialorder %v324, 0.0
      %vm331 = vcmp.ge.f32.partialorder %v326, 0.0
      %v332 = vmul.f32 %v324, 0.01
      %v333 = vmul.f32 %v326, 0.01
      %v334 = vsel %vm330, %v324, %v332
      %v335 = vsel %vm331, %v326, %v333
      %v338 = vcombine.low %v334, %v335
      %340 = vst [vmem:[%s259] sm:$0x77] %v338
      %v341 = vld [vmem:[%s3] sm:$0xff]
      %v342 = vld [vmem:[%s4] sm:$0xff]
      %v343 = vpack.c.bf16 %v341, %v341
      %v344 = vpack.c.bf16 %v334, %v334
      %v345 = vpack.c.bf16 %v335, %v335
      %347 = vset.pattern.permute.xlu0 0
      %348 = vperm.xlu0 %347, %v342
      %v349 = vpop.permute.xlu0 %348
      %vm351 = vcmask 23552
      %v353 = vsel %vm351, %v343, 0
      %vm355 = vcmask 1040384
      %vm356 = vcmask 1041408
      %v357 = vsel %vm355, 4294967295, 65535
      %v358 = vsel %vm356, %v357, 0
      %v360 = vand.u32 %v344, %v358
      %v363 = vand.u32 %v345, %v358
      %365 = vmatprep.subr.bf16.mxu0 %v363
      %366 = vmatpush1.bf16.msra.mxu0 %v360
      %367 = vmatprep.subr.bf16.mxu0 0
      %368 = vmatpush1.bf16.msra.mxu0 0
      %369 = vmatprep.subr.bf16.mxu0 0
      %370 = vmatpush1.bf16.msra.mxu0 0
      %371 = vmatprep.subr.bf16.mxu0 0
      %372 = vmatpush1.bf16.msra.mxu0 0
      %373 = vmatprep.subr.bf16.mxu0 0
      %374 = vmatpush1.bf16.msra.mxu0 0
      %375 = vmatprep.subr.bf16.mxu0 0
      %376 = vmatpush1.bf16.msra.mxu0 0
      %377 = vmatprep.subr.bf16.mxu0 0
      %378 = vmatpush1.bf16.msra.mxu0 0
      %379 = vmatprep.subr.bf16.mxu0 0
      %380 = vmatpush1.bf16.msra.mxu0 0
      %381 = vmatprep.subr.bf16.mxu0 0
      %382 = vmatpush1.bf16.msra.mxu0 0
      %383 = vmatprep.subr.bf16.mxu0 0
      %384 = vmatpush1.bf16.msra.mxu0 0
      %385 = vmatprep.subr.bf16.mxu0 0
      %386 = vmatpush1.bf16.msra.mxu0 0
      %387 = vmatprep.subr.bf16.mxu0 0
      %388 = vmatpush1.bf16.msra.mxu0 0
      %389 = vmatprep.subr.bf16.mxu0 0
      %390 = vmatpush1.bf16.msra.mxu0 0
      %391 = vmatprep.subr.bf16.mxu0 0
      %392 = vmatpush1.bf16.msra.mxu0 0
      %393 = vmatprep.subr.bf16.mxu0 0
      %394 = vmatpush1.bf16.msra.mxu0 0
      %395 = vmatprep.subr.bf16.mxu0 0
      %396 = vmatpush1.bf16.msra.mxu0 0
      %397 = vmatprep.mubr.bf16.mxu0 0
      %398 = vmatmul.mubr.bf16.gmra.mrb[0].mxu0 %v353
      %v399 = vpop.f32.mrb[0].mxu0
      %v400 = vadd.f32 %v349, %v399
      %v401 = vpop.f32.mrb[0].mxu0
      %v402 = vadd.f32 %v349, %v401
      %v403 = vpop.f32.mrb[0].mxu0
      %v404 = vpop.f32.mrb[0].mxu0
      %405 = vdwg.mxu0
      %406 = vst [vmem:[%s264] sm:$0xff] %v400
      %407 = vst [vmem:[%s264 + $0x8] sm:$0xff] %v402
      %p408 = scmp.lt.s32.totalorder %s18, 1
      %s409 = scalar_select %p408, %s18, 1
      %s410 = smul.addr %s409, 2
      %s411 = smul.addr %s410, 4
      %s412 = scalar_lea.vmem %s5, %s411
      %p413 = scmp.lt.s32.totalorder %s18, 1
      %s414 = scalar_select %p413, %s18, 1
      %s415 = smul.addr %s414, 2
      %s416 = smul.addr %s415, 8
      %s417 = scalar_lea.vmem %s6, %s416
      // Predicated region
      $region41: #{_lambda_.5} parent=39 // pred_check
        %p418 = pneg %p146
      $region42: #{_lambda_.5} parent=39 // pred_check_branch
        %420 = sbr.rel (%p418) target = $region44
      $region43: #{_lambda_.5} parent=39 // pred_region
        _
      $region44: #{_lambda_.5} parent=39 // pred_fallthru
        _
      // Predicated region
      $region45: #{_lambda_.5} parent=39 // pred_check
        %p421 = pneg %p172
      $region46: #{_lambda_.5} parent=39 // pred_check_branch
        %423 = sbr.rel (%p421) target = $region48
      $region47: #{_lambda_.5} parent=39 // pred_region
        _
      $region48: #{_lambda_.5} parent=39 // pred_fallthru
        _
    $region40: #{_lambda_.5} parent=5 // pred_fallthru
      _
    %p424 = scmp.le.s32.totalorder 2, %s13
    // Predicated region
    $region49: #{_lambda_.5} parent=5 // pred_check
      %p425 = pneg %p424
    $region50: #{_lambda_.5} parent=5 // pred_check_branch
      %427 = sbr.rel (%p425) target = $region52
    $region51: #{_lambda_.5} parent=5 // pred_region
      %s428 = ssub.s32 %s13, 2
      // Predicated region
      $region53: #{_lambda_.5} parent=51 // pred_check
        %p429 = pneg %p152
      $region54: #{_lambda_.5} parent=51 // pred_check_branch
        %431 = sbr.rel (%p429) target = $region56
      $region55: #{_lambda_.5} parent=51 // pred_region
        %p432 = scmp.lt.s32.totalorder %s19, 1
        %s433 = scalar_select %p432, %s19, 1
        %s434 = smul.addr %s433, 2
        %s435 = smul.addr %s434, 4
        %s436 = scalar_lea.vmem %s5, %s435
      $region56: #{_lambda_.5} parent=51 // pred_fallthru
        _
      // Predicated region
      $region57: #{_lambda_.5} parent=51 // pred_check
        %p437 = pneg %p178
      $region58: #{_lambda_.5} parent=51 // pred_check_branch
        %439 = sbr.rel (%p437) target = $region60
      $region59: #{_lambda_.5} parent=51 // pred_region
        %p440 = scmp.lt.s32.totalorder %s19, 1
        %s441 = scalar_select %p440, %s19, 1
        %s442 = smul.addr %s441, 2
        %s443 = smul.addr %s442, 8
        %s444 = scalar_lea.vmem %s6, %s443
      $region60: #{_lambda_.5} parent=51 // pred_fallthru
        _
    $region52: #{_lambda_.5} parent=5 // pred_fallthru
      _
  $region6: #{_lambda_.5} parent=0 // loop_footer
    %s17 = sadd.s32 1, %s13
  $region7: #{_lambda_.5} parent=0 // loop_footer_branch
    %12 = sbr.rel target = $region3
  $region8: #{_lambda_.5} parent=0 // loop_exit
    _

// kernel: _lambda_.3
$region0: #{_lambda_.3}
  #allocation0 [shape = 'u32[]', space=smem, size = 0x4, offset = 0x4, fixed_abs, tag = 'smem constant byte address 0x4 - core index']
  #allocation1 [shape = 'u32[144,128]{1,0:T(1,128)}', space=vmem, size = 0x12000, scoped, tag = 'internal scratch']
  #allocation2 [shape = 'f32[16,320]{1,0:T(8,128)}', space=vmem, size = 0x6000, scoped, tag = 'scratch operand']
  %s0 = inlined_call_operand.smem [shape: u32[31], index: -1, kind: input, shape index: {}]
  %s1 = sld [smem:[%s0]]
  %s2 = scalar_lea.smem %s0, 1
  %s3 = sld [smem:[%s2]]
  %s4 = scalar_lea.smem %s0, 2
  %s5 = sld [smem:[%s4]]
  %s6 = scalar_lea.smem %s0, 3
  %s7 = sld [smem:[%s6]]
  %s8 = scalar_lea.smem %s0, 4
  %s9 = sld [smem:[%s8]]
  %s10 = scalar_lea.smem %s0, 5
  %s11 = sld [smem:[%s10]]
  %s12 = scalar_lea.smem %s0, 6
  %s13 = sld [smem:[%s12]]
  %s14 = scalar_lea.smem %s0, 7
  %s15 = sld [smem:[%s14]]
  %s16 = scalar_lea.smem %s0, 8
  %s17 = sld [smem:[%s16]]
  %s18 = scalar_lea.smem %s0, 9
  %s19 = sld [smem:[%s18]]
  %s20 = scalar_lea.smem %s0, 10
  %s21 = sld [smem:[%s20]]
  %s22 = scalar_lea.smem %s0, 11
  %s23 = sld [smem:[%s22]]
  %s24 = scalar_lea.smem %s0, 12
  %s25 = sld [smem:[%s24]]
  %s26 = scalar_lea.smem %s0, 13
  %s27 = sld [smem:[%s26]]
  %s28 = scalar_lea.smem %s0, 14
  %s29 = sld [smem:[%s28]]
  %s30 = scalar_lea.smem %s0, 15
  %s31 = sld [smem:[%s30]]
  %s32 = scalar_lea.smem %s0, 16
  %s33 = sld [smem:[%s32]]
  %s34 = scalar_lea.smem %s0, 17
  %s35 = sld [smem:[%s34]]
  %s36 = scalar_lea.smem %s0, 18
  %s37 = sld [smem:[%s36]]
  %s38 = scalar_lea.smem %s0, 19
  %s39 = sld [smem:[%s38]]
  %s40 = scalar_lea.smem %s0, 20
  %s41 = sld [smem:[%s40]]
  %s42 = scalar_lea.smem %s0, 21
  %s43 = sld [smem:[%s42]]
  %s44 = scalar_lea.smem %s0, 22
  %s45 = sld [smem:[%s44]]
  %s46 = scalar_lea.smem %s0, 23
  %s47 = sld [smem:[%s46]]
  %s48 = scalar_lea.smem %s0, 24
  %s49 = sld [smem:[%s48]]
  %s50 = scalar_lea.smem %s0, 25
  %s51 = sld [smem:[%s50]]
  %s52 = scalar_lea.smem %s0, 26
  %s53 = sld [smem:[%s52]]
  %s54 = scalar_lea.smem %s0, 27
  %s55 = sld [smem:[%s54]]
  %s56 = scalar_lea.smem %s0, 28
  %s57 = sld [smem:[%s56]]
  %s58 = scalar_lea.smem %s0, 29
  %s59 = sld [smem:[%s58]]
  %s60 = scalar_lea.smem %s0, 30
  %s61 = sld [smem:[%s60]]
  %62 = xla_tuple %s59, %s61
  %s63 = sld [smem:[#allocation0]]
  $region157: #{_lambda_.3} parent=0
    _
  %s65 = ssub.s32 1, %s63
  %s66 = scalar_select 0, %s65, %s63
  loop: start=0, step=1, limit=4
  $region2: #{_lambda_.3} parent=0 // loop_pre_header
    _
  $region3: #{_lambda_.3} parent=0 // loop_header
    %s68 = sphi 0, %s72
    %p69 = scmp.ge.s32.totalorder %s68, 4
    %s78 = sphi 0, %s80
    %s81 = sphi 0, %s78
    %s82 = sphi 0, %s81
    %s98 = sphi 0, %s82
    %s104 = sphi 0, %s106
    %s107 = sphi 0, %s104
    %s108 = sphi 0, %s107
    %s124 = sphi 0, %s108
    %s130 = sphi 0, %s132
    %s133 = sphi 0, %s130
    %s134 = sphi 0, %s133
    %s150 = sphi 0, %s134
    %s154 = sphi 0, %s154
    %s156 = sphi 0, %s154
    %s157 = sphi 0, %s156
    %s171 = sphi 0, %s157
    %s175 = sphi 0, %s175
    %s177 = sphi 0, %s175
    %s178 = sphi 0, %s177
    %s192 = sphi 0, %s178
    %s198 = sphi 0, %s200
    %s201 = sphi 0, %s198
    %s202 = sphi 0, %s201
    %s218 = sphi 0, %s202
    %s224 = sphi 0, %s226
    %s227 = sphi 0, %s224
    %s228 = sphi 0, %s227
    %s244 = sphi 0, %s228
    %s250 = sphi 0, %s252
    %s253 = sphi 0, %s250
    %s254 = sphi 0, %s253
    %s270 = sphi 0, %s254
    %s276 = sphi 0, %s278
    %s279 = sphi 0, %s276
    %s280 = sphi 0, %s279
    %s296 = sphi 0, %s280
    %s300 = sphi 0, %s300
    %s302 = sphi 0, %s300
    %s303 = sphi 0, %s302
    %s317 = sphi 0, %s303
    %s321 = sphi 0, %s321
    %s323 = sphi 0, %s321
    %s324 = sphi 0, %s323
    %s338 = sphi 0, %s324
    %s342 = sphi 0, %s342
    %s344 = sphi 0, %s342
    %s345 = sphi 0, %s344
    %s359 = sphi 0, %s345
    %s363 = sphi 0, %s363
    %s365 = sphi 0, %s363
    %s366 = sphi 0, %s365
    %s380 = sphi 0, %s366
    %s384 = sphi 0, %s384
    %s386 = sphi 0, %s384
    %s387 = sphi 0, %s386
    %s401 = sphi 0, %s387
    %s405 = sphi 0, %s405
    %s407 = sphi 0, %s405
    %s408 = sphi 0, %s407
    %s422 = sphi 0, %s408
    %s426 = sphi 0, %s426
    %s428 = sphi 0, %s426
    %s429 = sphi 0, %s428
    %s443 = sphi 0, %s429
    %s447 = sphi 0, %s447
    %s449 = sphi 0, %s447
    %s450 = sphi 0, %s449
    %s464 = sphi 0, %s450
    %s468 = sphi 0, %s468
    %s470 = sphi 0, %s468
    %s471 = sphi 0, %s470
    %s485 = sphi 0, %s471
    %s489 = sphi 0, %s489
    %s491 = sphi 0, %s489
    %s492 = sphi 0, %s491
    %s506 = sphi 0, %s492
    %s510 = sphi 0, %s510
    %s512 = sphi 0, %s510
    %s513 = sphi 0, %s512
    %s527 = sphi 0, %s513
    %s531 = sphi 0, %s531
    %s533 = sphi 0, %s531
    %s534 = sphi 0, %s533
    %s548 = sphi 0, %s534
    %s552 = sphi 0, %s552
    %s554 = sphi 0, %s552
    %s555 = sphi 0, %s554
    %s569 = sphi 0, %s555
    %s573 = sphi 0, %s573
    %s575 = sphi 0, %s573
    %s576 = sphi 0, %s575
    %s590 = sphi 0, %s576
    %s594 = sphi 0, %s594
    %s596 = sphi 0, %s594
    %s597 = sphi 0, %s596
    %s611 = sphi 0, %s597
    %s615 = sphi 0, %s615
    %s617 = sphi 0, %s615
    %s618 = sphi 0, %s617
    %s632 = sphi 0, %s618
    %s636 = sphi 0, %s636
    %s638 = sphi 0, %s636
    %s639 = sphi 0, %s638
    %s653 = sphi 0, %s639
    %s657 = sphi 0, %s657
    %s659 = sphi 0, %s657
    %s660 = sphi 0, %s659
    %s674 = sphi 0, %s660
    %s678 = sphi 0, %s678
    %s680 = sphi 0, %s678
    %s681 = sphi 0, %s680
    %s695 = sphi 0, %s681
    %s699 = sphi 0, %s699
    %s701 = sphi 0, %s699
    %s702 = sphi 0, %s701
    %s716 = sphi 0, %s702
    %s722 = sphi 0, %s724
    %s725 = sphi 0, %s722
    %s726 = sphi 0, %s725
    %s742 = sphi 0, %s726
    %s748 = sphi 0, %s750
    %s751 = sphi 0, %s748
    %s752 = sphi 0, %s751
    %s768 = sphi 0, %s752
  $region4: #{_lambda_.3} parent=0 // loop_header_branch
    %71 = sbr.rel (%p69) target = $region8
  $region5: #{_lambda_.3} parent=0 // loop_body
    %s73 = ssub.s32 %s68, 1
    %s74 = ssub.s32 %s68, 2
    %s75 = sadd.s32 %s68, 1
    %s76 = ssub.s32 %s68, %s75
    %p77 = scmp.eq.s32.totalorder %s76, 0
    %s79 = sadd.s32 %s78, 1
    %s80 = scalar_select %p77, %s78, %s79
    %p83 = pneg %p77
    %p84 = scmp.eq.s32.totalorder %s68, 1
    %p85 = por %p83, %p84
    %p86 = scmp.ne.s32.totalorder %s78, %s81
    %p87 = scmp.eq.s32.totalorder %s68, 0
    %p88 = por %p86, %p87
    %p89 = scmp.ne.s32.totalorder %s78, %s81
    %p90 = scmp.eq.s32.totalorder %s73, 1
    %p91 = por %p89, %p90
    %p92 = scmp.ne.s32.totalorder %s81, %s82
    %p93 = scmp.eq.s32.totalorder %s73, 0
    %p94 = por %p92, %p93
    %p95 = scmp.ne.s32.totalorder %s81, %s82
    %p96 = scmp.eq.s32.totalorder %s74, 1
    %p97 = por %p95, %p96
    %p99 = scmp.ne.s32.totalorder %s82, %s98
    %p100 = scmp.eq.s32.totalorder %s74, 0
    %p101 = por %p99, %p100
    %s102 = ssub.s32 %s68, %s75
    %p103 = scmp.eq.s32.totalorder %s102, 0
    %s105 = sadd.s32 %s104, 1
    %s106 = scalar_select %p103, %s104, %s105
    %p109 = pneg %p103
    %p110 = scmp.eq.s32.totalorder %s68, 1
    %p111 = por %p109, %p110
    %p112 = scmp.ne.s32.totalorder %s104, %s107
    %p113 = scmp.eq.s32.totalorder %s68, 0
    %p114 = por %p112, %p113
    %p115 = scmp.ne.s32.totalorder %s104, %s107
    %p116 = scmp.eq.s32.totalorder %s73, 1
    %p117 = por %p115, %p116
    %p118 = scmp.ne.s32.totalorder %s107, %s108
    %p119 = scmp.eq.s32.totalorder %s73, 0
    %p120 = por %p118, %p119
    %p121 = scmp.ne.s32.totalorder %s107, %s108
    %p122 = scmp.eq.s32.totalorder %s74, 1
    %p123 = por %p121, %p122
    %p125 = scmp.ne.s32.totalorder %s108, %s124
    %p126 = scmp.eq.s32.totalorder %s74, 0
    %p127 = por %p125, %p126
    %s128 = ssub.s32 %s68, %s75
    %p129 = scmp.eq.s32.totalorder %s128, 0
    %s131 = sadd.s32 %s130, 1
    %s132 = scalar_select %p129, %s130, %s131
    %p135 = pneg %p129
    %p136 = scmp.eq.s32.totalorder %s68, 1
    %p137 = por %p135, %p136
    %p138 = scmp.ne.s32.totalorder %s130, %s133
    %p139 = scmp.eq.s32.totalorder %s68, 0
    %p140 = por %p138, %p139
    %p141 = scmp.ne.s32.totalorder %s130, %s133
    %p142 = scmp.eq.s32.totalorder %s73, 1
    %p143 = por %p141, %p142
    %p144 = scmp.ne.s32.totalorder %s133, %s134
    %p145 = scmp.eq.s32.totalorder %s73, 0
    %p146 = por %p144, %p145
    %p147 = scmp.ne.s32.totalorder %s133, %s134
    %p148 = scmp.eq.s32.totalorder %s74, 1
    %p149 = por %p147, %p148
    %p151 = scmp.ne.s32.totalorder %s134, %s150
    %p152 = scmp.eq.s32.totalorder %s74, 0
    %p153 = por %p151, %p152
    %s155 = sadd.s32 %s154, 1
    %p158 = scmp.eq.s32.totalorder %s68, 1
    %p159 = scmp.ne.s32.totalorder %s154, %s156
    %p160 = scmp.eq.s32.totalorder %s68, 0
    %p161 = por %p159, %p160
    %p162 = scmp.ne.s32.totalorder %s154, %s156
    %p163 = scmp.eq.s32.totalorder %s73, 1
    %p164 = por %p162, %p163
    %p165 = scmp.ne.s32.totalorder %s156, %s157
    %p166 = scmp.eq.s32.totalorder %s73, 0
    %p167 = por %p165, %p166
    %p168 = scmp.ne.s32.totalorder %s156, %s157
    %p169 = scmp.eq.s32.totalorder %s74, 1
    %p170 = por %p168, %p169
    %p172 = scmp.ne.s32.totalorder %s157, %s171
    %p173 = scmp.eq.s32.totalorder %s74, 0
    %p174 = por %p172, %p173
    %s176 = sadd.s32 %s175, 1
    %p179 = scmp.eq.s32.totalorder %s68, 1
    %p180 = scmp.ne.s32.totalorder %s175, %s177
    %p181 = scmp.eq.s32.totalorder %s68, 0
    %p182 = por %p180, %p181
    %p183 = scmp.ne.s32.totalorder %s175, %s177
    %p184 = scmp.eq.s32.totalorder %s73, 1
    %p185 = por %p183, %p184
    %p186 = scmp.ne.s32.totalorder %s177, %s178
    %p187 = scmp.eq.s32.totalorder %s73, 0
    %p188 = por %p186, %p187
    %p189 = scmp.ne.s32.totalorder %s177, %s178
    %p190 = scmp.eq.s32.totalorder %s74, 1
    %p191 = por %p189, %p190
    %p193 = scmp.ne.s32.totalorder %s178, %s192
    %p194 = scmp.eq.s32.totalorder %s74, 0
    %p195 = por %p193, %p194
    %s196 = ssub.s32 %s68, %s75
    %p197 = scmp.eq.s32.totalorder %s196, 0
    %s199 = sadd.s32 %s198, 1
    %s200 = scalar_select %p197, %s198, %s199
    %p203 = pneg %p197
    %p204 = scmp.eq.s32.totalorder %s68, 1
    %p205 = por %p203, %p204
    %p206 = scmp.ne.s32.totalorder %s198, %s201
    %p207 = scmp.eq.s32.totalorder %s68, 0
    %p208 = por %p206, %p207
    %p209 = scmp.ne.s32.totalorder %s198, %s201
    %p210 = scmp.eq.s32.totalorder %s73, 1
    %p211 = por %p209, %p210
    %p212 = scmp.ne.s32.totalorder %s201, %s202
    %p213 = scmp.eq.s32.totalorder %s73, 0
    %p214 = por %p212, %p213
    %p215 = scmp.ne.s32.totalorder %s201, %s202
    %p216 = scmp.eq.s32.totalorder %s74, 1
    %p217 = por %p215, %p216
    %p219 = scmp.ne.s32.totalorder %s202, %s218
    %p220 = scmp.eq.s32.totalorder %s74, 0
    %p221 = por %p219, %p220
    %s222 = ssub.s32 %s68, %s75
    %p223 = scmp.eq.s32.totalorder %s222, 0
    %s225 = sadd.s32 %s224, 1
    %s226 = scalar_select %p223, %s224, %s225
    %p229 = pneg %p223
    %p230 = scmp.eq.s32.totalorder %s68, 1
    %p231 = por %p229, %p230
    %p232 = scmp.ne.s32.totalorder %s224, %s227
    %p233 = scmp.eq.s32.totalorder %s68, 0
    %p234 = por %p232, %p233
    %p235 = scmp.ne.s32.totalorder %s224, %s227
    %p236 = scmp.eq.s32.totalorder %s73, 1
    %p237 = por %p235, %p236
    %p238 = scmp.ne.s32.totalorder %s227, %s228
    %p239 = scmp.eq.s32.totalorder %s73, 0
    %p240 = por %p238, %p239
    %p241 = scmp.ne.s32.totalorder %s227, %s228
    %p242 = scmp.eq.s32.totalorder %s74, 1
    %p243 = por %p241, %p242
    %p245 = scmp.ne.s32.totalorder %s228, %s244
    %p246 = scmp.eq.s32.totalorder %s74, 0
    %p247 = por %p245, %p246
    %s248 = ssub.s32 %s68, %s75
    %p249 = scmp.eq.s32.totalorder %s248, 0
    %s251 = sadd.s32 %s250, 1
    %s252 = scalar_select %p249, %s250, %s251
    %p255 = pneg %p249
    %p256 = scmp.eq.s32.totalorder %s68, 1
    %p257 = por %p255, %p256
    %p258 = scmp.ne.s32.totalorder %s250, %s253
    %p259 = scmp.eq.s32.totalorder %s68, 0
    %p260 = por %p258, %p259
    %p261 = scmp.ne.s32.totalorder %s250, %s253
    %p262 = scmp.eq.s32.totalorder %s73, 1
    %p263 = por %p261, %p262
    %p264 = scmp.ne.s32.totalorder %s253, %s254
    %p265 = scmp.eq.s32.totalorder %s73, 0
    %p266 = por %p264, %p265
    %p267 = scmp.ne.s32.totalorder %s253, %s254
    %p268 = scmp.eq.s32.totalorder %s74, 1
    %p269 = por %p267, %p268
    %p271 = scmp.ne.s32.totalorder %s254, %s270
    %p272 = scmp.eq.s32.totalorder %s74, 0
    %p273 = por %p271, %p272
    %s274 = ssub.s32 %s68, %s75
    %p275 = scmp.eq.s32.totalorder %s274, 0
    %s277 = sadd.s32 %s276, 1
    %s278 = scalar_select %p275, %s276, %s277
    %p281 = pneg %p275
    %p282 = scmp.eq.s32.totalorder %s68, 1
    %p283 = por %p281, %p282
    %p284 = scmp.ne.s32.totalorder %s276, %s279
    %p285 = scmp.eq.s32.totalorder %s68, 0
    %p286 = por %p284, %p285
    %p287 = scmp.ne.s32.totalorder %s276, %s279
    %p288 = scmp.eq.s32.totalorder %s73, 1
    %p289 = por %p287, %p288
    %p290 = scmp.ne.s32.totalorder %s279, %s280
    %p291 = scmp.eq.s32.totalorder %s73, 0
    %p292 = por %p290, %p291
    %p293 = scmp.ne.s32.totalorder %s279, %s280
    %p294 = scmp.eq.s32.totalorder %s74, 1
    %p295 = por %p293, %p294
    %p297 = scmp.ne.s32.totalorder %s280, %s296
    %p298 = scmp.eq.s32.totalorder %s74, 0
    %p299 = por %p297, %p298
    %s301 = sadd.s32 %s300, 1
    %p304 = scmp.eq.s32.totalorder %s68, 1
    %p305 = scmp.ne.s32.totalorder %s300, %s302
    %p306 = scmp.eq.s32.totalorder %s68, 0
    %p307 = por %p305, %p306
    %p308 = scmp.ne.s32.totalorder %s300, %s302
    %p309 = scmp.eq.s32.totalorder %s73, 1
    %p310 = por %p308, %p309
    %p311 = scmp.ne.s32.totalorder %s302, %s303
    %p312 = scmp.eq.s32.totalorder %s73, 0
    %p313 = por %p311, %p312
    %p314 = scmp.ne.s32.totalorder %s302, %s303
    %p315 = scmp.eq.s32.totalorder %s74, 1
    %p316 = por %p314, %p315
    %p318 = scmp.ne.s32.totalorder %s303, %s317
    %p319 = scmp.eq.s32.totalorder %s74, 0
    %p320 = por %p318, %p319
    %s322 = sadd.s32 %s321, 1
    %p325 = scmp.eq.s32.totalorder %s68, 1
    %p326 = scmp.ne.s32.totalorder %s321, %s323
    %p327 = scmp.eq.s32.totalorder %s68, 0
    %p328 = por %p326, %p327
    %p329 = scmp.ne.s32.totalorder %s321, %s323
    %p330 = scmp.eq.s32.totalorder %s73, 1
    %p331 = por %p329, %p330
    %p332 = scmp.ne.s32.totalorder %s323, %s324
    %p333 = scmp.eq.s32.totalorder %s73, 0
    %p334 = por %p332, %p333
    %p335 = scmp.ne.s32.totalorder %s323, %s324
    %p336 = scmp.eq.s32.totalorder %s74, 1
    %p337 = por %p335, %p336
    %p339 = scmp.ne.s32.totalorder %s324, %s338
    %p340 = scmp.eq.s32.totalorder %s74, 0
    %p341 = por %p339, %p340
    %s343 = sadd.s32 %s342, 1
    %p346 = scmp.eq.s32.totalorder %s68, 1
    %p347 = scmp.ne.s32.totalorder %s342, %s344
    %p348 = scmp.eq.s32.totalorder %s68, 0
    %p349 = por %p347, %p348
    %p350 = scmp.ne.s32.totalorder %s342, %s344
    %p351 = scmp.eq.s32.totalorder %s73, 1
    %p352 = por %p350, %p351
    %p353 = scmp.ne.s32.totalorder %s344, %s345
    %p354 = scmp.eq.s32.totalorder %s73, 0
    %p355 = por %p353, %p354
    %p356 = scmp.ne.s32.totalorder %s344, %s345
    %p357 = scmp.eq.s32.totalorder %s74, 1
    %p358 = por %p356, %p357
    %p360 = scmp.ne.s32.totalorder %s345, %s359
    %p361 = scmp.eq.s32.totalorder %s74, 0
    %p362 = por %p360, %p361
    %s364 = sadd.s32 %s363, 1
    %p367 = scmp.eq.s32.totalorder %s68, 1
    %p368 = scmp.ne.s32.totalorder %s363, %s365
    %p369 = scmp.eq.s32.totalorder %s68, 0
    %p370 = por %p368, %p369
    %p371 = scmp.ne.s32.totalorder %s363, %s365
    %p372 = scmp.eq.s32.totalorder %s73, 1
    %p373 = por %p371, %p372
    %p374 = scmp.ne.s32.totalorder %s365, %s366
    %p375 = scmp.eq.s32.totalorder %s73, 0
    %p376 = por %p374, %p375
    %p377 = scmp.ne.s32.totalorder %s365, %s366
    %p378 = scmp.eq.s32.totalorder %s74, 1
    %p379 = por %p377, %p378
    %p381 = scmp.ne.s32.totalorder %s366, %s380
    %p382 = scmp.eq.s32.totalorder %s74, 0
    %p383 = por %p381, %p382
    %s385 = sadd.s32 %s384, 1
    %p388 = scmp.eq.s32.totalorder %s68, 1
    %p389 = scmp.ne.s32.totalorder %s384, %s386
    %p390 = scmp.eq.s32.totalorder %s68, 0
    %p391 = por %p389, %p390
    %p392 = scmp.ne.s32.totalorder %s384, %s386
    %p393 = scmp.eq.s32.totalorder %s73, 1
    %p394 = por %p392, %p393
    %p395 = scmp.ne.s32.totalorder %s386, %s387
    %p396 = scmp.eq.s32.totalorder %s73, 0
    %p397 = por %p395, %p396
    %p398 = scmp.ne.s32.totalorder %s386, %s387
    %p399 = scmp.eq.s32.totalorder %s74, 1
    %p400 = por %p398, %p399
    %p402 = scmp.ne.s32.totalorder %s387, %s401
    %p403 = scmp.eq.s32.totalorder %s74, 0
    %p404 = por %p402, %p403
    %s406 = sadd.s32 %s405, 1
    %p409 = scmp.eq.s32.totalorder %s68, 1
    %p410 = scmp.ne.s32.totalorder %s405, %s407
    %p411 = scmp.eq.s32.totalorder %s68, 0
    %p412 = por %p410, %p411
    %p413 = scmp.ne.s32.totalorder %s405, %s407
    %p414 = scmp.eq.s32.totalorder %s73, 1
    %p415 = por %p413, %p414
    %p416 = scmp.ne.s32.totalorder %s407, %s408
    %p417 = scmp.eq.s32.totalorder %s73, 0
    %p418 = por %p416, %p417
    %p419 = scmp.ne.s32.totalorder %s407, %s408
    %p420 = scmp.eq.s32.totalorder %s74, 1
    %p421 = por %p419, %p420
    %p423 = scmp.ne.s32.totalorder %s408, %s422
    %p424 = scmp.eq.s32.totalorder %s74, 0
    %p425 = por %p423, %p424
    %s427 = sadd.s32 %s426, 1
    %p430 = scmp.eq.s32.totalorder %s68, 1
    %p431 = scmp.ne.s32.totalorder %s426, %s428
    %p432 = scmp.eq.s32.totalorder %s68, 0
    %p433 = por %p431, %p432
    %p434 = scmp.ne.s32.totalorder %s426, %s428
    %p435 = scmp.eq.s32.totalorder %s73, 1
    %p436 = por %p434, %p435
    %p437 = scmp.ne.s32.totalorder %s428, %s429
    %p438 = scmp.eq.s32.totalorder %s73, 0
    %p439 = por %p437, %p438
    %p440 = scmp.ne.s32.totalorder %s428, %s429
    %p441 = scmp.eq.s32.totalorder %s74, 1
    %p442 = por %p440, %p441
    %p444 = scmp.ne.s32.totalorder %s429, %s443
    %p445 = scmp.eq.s32.totalorder %s74, 0
    %p446 = por %p444, %p445
    %s448 = sadd.s32 %s447, 1
    %p451 = scmp.eq.s32.totalorder %s68, 1
    %p452 = scmp.ne.s32.totalorder %s447, %s449
    %p453 = scmp.eq.s32.totalorder %s68, 0
    %p454 = por %p452, %p453
    %p455 = scmp.ne.s32.totalorder %s447, %s449
    %p456 = scmp.eq.s32.totalorder %s73, 1
    %p457 = por %p455, %p456
    %p458 = scmp.ne.s32.totalorder %s449, %s450
    %p459 = scmp.eq.s32.totalorder %s73, 0
    %p460 = por %p458, %p459
    %p461 = scmp.ne.s32.totalorder %s449, %s450
    %p462 = scmp.eq.s32.totalorder %s74, 1
    %p463 = por %p461, %p462
    %p465 = scmp.ne.s32.totalorder %s450, %s464
    %p466 = scmp.eq.s32.totalorder %s74, 0
    %p467 = por %p465, %p466
    %s469 = sadd.s32 %s468, 1
    %p472 = scmp.eq.s32.totalorder %s68, 1
    %p473 = scmp.ne.s32.totalorder %s468, %s470
    %p474 = scmp.eq.s32.totalorder %s68, 0
    %p475 = por %p473, %p474
    %p476 = scmp.ne.s32.totalorder %s468, %s470
    %p477 = scmp.eq.s32.totalorder %s73, 1
    %p478 = por %p476, %p477
    %p479 = scmp.ne.s32.totalorder %s470, %s471
    %p480 = scmp.eq.s32.totalorder %s73, 0
    %p481 = por %p479, %p480
    %p482 = scmp.ne.s32.totalorder %s470, %s471
    %p483 = scmp.eq.s32.totalorder %s74, 1
    %p484 = por %p482, %p483
    %p486 = scmp.ne.s32.totalorder %s471, %s485
    %p487 = scmp.eq.s32.totalorder %s74, 0
    %p488 = por %p486, %p487
    %s490 = sadd.s32 %s489, 1
    %p493 = scmp.eq.s32.totalorder %s68, 1
    %p494 = scmp.ne.s32.totalorder %s489, %s491
    %p495 = scmp.eq.s32.totalorder %s68, 0
    %p496 = por %p494, %p495
    %p497 = scmp.ne.s32.totalorder %s489, %s491
    %p498 = scmp.eq.s32.totalorder %s73, 1
    %p499 = por %p497, %p498
    %p500 = scmp.ne.s32.totalorder %s491, %s492
    %p501 = scmp.eq.s32.totalorder %s73, 0
    %p502 = por %p500, %p501
    %p503 = scmp.ne.s32.totalorder %s491, %s492
    %p504 = scmp.eq.s32.totalorder %s74, 1
    %p505 = por %p503, %p504
    %p507 = scmp.ne.s32.totalorder %s492, %s506
    %p508 = scmp.eq.s32.totalorder %s74, 0
    %p509 = por %p507, %p508
    %s511 = sadd.s32 %s510, 1
    %p514 = scmp.eq.s32.totalorder %s68, 1
    %p515 = scmp.ne.s32.totalorder %s510, %s512
    %p516 = scmp.eq.s32.totalorder %s68, 0
    %p517 = por %p515, %p516
    %p518 = scmp.ne.s32.totalorder %s510, %s512
    %p519 = scmp.eq.s32.totalorder %s73, 1
    %p520 = por %p518, %p519
    %p521 = scmp.ne.s32.totalorder %s512, %s513
    %p522 = scmp.eq.s32.totalorder %s73, 0
    %p523 = por %p521, %p522
    %p524 = scmp.ne.s32.totalorder %s512, %s513
    %p525 = scmp.eq.s32.totalorder %s74, 1
    %p526 = por %p524, %p525
    %p528 = scmp.ne.s32.totalorder %s513, %s527
    %p529 = scmp.eq.s32.totalorder %s74, 0
    %p530 = por %p528, %p529
    %s532 = sadd.s32 %s531, 1
    %p535 = scmp.eq.s32.totalorder %s68, 1
    %p536 = scmp.ne.s32.totalorder %s531, %s533
    %p537 = scmp.eq.s32.totalorder %s68, 0
    %p538 = por %p536, %p537
    %p539 = scmp.ne.s32.totalorder %s531, %s533
    %p540 = scmp.eq.s32.totalorder %s73, 1
    %p541 = por %p539, %p540
    %p542 = scmp.ne.s32.totalorder %s533, %s534
    %p543 = scmp.eq.s32.totalorder %s73, 0
    %p544 = por %p542, %p543
    %p545 = scmp.ne.s32.totalorder %s533, %s534
    %p546 = scmp.eq.s32.totalorder %s74, 1
    %p547 = por %p545, %p546
    %p549 = scmp.ne.s32.totalorder %s534, %s548
    %p550 = scmp.eq.s32.totalorder %s74, 0
    %p551 = por %p549, %p550
    %s553 = sadd.s32 %s552, 1
    %p556 = scmp.eq.s32.totalorder %s68, 1
    %p557 = scmp.ne.s32.totalorder %s552, %s554
    %p558 = scmp.eq.s32.totalorder %s68, 0
    %p559 = por %p557, %p558
    %p560 = scmp.ne.s32.totalorder %s552, %s554
    %p561 = scmp.eq.s32.totalorder %s73, 1
    %p562 = por %p560, %p561
    %p563 = scmp.ne.s32.totalorder %s554, %s555
    %p564 = scmp.eq.s32.totalorder %s73, 0
    %p565 = por %p563, %p564
    %p566 = scmp.ne.s32.totalorder %s554, %s555
    %p567 = scmp.eq.s32.totalorder %s74, 1
    %p568 = por %p566, %p567
    %p570 = scmp.ne.s32.totalorder %s555, %s569
    %p571 = scmp.eq.s32.totalorder %s74, 0
    %p572 = por %p570, %p571
    %s574 = sadd.s32 %s573, 1
    %p577 = scmp.eq.s32.totalorder %s68, 1
    %p578 = scmp.ne.s32.totalorder %s573, %s575
    %p579 = scmp.eq.s32.totalorder %s68, 0
    %p580 = por %p578, %p579
    %p581 = scmp.ne.s32.totalorder %s573, %s575
    %p582 = scmp.eq.s32.totalorder %s73, 1
    %p583 = por %p581, %p582
    %p584 = scmp.ne.s32.totalorder %s575, %s576
    %p585 = scmp.eq.s32.totalorder %s73, 0
    %p586 = por %p584, %p585
    %p587 = scmp.ne.s32.totalorder %s575, %s576
    %p588 = scmp.eq.s32.totalorder %s74, 1
    %p589 = por %p587, %p588
    %p591 = scmp.ne.s32.totalorder %s576, %s590
    %p592 = scmp.eq.s32.totalorder %s74, 0
    %p593 = por %p591, %p592
    %s595 = sadd.s32 %s594, 1
    %p598 = scmp.eq.s32.totalorder %s68, 1
    %p599 = scmp.ne.s32.totalorder %s594, %s596
    %p600 = scmp.eq.s32.totalorder %s68, 0
    %p601 = por %p599, %p600
    %p602 = scmp.ne.s32.totalorder %s594, %s596
    %p603 = scmp.eq.s32.totalorder %s73, 1
    %p604 = por %p602, %p603
    %p605 = scmp.ne.s32.totalorder %s596, %s597
    %p606 = scmp.eq.s32.totalorder %s73, 0
    %p607 = por %p605, %p606
    %p608 = scmp.ne.s32.totalorder %s596, %s597
    %p609 = scmp.eq.s32.totalorder %s74, 1
    %p610 = por %p608, %p609
    %p612 = scmp.ne.s32.totalorder %s597, %s611
    %p613 = scmp.eq.s32.totalorder %s74, 0
    %p614 = por %p612, %p613
    %s616 = sadd.s32 %s615, 1
    %p619 = scmp.eq.s32.totalorder %s68, 1
    %p620 = scmp.ne.s32.totalorder %s615, %s617
    %p621 = scmp.eq.s32.totalorder %s68, 0
    %p622 = por %p620, %p621
    %p623 = scmp.ne.s32.totalorder %s615, %s617
    %p624 = scmp.eq.s32.totalorder %s73, 1
    %p625 = por %p623, %p624
    %p626 = scmp.ne.s32.totalorder %s617, %s618
    %p627 = scmp.eq.s32.totalorder %s73, 0
    %p628 = por %p626, %p627
    %p629 = scmp.ne.s32.totalorder %s617, %s618
    %p630 = scmp.eq.s32.totalorder %s74, 1
    %p631 = por %p629, %p630
    %p633 = scmp.ne.s32.totalorder %s618, %s632
    %p634 = scmp.eq.s32.totalorder %s74, 0
    %p635 = por %p633, %p634
    %s637 = sadd.s32 %s636, 1
    %p640 = scmp.eq.s32.totalorder %s68, 1
    %p641 = scmp.ne.s32.totalorder %s636, %s638
    %p642 = scmp.eq.s32.totalorder %s68, 0
    %p643 = por %p641, %p642
    %p644 = scmp.ne.s32.totalorder %s636, %s638
    %p645 = scmp.eq.s32.totalorder %s73, 1
    %p646 = por %p644, %p645
    %p647 = scmp.ne.s32.totalorder %s638, %s639
    %p648 = scmp.eq.s32.totalorder %s73, 0
    %p649 = por %p647, %p648
    %p650 = scmp.ne.s32.totalorder %s638, %s639
    %p651 = scmp.eq.s32.totalorder %s74, 1
    %p652 = por %p650, %p651
    %p654 = scmp.ne.s32.totalorder %s639, %s653
    %p655 = scmp.eq.s32.totalorder %s74, 0
    %p656 = por %p654, %p655
    %s658 = sadd.s32 %s657, 1
    %p661 = scmp.eq.s32.totalorder %s68, 1
    %p662 = scmp.ne.s32.totalorder %s657, %s659
    %p663 = scmp.eq.s32.totalorder %s68, 0
    %p664 = por %p662, %p663
    %p665 = scmp.ne.s32.totalorder %s657, %s659
    %p666 = scmp.eq.s32.totalorder %s73, 1
    %p667 = por %p665, %p666
    %p668 = scmp.ne.s32.totalorder %s659, %s660
    %p669 = scmp.eq.s32.totalorder %s73, 0
    %p670 = por %p668, %p669
    %p671 = scmp.ne.s32.totalorder %s659, %s660
    %p672 = scmp.eq.s32.totalorder %s74, 1
    %p673 = por %p671, %p672
    %p675 = scmp.ne.s32.totalorder %s660, %s674
    %p676 = scmp.eq.s32.totalorder %s74, 0
    %p677 = por %p675, %p676
    %s679 = sadd.s32 %s678, 1
    %p682 = scmp.eq.s32.totalorder %s68, 1
    %p683 = scmp.ne.s32.totalorder %s678, %s680
    %p684 = scmp.eq.s32.totalorder %s68, 0
    %p685 = por %p683, %p684
    %p686 = scmp.ne.s32.totalorder %s678, %s680
    %p687 = scmp.eq.s32.totalorder %s73, 1
    %p688 = por %p686, %p687
    %p689 = scmp.ne.s32.totalorder %s680, %s681
    %p690 = scmp.eq.s32.totalorder %s73, 0
    %p691 = por %p689, %p690
    %p692 = scmp.ne.s32.totalorder %s680, %s681
    %p693 = scmp.eq.s32.totalorder %s74, 1
    %p694 = por %p692, %p693
    %p696 = scmp.ne.s32.totalorder %s681, %s695
    %p697 = scmp.eq.s32.totalorder %s74, 0
    %p698 = por %p696, %p697
    %s700 = sadd.s32 %s699, 1
    %p703 = scmp.eq.s32.totalorder %s68, 1
    %p704 = scmp.ne.s32.totalorder %s699, %s701
    %p705 = scmp.eq.s32.totalorder %s68, 0
    %p706 = por %p704, %p705
    %p707 = scmp.ne.s32.totalorder %s699, %s701
    %p708 = scmp.eq.s32.totalorder %s73, 1
    %p709 = por %p707, %p708
    %p710 = scmp.ne.s32.totalorder %s701, %s702
    %p711 = scmp.eq.s32.totalorder %s73, 0
    %p712 = por %p710, %p711
    %p713 = scmp.ne.s32.totalorder %s701, %s702
    %p714 = scmp.eq.s32.totalorder %s74, 1
    %p715 = por %p713, %p714
    %p717 = scmp.ne.s32.totalorder %s702, %s716
    %p718 = scmp.eq.s32.totalorder %s74, 0
    %p719 = por %p717, %p718
    %s720 = ssub.s32 %s68, %s75
    %p721 = scmp.eq.s32.totalorder %s720, 0
    %s723 = sadd.s32 %s722, 1
    %s724 = scalar_select %p721, %s722, %s723
    %p727 = pneg %p721
    %p728 = scmp.eq.s32.totalorder %s68, 1
    %p729 = por %p727, %p728
    %p730 = scmp.ne.s32.totalorder %s722, %s725
    %p731 = scmp.eq.s32.totalorder %s68, 0
    %p732 = por %p730, %p731
    %p733 = scmp.ne.s32.totalorder %s722, %s725
    %p734 = scmp.eq.s32.totalorder %s73, 1
    %p735 = por %p733, %p734
    %p736 = scmp.ne.s32.totalorder %s725, %s726
    %p737 = scmp.eq.s32.totalorder %s73, 0
    %p738 = por %p736, %p737
    %p739 = scmp.ne.s32.totalorder %s725, %s726
    %p740 = scmp.eq.s32.totalorder %s74, 1
    %p741 = por %p739, %p740
    %p743 = scmp.ne.s32.totalorder %s726, %s742
    %p744 = scmp.eq.s32.totalorder %s74, 0
    %p745 = por %p743, %p744
    %s746 = ssub.s32 %s68, %s75
    %p747 = scmp.eq.s32.totalorder %s746, 0
    %s749 = sadd.s32 %s748, 1
    %s750 = scalar_select %p747, %s748, %s749
    %p753 = pneg %p747
    %p754 = scmp.eq.s32.totalorder %s68, 1
    %p755 = por %p753, %p754
    %p756 = scmp.ne.s32.totalorder %s748, %s751
    %p757 = scmp.eq.s32.totalorder %s68, 0
    %p758 = por %p756, %p757
    %p759 = scmp.ne.s32.totalorder %s748, %s751
    %p760 = scmp.eq.s32.totalorder %s73, 1
    %p761 = por %p759, %p760
    %p762 = scmp.ne.s32.totalorder %s751, %s752
    %p763 = scmp.eq.s32.totalorder %s73, 0
    %p764 = por %p762, %p763
    %p765 = scmp.ne.s32.totalorder %s751, %s752
    %p766 = scmp.eq.s32.totalorder %s74, 1
    %p767 = por %p765, %p766
    %p769 = scmp.ne.s32.totalorder %s752, %s768
    %p770 = scmp.eq.s32.totalorder %s74, 0
    %p771 = por %p769, %p770
    %p772 = scmp.le.s32.totalorder 1, %s68
    %p773 = scmp.lt.s32.totalorder %s68, 3
    %p774 = pnand %p772, %p773
    %p775 = pneg %p774
    // Predicated region
    $region9: #{_lambda_.3} parent=5 // pred_check
      _
    $region10: #{_lambda_.3} parent=5 // pred_check_branch
      %777 = sbr.rel (%p774) target = $region12
    $region11: #{_lambda_.3} parent=5 // pred_region
      %s778 = ssub.s32 %s68, 1
      // Predicated region
      $region13: #{_lambda_.3} parent=11 // pred_check
        %p779 = pneg %p167
      $region14: #{_lambda_.3} parent=11 // pred_check_branch
        %781 = sbr.rel (%p779) target = $region16
      $region15: #{_lambda_.3} parent=11 // pred_region
        _
      $region16: #{_lambda_.3} parent=11 // pred_fallthru
        _
      // Predicated region
      $region17: #{_lambda_.3} parent=11 // pred_check
        %p782 = pneg %p188
      $region18: #{_lambda_.3} parent=11 // pred_check_branch
        %784 = sbr.rel (%p782) target = $region20
      $region19: #{_lambda_.3} parent=11 // pred_region
        _
      $region20: #{_lambda_.3} parent=11 // pred_fallthru
        _
      // Predicated region
      $region21: #{_lambda_.3} parent=11 // pred_check
        %p785 = pneg %p313
      $region22: #{_lambda_.3} parent=11 // pred_check_branch
        %787 = sbr.rel (%p785) target = $region24
      $region23: #{_lambda_.3} parent=11 // pred_region
        _
      $region24: #{_lambda_.3} parent=11 // pred_fallthru
        _
      // Predicated region
      $region25: #{_lambda_.3} parent=11 // pred_check
        %p788 = pneg %p334
      $region26: #{_lambda_.3} parent=11 // pred_check_branch
        %790 = sbr.rel (%p788) target = $region28
      $region27: #{_lambda_.3} parent=11 // pred_region
        _
      $region28: #{_lambda_.3} parent=11 // pred_fallthru
        _
      // Predicated region
      $region29: #{_lambda_.3} parent=11 // pred_check
        %p791 = pneg %p355
      $region30: #{_lambda_.3} parent=11 // pred_check_branch
        %793 = sbr.rel (%p791) target = $region32
      $region31: #{_lambda_.3} parent=11 // pred_region
        _
      $region32: #{_lambda_.3} parent=11 // pred_fallthru
        _
      // Predicated region
      $region33: #{_lambda_.3} parent=11 // pred_check
        %p794 = pneg %p376
      $region34: #{_lambda_.3} parent=11 // pred_check_branch
        %796 = sbr.rel (%p794) target = $region36
      $region35: #{_lambda_.3} parent=11 // pred_region
        _
      $region36: #{_lambda_.3} parent=11 // pred_fallthru
        _
      // Predicated region
      $region37: #{_lambda_.3} parent=11 // pred_check
        %p797 = pneg %p397
      $region38: #{_lambda_.3} parent=11 // pred_check_branch
        %799 = sbr.rel (%p797) target = $region40
      $region39: #{_lambda_.3} parent=11 // pred_region
        _
      $region40: #{_lambda_.3} parent=11 // pred_fallthru
        _
      // Predicated region
      $region41: #{_lambda_.3} parent=11 // pred_check
        %p800 = pneg %p418
      $region42: #{_lambda_.3} parent=11 // pred_check_branch
        %802 = sbr.rel (%p800) target = $region44
      $region43: #{_lambda_.3} parent=11 // pred_region
        _
      $region44: #{_lambda_.3} parent=11 // pred_fallthru
        _
      // Predicated region
      $region45: #{_lambda_.3} parent=11 // pred_check
        %p803 = pneg %p439
      $region46: #{_lambda_.3} parent=11 // pred_check_branch
        %805 = sbr.rel (%p803) target = $region48
      $region47: #{_lambda_.3} parent=11 // pred_region
        _
      $region48: #{_lambda_.3} parent=11 // pred_fallthru
        _
      // Predicated region
      $region49: #{_lambda_.3} parent=11 // pred_check
        %p806 = pneg %p460
      $region50: #{_lambda_.3} parent=11 // pred_check_branch
        %808 = sbr.rel (%p806) target = $region52
      $region51: #{_lambda_.3} parent=11 // pred_region
        _
      $region52: #{_lambda_.3} parent=11 // pred_fallthru
        _
      // Predicated region
      $region53: #{_lambda_.3} parent=11 // pred_check
        %p809 = pneg %p481
      $region54: #{_lambda_.3} parent=11 // pred_check_branch
        %811 = sbr.rel (%p809) target = $region56
      $region55: #{_lambda_.3} parent=11 // pred_region
        _
      $region56: #{_lambda_.3} parent=11 // pred_fallthru
        _
      // Predicated region
      $region57: #{_lambda_.3} parent=11 // pred_check
        %p812 = pneg %p502
      $region58: #{_lambda_.3} parent=11 // pred_check_branch
        %814 = sbr.rel (%p812) target = $region60
      $region59: #{_lambda_.3} parent=11 // pred_region
        _
      $region60: #{_lambda_.3} parent=11 // pred_fallthru
        _
      // Predicated region
      $region61: #{_lambda_.3} parent=11 // pred_check
        %p815 = pneg %p523
      $region62: #{_lambda_.3} parent=11 // pred_check_branch
        %817 = sbr.rel (%p815) target = $region64
      $region63: #{_lambda_.3} parent=11 // pred_region
        _
      $region64: #{_lambda_.3} parent=11 // pred_fallthru
        _
      // Predicated region
      $region65: #{_lambda_.3} parent=11 // pred_check
        %p818 = pneg %p544
      $region66: #{_lambda_.3} parent=11 // pred_check_branch
        %820 = sbr.rel (%p818) target = $region68
      $region67: #{_lambda_.3} parent=11 // pred_region
        _
      $region68: #{_lambda_.3} parent=11 // pred_fallthru
        _
      // Predicated region
      $region69: #{_lambda_.3} parent=11 // pred_check
        %p821 = pneg %p565
      $region70: #{_lambda_.3} parent=11 // pred_check_branch
        %823 = sbr.rel (%p821) target = $region72
      $region71: #{_lambda_.3} parent=11 // pred_region
        _
      $region72: #{_lambda_.3} parent=11 // pred_fallthru
        _
      // Predicated region
      $region73: #{_lambda_.3} parent=11 // pred_check
        %p824 = pneg %p586
      $region74: #{_lambda_.3} parent=11 // pred_check_branch
        %826 = sbr.rel (%p824) target = $region76
      $region75: #{_lambda_.3} parent=11 // pred_region
        _
      $region76: #{_lambda_.3} parent=11 // pred_fallthru
        _
      // Predicated region
      $region77: #{_lambda_.3} parent=11 // pred_check
        %p827 = pneg %p607
      $region78: #{_lambda_.3} parent=11 // pred_check_branch
        %829 = sbr.rel (%p827) target = $region80
      $region79: #{_lambda_.3} parent=11 // pred_region
        _
      $region80: #{_lambda_.3} parent=11 // pred_fallthru
        _
      // Predicated region
      $region81: #{_lambda_.3} parent=11 // pred_check
        %p830 = pneg %p628
      $region82: #{_lambda_.3} parent=11 // pred_check_branch
        %832 = sbr.rel (%p830) target = $region84
      $region83: #{_lambda_.3} parent=11 // pred_region
        _
      $region84: #{_lambda_.3} parent=11 // pred_fallthru
        _
      // Predicated region
      $region85: #{_lambda_.3} parent=11 // pred_check
        %p833 = pneg %p649
      $region86: #{_lambda_.3} parent=11 // pred_check_branch
        %835 = sbr.rel (%p833) target = $region88
      $region87: #{_lambda_.3} parent=11 // pred_region
        _
      $region88: #{_lambda_.3} parent=11 // pred_fallthru
        _
      // Predicated region
      $region89: #{_lambda_.3} parent=11 // pred_check
        %p836 = pneg %p670
      $region90: #{_lambda_.3} parent=11 // pred_check_branch
        %838 = sbr.rel (%p836) target = $region92
      $region91: #{_lambda_.3} parent=11 // pred_region
        _
      $region92: #{_lambda_.3} parent=11 // pred_fallthru
        _
      // Predicated region
      $region93: #{_lambda_.3} parent=11 // pred_check
        %p839 = pneg %p691
      $region94: #{_lambda_.3} parent=11 // pred_check_branch
        %841 = sbr.rel (%p839) target = $region96
      $region95: #{_lambda_.3} parent=11 // pred_region
        _
      $region96: #{_lambda_.3} parent=11 // pred_fallthru
        _
      // Predicated region
      $region97: #{_lambda_.3} parent=11 // pred_check
        %p842 = pneg %p712
      $region98: #{_lambda_.3} parent=11 // pred_check_branch
        %844 = sbr.rel (%p842) target = $region100
      $region99: #{_lambda_.3} parent=11 // pred_region
        _
      $region100: #{_lambda_.3} parent=11 // pred_fallthru
        _
    $region12: #{_lambda_.3} parent=5 // pred_fallthru
      _
    %p845 = scmp.lt.s32.totalorder %s68, 2
    // Predicated region
    $region101: #{_lambda_.3} parent=5 // pred_check
      %p846 = pneg %p845
    $region102: #{_lambda_.3} parent=5 // pred_check_branch
      %848 = sbr.rel (%p846) target = $region104
    $region103: #{_lambda_.3} parent=5 // pred_region
      // Predicated region
      $region105: #{_lambda_.3} parent=103 // pred_check
        %p849 = pneg %p88
      $region106: #{_lambda_.3} parent=103 // pred_check_branch
        %851 = sbr.rel (%p849) target = $region108
      $region107: #{_lambda_.3} parent=103 // pred_region
        %p852 = scmp.lt.s32.totalorder %s68, 1
        %s853 = scalar_select %p852, %s68, 1
        %s854 = smul.addr %s853, 8
        %s855 = scalar_lea.vmem %s1, %s854
      $region108: #{_lambda_.3} parent=103 // pred_fallthru
        _
      // Predicated region
      $region109: #{_lambda_.3} parent=103 // pred_check
        %p856 = pneg %p114
      $region110: #{_lambda_.3} parent=103 // pred_check_branch
        %858 = sbr.rel (%p856) target = $region112
      $region111: #{_lambda_.3} parent=103 // pred_region
        %p859 = scmp.lt.s32.totalorder %s68, 1
        %s860 = scalar_select %p859, %s68, 1
        %s861 = smul.addr %s860, 2
        %s862 = smul.addr %s861, 4
        %s863 = scalar_lea.vmem %s3, %s862
      $region112: #{_lambda_.3} parent=103 // pred_fallthru
        _
      // Predicated region
      $region113: #{_lambda_.3} parent=103 // pred_check
        %p864 = pneg %p140
      $region114: #{_lambda_.3} parent=103 // pred_check_branch
        %866 = sbr.rel (%p864) target = $region116
      $region115: #{_lambda_.3} parent=103 // pred_region
        %p867 = scmp.lt.s32.totalorder %s68, 1
        %s868 = scalar_select %p867, %s68, 1
        %s869 = smul.addr %s868, 2
        %s870 = smul.addr %s869, 8
        %s871 = scalar_lea.vmem %s5, %s870
      $region116: #{_lambda_.3} parent=103 // pred_fallthru
        _
      // Predicated region
      $region117: #{_lambda_.3} parent=103 // pred_check
        %p872 = pneg %p208
      $region118: #{_lambda_.3} parent=103 // pred_check_branch
        %874 = sbr.rel (%p872) target = $region120
      $region119: #{_lambda_.3} parent=103 // pred_region
        %p875 = scmp.lt.s32.totalorder %s68, 1
        %s876 = scalar_select %p875, %s68, 1
        %s877 = smul.addr %s876, 4
        %s878 = smul.addr %s877, 4
        %s879 = scalar_lea.vmem %s11, %s878
      $region120: #{_lambda_.3} parent=103 // pred_fallthru
        _
      // Predicated region
      $region121: #{_lambda_.3} parent=103 // pred_check
        %p880 = pneg %p234
      $region122: #{_lambda_.3} parent=103 // pred_check_branch
        %882 = sbr.rel (%p880) target = $region124
      $region123: #{_lambda_.3} parent=103 // pred_region
        %p883 = scmp.lt.s32.totalorder %s68, 1
        %s884 = scalar_select %p883, %s68, 1
        %s885 = smul.addr %s884, 2
        %s886 = smul.addr %s885, 8
        %s887 = scalar_lea.vmem %s13, %s886
      $region124: #{_lambda_.3} parent=103 // pred_fallthru
        _
      // Predicated region
      $region125: #{_lambda_.3} parent=103 // pred_check
        %p888 = pneg %p260
      $region126: #{_lambda_.3} parent=103 // pred_check_branch
        %890 = sbr.rel (%p888) target = $region128
      $region127: #{_lambda_.3} parent=103 // pred_region
        %p891 = scmp.lt.s32.totalorder %s68, 1
        %s892 = scalar_select %p891, %s68, 1
        %s893 = smul.addr %s892, 4
        %s894 = smul.addr %s893, 4
        %s895 = scalar_lea.vmem %s15, %s894
      $region128: #{_lambda_.3} parent=103 // pred_fallthru
        _
      // Predicated region
      $region129: #{_lambda_.3} parent=103 // pred_check
        %p896 = pneg %p286
      $region130: #{_lambda_.3} parent=103 // pred_check_branch
        %898 = sbr.rel (%p896) target = $region132
      $region131: #{_lambda_.3} parent=103 // pred_region
        %p899 = scmp.lt.s32.totalorder %s68, 1
        %s900 = scalar_select %p899, %s68, 1
        %s901 = smul.addr %s900, 2
        %s902 = smul.addr %s901, 8
        %s903 = scalar_lea.vmem %s17, %s902
      $region132: #{_lambda_.3} parent=103 // pred_fallthru
        _
    $region104: #{_lambda_.3} parent=5 // pred_fallthru
      _
    %p904 = scmp.le.s32.totalorder 1, %s68
    %p905 = scmp.lt.s32.totalorder %s68, 3
    %p906 = pnand %p904, %p905
    %p907 = pneg %p906
    // Predicated region
    $region133: #{_lambda_.3} parent=5 // pred_check
      _
    $region134: #{_lambda_.3} parent=5 // pred_check_branch
      %909 = sbr.rel (%p906) target = $region136
    $region135: #{_lambda_.3} parent=5 // pred_region
      %s910 = ssub.s32 %s68, 1
      %p911 = scmp.lt.s32.totalorder %s73, 1
      %s912 = scalar_select %p911, %s73, 1
      %s913 = smul.addr %s912, 8
      %s914 = scalar_lea.vmem %s1, %s913
      %p915 = pneg %p94
      %p916 = pneg %p91
      %p917 = scmp.lt.s32.totalorder %s73, 1
      %s918 = scalar_select %p917, %s73, 1
      %s919 = smul.addr %s918, 2
      %s920 = smul.addr %s919, 4
      %s921 = scalar_lea.vmem %s3, %s920
      %p922 = pneg %p120
      %p923 = pneg %p117
      %p924 = scmp.lt.s32.totalorder %s73, 1
      %s925 = scalar_select %p924, %s73, 1
      %s926 = smul.addr %s925, 2
      %s927 = smul.addr %s926, 8
      %s928 = scalar_lea.vmem %s5, %s927
      %p929 = pneg %p146
      %p930 = pneg %p143
      %p931 = pneg %p167
      %p932 = pneg %p164
      %p933 = pneg %p188
      %p934 = pneg %p185
      %p935 = scmp.lt.s32.totalorder %s73, 1
      %s936 = scalar_select %p935, %s73, 1
      %s937 = smul.addr %s936, 4
      %s938 = smul.addr %s937, 4
      %s939 = scalar_lea.vmem %s11, %s938
      %p940 = pneg %p214
      %p941 = pneg %p211
      %p942 = scmp.lt.s32.totalorder %s73, 1
      %s943 = scalar_select %p942, %s73, 1
      %s944 = smul.addr %s943, 2
      %s945 = smul.addr %s944, 8
      %s946 = scalar_lea.vmem %s13, %s945
      %p947 = pneg %p240
      %p948 = pneg %p237
      %p949 = scmp.lt.s32.totalorder %s73, 1
      %s950 = scalar_select %p949, %s73, 1
      %s951 = smul.addr %s950, 4
      %s952 = smul.addr %s951, 4
      %s953 = scalar_lea.vmem %s15, %s952
      %p954 = pneg %p266
      %p955 = pneg %p263
      %p956 = scmp.lt.s32.totalorder %s73, 1
      %s957 = scalar_select %p956, %s73, 1
      %s958 = smul.addr %s957, 2
      %s959 = smul.addr %s958, 8
      %s960 = scalar_lea.vmem %s17, %s959
      %p961 = pneg %p292
      %p962 = pneg %p289
      %p963 = pneg %p313
      %p964 = pneg %p310
      %p965 = pneg %p334
      %p966 = pneg %p331
      %p967 = pneg %p355
      %p968 = pneg %p352
      %p969 = pneg %p376
      %p970 = pneg %p373
      %p971 = pneg %p397
      %p972 = pneg %p394
      %p973 = pneg %p418
      %p974 = pneg %p415
      %p975 = pneg %p439
      %p976 = pneg %p436
      %p977 = pneg %p460
      %p978 = pneg %p457
      %p979 = pneg %p481
      %p980 = pneg %p478
      %p981 = pneg %p502
      %p982 = pneg %p499
      %p983 = pneg %p523
      %p984 = pneg %p520
      %p985 = pneg %p544
      %p986 = pneg %p541
      %p987 = pneg %p565
      %p988 = pneg %p562
      %p989 = pneg %p586
      %p990 = pneg %p583
      %p991 = pneg %p607
      %p992 = pneg %p604
      %p993 = pneg %p628
      %p994 = pneg %p625
      %p995 = pneg %p649
      %p996 = pneg %p646
      %p997 = pneg %p670
      %p998 = pneg %p667
      %p999 = pneg %p691
      %p1000 = pneg %p688
      %p1001 = pneg %p712
      %p1002 = pneg %p709
      %p1003 = pneg %p738
      %p1004 = pneg %p735
      %p1005 = scmp.lt.s32.totalorder %s73, 1
      %s1006 = scalar_select %p1005, %s73, 1
      %s1007 = smul.addr %s1006, 2
      %s1008 = scalar_lea.vmem %s59, %s1007
      %p1009 = pneg %p764
      %p1010 = pneg %p761
      %p1011 = scmp.lt.s32.totalorder %s73, 1
      %s1012 = scalar_select %p1011, %s73, 1
      %s1013 = smul.addr %s1012, 8
      %s1014 = scalar_lea.vmem %s61, %s1013
      %p1015 = scmp.lt.s32.totalorder %s73, 1
      %s1016 = scalar_select %p1015, %s73, 1
      %s1017 = smul.addr %s1016, 8
      %s1018 = scalar_lea.vmem %s1, %s1017
      %p1019 = scmp.lt.s32.totalorder %s73, 1
      %s1020 = scalar_select %p1019, %s73, 1
      %s1021 = smul.addr %s1020, 2
      %s1022 = smul.addr %s1021, 4
      %s1023 = scalar_lea.vmem %s3, %s1022
      %p1024 = scmp.lt.s32.totalorder %s73, 1
      %s1025 = scalar_select %p1024, %s73, 1
      %s1026 = smul.addr %s1025, 2
      %s1027 = smul.addr %s1026, 8
      %s1028 = scalar_lea.vmem %s5, %s1027
      %p1029 = scmp.lt.s32.totalorder %s73, 1
      %s1030 = scalar_select %p1029, %s73, 1
      %s1031 = smul.addr %s1030, 4
      %s1032 = smul.addr %s1031, 4
      %s1033 = scalar_lea.vmem %s11, %s1032
      %p1034 = scmp.lt.s32.totalorder %s73, 1
      %s1035 = scalar_select %p1034, %s73, 1
      %s1036 = smul.addr %s1035, 2
      %s1037 = smul.addr %s1036, 8
      %s1038 = scalar_lea.vmem %s13, %s1037
      %p1039 = scmp.lt.s32.totalorder %s73, 1
      %s1040 = scalar_select %p1039, %s73, 1
      %s1041 = smul.addr %s1040, 4
      %s1042 = smul.addr %s1041, 4
      %s1043 = scalar_lea.vmem %s15, %s1042
      %p1044 = scmp.lt.s32.totalorder %s73, 1
      %s1045 = scalar_select %p1044, %s73, 1
      %s1046 = smul.addr %s1045, 2
      %s1047 = smul.addr %s1046, 8
      %s1048 = scalar_lea.vmem %s17, %s1047
      %p1049 = scmp.lt.s32.totalorder %s73, 1
      %s1050 = scalar_select %p1049, %s73, 1
      %s1051 = smul.addr %s1050, 2
      %s1052 = scalar_lea.vmem %s59, %s1051
      %p1053 = scmp.lt.s32.totalorder %s73, 1
      %s1054 = scalar_select %p1053, %s73, 1
      %s1055 = smul.addr %s1054, 8
      %s1056 = scalar_lea.vmem %s61, %s1055
      %v1058 = vlaneseq
      %v1059 = vand.u32 %v1058, 127
      %vm1060 = vcmp.lt.s32.totalorder %v1059, 0
      %v1061 = vsub.s32 0, %v1059
      %v1062 = vsel %vm1060, %v1061, %v1059
      %v1063 = vshrl.u32 %v1062, 3
      %v1064 = vand.u32 %v1062, 7
      %v1065 = vsub.s32 0, %v1064
      %v1066 = vsel %vm1060, %v1065, %v1064
      %vm1067 = vcmp.ne.s32.totalorder %v1066, 0
      %vm1068 = vcmp.lt.s32.totalorder %v1066, 0
      %vm1069 = vmand %vm1068, %vm1067
      %v1070 = vadd.s32 %v1066, 8
      %v1071 = vsel %vm1069, %v1070, %v1066
      %1072 = vst [vmem:[#allocation2] sm:$0xff] 0.0
      %1073 = vst [vmem:[#allocation2 + $0x18] sm:$0xff] 0.0
      %vm1074 = vcmask 1048064
      %1075 = vst.msk [vmem:[#allocation2 + $0x8] sm:$0xff] %vm1074, 0.0
      %vm1076 = vcmask 523264
      %1077 = vst.msk [vmem:[#allocation2 + $0x10] sm:$0xff] %vm1076, 0.0
      %1078 = vst.msk [vmem:[#allocation2 + $0x20] sm:$0xff] %vm1074, 0.0
      %1079 = vst.msk [vmem:[#allocation2 + $0x28] sm:$0xff] %vm1076, 0.0
      %v1080 = vld [vmem:[%s1018] sm:$0xff]
      %1081 = vst.msk [vmem:[#allocation2 + $0x8] sm:$0xff] %vm1076, %v1080
      %v1082 = vld [vmem:[%s1023] sm:$0xf]
      %v1083 = vld [vmem:[%s1023 + $0x4] sm:$0xf]
      %v1084 = vld [vmem:[%s1028] sm:$0xff]
      %v1085 = vld [vmem:[%s1028 + $0x8] sm:$0xff]
      %v1086 = vld [vmem:[#allocation2] sm:$0xff]
      %v1087 = vld [vmem:[#allocation2 + $0x8] sm:$0xff]
      %v1088 = vadd.s32 %v1071, 4294967295
      %vm1089 = vcmp.ge.s32.totalorder %v1088, 0
      %vm1090 = vcmp.lt.s32.totalorder %v1088, 8
      %vm1091 = vmand %vm1089, %vm1090
      %v1092 = vsel %vm1091, 1, 0
      %vm1093 = vcmp.eq.s32.totalorder %v1092, 1
      %1096 = vrot.lane.b32.xlu0 %v1086, 9
      %v1097 = vpop.permute.xlu0 %1096
      %1098 = vrot.lane.b32.xlu0 %v1087, 9
      %v1099 = vpop.permute.xlu0 %1098
      %vm1100 = vcmask 72704
      %v1101 = vsel %vm1100, %v1097, %v1099
      %v1103 = vsel %vm1093, %v1101, 0.0
      %v1104 = vadd.s32 %v1071, 1
      %vm1105 = vcmp.ge.s32.totalorder %v1104, 0
      %vm1106 = vcmp.lt.s32.totalorder %v1104, 8
      %vm1107 = vmand %vm1105, %vm1106
      %v1108 = vsel %vm1107, 1, 0
      %vm1109 = vcmp.eq.s32.totalorder %v1108, 1
      %1110 = vrot.lane.b32.xlu0 %v1086, 7
      %v1111 = vpop.permute.xlu0 %1110
      %1112 = vrot.lane.b32.xlu0 %v1087, 7
      %v1113 = vpop.permute.xlu0 %1112
      %vm1114 = vcmask 56320
      %v1115 = vsel %vm1114, %v1111, %v1113
      %v1117 = vsel %vm1109, %v1115, 0.0
      %1118 = vrot.lane.b32.xlu0 %v1086, 1
      %v1119 = vpop.permute.xlu0 %1118
      %1120 = vrot.lane.b32.xlu0 %v1087, 1
      %v1121 = vpop.permute.xlu0 %1120
      %vm1122 = vcmask 7168
      %v1123 = vsel %vm1122, %v1119, %v1121
      %v1125 = vsel %vm1093, %v1123, 0.0
      %1126 = vrot.lane.b32.xlu0 %v1087, 127
      %v1127 = vpop.permute.xlu0 %1126
      %v1129 = vsel %vm1109, %v1127, 0.0
      %1130 = vrot.lane.b32.xlu0 %v1087, 121
      %v1131 = vpop.permute.xlu0 %1130
      %v1133 = vsel %vm1093, %v1131, 0.0
      %1134 = vrot.lane.b32.xlu0 %v1087, 119
      %v1135 = vpop.permute.xlu0 %1134
      %v1137 = vsel %vm1109, %v1135, 0.0
      %1138 = vrot.lane.b32.xlu0 %v1086, 8
      %v1139 = vpop.permute.xlu0 %1138
      %1140 = vrot.lane.b32.xlu0 %v1087, 8
      %v1141 = vpop.permute.xlu0 %1140
      %vm1142 = vcmask 64512
      %v1143 = vsel %vm1142, %v1139, %v1141
      %1145 = vrot.lane.b32.xlu0 %v1087, 120
      %v1146 = vpop.permute.xlu0 %1145
      %v1148 = vpack.c.bf16 %v1143, %v1103
      %v1149 = vpack.c.bf16 %v1125, %v1117
      %v1150 = vpack.c.bf16 %v1129, %v1087
      %v1151 = vpack.c.bf16 %v1146, %v1133
      %v1152 = vpack.c.bf16 %v1137, %v1137
      %1154 = vset.pattern.permute.xlu0 0
      %1155 = vperm.xlu0 %1154, %v1084
      %v1156 = vpop.permute.xlu0 %1155
      %1159 = vset.pattern.permute.xlu0 0
      %1160 = vperm.xlu0 %1159, %v1085
      %v1161 = vpop.permute.xlu0 %1160
      %v1165 = vunpack.c.l.b16 %v1082
      %v1166 = vunpack.c.l.b16 %v1083
      %v1167 = vpack.c.b16 %v1166, %v1165
      %vm1168 = vcmask 588800
      %v1170 = vsel %vm1168, %v1167, 0
      %vm1172 = vcmask 1043456
      %v1174 = vsel %vm1172, %v1152, 0
      %1176 = vmatprep.subr.bf16.mxu0 0
      %1177 = vmatpush1.bf16.msra.mxu0 %v1148
      %1178 = vmatprep.subr.bf16.mxu0 0
      %1179 = vmatpush1.bf16.msra.mxu0 %v1149
      %1180 = vmatprep.subr.bf16.mxu0 0
      %1181 = vmatpush1.bf16.msra.mxu0 %v1150
      %1182 = vmatprep.subr.bf16.mxu0 0
      %1183 = vmatpush1.bf16.msra.mxu0 %v1151
      %1184 = vmatprep.subr.bf16.mxu0 0
      %1185 = vmatpush1.bf16.msra.mxu0 %v1174
      %1186 = vmatprep.subr.bf16.mxu0 0
      %1187 = vmatpush1.bf16.msra.mxu0 0
      %1188 = vmatprep.subr.bf16.mxu0 0
      %1189 = vmatpush1.bf16.msra.mxu0 0
      %1190 = vmatprep.subr.bf16.mxu0 0
      %1191 = vmatpush1.bf16.msra.mxu0 0
      %1192 = vmatprep.subr.bf16.mxu0 0
      %1193 = vmatpush1.bf16.msra.mxu0 0
      %1194 = vmatprep.subr.bf16.mxu0 0
      %1195 = vmatpush1.bf16.msra.mxu0 0
      %1196 = vmatprep.subr.bf16.mxu0 0
      %1197 = vmatpush1.bf16.msra.mxu0 0
      %1198 = vmatprep.subr.bf16.mxu0 0
      %1199 = vmatpush1.bf16.msra.mxu0 0
      %1200 = vmatprep.subr.bf16.mxu0 0
      %1201 = vmatpush1.bf16.msra.mxu0 0
      %1202 = vmatprep.subr.bf16.mxu0 0
      %1203 = vmatpush1.bf16.msra.mxu0 0
      %1204 = vmatprep.subr.bf16.mxu0 0
      %1205 = vmatpush1.bf16.msra.mxu0 0
      %1206 = vmatprep.subr.bf16.mxu0 0
      %1207 = vmatpush1.bf16.msra.mxu0 0
      %1208 = vmatprep.mubr.bf16.mxu0 0
      %1209 = vmatmul.mubr.bf16.gmra.mrb[0].mxu0 %v1170
      %v1210 = vpop.f32.mrb[0].mxu0
      %v1211 = vadd.f32 %v1156, %v1210
      %v1212 = vpop.f32.mrb[0].mxu0
      %v1213 = vpop.f32.mrb[0].mxu0
      %v1214 = vadd.f32 %v1161, %v1213
      %v1215 = vpop.f32.mrb[0].mxu0
      %1216 = vdwg.mxu0
      %v1217 = vld [vmem:[%s7] sm:$0xff]
      %v1218 = vld [vmem:[%s7 + $0x8] sm:$0xff]
      %v1219 = vld [vmem:[%s9] sm:$0xff]
      %v1220 = vld [vmem:[%s9 + $0x8] sm:$0xff]
      %v1221 = vsel %vm1076, %v1211, 0.0
      %v1222 = vsel %vm1076, %v1214, 0.0
      %v1223 = vadd.f32 %v1221, %v1222
      %v1224 = vrot.slane %v1223, 4
      %v1225 = vadd.f32 %v1223, %v1224
      %v1226 = vrot.slane %v1225, 2
      %v1227 = vadd.f32 %v1225, %v1226
      %v1228 = vrot.slane %v1227, 1
      %v1229 = vadd.f32 %v1227, %v1228
      %v1230 = vrcp.pop 16.0
      %v1231 = vmul.f32 %v1229, %v1230
      %v1232 = vsub.f32 %v1211, %v1231
      %v1233 = vsub.f32 %v1214, %v1231
      %v1234 = vmul.f32 %v1232, %v1232
      %v1235 = vmul.f32 %v1233, %v1233
      %v1236 = vsel %vm1076, %v1234, 0.0
      %v1237 = vsel %vm1076, %v1235, 0.0
      %v1238 = vadd.f32 %v1236, %v1237
      %v1239 = vrot.slane %v1238, 4
      %v1240 = vadd.f32 %v1238, %v1239
      %v1241 = vrot.slane %v1240, 2
      %v1242 = vadd.f32 %v1240, %v1241
      %v1243 = vrot.slane %v1242, 1
      %v1244 = vadd.f32 %v1242, %v1243
      %v1245 = vmul.f32 %v1244, %v1230
      %v1246 = vadd.f32 %v1245, 1e-06
      %v1247 = vrsqrt.pop %v1246
      %v1248 = vmul.f32 %v1232, %v1247
      %v1249 = vmul.f32 %v1233, %v1247
      %1251 = vset.pattern.permute.xlu0 0
      %1252 = vperm.xlu0 %1251, %v1217
      %v1253 = vpop.permute.xlu0 %1252
      %1256 = vset.pattern.permute.xlu0 0
      %1257 = vperm.xlu0 %1256, %v1218
      %v1258 = vpop.permute.xlu0 %1257
      %v1260 = vmul.f32 %v1248, %v1253
      %v1261 = vmul.f32 %v1249, %v1258
      %1263 = vset.pattern.permute.xlu0 0
      %1264 = vperm.xlu0 %1263, %v1219
      %v1265 = vpop.permute.xlu0 %1264
      %1268 = vset.pattern.permute.xlu0 0
      %1269 = vperm.xlu0 %1268, %v1220
      %v1270 = vpop.permute.xlu0 %1269
      %v1272 = vadd.f32 %v1260, %v1265
      %v1273 = vadd.f32 %v1261, %v1270
      %v1274 = vld [vmem:[%s1033] sm:$0xff]
      %v1275 = vld [vmem:[%s1033 + $0x8] sm:$0xff]
      %v1276 = vld [vmem:[%s1038] sm:$0xff]
      %v1277 = vld [vmem:[%s1038 + $0x8] sm:$0xff]
      %1278 = vst.msk [vmem:[#allocation2 + $0x8] sm:$0xff] %vm1076, %v1272
      %1279 = vst.msk [vmem:[#allocation2 + $0x20] sm:$0xff] %vm1076, %v1273
      %v1280 = vld [vmem:[#allocation2] sm:$0xff]
      %v1281 = vld [vmem:[#allocation2 + $0x8] sm:$0xff]
      %v1282 = vld [vmem:[#allocation2 + $0x18] sm:$0xff]
      %v1283 = vld [vmem:[#allocation2 + $0x20] sm:$0xff]
      %1288 = vrot.lane.b32.xlu0 %v1280, 9
      %v1289 = vpop.permute.xlu0 %1288
      %1290 = vrot.lane.b32.xlu0 %v1281, 9
      %v1291 = vpop.permute.xlu0 %1290
      %1292 = vrot.lane.b32.xlu0 %v1282, 9
      %v1293 = vpop.permute.xlu0 %1292
      %1294 = vrot.lane.b32.xlu0 %v1283, 9
      %v1295 = vpop.permute.xlu0 %1294
      %v1296 = vsel %vm1100, %v1289, %v1291
      %v1297 = vsel %vm1100, %v1293, %v1295
      %v1300 = vsel %vm1093, %v1296, 0.0
      %v1301 = vsel %vm1093, %v1297, 0.0
      %1302 = vrot.lane.b32.xlu0 %v1280, 7
      %v1303 = vpop.permute.xlu0 %1302
      %1304 = vrot.lane.b32.xlu0 %v1281, 7
      %v1305 = vpop.permute.xlu0 %1304
      %1306 = vrot.lane.b32.xlu0 %v1282, 7
      %v1307 = vpop.permute.xlu0 %1306
      %1308 = vrot.lane.b32.xlu0 %v1283, 7
      %v1309 = vpop.permute.xlu0 %1308
      %v1310 = vsel %vm1114, %v1303, %v1305
      %v1311 = vsel %vm1114, %v1307, %v1309
      %v1314 = vsel %vm1109, %v1310, 0.0
      %v1315 = vsel %vm1109, %v1311, 0.0
      %1316 = vrot.lane.b32.xlu0 %v1280, 1
      %v1317 = vpop.permute.xlu0 %1316
      %1318 = vrot.lane.b32.xlu0 %v1281, 1
      %v1319 = vpop.permute.xlu0 %1318
      %1320 = vrot.lane.b32.xlu0 %v1282, 1
      %v1321 = vpop.permute.xlu0 %1320
      %1322 = vrot.lane.b32.xlu0 %v1283, 1
      %v1323 = vpop.permute.xlu0 %1322
      %v1324 = vsel %vm1122, %v1317, %v1319
      %v1325 = vsel %vm1122, %v1321, %v1323
      %v1328 = vsel %vm1093, %v1324, 0.0
      %v1329 = vsel %vm1093, %v1325, 0.0
      %1330 = vrot.lane.b32.xlu0 %v1281, 127
      %v1331 = vpop.permute.xlu0 %1330
      %1332 = vrot.lane.b32.xlu0 %v1283, 127
      %v1333 = vpop.permute.xlu0 %1332
      %v1336 = vsel %vm1109, %v1331, 0.0
      %v1337 = vsel %vm1109, %v1333, 0.0
      %1338 = vrot.lane.b32.xlu0 %v1281, 121
      %v1339 = vpop.permute.xlu0 %1338
      %1340 = vrot.lane.b32.xlu0 %v1283, 121
      %v1341 = vpop.permute.xlu0 %1340
      %v1344 = vsel %vm1093, %v1339, 0.0
      %v1345 = vsel %vm1093, %v1341, 0.0
      %1346 = vrot.lane.b32.xlu0 %v1281, 119
      %v1347 = vpop.permute.xlu0 %1346
      %1348 = vrot.lane.b32.xlu0 %v1283, 119
      %v1349 = vpop.permute.xlu0 %1348
      %v1352 = vsel %vm1109, %v1347, 0.0
      %v1353 = vsel %vm1109, %v1349, 0.0
      %1354 = vrot.lane.b32.xlu0 %v1280, 8
      %v1355 = vpop.permute.xlu0 %1354
      %1356 = vrot.lane.b32.xlu0 %v1281, 8
      %v1357 = vpop.permute.xlu0 %1356
      %1358 = vrot.lane.b32.xlu0 %v1282, 8
      %v1359 = vpop.permute.xlu0 %1358
      %1360 = vrot.lane.b32.xlu0 %v1283, 8
      %v1361 = vpop.permute.xlu0 %1360
      %v1362 = vsel %vm1142, %v1355, %v1357
      %v1363 = vsel %vm1142, %v1359, %v1361
      %1366 = vrot.lane.b32.xlu0 %v1281, 120
      %v1367 = vpop.permute.xlu0 %1366
      %1368 = vrot.lane.b32.xlu0 %v1283, 120
      %v1369 = vpop.permute.xlu0 %1368
      %v1372 = vpack.c.bf16 %v1301, %v1300
      %v1373 = vpack.c.bf16 %v1363, %v1362
      %v1374 = vpack.c.bf16 %v1315, %v1314
      %v1375 = vpack.c.bf16 %v1329, %v1328
      %v1376 = vpack.c.bf16 %v1283, %v1281
      %v1377 = vpack.c.bf16 %v1337, %v1336
      %v1378 = vpack.c.bf16 %v1345, %v1344
      %v1379 = vpack.c.bf16 %v1369, %v1367
      %v1380 = vpack.c.bf16 %v1353, %v1352
      %1382 = vset.pattern.permute.xlu0 0
      %1383 = vperm.xlu0 %1382, %v1276
      %v1384 = vpop.permute.xlu0 %1383
      %1387 = vset.pattern.permute.xlu0 0
      %1388 = vperm.xlu0 %1387, %v1277
      %v1389 = vpop.permute.xlu0 %1388
      %v1393 = vunpack.c.l.b16 %v1274
      %v1394 = vunpack.c.h.b16 %v1274
      %v1395 = vunpack.c.l.b16 %v1275
      %v1396 = vunpack.c.h.b16 %v1275
      %v1397 = vpack.c.b16 %v1395, %v1393
      %v1398 = vpack.c.b16 %v1396, %v1394
      %vm1400 = vcmask 130048
      %v1402 = vsel %vm1400, %v1398, 0
      %1404 = vmatprep.subr.bf16.mxu0 0
      %1405 = vmatpush1.bf16.msra.mxu0 %v1372
      %1406 = vmatprep.subr.bf16.mxu0 0
      %1407 = vmatpush1.bf16.msra.mxu0 %v1373
      %1408 = vmatprep.subr.bf16.mxu0 0
      %1409 = vmatpush1.bf16.msra.mxu0 %v1374
      %1410 = vmatprep.subr.bf16.mxu0 0
      %1411 = vmatpush1.bf16.msra.mxu0 %v1375
      %1412 = vmatprep.subr.bf16.mxu0 0
      %1413 = vmatpush1.bf16.msra.mxu0 %v1376
      %1414 = vmatprep.subr.bf16.mxu0 0
      %1415 = vmatpush1.bf16.msra.mxu0 %v1377
      %1416 = vmatprep.subr.bf16.mxu0 0
      %1417 = vmatpush1.bf16.msra.mxu0 %v1378
      %1418 = vmatprep.subr.bf16.mxu0 0
      %1419 = vmatpush1.bf16.msra.mxu0 %v1379
      %1420 = vmatprep.subr.bf16.mxu0 0
      %1421 = vmatpush1.bf16.msra.mxu0 %v1380
      %1422 = vmatprep.subr.bf16.mxu0 0
      %1423 = vmatpush1.bf16.msra.mxu0 0
      %1424 = vmatprep.subr.bf16.mxu0 0
      %1425 = vmatpush1.bf16.msra.mxu0 0
      %1426 = vmatprep.subr.bf16.mxu0 0
      %1427 = vmatpush1.bf16.msra.mxu0 0
      %1428 = vmatprep.subr.bf16.mxu0 0
      %1429 = vmatpush1.bf16.msra.mxu0 0
      %1430 = vmatprep.subr.bf16.mxu0 0
      %1431 = vmatpush1.bf16.msra.mxu0 0
      %1432 = vmatprep.subr.bf16.mxu0 0
      %1433 = vmatpush1.bf16.msra.mxu0 0
      %1434 = vmatprep.subr.bf16.mxu0 0
      %1435 = vmatpush1.bf16.msra.mxu0 0
      %1436 = vmatprep.mubr.bf16.mxu0 %v1402
      %1437 = vmatmul.mubr.bf16.gmra.mrb[0].mxu0 %v1397
      %v1438 = vpop.f32.mrb[0].mxu0
      %v1439 = vadd.f32 %v1384, %v1438
      %v1440 = vpop.f32.mrb[0].mxu0
      %v1441 = vpop.f32.mrb[0].mxu0
      %v1442 = vadd.f32 %v1389, %v1441
      %v1443 = vpop.f32.mrb[0].mxu0
      %1444 = vdwg.mxu0
      %vm1445 = vcmp.ge.f32.partialorder %v1439, 0.0
      %vm1446 = vcmp.ge.f32.partialorder %v1442, 0.0
      %v1447 = vmul.f32 %v1439, 0.01
      %v1448 = vmul.f32 %v1442, 0.01
      %v1449 = vsel %vm1445, %v1439, %v1447
      %v1450 = vsel %vm1446, %v1442, %v1448
      %v1451 = vld [vmem:[%s1043] sm:$0xff]
      %v1452 = vld [vmem:[%s1043 + $0x8] sm:$0xff]
      %v1453 = vld [vmem:[%s1048] sm:$0xff]
      %v1454 = vld [vmem:[%s1048 + $0x8] sm:$0xff]
      %1455 = vst.msk [vmem:[#allocation2 + $0x8] sm:$0xff] %vm1076, %v1449
      %1456 = vst.msk [vmem:[#allocation2 + $0x20] sm:$0xff] %vm1076, %v1450
      %v1457 = vld [vmem:[#allocation2] sm:$0xff]
      %v1458 = vld [vmem:[#allocation2 + $0x8] sm:$0xff]
      %v1459 = vld [vmem:[#allocation2 + $0x18] sm:$0xff]
      %v1460 = vld [vmem:[#allocation2 + $0x20] sm:$0xff]
      %1465 = vrot.lane.b32.xlu0 %v1457, 9
      %v1466 = vpop.permute.xlu0 %1465
      %1467 = vrot.lane.b32.xlu0 %v1458, 9
      %v1468 = vpop.permute.xlu0 %1467
      %1469 = vrot.lane.b32.xlu0 %v1459, 9
      %v1470 = vpop.permute.xlu0 %1469
      %1471 = vrot.lane.b32.xlu0 %v1460, 9
      %v1472 = vpop.permute.xlu0 %1471
      %v1473 = vsel %vm1100, %v1466, %v1468
      %v1474 = vsel %vm1100, %v1470, %v1472
      %v1477 = vsel %vm1093, %v1473, 0.0
      %v1478 = vsel %vm1093, %v1474, 0.0
      %1479 = vrot.lane.b32.xlu0 %v1457, 7
      %v1480 = vpop.permute.xlu0 %1479
      %1481 = vrot.lane.b32.xlu0 %v1458, 7
      %v1482 = vpop.permute.xlu0 %1481
      %1483 = vrot.lane.b32.xlu0 %v1459, 7
      %v1484 = vpop.permute.xlu0 %1483
      %1485 = vrot.lane.b32.xlu0 %v1460, 7
      %v1486 = vpop.permute.xlu0 %1485
      %v1487 = vsel %vm1114, %v1480, %v1482
      %v1488 = vsel %vm1114, %v1484, %v1486
      %v1491 = vsel %vm1109, %v1487, 0.0
      %v1492 = vsel %vm1109, %v1488, 0.0
      %1493 = vrot.lane.b32.xlu0 %v1457, 1
      %v1494 = vpop.permute.xlu0 %1493
      %1495 = vrot.lane.b32.xlu0 %v1458, 1
      %v1496 = vpop.permute.xlu0 %1495
      %1497 = vrot.lane.b32.xlu0 %v1459, 1
      %v1498 = vpop.permute.xlu0 %1497
      %1499 = vrot.lane.b32.xlu0 %v1460, 1
      %v1500 = vpop.permute.xlu0 %1499
      %v1501 = vsel %vm1122, %v1494, %v1496
      %v1502 = vsel %vm1122, %v1498, %v1500
      %v1505 = vsel %vm1093, %v1501, 0.0
      %v1506 = vsel %vm1093, %v1502, 0.0
      %1507 = vrot.lane.b32.xlu0 %v1458, 127
      %v1508 = vpop.permute.xlu0 %1507
      %1509 = vrot.lane.b32.xlu0 %v1460, 127
      %v1510 = vpop.permute.xlu0 %1509
      %v1513 = vsel %vm1109, %v1508, 0.0
      %v1514 = vsel %vm1109, %v1510, 0.0
      %1515 = vrot.lane.b32.xlu0 %v1458, 121
      %v1516 = vpop.permute.xlu0 %1515
      %1517 = vrot.lane.b32.xlu0 %v1460, 121
      %v1518 = vpop.permute.xlu0 %1517
      %v1521 = vsel %vm1093, %v1516, 0.0
      %v1522 = vsel %vm1093, %v1518, 0.0
      %1523 = vrot.lane.b32.xlu0 %v1458, 119
      %v1524 = vpop.permute.xlu0 %1523
      %1525 = vrot.lane.b32.xlu0 %v1460, 119
      %v1526 = vpop.permute.xlu0 %1525
      %v1529 = vsel %vm1109, %v1524, 0.0
      %v1530 = vsel %vm1109, %v1526, 0.0
      %1531 = vrot.lane.b32.xlu0 %v1457, 8
      %v1532 = vpop.permute.xlu0 %1531
      %1533 = vrot.lane.b32.xlu0 %v1458, 8
      %v1534 = vpop.permute.xlu0 %1533
      %1535 = vrot.lane.b32.xlu0 %v1459, 8
      %v1536 = vpop.permute.xlu0 %1535
      %1537 = vrot.lane.b32.xlu0 %v1460, 8
      %v1538 = vpop.permute.xlu0 %1537
      %v1539 = vsel %vm1142, %v1532, %v1534
      %v1540 = vsel %vm1142, %v1536, %v1538
      %1543 = vrot.lane.b32.xlu0 %v1458, 120
      %v1544 = vpop.permute.xlu0 %1543
      %1545 = vrot.lane.b32.xlu0 %v1460, 120
      %v1546 = vpop.permute.xlu0 %1545
      %v1549 = vpack.c.bf16 %v1478, %v1477
      %v1550 = vpack.c.bf16 %v1540, %v1539
      %v1551 = vpack.c.bf16 %v1492, %v1491
      %v1552 = vpack.c.bf16 %v1506, %v1505
      %v1553 = vpack.c.bf16 %v1460, %v1458
      %v1554 = vpack.c.bf16 %v1514, %v1513
      %v1555 = vpack.c.bf16 %v1522, %v1521
      %v1556 = vpack.c.bf16 %v1546, %v1544
      %v1557 = vpack.c.bf16 %v1530, %v1529
      %1559 = vset.pattern.permute.xlu0 0
      %1560 = vperm.xlu0 %1559, %v1453
      %v1561 = vpop.permute.xlu0 %1560
      %1564 = vset.pattern.permute.xlu0 0
      %1565 = vperm.xlu0 %1564, %v1454
      %v1566 = vpop.permute.xlu0 %1565
      %v1570 = vunpack.c.l.b16 %v1451
      %v1571 = vunpack.c.h.b16 %v1451
      %v1572 = vunpack.c.l.b16 %v1452
      %v1573 = vunpack.c.h.b16 %v1452
      %v1574 = vpack.c.b16 %v1572, %v1570
      %v1575 = vpack.c.b16 %v1573, %v1571
      %v1578 = vsel %vm1400, %v1575, 0
      %1580 = vmatprep.subr.bf16.mxu0 0
      %1581 = vmatpush1.bf16.msra.mxu0 %v1549
      %1582 = vmatprep.subr.bf16.mxu0 0
      %1583 = vmatpush1.bf16.msra.mxu0 %v1550
      %1584 = vmatprep.subr.bf16.mxu0 0
      %1585 = vmatpush1.bf16.msra.mxu0 %v1551
      %1586 = vmatprep.subr.bf16.mxu0 0
      %1587 = vmatpush1.bf16.msra.mxu0 %v1552
      %1588 = vmatprep.subr.bf16.mxu0 0
      %1589 = vmatpush1.bf16.msra.mxu0 %v1553
      %1590 = vmatprep.subr.bf16.mxu0 0
      %1591 = vmatpush1.bf16.msra.mxu0 %v1554
      %1592 = vmatprep.subr.bf16.mxu0 0
      %1593 = vmatpush1.bf16.msra.mxu0 %v1555
      %1594 = vmatprep.subr.bf16.mxu0 0
      %1595 = vmatpush1.bf16.msra.mxu0 %v1556
      %1596 = vmatprep.subr.bf16.mxu0 0
      %1597 = vmatpush1.bf16.msra.mxu0 %v1557
      %1598 = vmatprep.subr.bf16.mxu0 0
      %1599 = vmatpush1.bf16.msra.mxu0 0
      %1600 = vmatprep.subr.bf16.mxu0 0
      %1601 = vmatpush1.bf16.msra.mxu0 0
      %1602 = vmatprep.subr.bf16.mxu0 0
      %1603 = vmatpush1.bf16.msra.mxu0 0
      %1604 = vmatprep.subr.bf16.mxu0 0
      %1605 = vmatpush1.bf16.msra.mxu0 0
      %1606 = vmatprep.subr.bf16.mxu0 0
      %1607 = vmatpush1.bf16.msra.mxu0 0
      %1608 = vmatprep.subr.bf16.mxu0 0
      %1609 = vmatpush1.bf16.msra.mxu0 0
      %1610 = vmatprep.subr.bf16.mxu0 0
      %1611 = vmatpush1.bf16.msra.mxu0 0
      %1612 = vmatprep.mubr.bf16.mxu0 %v1578
      %1613 = vmatmul.mubr.bf16.gmra.mrb[0].mxu0 %v1574
      %v1614 = vpop.f32.mrb[0].mxu0
      %v1615 = vadd.f32 %v1561, %v1614
      %v1616 = vpop.f32.mrb[0].mxu0
      %v1617 = vpop.f32.mrb[0].mxu0
      %v1618 = vadd.f32 %v1566, %v1617
      %v1619 = vpop.f32.mrb[0].mxu0
      %1620 = vdwg.mxu0
      %v1621 = vld [vmem:[%s19] sm:$0xff]
      %v1622 = vld [vmem:[%s19 + $0x8] sm:$0xff]
      %1624 = vset.pattern.permute.xlu0 0
      %1625 = vperm.xlu0 %1624, %v1621
      %v1626 = vpop.permute.xlu0 %1625
      %1629 = vset.pattern.permute.xlu0 0
      %1630 = vperm.xlu0 %1629, %v1622
      %v1631 = vpop.permute.xlu0 %1630
      %v1633 = vmul.f32 %v1626, %v1615
      %v1634 = vmul.f32 %v1631, %v1618
      %v1635 = vadd.f32 %v1211, %v1633
      %v1636 = vadd.f32 %v1214, %v1634
      %v1637 = vld [vmem:[%s21] sm:$0xff]
      %v1638 = vld [vmem:[%s21 + $0x8] sm:$0xff]
      %v1639 = vld [vmem:[%s23] sm:$0xff]
      %v1640 = vld [vmem:[%s23 + $0x8] sm:$0xff]
      %v1641 = vsel %vm1076, %v1635, 0.0
      %v1642 = vsel %vm1076, %v1636, 0.0
      %v1643 = vadd.f32 %v1641, %v1642
      %v1644 = vrot.slane %v1643, 4
      %v1645 = vadd.f32 %v1643, %v1644
      %v1646 = vrot.slane %v1645, 2
      %v1647 = vadd.f32 %v1645, %v1646
      %v1648 = vrot.slane %v1647, 1
      %v1649 = vadd.f32 %v1647, %v1648
      %v1650 = vmul.f32 %v1649, %v1230
      %v1651 = vsub.f32 %v1635, %v1650
      %v1652 = vsub.f32 %v1636, %v1650
      %v1653 = vmul.f32 %v1651, %v1651
      %v1654 = vmul.f32 %v1652, %v1652
      %v1655 = vsel %vm1076, %v1653, 0.0
      %v1656 = vsel %vm1076, %v1654, 0.0
      %v1657 = vadd.f32 %v1655, %v1656
      %v1658 = vrot.slane %v1657, 4
      %v1659 = vadd.f32 %v1657, %v1658
      %v1660 = vrot.slane %v1659, 2
      %v1661 = vadd.f32 %v1659, %v1660
      %v1662 = vrot.slane %v1661, 1
      %v1663 = vadd.f32 %v1661, %v1662
      %v1664 = vmul.f32 %v1663, %v1230
      %v1665 = vadd.f32 %v1664, 1e-06
      %v1666 = vrsqrt.pop %v1665
      %v1667 = vmul.f32 %v1651, %v1666
      %v1668 = vmul.f32 %v1652, %v1666
      %1670 = vset.pattern.permute.xlu0 0
      %1671 = vperm.xlu0 %1670, %v1637
      %v1672 = vpop.permute.xlu0 %1671
      %1675 = vset.pattern.permute.xlu0 0
      %1676 = vperm.xlu0 %1675, %v1638
      %v1677 = vpop.permute.xlu0 %1676
      %v1679 = vmul.f32 %v1667, %v1672
      %v1680 = vmul.f32 %v1668, %v1677
      %1682 = vset.pattern.permute.xlu0 0
      %1683 = vperm.xlu0 %1682, %v1639
      %v1684 = vpop.permute.xlu0 %1683
      %1687 = vset.pattern.permute.xlu0 0
      %1688 = vperm.xlu0 %1687, %v1640
      %v1689 = vpop.permute.xlu0 %1688
      %v1691 = vadd.f32 %v1679, %v1684
      %v1692 = vadd.f32 %v1680, %v1689
      %v1693 = vld [vmem:[%s25] sm:$0xff]
      %v1694 = vld [vmem:[%s25 + $0x8] sm:$0xff]
      %v1695 = vld [vmem:[%s27] sm:$0xff]
      %v1696 = vld [vmem:[%s27 + $0x8] sm:$0xff]
      %v1697 = vpack.c.bf16 %v1694, %v1693
      %v1698 = vpack.c.bf16 %v1692, %v1691
      %1700 = vset.pattern.permute.xlu0 0
      %1701 = vperm.xlu0 %1700, %v1695
      %v1702 = vpop.permute.xlu0 %1701
      %1705 = vset.pattern.permute.xlu0 0
      %1706 = vperm.xlu0 %1705, %v1696
      %v1707 = vpop.permute.xlu0 %1706
      %v1710 = vsel %vm1400, %v1697, 0
      %1712 = vmatprep.subr.bf16.mxu0 0
      %1713 = vmatpush1.bf16.msra.mxu0 %v1698
      %1714 = vmatprep.subr.bf16.mxu0 0
      %1715 = vmatpush1.bf16.msra.mxu0 0
      %1716 = vmatprep.subr.bf16.mxu0 0
      %1717 = vmatpush1.bf16.msra.mxu0 0
      %1718 = vmatprep.subr.bf16.mxu0 0
      %1719 = vmatpush1.bf16.msra.mxu0 0
      %1720 = vmatprep.subr.bf16.mxu0 0
      %1721 = vmatpush1.bf16.msra.mxu0 0
      %1722 = vmatprep.subr.bf16.mxu0 0
      %1723 = vmatpush1.bf16.msra.mxu0 0
      %1724 = vmatprep.subr.bf16.mxu0 0
      %1725 = vmatpush1.bf16.msra.mxu0 0
      %1726 = vmatprep.subr.bf16.mxu0 0
      %1727 = vmatpush1.bf16.msra.mxu0 0
      %1728 = vmatprep.subr.bf16.mxu0 0
      %1729 = vmatpush1.bf16.msra.mxu0 0
      %1730 = vmatprep.subr.bf16.mxu0 0
      %1731 = vmatpush1.bf16.msra.mxu0 0
      %1732 = vmatprep.subr.bf16.mxu0 0
      %1733 = vmatpush1.bf16.msra.mxu0 0
      %1734 = vmatprep.subr.bf16.mxu0 0
      %1735 = vmatpush1.bf16.msra.mxu0 0
      %1736 = vmatprep.subr.bf16.mxu0 0
      %1737 = vmatpush1.bf16.msra.mxu0 0
      %1738 = vmatprep.subr.bf16.mxu0 0
      %1739 = vmatpush1.bf16.msra.mxu0 0
      %1740 = vmatprep.subr.bf16.mxu0 0
      %1741 = vmatpush1.bf16.msra.mxu0 0
      %1742 = vmatprep.subr.bf16.mxu0 0
      %1743 = vmatpush1.bf16.msra.mxu0 0
      %1744 = vmatprep.mubr.bf16.mxu0 0
      %1745 = vmatmul.mubr.bf16.gmra.mrb[0].mxu0 %v1710
      %v1746 = vpop.f32.mrb[0].mxu0
      %v1747 = vadd.f32 %v1702, %v1746
      %v1748 = vpop.f32.mrb[0].mxu0
      %v1749 = vpop.f32.mrb[0].mxu0
      %v1750 = vadd.f32 %v1707, %v1749
      %v1751 = vpop.f32.mrb[0].mxu0
      %1752 = vdwg.mxu0
      %v1753 = vld [vmem:[%s29] sm:$0xff]
      %v1754 = vld [vmem:[%s29 + $0x8] sm:$0xff]
      %v1755 = vld [vmem:[%s31] sm:$0xff]
      %v1756 = vld [vmem:[%s31 + $0x8] sm:$0xff]
      %v1757 = vpack.c.bf16 %v1754, %v1753
      %1759 = vset.pattern.permute.xlu0 0
      %1760 = vperm.xlu0 %1759, %v1755
      %v1761 = vpop.permute.xlu0 %1760
      %1764 = vset.pattern.permute.xlu0 0
      %1765 = vperm.xlu0 %1764, %v1756
      %v1766 = vpop.permute.xlu0 %1765
      %v1769 = vsel %vm1400, %v1757, 0
      %1771 = vmatprep.subr.bf16.mxu0 0
      %1772 = vmatpush1.bf16.msra.mxu0 %v1698
      %1773 = vmatprep.subr.bf16.mxu0 0
      %1774 = vmatpush1.bf16.msra.mxu0 0
      %1775 = vmatprep.subr.bf16.mxu0 0
      %1776 = vmatpush1.bf16.msra.mxu0 0
      %1777 = vmatprep.subr.bf16.mxu0 0
      %1778 = vmatpush1.bf16.msra.mxu0 0
      %1779 = vmatprep.subr.bf16.mxu0 0
      %1780 = vmatpush1.bf16.msra.mxu0 0
      %1781 = vmatprep.subr.bf16.mxu0 0
      %1782 = vmatpush1.bf16.msra.mxu0 0
      %1783 = vmatprep.subr.bf16.mxu0 0
      %1784 = vmatpush1.bf16.msra.mxu0 0
      %1785 = vmatprep.subr.bf16.mxu0 0
      %1786 = vmatpush1.bf16.msra.mxu0 0
      %1787 = vmatprep.subr.bf16.mxu0 0
      %1788 = vmatpush1.bf16.msra.mxu0 0
      %1789 = vmatprep.subr.bf16.mxu0 0
      %1790 = vmatpush1.bf16.msra.mxu0 0
      %1791 = vmatprep.subr.bf16.mxu0 0
      %1792 = vmatpush1.bf16.msra.mxu0 0
      %1793 = vmatprep.subr.bf16.mxu0 0
      %1794 = vmatpush1.bf16.msra.mxu0 0
      %1795 = vmatprep.subr.bf16.mxu0 0
      %1796 = vmatpush1.bf16.msra.mxu0 0
      %1797 = vmatprep.subr.bf16.mxu0 0
      %1798 = vmatpush1.bf16.msra.mxu0 0
      %1799 = vmatprep.subr.bf16.mxu0 0
      %1800 = vmatpush1.bf16.msra.mxu0 0
      %1801 = vmatprep.subr.bf16.mxu0 0
      %1802 = vmatpush1.bf16.msra.mxu0 0
      %1803 = vmatprep.mubr.bf16.mxu0 0
      %1804 = vmatmul.mubr.bf16.gmra.mrb[0].mxu0 %v1769
      %v1805 = vpop.f32.mrb[0].mxu0
      %v1806 = vadd.f32 %v1761, %v1805
      %v1807 = vpop.f32.mrb[0].mxu0
      %v1808 = vpop.f32.mrb[0].mxu0
      %v1809 = vadd.f32 %v1766, %v1808
      %v1810 = vpop.f32.mrb[0].mxu0
      %1811 = vdwg.mxu0
      %v1812 = vld [vmem:[%s33] sm:$0xff]
      %v1813 = vld [vmem:[%s33 + $0x8] sm:$0xff]
      %v1814 = vld [vmem:[%s35] sm:$0xff]
      %v1815 = vld [vmem:[%s35 + $0x8] sm:$0xff]
      %v1816 = vpack.c.bf16 %v1813, %v1812
      %1818 = vset.pattern.permute.xlu0 0
      %1819 = vperm.xlu0 %1818, %v1814
      %v1820 = vpop.permute.xlu0 %1819
      %1823 = vset.pattern.permute.xlu0 0
      %1824 = vperm.xlu0 %1823, %v1815
      %v1825 = vpop.permute.xlu0 %1824
      %v1828 = vsel %vm1400, %v1816, 0
      %1830 = vmatprep.subr.bf16.mxu0 0
      %1831 = vmatpush1.bf16.msra.mxu0 %v1698
      %1832 = vmatprep.subr.bf16.mxu0 0
      %1833 = vmatpush1.bf16.msra.mxu0 0
      %1834 = vmatprep.subr.bf16.mxu0 0
      %1835 = vmatpush1.bf16.msra.mxu0 0
      %1836 = vmatprep.subr.bf16.mxu0 0
      %1837 = vmatpush1.bf16.msra.mxu0 0
      %1838 = vmatprep.subr.bf16.mxu0 0
      %1839 = vmatpush1.bf16.msra.mxu0 0
      %1840 = vmatprep.subr.bf16.mxu0 0
      %1841 = vmatpush1.bf16.msra.mxu0 0
      %1842 = vmatprep.subr.bf16.mxu0 0
      %1843 = vmatpush1.bf16.msra.mxu0 0
      %1844 = vmatprep.subr.bf16.mxu0 0
      %1845 = vmatpush1.bf16.msra.mxu0 0
      %1846 = vmatprep.subr.bf16.mxu0 0
      %1847 = vmatpush1.bf16.msra.mxu0 0
      %1848 = vmatprep.subr.bf16.mxu0 0
      %1849 = vmatpush1.bf16.msra.mxu0 0
      %1850 = vmatprep.subr.bf16.mxu0 0
      %1851 = vmatpush1.bf16.msra.mxu0 0
      %1852 = vmatprep.subr.bf16.mxu0 0
      %1853 = vmatpush1.bf16.msra.mxu0 0
      %1854 = vmatprep.subr.bf16.mxu0 0
      %1855 = vmatpush1.bf16.msra.mxu0 0
      %1856 = vmatprep.subr.bf16.mxu0 0
      %1857 = vmatpush1.bf16.msra.mxu0 0
      %1858 = vmatprep.subr.bf16.mxu0 0
      %1859 = vmatpush1.bf16.msra.mxu0 0
      %1860 = vmatprep.subr.bf16.mxu0 0
      %1861 = vmatpush1.bf16.msra.mxu0 0
      %1862 = vmatprep.mubr.bf16.mxu0 0
      %1863 = vmatmul.mubr.bf16.gmra.mrb[0].mxu0 %v1828
      %v1864 = vpop.f32.mrb[0].mxu0
      %v1865 = vadd.f32 %v1820, %v1864
      %v1866 = vpop.f32.mrb[0].mxu0
      %v1867 = vpop.f32.mrb[0].mxu0
      %v1868 = vadd.f32 %v1825, %v1867
      %v1869 = vpop.f32.mrb[0].mxu0
      %1870 = vdwg.mxu0
      %v1871 = vpack.c.bf16 %v1750, %v1747
      %v1872 = vpack.c.bf16 %v1809, %v1806
      %1873 = vxpose.xlu0.c.b16.start [1/8] %v1871, 128
      %1874 = vxpose.xlu0.c.b16.cont [2/8] 0, 128
      %1875 = vxpose.xlu0.c.b16.cont [3/8] 0, 128
      %1876 = vxpose.xlu0.c.b16.cont [4/8] 0, 128
      %1877 = vxpose.xlu0.c.b16.cont [5/8] 0, 128
      %1878 = vxpose.xlu0.c.b16.cont [6/8] 0, 128
      %1879 = vxpose.xlu0.c.b16.cont [7/8] 0, 128
      %1880 = vxpose.xlu0.c.b16.end [8/8] 0, 128
      %v1881 = vpop.trf.xlu0
      %v1882 = vpop.trf.xlu0
      %v1883 = vpop.trf.xlu0
      %v1884 = vpop.trf.xlu0
      %v1885 = vpop.trf.xlu0
      %v1886 = vpop.trf.xlu0
      %v1887 = vpop.trf.xlu0
      %v1888 = vpop.trf.xlu0
      %v1890 = vsel %vm1400, %v1881, 0
      %v1893 = vsel %vm1400, %v1882, 0
      %v1896 = vsel %vm1400, %v1883, 0
      %v1899 = vsel %vm1400, %v1884, 0
      %1901 = vmatprep.subr.bf16.mxu0 0
      %1902 = vmatpush1.bf16.msra.mxu0 %v1872
      %1903 = vmatprep.subr.bf16.mxu0 0
      %1904 = vmatpush1.bf16.msra.mxu0 0
      %1905 = vmatprep.subr.bf16.mxu0 0
      %1906 = vmatpush1.bf16.msra.mxu0 0
      %1907 = vmatprep.subr.bf16.mxu0 0
      %1908 = vmatpush1.bf16.msra.mxu0 0
      %1909 = vmatprep.subr.bf16.mxu0 0
      %1910 = vmatpush1.bf16.msra.mxu0 0
      %1911 = vmatprep.subr.bf16.mxu0 0
      %1912 = vmatpush1.bf16.msra.mxu0 0
      %1913 = vmatprep.subr.bf16.mxu0 0
      %1914 = vmatpush1.bf16.msra.mxu0 0
      %1915 = vmatprep.subr.bf16.mxu0 0
      %1916 = vmatpush1.bf16.msra.mxu0 0
      %1917 = vmatprep.subr.bf16.mxu0 0
      %1918 = vmatpush1.bf16.msra.mxu0 0
      %1919 = vmatprep.subr.bf16.mxu0 0
      %1920 = vmatpush1.bf16.msra.mxu0 0
      %1921 = vmatprep.subr.bf16.mxu0 0
      %1922 = vmatpush1.bf16.msra.mxu0 0
      %1923 = vmatprep.subr.bf16.mxu0 0
      %1924 = vmatpush1.bf16.msra.mxu0 0
      %1925 = vmatprep.subr.bf16.mxu0 0
      %1926 = vmatpush1.bf16.msra.mxu0 0
      %1927 = vmatprep.subr.bf16.mxu0 0
      %1928 = vmatpush1.bf16.msra.mxu0 0
      %1929 = vmatprep.subr.bf16.mxu0 0
      %1930 = vmatpush1.bf16.msra.mxu0 0
      %1931 = vmatprep.subr.bf16.mxu0 0
      %1932 = vmatpush1.bf16.msra.mxu0 0
      %1933 = vmatprep.mubr.bf16.mxu0 0
      %1934 = vmatmul.mubr.bf16.gmra.mrb[0].mxu0 %v1890
      %v1935 = vpop.f32.mrb[0].mxu0
      %v1936 = vadd.f32 0.0, %v1935
      %v1937 = vpop.f32.mrb[0].mxu0
      %v1938 = vpop.f32.mrb[0].mxu0
      %v1939 = vadd.f32 0.0, %v1938
      %v1940 = vpop.f32.mrb[0].mxu0
      %1941 = vmatprep.mubr.bf16.mxu0 0
      %1942 = vmatmul.mubr.bf16.gmra.mrb[0].mxu0 %v1893
      %v1943 = vpop.f32.mrb[0].mxu0
      %v1944 = vadd.f32 0.0, %v1943
      %v1945 = vpop.f32.mrb[0].mxu0
      %v1946 = vpop.f32.mrb[0].mxu0
      %v1947 = vadd.f32 0.0, %v1946
      %v1948 = vpop.f32.mrb[0].mxu0
      %1949 = vmatprep.mubr.bf16.mxu0 0
      %1950 = vmatmul.mubr.bf16.gmra.mrb[0].mxu0 %v1896
      %v1951 = vpop.f32.mrb[0].mxu0
      %v1952 = vadd.f32 0.0, %v1951
      %v1953 = vpop.f32.mrb[0].mxu0
      %v1954 = vpop.f32.mrb[0].mxu0
      %v1955 = vadd.f32 0.0, %v1954
      %v1956 = vpop.f32.mrb[0].mxu0
      %1957 = vmatprep.mubr.bf16.mxu0 0
      %1958 = vmatmul.mubr.bf16.gmra.mrb[0].mxu0 %v1899
      %v1959 = vpop.f32.mrb[0].mxu0
      %v1960 = vadd.f32 0.0, %v1959
      %v1961 = vpop.f32.mrb[0].mxu0
      %v1962 = vpop.f32.mrb[0].mxu0
      %v1963 = vadd.f32 0.0, %v1962
      %v1964 = vpop.f32.mrb[0].mxu0
      %1965 = vdwg.mxu0
      %v1966 = vmul.f32 %v1936, 0.25
      %v1967 = vmul.f32 %v1939, 0.25
      %v1968 = vmul.f32 %v1944, 0.25
      %v1969 = vmul.f32 %v1947, 0.25
      %v1970 = vmul.f32 %v1952, 0.25
      %v1971 = vmul.f32 %v1955, 0.25
      %v1972 = vmul.f32 %v1960, 0.25
      %v1973 = vmul.f32 %v1963, 0.25
      %v1974 = vsel %vm1076, %v1966, -inf
      %1975 = vmax.xlane.f32.xlu0 %v1974
      %v1976 = vpop.xlane.xlu0 %1975
      %v1977 = vsel %vm1076, %v1967, -inf
      %1978 = vmax.xlane.f32.xlu0 %v1977
      %v1979 = vpop.xlane.xlu0 %1978
      %v1980 = vsel %vm1076, %v1968, -inf
      %1981 = vmax.xlane.f32.xlu0 %v1980
      %v1982 = vpop.xlane.xlu0 %1981
      %v1983 = vsel %vm1076, %v1969, -inf
      %1984 = vmax.xlane.f32.xlu0 %v1983
      %v1985 = vpop.xlane.xlu0 %1984
      %v1986 = vsel %vm1076, %v1970, -inf
      %1987 = vmax.xlane.f32.xlu0 %v1986
      %v1988 = vpop.xlane.xlu0 %1987
      %v1989 = vsel %vm1076, %v1971, -inf
      %1990 = vmax.xlane.f32.xlu0 %v1989
      %v1991 = vpop.xlane.xlu0 %1990
      %v1992 = vsel %vm1076, %v1972, -inf
      %1993 = vmax.xlane.f32.xlu0 %v1992
      %v1994 = vpop.xlane.xlu0 %1993
      %v1995 = vsel %vm1076, %v1973, -inf
      %1996 = vmax.xlane.f32.xlu0 %v1995
      %v1997 = vpop.xlane.xlu0 %1996
      %v1998 = vsub.f32 %v1966, %v1976
      %v1999 = vsub.f32 %v1967, %v1979
      %v2000 = vsub.f32 %v1968, %v1982
      %v2001 = vsub.f32 %v1969, %v1985
      %v2002 = vsub.f32 %v1970, %v1988
      %v2003 = vsub.f32 %v1971, %v1991
      %v2004 = vsub.f32 %v1972, %v1994
      %v2005 = vsub.f32 %v1973, %v1997
      %v2006 = vmul.f32 %v1998, 1.442695
      %v2007 = vpow.pop %v2006
      %v2008 = vmul.f32 %v1999, 1.442695
      %v2009 = vpow.pop %v2008
      %v2010 = vmul.f32 %v2000, 1.442695
      %v2011 = vpow.pop %v2010
      %v2012 = vmul.f32 %v2001, 1.442695
      %v2013 = vpow.pop %v2012
      %v2014 = vmul.f32 %v2002, 1.442695
      %v2015 = vpow.pop %v2014
      %v2016 = vmul.f32 %v2003, 1.442695
      %v2017 = vpow.pop %v2016
      %v2018 = vmul.f32 %v2004, 1.442695
      %v2019 = vpow.pop %v2018
      %v2020 = vmul.f32 %v2005, 1.442695
      %v2021 = vpow.pop %v2020
      %v2022 = vsel %vm1076, %v2007, 0.0
      %2023 = vadd.xlane.f32.xlu0 %v2022
      %v2024 = vpop.xlane.xlu0 %2023
      %v2025 = vsel %vm1076, %v2009, 0.0
      %2026 = vadd.xlane.f32.xlu0 %v2025
      %v2027 = vpop.xlane.xlu0 %2026
      %v2028 = vsel %vm1076, %v2011, 0.0
      %2029 = vadd.xlane.f32.xlu0 %v2028
      %v2030 = vpop.xlane.xlu0 %2029
      %v2031 = vsel %vm1076, %v2013, 0.0
      %2032 = vadd.xlane.f32.xlu0 %v2031
      %v2033 = vpop.xlane.xlu0 %2032
      %v2034 = vsel %vm1076, %v2015, 0.0
      %2035 = vadd.xlane.f32.xlu0 %v2034
      %v2036 = vpop.xlane.xlu0 %2035
      %v2037 = vsel %vm1076, %v2017, 0.0
      %2038 = vadd.xlane.f32.xlu0 %v2037
      %v2039 = vpop.xlane.xlu0 %2038
      %v2040 = vsel %vm1076, %v2019, 0.0
      %2041 = vadd.xlane.f32.xlu0 %v2040
      %v2042 = vpop.xlane.xlu0 %2041
      %v2043 = vsel %vm1076, %v2021, 0.0
      %2044 = vadd.xlane.f32.xlu0 %v2043
      %v2045 = vpop.xlane.xlu0 %2044
      %v2046 = vrcp.pop %v2024
      %v2047 = vmul.f32 %v2007, %v2046
      %v2048 = vrcp.pop %v2027
      %v2049 = vmul.f32 %v2009, %v2048
      %v2050 = vrcp.pop %v2030
      %v2051 = vmul.f32 %v2011, %v2050
      %v2052 = vrcp.pop %v2033
      %v2053 = vmul.f32 %v2013, %v2052
      %v2054 = vrcp.pop %v2036
      %v2055 = vmul.f32 %v2015, %v2054
      %v2056 = vrcp.pop %v2039
      %v2057 = vmul.f32 %v2017, %v2056
      %v2058 = vrcp.pop %v2042
      %v2059 = vmul.f32 %v2019, %v2058
      %v2060 = vrcp.pop %v2045
      %v2061 = vmul.f32 %v2021, %v2060
      %v2063 = vsel %vm1076, %v1865, 0
      %v2066 = vsel %vm1076, %v1868, 0
      %v2069 = vsel %vm1076, %v2047, 0
      %v2072 = vsel %vm1076, %v2049, 0
      %v2075 = vsel %vm1076, %v2051, 0
      %v2078 = vsel %vm1076, %v2053, 0
      %v2081 = vsel %vm1076, %v2055, 0
      %v2084 = vsel %vm1076, %v2057, 0
      %v2087 = vsel %vm1076, %v2059, 0
      %v2090 = vsel %vm1076, %v2061, 0
      %2092 = vmatprep.subr.mxu0 0.0
      %2093 = vmatpush1.xpose.msra.mxu0 %v2069
      %2094 = vmatprep.subr.mxu0 0.0
      %2095 = vmatpush1.xpose.msra.mxu0 %v2072
      %2096 = vmatprep.subr.mxu0 0.0
      %2097 = vmatpush1.xpose.msra.mxu0 %v2075
      %2098 = vmatprep.subr.mxu0 0.0
      %2099 = vmatpush1.xpose.msra.mxu0 %v2078
      %2100 = vmatprep.subr.mxu0 0.0
      %2101 = vmatpush1.xpose.msra.mxu0 %v2081
      %2102 = vmatprep.subr.mxu0 0.0
      %2103 = vmatpush1.xpose.msra.mxu0 %v2084
      %2104 = vmatprep.subr.mxu0 0.0
      %2105 = vmatpush1.xpose.msra.mxu0 %v2087
      %2106 = vmatprep.subr.mxu0 0.0
      %2107 = vmatpush1.xpose.msra.mxu0 %v2090
      %2108 = vmatprep.subr.mxu0 0.0
      %2109 = vmatpush1.xpose.msra.mxu0 0.0
      %2110 = vmatprep.subr.mxu0 0.0
      %2111 = vmatpush1.xpose.msra.mxu0 0.0
      %2112 = vmatprep.subr.mxu0 0.0
      %2113 = vmatpush1.xpose.msra.mxu0 0.0
      %2114 = vmatprep.subr.mxu0 0.0
      %2115 = vmatpush1.xpose.msra.mxu0 0.0
      %2116 = vmatprep.subr.mxu0 0.0
      %2117 = vmatpush1.xpose.msra.mxu0 0.0
      %2118 = vmatprep.subr.mxu0 0.0
      %2119 = vmatpush1.xpose.msra.mxu0 0.0
      %2120 = vmatprep.subr.mxu0 0.0
      %2121 = vmatpush1.xpose.msra.mxu0 0.0
      %2122 = vmatprep.subr.mxu0 0.0
      %2123 = vmatpush1.xpose.msra.mxu0 0.0
      %2124 = vmatprep.subr.mxu0 0.0
      %2125 = vmatpush1.xpose.msra.mxu0 0.0
      %2126 = vmatprep.subr.mxu0 0.0
      %2127 = vmatpush1.xpose.msra.mxu0 0.0
      %2128 = vmatprep.subr.mxu0 0.0
      %2129 = vmatpush1.xpose.msra.mxu0 0.0
      %2130 = vmatprep.subr.mxu0 0.0
      %2131 = vmatpush1.xpose.msra.mxu0 0.0
      %2132 = vmatprep.subr.mxu0 0.0
      %2133 = vmatpush1.xpose.msra.mxu0 0.0
      %2134 = vmatprep.subr.mxu0 0.0
      %2135 = vmatpush1.xpose.msra.mxu0 0.0
      %2136 = vmatprep.subr.mxu0 0.0
      %2137 = vmatpush1.xpose.msra.mxu0 0.0
      %2138 = vmatprep.subr.mxu0 0.0
      %2139 = vmatpush1.xpose.msra.mxu0 0.0
      %2140 = vmatprep.subr.mxu0 0.0
      %2141 = vmatpush1.xpose.msra.mxu0 0.0
      %2142 = vmatprep.subr.mxu0 0.0
      %2143 = vmatpush1.xpose.msra.mxu0 0.0
      %2144 = vmatprep.subr.mxu0 0.0
      %2145 = vmatpush1.xpose.msra.mxu0 0.0
      %2146 = vmatprep.subr.mxu0 0.0
      %2147 = vmatpush1.xpose.msra.mxu0 0.0
      %2148 = vmatprep.subr.mxu0 0.0
      %2149 = vmatpush1.xpose.msra.mxu0 0.0
      %2150 = vmatprep.subr.mxu0 0.0
      %2151 = vmatpush1.xpose.msra.mxu0 0.0
      %2152 = vmatprep.subr.mxu0 0.0
      %2153 = vmatpush1.xpose.msra.mxu0 0.0
      %2154 = vmatprep.subr.mxu0 0.0
      %2155 = vmatpush1.xpose.msra.mxu0 0.0
      %2156 = vmatprep.mubr.f32.mxu0 0.0
      %2157 = vmatmul.mubr.f32.gmra.mrb[0].mxu0 %v2063
      %v2158 = vpop.f32.mrb[0].mxu0
      %v2159 = vadd.f32 0.0, %v2158
      %v2160 = vpop.f32.mrb[0].mxu0
      %2161 = vmatprep.mubr.f32.mxu0 0.0
      %2162 = vmatmul.mubr.f32.gmra.mrb[0].mxu0 %v2066
      %v2163 = vpop.f32.mrb[0].mxu0
      %v2164 = vadd.f32 0.0, %v2163
      %v2165 = vpop.f32.mrb[0].mxu0
      %2166 = vdwg.mxu0
      %v2167 = vld [vmem:[%s37] sm:$0xff]
      %v2168 = vld [vmem:[%s37 + $0x8] sm:$0xff]
      %v2169 = vld [vmem:[%s39] sm:$0xff]
      %v2170 = vld [vmem:[%s39 + $0x8] sm:$0xff]
      %v2171 = vpack.c.bf16 %v2168, %v2167
      %v2172 = vpack.c.bf16 %v2164, %v2159
      %2174 = vset.pattern.permute.xlu0 0
      %2175 = vperm.xlu0 %2174, %v2169
      %v2176 = vpop.permute.xlu0 %2175
      %2179 = vset.pattern.permute.xlu0 0
      %2180 = vperm.xlu0 %2179, %v2170
      %v2181 = vpop.permute.xlu0 %2180
      %v2184 = vsel %vm1400, %v2171, 0
      %2186 = vmatprep.subr.bf16.mxu0 0
      %2187 = vmatpush1.bf16.msra.mxu0 %v2172
      %2188 = vmatprep.subr.bf16.mxu0 0
      %2189 = vmatpush1.bf16.msra.mxu0 0
      %2190 = vmatprep.subr.bf16.mxu0 0
      %2191 = vmatpush1.bf16.msra.mxu0 0
      %2192 = vmatprep.subr.bf16.mxu0 0
      %2193 = vmatpush1.bf16.msra.mxu0 0
      %2194 = vmatprep.subr.bf16.mxu0 0
      %2195 = vmatpush1.bf16.msra.mxu0 0
      %2196 = vmatprep.subr.bf16.mxu0 0
      %2197 = vmatpush1.bf16.msra.mxu0 0
      %2198 = vmatprep.subr.bf16.mxu0 0
      %2199 = vmatpush1.bf16.msra.mxu0 0
      %2200 = vmatprep.subr.bf16.mxu0 0
      %2201 = vmatpush1.bf16.msra.mxu0 0
      %2202 = vmatprep.subr.bf16.mxu0 0
      %2203 = vmatpush1.bf16.msra.mxu0 0
      %2204 = vmatprep.subr.bf16.mxu0 0
      %2205 = vmatpush1.bf16.msra.mxu0 0
      %2206 = vmatprep.subr.bf16.mxu0 0
      %2207 = vmatpush1.bf16.msra.mxu0 0
      %2208 = vmatprep.subr.bf16.mxu0 0
      %2209 = vmatpush1.bf16.msra.mxu0 0
      %2210 = vmatprep.subr.bf16.mxu0 0
      %2211 = vmatpush1.bf16.msra.mxu0 0
      %2212 = vmatprep.subr.bf16.mxu0 0
      %2213 = vmatpush1.bf16.msra.mxu0 0
      %2214 = vmatprep.subr.bf16.mxu0 0
      %2215 = vmatpush1.bf16.msra.mxu0 0
      %2216 = vmatprep.subr.bf16.mxu0 0
      %2217 = vmatpush1.bf16.msra.mxu0 0
      %2218 = vmatprep.mubr.bf16.mxu0 0
      %2219 = vmatmul.mubr.bf16.gmra.mrb[0].mxu0 %v2184
      %v2220 = vpop.f32.mrb[0].mxu0
      %v2221 = vadd.f32 %v2176, %v2220
      %v2222 = vpop.f32.mrb[0].mxu0
      %v2223 = vpop.f32.mrb[0].mxu0
      %v2224 = vadd.f32 %v2181, %v2223
      %v2225 = vpop.f32.mrb[0].mxu0
      %2226 = vdwg.mxu0
      %v2227 = vld [vmem:[%s41] sm:$0xff]
      %v2228 = vld [vmem:[%s41 + $0x8] sm:$0xff]
      %2230 = vset.pattern.permute.xlu0 0
      %2231 = vperm.xlu0 %2230, %v2227
      %v2232 = vpop.permute.xlu0 %2231
      %2235 = vset.pattern.permute.xlu0 0
      %2236 = vperm.xlu0 %2235, %v2228
      %v2237 = vpop.permute.xlu0 %2236
      %v2239 = vmul.f32 %v2232, %v2221
      %v2240 = vmul.f32 %v2237, %v2224
      %v2241 = vadd.f32 %v1635, %v2239
      %v2242 = vadd.f32 %v1636, %v2240
      %v2243 = vld [vmem:[%s43] sm:$0xff]
      %v2244 = vld [vmem:[%s43 + $0x8] sm:$0xff]
      %v2245 = vld [vmem:[%s45] sm:$0xff]
      %v2246 = vld [vmem:[%s45 + $0x8] sm:$0xff]
      %v2247 = vsel %vm1076, %v2241, 0.0
      %v2248 = vsel %vm1076, %v2242, 0.0
      %v2249 = vadd.f32 %v2247, %v2248
      %v2250 = vrot.slane %v2249, 4
      %v2251 = vadd.f32 %v2249, %v2250
      %v2252 = vrot.slane %v2251, 2
      %v2253 = vadd.f32 %v2251, %v2252
      %v2254 = vrot.slane %v2253, 1
      %v2255 = vadd.f32 %v2253, %v2254
      %v2256 = vmul.f32 %v2255, %v1230
      %v2257 = vsub.f32 %v2241, %v2256
      %v2258 = vsub.f32 %v2242, %v2256
      %v2259 = vmul.f32 %v2257, %v2257
      %v2260 = vmul.f32 %v2258, %v2258
      %v2261 = vsel %vm1076, %v2259, 0.0
      %v2262 = vsel %vm1076, %v2260, 0.0
      %v2263 = vadd.f32 %v2261, %v2262
      %v2264 = vrot.slane %v2263, 4
      %v2265 = vadd.f32 %v2263, %v2264
      %v2266 = vrot.slane %v2265, 2
      %v2267 = vadd.f32 %v2265, %v2266
      %v2268 = vrot.slane %v2267, 1
      %v2269 = vadd.f32 %v2267, %v2268
      %v2270 = vmul.f32 %v2269, %v1230
      %v2271 = vadd.f32 %v2270, 1e-06
      %v2272 = vrsqrt.pop %v2271
      %v2273 = vmul.f32 %v2257, %v2272
      %v2274 = vmul.f32 %v2258, %v2272
      %2276 = vset.pattern.permute.xlu0 0
      %2277 = vperm.xlu0 %2276, %v2243
      %v2278 = vpop.permute.xlu0 %2277
      %2281 = vset.pattern.permute.xlu0 0
      %2282 = vperm.xlu0 %2281, %v2244
      %v2283 = vpop.permute.xlu0 %2282
      %v2285 = vmul.f32 %v2273, %v2278
      %v2286 = vmul.f32 %v2274, %v2283
      %2288 = vset.pattern.permute.xlu0 0
      %2289 = vperm.xlu0 %2288, %v2245
      %v2290 = vpop.permute.xlu0 %2289
      %2293 = vset.pattern.permute.xlu0 0
      %2294 = vperm.xlu0 %2293, %v2246
      %v2295 = vpop.permute.xlu0 %2294
      %v2297 = vadd.f32 %v2285, %v2290
      %v2298 = vadd.f32 %v2286, %v2295
      %v2299 = vld [vmem:[%s47] sm:$0xf]
      %v2302 = vunpack.c.l.s4 1983009808
      %v2303 = vunpack.c.0.s8 %v2302
      %v2304 = vlaneseq
      %v2305 = vshrl.u32 %v2304, 7
      %v2306 = vsub.s32 %v2303, %v2305
      %v2307 = vrot.slane %v2299, %v2306
      %v2308 = vcombine.high %v2307, %v2307
      %v2311 = vpack.c.bf16 %v2307, %v2307
      %v2312 = vpack.c.bf16 %v2308, %v2308
      %v2313 = vld [vmem:[%s49] sm:$0x3]
      %2314 = vst.msk [vmem:[#allocation2 + $0x8] sm:$0xff] %vm1076, %v2297
      %2315 = vst.msk [vmem:[#allocation2 + $0x20] sm:$0xff] %vm1076, %v2298
      %v2316 = vld [vmem:[#allocation2] sm:$0xff]
      %v2317 = vld [vmem:[#allocation2 + $0x8] sm:$0xff]
      %v2318 = vld [vmem:[#allocation2 + $0x18] sm:$0xff]
      %v2319 = vld [vmem:[#allocation2 + $0x20] sm:$0xff]
      %2324 = vrot.lane.b32.xlu0 %v2316, 9
      %v2325 = vpop.permute.xlu0 %2324
      %2326 = vrot.lane.b32.xlu0 %v2317, 9
      %v2327 = vpop.permute.xlu0 %2326
      %2328 = vrot.lane.b32.xlu0 %v2318, 9
      %v2329 = vpop.permute.xlu0 %2328
      %2330 = vrot.lane.b32.xlu0 %v2319, 9
      %v2331 = vpop.permute.xlu0 %2330
      %v2332 = vsel %vm1100, %v2325, %v2327
      %v2333 = vsel %vm1100, %v2329, %v2331
      %v2336 = vsel %vm1093, %v2332, 0.0
      %v2337 = vsel %vm1093, %v2333, 0.0
      %2338 = vrot.lane.b32.xlu0 %v2316, 7
      %v2339 = vpop.permute.xlu0 %2338
      %2340 = vrot.lane.b32.xlu0 %v2317, 7
      %v2341 = vpop.permute.xlu0 %2340
      %2342 = vrot.lane.b32.xlu0 %v2318, 7
      %v2343 = vpop.permute.xlu0 %2342
      %2344 = vrot.lane.b32.xlu0 %v2319, 7
      %v2345 = vpop.permute.xlu0 %2344
      %v2346 = vsel %vm1114, %v2339, %v2341
      %v2347 = vsel %vm1114, %v2343, %v2345
      %v2350 = vsel %vm1109, %v2346, 0.0
      %v2351 = vsel %vm1109, %v2347, 0.0
      %2352 = vrot.lane.b32.xlu0 %v2316, 1
      %v2353 = vpop.permute.xlu0 %2352
      %2354 = vrot.lane.b32.xlu0 %v2317, 1
      %v2355 = vpop.permute.xlu0 %2354
      %2356 = vrot.lane.b32.xlu0 %v2318, 1
      %v2357 = vpop.permute.xlu0 %2356
      %2358 = vrot.lane.b32.xlu0 %v2319, 1
      %v2359 = vpop.permute.xlu0 %2358
      %v2360 = vsel %vm1122, %v2353, %v2355
      %v2361 = vsel %vm1122, %v2357, %v2359
      %v2364 = vsel %vm1093, %v2360, 0.0
      %v2365 = vsel %vm1093, %v2361, 0.0
      %2366 = vrot.lane.b32.xlu0 %v2317, 127
      %v2367 = vpop.permute.xlu0 %2366
      %2368 = vrot.lane.b32.xlu0 %v2319, 127
      %v2369 = vpop.permute.xlu0 %2368
      %v2372 = vsel %vm1109, %v2367, 0.0
      %v2373 = vsel %vm1109, %v2369, 0.0
      %2374 = vrot.lane.b32.xlu0 %v2317, 121
      %v2375 = vpop.permute.xlu0 %2374
      %2376 = vrot.lane.b32.xlu0 %v2319, 121
      %v2377 = vpop.permute.xlu0 %2376
      %v2380 = vsel %vm1093, %v2375, 0.0
      %v2381 = vsel %vm1093, %v2377, 0.0
      %2382 = vrot.lane.b32.xlu0 %v2317, 119
      %v2383 = vpop.permute.xlu0 %2382
      %2384 = vrot.lane.b32.xlu0 %v2319, 119
      %v2385 = vpop.permute.xlu0 %2384
      %v2388 = vsel %vm1109, %v2383, 0.0
      %v2389 = vsel %vm1109, %v2385, 0.0
      %2390 = vrot.lane.b32.xlu0 %v2316, 8
      %v2391 = vpop.permute.xlu0 %2390
      %2392 = vrot.lane.b32.xlu0 %v2317, 8
      %v2393 = vpop.permute.xlu0 %2392
      %2394 = vrot.lane.b32.xlu0 %v2318, 8
      %v2395 = vpop.permute.xlu0 %2394
      %2396 = vrot.lane.b32.xlu0 %v2319, 8
      %v2397 = vpop.permute.xlu0 %2396
      %v2398 = vsel %vm1142, %v2391, %v2393
      %v2399 = vsel %vm1142, %v2395, %v2397
      %2402 = vrot.lane.b32.xlu0 %v2317, 120
      %v2403 = vpop.permute.xlu0 %2402
      %2404 = vrot.lane.b32.xlu0 %v2319, 120
      %v2405 = vpop.permute.xlu0 %2404
      %v2408 = vpack.c.bf16 %v2337, %v2336
      %v2409 = vpack.c.bf16 %v2399, %v2398
      %v2410 = vpack.c.bf16 %v2351, %v2350
      %v2411 = vpack.c.bf16 %v2365, %v2364
      %v2412 = vpack.c.bf16 %v2319, %v2317
      %v2413 = vpack.c.bf16 %v2373, %v2372
      %v2414 = vpack.c.bf16 %v2381, %v2380
      %v2415 = vpack.c.bf16 %v2405, %v2403
      %v2416 = vpack.c.bf16 %v2389, %v2388
      %2418 = vset.pattern.permute.xlu0 0
      %2419 = vperm.xlu0 %2418, %v2313
      %v2420 = vpop.permute.xlu0 %2419
      %v2423 = vsel %vm1400, %v2312, 0
      %2425 = vmatprep.subr.bf16.mxu0 0
      %2426 = vmatpush1.bf16.msra.mxu0 %v2408
      %2427 = vmatprep.subr.bf16.mxu0 0
      %2428 = vmatpush1.bf16.msra.mxu0 %v2409
      %2429 = vmatprep.subr.bf16.mxu0 0
      %2430 = vmatpush1.bf16.msra.mxu0 %v2410
      %2431 = vmatprep.subr.bf16.mxu0 0
      %2432 = vmatpush1.bf16.msra.mxu0 %v2411
      %2433 = vmatprep.subr.bf16.mxu0 0
      %2434 = vmatpush1.bf16.msra.mxu0 %v2412
      %2435 = vmatprep.subr.bf16.mxu0 0
      %2436 = vmatpush1.bf16.msra.mxu0 %v2413
      %2437 = vmatprep.subr.bf16.mxu0 0
      %2438 = vmatpush1.bf16.msra.mxu0 %v2414
      %2439 = vmatprep.subr.bf16.mxu0 0
      %2440 = vmatpush1.bf16.msra.mxu0 %v2415
      %2441 = vmatprep.subr.bf16.mxu0 0
      %2442 = vmatpush1.bf16.msra.mxu0 %v2416
      %2443 = vmatprep.subr.bf16.mxu0 0
      %2444 = vmatpush1.bf16.msra.mxu0 0
      %2445 = vmatprep.subr.bf16.mxu0 0
      %2446 = vmatpush1.bf16.msra.mxu0 0
      %2447 = vmatprep.subr.bf16.mxu0 0
      %2448 = vmatpush1.bf16.msra.mxu0 0
      %2449 = vmatprep.subr.bf16.mxu0 0
      %2450 = vmatpush1.bf16.msra.mxu0 0
      %2451 = vmatprep.subr.bf16.mxu0 0
      %2452 = vmatpush1.bf16.msra.mxu0 0
      %2453 = vmatprep.subr.bf16.mxu0 0
      %2454 = vmatpush1.bf16.msra.mxu0 0
      %2455 = vmatprep.subr.bf16.mxu0 0
      %2456 = vmatpush1.bf16.msra.mxu0 0
      %2457 = vmatprep.mubr.bf16.mxu0 %v2423
      %2458 = vmatmul.mubr.bf16.gmra.mrb[0].mxu0 %v2311
      %v2459 = vpop.f32.mrb[0].mxu0
      %v2460 = vadd.f32 %v2420, %v2459
      %v2461 = vpop.f32.mrb[0].mxu0
      %v2462 = vpop.f32.mrb[0].mxu0
      %v2463 = vpop.f32.mrb[0].mxu0
      %2464 = vdwg.mxu0
      %vm2465 = vcmp.ge.f32.partialorder %v2460, 0.0
      %v2466 = vmul.f32 %v2460, 0.01
      %v2467 = vsel %vm2465, %v2460, %v2466
      %vm2468 = vcmask 517120
      %2469 = vst.msk [vmem:[%s1052] sm:$0x3] %vm2468, %v2467
      %v2470 = vld [vmem:[%s51] sm:$0xff]
      %v2471 = vld [vmem:[%s51 + $0x8] sm:$0xff]
      %v2472 = vld [vmem:[%s53] sm:$0xff]
      %v2473 = vld [vmem:[%s53 + $0x8] sm:$0xff]
      %2475 = vset.pattern.permute.xlu0 0
      %2476 = vperm.xlu0 %2475, %v2470
      %v2477 = vpop.permute.xlu0 %2476
      %2480 = vset.pattern.permute.xlu0 0
      %2481 = vperm.xlu0 %2480, %v2471
      %v2482 = vpop.permute.xlu0 %2481
      %v2484 = vmul.f32 %v2273, %v2477
      %v2485 = vmul.f32 %v2274, %v2482
      %2487 = vset.pattern.permute.xlu0 0
      %2488 = vperm.xlu0 %2487, %v2472
      %v2489 = vpop.permute.xlu0 %2488
      %2492 = vset.pattern.permute.xlu0 0
      %2493 = vperm.xlu0 %2492, %v2473
      %v2494 = vpop.permute.xlu0 %2493
      %v2496 = vadd.f32 %v2484, %v2489
      %v2497 = vadd.f32 %v2485, %v2494
      %v2498 = vld [vmem:[%s55] sm:$0xff]
      %v2499 = vld [vmem:[%s55 + $0x8] sm:$0xff]
      %v2500 = vpack.c.bf16 %v2498, %v2498
      %v2501 = vpack.c.bf16 %v2499, %v2499
      %v2502 = vld [vmem:[%s57] sm:$0xff]
      %2503 = vst.msk [vmem:[#allocation2 + $0x8] sm:$0xff] %vm1076, %v2496
      %2504 = vst.msk [vmem:[#allocation2 + $0x20] sm:$0xff] %vm1076, %v2497
      %v2505 = vld [vmem:[#allocation2] sm:$0xff]
      %v2506 = vld [vmem:[#allocation2 + $0x8] sm:$0xff]
      %v2507 = vld [vmem:[#allocation2 + $0x18] sm:$0xff]
      %v2508 = vld [vmem:[#allocation2 + $0x20] sm:$0xff]
      %2513 = vrot.lane.b32.xlu0 %v2505, 9
      %v2514 = vpop.permute.xlu0 %2513
      %2515 = vrot.lane.b32.xlu0 %v2506, 9
      %v2516 = vpop.permute.xlu0 %2515
      %2517 = vrot.lane.b32.xlu0 %v2507, 9
      %v2518 = vpop.permute.xlu0 %2517
      %2519 = vrot.lane.b32.xlu0 %v2508, 9
      %v2520 = vpop.permute.xlu0 %2519
      %v2521 = vsel %vm1100, %v2514, %v2516
      %v2522 = vsel %vm1100, %v2518, %v2520
      %v2525 = vsel %vm1093, %v2521, 0.0
      %v2526 = vsel %vm1093, %v2522, 0.0
      %2527 = vrot.lane.b32.xlu0 %v2505, 7
      %v2528 = vpop.permute.xlu0 %2527
      %2529 = vrot.lane.b32.xlu0 %v2506, 7
      %v2530 = vpop.permute.xlu0 %2529
      %2531 = vrot.lane.b32.xlu0 %v2507, 7
      %v2532 = vpop.permute.xlu0 %2531
      %2533 = vrot.lane.b32.xlu0 %v2508, 7
      %v2534 = vpop.permute.xlu0 %2533
      %v2535 = vsel %vm1114, %v2528, %v2530
      %v2536 = vsel %vm1114, %v2532, %v2534
      %v2539 = vsel %vm1109, %v2535, 0.0
      %v2540 = vsel %vm1109, %v2536, 0.0
      %2541 = vrot.lane.b32.xlu0 %v2505, 1
      %v2542 = vpop.permute.xlu0 %2541
      %2543 = vrot.lane.b32.xlu0 %v2506, 1
      %v2544 = vpop.permute.xlu0 %2543
      %2545 = vrot.lane.b32.xlu0 %v2507, 1
      %v2546 = vpop.permute.xlu0 %2545
      %2547 = vrot.lane.b32.xlu0 %v2508, 1
      %v2548 = vpop.permute.xlu0 %2547
      %v2549 = vsel %vm1122, %v2542, %v2544
      %v2550 = vsel %vm1122, %v2546, %v2548
      %v2553 = vsel %vm1093, %v2549, 0.0
      %v2554 = vsel %vm1093, %v2550, 0.0
      %2555 = vrot.lane.b32.xlu0 %v2506, 127
      %v2556 = vpop.permute.xlu0 %2555
      %2557 = vrot.lane.b32.xlu0 %v2508, 127
      %v2558 = vpop.permute.xlu0 %2557
      %v2561 = vsel %vm1109, %v2556, 0.0
      %v2562 = vsel %vm1109, %v2558, 0.0
      %2563 = vrot.lane.b32.xlu0 %v2506, 121
      %v2564 = vpop.permute.xlu0 %2563
      %2565 = vrot.lane.b32.xlu0 %v2508, 121
      %v2566 = vpop.permute.xlu0 %2565
      %v2569 = vsel %vm1093, %v2564, 0.0
      %v2570 = vsel %vm1093, %v2566, 0.0
      %2571 = vrot.lane.b32.xlu0 %v2506, 119
      %v2572 = vpop.permute.xlu0 %2571
      %2573 = vrot.lane.b32.xlu0 %v2508, 119
      %v2574 = vpop.permute.xlu0 %2573
      %v2577 = vsel %vm1109, %v2572, 0.0
      %v2578 = vsel %vm1109, %v2574, 0.0
      %2579 = vrot.lane.b32.xlu0 %v2505, 8
      %v2580 = vpop.permute.xlu0 %2579
      %2581 = vrot.lane.b32.xlu0 %v2506, 8
      %v2582 = vpop.permute.xlu0 %2581
      %2583 = vrot.lane.b32.xlu0 %v2507, 8
      %v2584 = vpop.permute.xlu0 %2583
      %2585 = vrot.lane.b32.xlu0 %v2508, 8
      %v2586 = vpop.permute.xlu0 %2585
      %v2587 = vsel %vm1142, %v2580, %v2582
      %v2588 = vsel %vm1142, %v2584, %v2586
      %2591 = vrot.lane.b32.xlu0 %v2506, 120
      %v2592 = vpop.permute.xlu0 %2591
      %2593 = vrot.lane.b32.xlu0 %v2508, 120
      %v2594 = vpop.permute.xlu0 %2593
      %v2597 = vpack.c.bf16 %v2526, %v2525
      %v2598 = vpack.c.bf16 %v2588, %v2587
      %v2599 = vpack.c.bf16 %v2540, %v2539
      %v2600 = vpack.c.bf16 %v2554, %v2553
      %v2601 = vpack.c.bf16 %v2508, %v2506
      %v2602 = vpack.c.bf16 %v2562, %v2561
      %v2603 = vpack.c.bf16 %v2570, %v2569
      %v2604 = vpack.c.bf16 %v2594, %v2592
      %v2605 = vpack.c.bf16 %v2578, %v2577
      %2607 = vset.pattern.permute.xlu0 0
      %2608 = vperm.xlu0 %2607, %v2502
      %v2609 = vpop.permute.xlu0 %2608
      %v2612 = vsel %vm1400, %v2501, 0
      %2614 = vmatprep.subr.bf16.mxu0 0
      %2615 = vmatpush1.bf16.msra.mxu0 %v2597
      %2616 = vmatprep.subr.bf16.mxu0 0
      %2617 = vmatpush1.bf16.msra.mxu0 %v2598
      %2618 = vmatprep.subr.bf16.mxu0 0
      %2619 = vmatpush1.bf16.msra.mxu0 %v2599
      %2620 = vmatprep.subr.bf16.mxu0 0
      %2621 = vmatpush1.bf16.msra.mxu0 %v2600
      %2622 = vmatprep.subr.bf16.mxu0 0
      %2623 = vmatpush1.bf16.msra.mxu0 %v2601
      %2624 = vmatprep.subr.bf16.mxu0 0
      %2625 = vmatpush1.bf16.msra.mxu0 %v2602
      %2626 = vmatprep.subr.bf16.mxu0 0
      %2627 = vmatpush1.bf16.msra.mxu0 %v2603
      %2628 = vmatprep.subr.bf16.mxu0 0
      %2629 = vmatpush1.bf16.msra.mxu0 %v2604
      %2630 = vmatprep.subr.bf16.mxu0 0
      %2631 = vmatpush1.bf16.msra.mxu0 %v2605
      %2632 = vmatprep.subr.bf16.mxu0 0
      %2633 = vmatpush1.bf16.msra.mxu0 0
      %2634 = vmatprep.subr.bf16.mxu0 0
      %2635 = vmatpush1.bf16.msra.mxu0 0
      %2636 = vmatprep.subr.bf16.mxu0 0
      %2637 = vmatpush1.bf16.msra.mxu0 0
      %2638 = vmatprep.subr.bf16.mxu0 0
      %2639 = vmatpush1.bf16.msra.mxu0 0
      %2640 = vmatprep.subr.bf16.mxu0 0
      %2641 = vmatpush1.bf16.msra.mxu0 0
      %2642 = vmatprep.subr.bf16.mxu0 0
      %2643 = vmatpush1.bf16.msra.mxu0 0
      %2644 = vmatprep.subr.bf16.mxu0 0
      %2645 = vmatpush1.bf16.msra.mxu0 0
      %2646 = vmatprep.mubr.bf16.mxu0 %v2612
      %2647 = vmatmul.mubr.bf16.gmra.mrb[0].mxu0 %v2500
      %v2648 = vpop.f32.mrb[0].mxu0
      %v2649 = vadd.f32 %v2609, %v2648
      %v2650 = vpop.f32.mrb[0].mxu0
      %v2651 = vpop.f32.mrb[0].mxu0
      %v2652 = vpop.f32.mrb[0].mxu0
      %2653 = vdwg.mxu0
      %2654 = vst.msk [vmem:[%s1056] sm:$0xff] %vm1076, %v2649
      %p2655 = scmp.lt.s32.totalorder %s73, 1
      %s2656 = scalar_select %p2655, %s73, 1
      %s2657 = smul.addr %s2656, 2
      %s2658 = scalar_lea.vmem %s59, %s2657
      %p2659 = scmp.lt.s32.totalorder %s73, 1
      %s2660 = scalar_select %p2659, %s73, 1
      %s2661 = smul.addr %s2660, 8
      %s2662 = scalar_lea.vmem %s61, %s2661
      // Predicated region
      $region137: #{_lambda_.3} parent=135 // pred_check
        %p2663 = pneg %p735
      $region138: #{_lambda_.3} parent=135 // pred_check_branch
        %2665 = sbr.rel (%p2663) target = $region140
      $region139: #{_lambda_.3} parent=135 // pred_region
        _
      $region140: #{_lambda_.3} parent=135 // pred_fallthru
        _
      // Predicated region
      $region141: #{_lambda_.3} parent=135 // pred_check
        %p2666 = pneg %p761
      $region142: #{_lambda_.3} parent=135 // pred_check_branch
        %2668 = sbr.rel (%p2666) target = $region144
      $region143: #{_lambda_.3} parent=135 // pred_region
        _
      $region144: #{_lambda_.3} parent=135 // pred_fallthru
        _
    $region136: #{_lambda_.3} parent=5 // pred_fallthru
      _
    %p2669 = scmp.le.s32.totalorder 2, %s68
    // Predicated region
    $region145: #{_lambda_.3} parent=5 // pred_check
      %p2670 = pneg %p2669
    $region146: #{_lambda_.3} parent=5 // pred_check_branch
      %2672 = sbr.rel (%p2670) target = $region148
    $region147: #{_lambda_.3} parent=5 // pred_region
      %s2673 = ssub.s32 %s68, 2
      // Predicated region
      $region149: #{_lambda_.3} parent=147 // pred_check
        %p2674 = pneg %p741
      $region150: #{_lambda_.3} parent=147 // pred_check_branch
        %2676 = sbr.rel (%p2674) target = $region152
      $region151: #{_lambda_.3} parent=147 // pred_region
        %p2677 = scmp.lt.s32.totalorder %s74, 1
        %s2678 = scalar_select %p2677, %s74, 1
        %s2679 = smul.addr %s2678, 2
        %s2680 = scalar_lea.vmem %s59, %s2679
      $region152: #{_lambda_.3} parent=147 // pred_fallthru
        _
      // Predicated region
      $region153: #{_lambda_.3} parent=147 // pred_check
        %p2681 = pneg %p767
      $region154: #{_lambda_.3} parent=147 // pred_check_branch
        %2683 = sbr.rel (%p2681) target = $region156
      $region155: #{_lambda_.3} parent=147 // pred_region
        %p2684 = scmp.lt.s32.totalorder %s74, 1
        %s2685 = scalar_select %p2684, %s74, 1
        %s2686 = smul.addr %s2685, 8
        %s2687 = scalar_lea.vmem %s61, %s2686
      $region156: #{_lambda_.3} parent=147 // pred_fallthru
        _
    $region148: #{_lambda_.3} parent=5 // pred_fallthru
      _
  $region6: #{_lambda_.3} parent=0 // loop_footer
    %s72 = sadd.s32 1, %s68
  $region7: #{_lambda_.3} parent=0 // loop_footer_branch
    %67 = sbr.rel target = $region3
  $region8: #{_lambda_.3} parent=0 // loop_exit
    _

// kernel: _lambda_.4
$region0: #{_lambda_.4}
  #allocation0 [shape = 'u32[]', space=smem, size = 0x4, offset = 0x4, fixed_abs, tag = 'smem constant byte address 0x4 - core index']
  #allocation1 [shape = 'u32[144,128]{1,0:T(1,128)}', space=vmem, size = 0x12000, scoped, tag = 'internal scratch']
  #allocation2 [shape = 'f32[16,512]{1,0:T(8,128)}', space=vmem, size = 0x8000, scoped, tag = 'scratch operand']
  %s0 = inlined_call_operand.vmem [shape: f32[2,8,256], index: 0, kind: input, shape index: {}]
  %s1 = inlined_call_operand.vmem [shape: f32[2,8,256], index: 1, kind: input, shape index: {}]
  %s2 = inlined_call_operand.vmem [shape: bf16[2,8,144], index: 2, kind: input, shape index: {}]
  %s3 = inlined_call_operand.vmem [shape: f32[2,8,1], index: 3, kind: input, shape index: {}]
  %s4 = inlined_call_operand.vmem [shape: f32[8,1], index: 4, kind: input, shape index: {}]
  %s5 = inlined_call_operand.vmem [shape: f32[8,1], index: 5, kind: input, shape index: {}]
  %s6 = inlined_call_operand.vmem [shape: bf16[2,8,72], index: 6, kind: input, shape index: {}]
  %s7 = inlined_call_operand.vmem [shape: f32[2,8,1], index: 7, kind: input, shape index: {}]
  %s8 = inlined_call_operand.vmem [shape: bf16[2,8,72], index: 8, kind: input, shape index: {}]
  %s9 = inlined_call_operand.vmem [shape: f32[2,8,1], index: 9, kind: input, shape index: {}]
  %s10 = inlined_call_operand.vmem [shape: f32[8,1], index: 10, kind: input, shape index: {}]
  %s11 = inlined_call_operand.vmem [shape: f32[8,1], index: 11, kind: input, shape index: {}]
  %s12 = inlined_call_operand.vmem [shape: f32[8,1], index: 12, kind: input, shape index: {}]
  %s13 = inlined_call_operand.vmem [shape: f32[2,72], index: 13, kind: input, shape index: {}]
  %s14 = inlined_call_operand.vmem [shape: f32[2,1], index: 14, kind: input, shape index: {}]
  %s15 = inlined_call_operand.vmem [shape: f32[2,2,256], index: 15, kind: output, shape index: {}]
  %s16 = sld [smem:[#allocation0]]
  $region93: #{_lambda_.4} parent=0
    _
  %s18 = ssub.s32 1, %s16
  %s19 = scalar_select 0, %s18, %s16
  loop: start=0, step=1, limit=4
  $region2: #{_lambda_.4} parent=0 // loop_pre_header
    _
  $region3: #{_lambda_.4} parent=0 // loop_header
    %s21 = sphi 0, %s25
    %p22 = scmp.ge.s32.totalorder %s21, 4
    %s31 = sphi 0, %s33
    %s34 = sphi 0, %s31
    %s35 = sphi 0, %s34
    %s51 = sphi 0, %s35
    %s57 = sphi 0, %s59
    %s60 = sphi 0, %s57
    %s61 = sphi 0, %s60
    %s77 = sphi 0, %s61
    %s83 = sphi 0, %s85
    %s86 = sphi 0, %s83
    %s87 = sphi 0, %s86
    %s103 = sphi 0, %s87
    %s109 = sphi 0, %s111
    %s112 = sphi 0, %s109
    %s113 = sphi 0, %s112
    %s129 = sphi 0, %s113
    %s133 = sphi 0, %s133
    %s135 = sphi 0, %s133
    %s136 = sphi 0, %s135
    %s150 = sphi 0, %s136
    %s154 = sphi 0, %s154
    %s156 = sphi 0, %s154
    %s157 = sphi 0, %s156
    %s171 = sphi 0, %s157
    %s177 = sphi 0, %s179
    %s180 = sphi 0, %s177
    %s181 = sphi 0, %s180
    %s197 = sphi 0, %s181
    %s203 = sphi 0, %s205
    %s206 = sphi 0, %s203
    %s207 = sphi 0, %s206
    %s223 = sphi 0, %s207
    %s229 = sphi 0, %s231
    %s232 = sphi 0, %s229
    %s233 = sphi 0, %s232
    %s249 = sphi 0, %s233
    %s255 = sphi 0, %s257
    %s258 = sphi 0, %s255
    %s259 = sphi 0, %s258
    %s275 = sphi 0, %s259
    %s279 = sphi 0, %s279
    %s281 = sphi 0, %s279
    %s282 = sphi 0, %s281
    %s296 = sphi 0, %s282
    %s300 = sphi 0, %s300
    %s302 = sphi 0, %s300
    %s303 = sphi 0, %s302
    %s317 = sphi 0, %s303
    %s321 = sphi 0, %s321
    %s323 = sphi 0, %s321
    %s324 = sphi 0, %s323
    %s338 = sphi 0, %s324
    %s342 = sphi 0, %s342
    %s344 = sphi 0, %s342
    %s345 = sphi 0, %s344
    %s359 = sphi 0, %s345
    %s363 = sphi 0, %s363
    %s365 = sphi 0, %s363
    %s366 = sphi 0, %s365
    %s380 = sphi 0, %s366
    %s386 = sphi 0, %s388
    %s389 = sphi 0, %s386
    %s390 = sphi 0, %s389
    %s406 = sphi 0, %s390
  $region4: #{_lambda_.4} parent=0 // loop_header_branch
    %24 = sbr.rel (%p22) target = $region8
  $region5: #{_lambda_.4} parent=0 // loop_body
    %s26 = ssub.s32 %s21, 1
    %s27 = ssub.s32 %s21, 2
    %s28 = sadd.s32 %s21, 1
    %s29 = ssub.s32 %s21, %s28
    %p30 = scmp.eq.s32.totalorder %s29, 0
    %s32 = sadd.s32 %s31, 1
    %s33 = scalar_select %p30, %s31, %s32
    %p36 = pneg %p30
    %p37 = scmp.eq.s32.totalorder %s21, 1
    %p38 = por %p36, %p37
    %p39 = scmp.ne.s32.totalorder %s31, %s34
    %p40 = scmp.eq.s32.totalorder %s21, 0
    %p41 = por %p39, %p40
    %p42 = scmp.ne.s32.totalorder %s31, %s34
    %p43 = scmp.eq.s32.totalorder %s26, 1
    %p44 = por %p42, %p43
    %p45 = scmp.ne.s32.totalorder %s34, %s35
    %p46 = scmp.eq.s32.totalorder %s26, 0
    %p47 = por %p45, %p46
    %p48 = scmp.ne.s32.totalorder %s34, %s35
    %p49 = scmp.eq.s32.totalorder %s27, 1
    %p50 = por %p48, %p49
    %p52 = scmp.ne.s32.totalorder %s35, %s51
    %p53 = scmp.eq.s32.totalorder %s27, 0
    %p54 = por %p52, %p53
    %s55 = ssub.s32 %s21, %s28
    %p56 = scmp.eq.s32.totalorder %s55, 0
    %s58 = sadd.s32 %s57, 1
    %s59 = scalar_select %p56, %s57, %s58
    %p62 = pneg %p56
    %p63 = scmp.eq.s32.totalorder %s21, 1
    %p64 = por %p62, %p63
    %p65 = scmp.ne.s32.totalorder %s57, %s60
    %p66 = scmp.eq.s32.totalorder %s21, 0
    %p67 = por %p65, %p66
    %p68 = scmp.ne.s32.totalorder %s57, %s60
    %p69 = scmp.eq.s32.totalorder %s26, 1
    %p70 = por %p68, %p69
    %p71 = scmp.ne.s32.totalorder %s60, %s61
    %p72 = scmp.eq.s32.totalorder %s26, 0
    %p73 = por %p71, %p72
    %p74 = scmp.ne.s32.totalorder %s60, %s61
    %p75 = scmp.eq.s32.totalorder %s27, 1
    %p76 = por %p74, %p75
    %p78 = scmp.ne.s32.totalorder %s61, %s77
    %p79 = scmp.eq.s32.totalorder %s27, 0
    %p80 = por %p78, %p79
    %s81 = ssub.s32 %s21, %s28
    %p82 = scmp.eq.s32.totalorder %s81, 0
    %s84 = sadd.s32 %s83, 1
    %s85 = scalar_select %p82, %s83, %s84
    %p88 = pneg %p82
    %p89 = scmp.eq.s32.totalorder %s21, 1
    %p90 = por %p88, %p89
    %p91 = scmp.ne.s32.totalorder %s83, %s86
    %p92 = scmp.eq.s32.totalorder %s21, 0
    %p93 = por %p91, %p92
    %p94 = scmp.ne.s32.totalorder %s83, %s86
    %p95 = scmp.eq.s32.totalorder %s26, 1
    %p96 = por %p94, %p95
    %p97 = scmp.ne.s32.totalorder %s86, %s87
    %p98 = scmp.eq.s32.totalorder %s26, 0
    %p99 = por %p97, %p98
    %p100 = scmp.ne.s32.totalorder %s86, %s87
    %p101 = scmp.eq.s32.totalorder %s27, 1
    %p102 = por %p100, %p101
    %p104 = scmp.ne.s32.totalorder %s87, %s103
    %p105 = scmp.eq.s32.totalorder %s27, 0
    %p106 = por %p104, %p105
    %s107 = ssub.s32 %s21, %s28
    %p108 = scmp.eq.s32.totalorder %s107, 0
    %s110 = sadd.s32 %s109, 1
    %s111 = scalar_select %p108, %s109, %s110
    %p114 = pneg %p108
    %p115 = scmp.eq.s32.totalorder %s21, 1
    %p116 = por %p114, %p115
    %p117 = scmp.ne.s32.totalorder %s109, %s112
    %p118 = scmp.eq.s32.totalorder %s21, 0
    %p119 = por %p117, %p118
    %p120 = scmp.ne.s32.totalorder %s109, %s112
    %p121 = scmp.eq.s32.totalorder %s26, 1
    %p122 = por %p120, %p121
    %p123 = scmp.ne.s32.totalorder %s112, %s113
    %p124 = scmp.eq.s32.totalorder %s26, 0
    %p125 = por %p123, %p124
    %p126 = scmp.ne.s32.totalorder %s112, %s113
    %p127 = scmp.eq.s32.totalorder %s27, 1
    %p128 = por %p126, %p127
    %p130 = scmp.ne.s32.totalorder %s113, %s129
    %p131 = scmp.eq.s32.totalorder %s27, 0
    %p132 = por %p130, %p131
    %s134 = sadd.s32 %s133, 1
    %p137 = scmp.eq.s32.totalorder %s21, 1
    %p138 = scmp.ne.s32.totalorder %s133, %s135
    %p139 = scmp.eq.s32.totalorder %s21, 0
    %p140 = por %p138, %p139
    %p141 = scmp.ne.s32.totalorder %s133, %s135
    %p142 = scmp.eq.s32.totalorder %s26, 1
    %p143 = por %p141, %p142
    %p144 = scmp.ne.s32.totalorder %s135, %s136
    %p145 = scmp.eq.s32.totalorder %s26, 0
    %p146 = por %p144, %p145
    %p147 = scmp.ne.s32.totalorder %s135, %s136
    %p148 = scmp.eq.s32.totalorder %s27, 1
    %p149 = por %p147, %p148
    %p151 = scmp.ne.s32.totalorder %s136, %s150
    %p152 = scmp.eq.s32.totalorder %s27, 0
    %p153 = por %p151, %p152
    %s155 = sadd.s32 %s154, 1
    %p158 = scmp.eq.s32.totalorder %s21, 1
    %p159 = scmp.ne.s32.totalorder %s154, %s156
    %p160 = scmp.eq.s32.totalorder %s21, 0
    %p161 = por %p159, %p160
    %p162 = scmp.ne.s32.totalorder %s154, %s156
    %p163 = scmp.eq.s32.totalorder %s26, 1
    %p164 = por %p162, %p163
    %p165 = scmp.ne.s32.totalorder %s156, %s157
    %p166 = scmp.eq.s32.totalorder %s26, 0
    %p167 = por %p165, %p166
    %p168 = scmp.ne.s32.totalorder %s156, %s157
    %p169 = scmp.eq.s32.totalorder %s27, 1
    %p170 = por %p168, %p169
    %p172 = scmp.ne.s32.totalorder %s157, %s171
    %p173 = scmp.eq.s32.totalorder %s27, 0
    %p174 = por %p172, %p173
    %s175 = ssub.s32 %s21, %s28
    %p176 = scmp.eq.s32.totalorder %s175, 0
    %s178 = sadd.s32 %s177, 1
    %s179 = scalar_select %p176, %s177, %s178
    %p182 = pneg %p176
    %p183 = scmp.eq.s32.totalorder %s21, 1
    %p184 = por %p182, %p183
    %p185 = scmp.ne.s32.totalorder %s177, %s180
    %p186 = scmp.eq.s32.totalorder %s21, 0
    %p187 = por %p185, %p186
    %p188 = scmp.ne.s32.totalorder %s177, %s180
    %p189 = scmp.eq.s32.totalorder %s26, 1
    %p190 = por %p188, %p189
    %p191 = scmp.ne.s32.totalorder %s180, %s181
    %p192 = scmp.eq.s32.totalorder %s26, 0
    %p193 = por %p191, %p192
    %p194 = scmp.ne.s32.totalorder %s180, %s181
    %p195 = scmp.eq.s32.totalorder %s27, 1
    %p196 = por %p194, %p195
    %p198 = scmp.ne.s32.totalorder %s181, %s197
    %p199 = scmp.eq.s32.totalorder %s27, 0
    %p200 = por %p198, %p199
    %s201 = ssub.s32 %s21, %s28
    %p202 = scmp.eq.s32.totalorder %s201, 0
    %s204 = sadd.s32 %s203, 1
    %s205 = scalar_select %p202, %s203, %s204
    %p208 = pneg %p202
    %p209 = scmp.eq.s32.totalorder %s21, 1
    %p210 = por %p208, %p209
    %p211 = scmp.ne.s32.totalorder %s203, %s206
    %p212 = scmp.eq.s32.totalorder %s21, 0
    %p213 = por %p211, %p212
    %p214 = scmp.ne.s32.totalorder %s203, %s206
    %p215 = scmp.eq.s32.totalorder %s26, 1
    %p216 = por %p214, %p215
    %p217 = scmp.ne.s32.totalorder %s206, %s207
    %p218 = scmp.eq.s32.totalorder %s26, 0
    %p219 = por %p217, %p218
    %p220 = scmp.ne.s32.totalorder %s206, %s207
    %p221 = scmp.eq.s32.totalorder %s27, 1
    %p222 = por %p220, %p221
    %p224 = scmp.ne.s32.totalorder %s207, %s223
    %p225 = scmp.eq.s32.totalorder %s27, 0
    %p226 = por %p224, %p225
    %s227 = ssub.s32 %s21, %s28
    %p228 = scmp.eq.s32.totalorder %s227, 0
    %s230 = sadd.s32 %s229, 1
    %s231 = scalar_select %p228, %s229, %s230
    %p234 = pneg %p228
    %p235 = scmp.eq.s32.totalorder %s21, 1
    %p236 = por %p234, %p235
    %p237 = scmp.ne.s32.totalorder %s229, %s232
    %p238 = scmp.eq.s32.totalorder %s21, 0
    %p239 = por %p237, %p238
    %p240 = scmp.ne.s32.totalorder %s229, %s232
    %p241 = scmp.eq.s32.totalorder %s26, 1
    %p242 = por %p240, %p241
    %p243 = scmp.ne.s32.totalorder %s232, %s233
    %p244 = scmp.eq.s32.totalorder %s26, 0
    %p245 = por %p243, %p244
    %p246 = scmp.ne.s32.totalorder %s232, %s233
    %p247 = scmp.eq.s32.totalorder %s27, 1
    %p248 = por %p246, %p247
    %p250 = scmp.ne.s32.totalorder %s233, %s249
    %p251 = scmp.eq.s32.totalorder %s27, 0
    %p252 = por %p250, %p251
    %s253 = ssub.s32 %s21, %s28
    %p254 = scmp.eq.s32.totalorder %s253, 0
    %s256 = sadd.s32 %s255, 1
    %s257 = scalar_select %p254, %s255, %s256
    %p260 = pneg %p254
    %p261 = scmp.eq.s32.totalorder %s21, 1
    %p262 = por %p260, %p261
    %p263 = scmp.ne.s32.totalorder %s255, %s258
    %p264 = scmp.eq.s32.totalorder %s21, 0
    %p265 = por %p263, %p264
    %p266 = scmp.ne.s32.totalorder %s255, %s258
    %p267 = scmp.eq.s32.totalorder %s26, 1
    %p268 = por %p266, %p267
    %p269 = scmp.ne.s32.totalorder %s258, %s259
    %p270 = scmp.eq.s32.totalorder %s26, 0
    %p271 = por %p269, %p270
    %p272 = scmp.ne.s32.totalorder %s258, %s259
    %p273 = scmp.eq.s32.totalorder %s27, 1
    %p274 = por %p272, %p273
    %p276 = scmp.ne.s32.totalorder %s259, %s275
    %p277 = scmp.eq.s32.totalorder %s27, 0
    %p278 = por %p276, %p277
    %s280 = sadd.s32 %s279, 1
    %p283 = scmp.eq.s32.totalorder %s21, 1
    %p284 = scmp.ne.s32.totalorder %s279, %s281
    %p285 = scmp.eq.s32.totalorder %s21, 0
    %p286 = por %p284, %p285
    %p287 = scmp.ne.s32.totalorder %s279, %s281
    %p288 = scmp.eq.s32.totalorder %s26, 1
    %p289 = por %p287, %p288
    %p290 = scmp.ne.s32.totalorder %s281, %s282
    %p291 = scmp.eq.s32.totalorder %s26, 0
    %p292 = por %p290, %p291
    %p293 = scmp.ne.s32.totalorder %s281, %s282
    %p294 = scmp.eq.s32.totalorder %s27, 1
    %p295 = por %p293, %p294
    %p297 = scmp.ne.s32.totalorder %s282, %s296
    %p298 = scmp.eq.s32.totalorder %s27, 0
    %p299 = por %p297, %p298
    %s301 = sadd.s32 %s300, 1
    %p304 = scmp.eq.s32.totalorder %s21, 1
    %p305 = scmp.ne.s32.totalorder %s300, %s302
    %p306 = scmp.eq.s32.totalorder %s21, 0
    %p307 = por %p305, %p306
    %p308 = scmp.ne.s32.totalorder %s300, %s302
    %p309 = scmp.eq.s32.totalorder %s26, 1
    %p310 = por %p308, %p309
    %p311 = scmp.ne.s32.totalorder %s302, %s303
    %p312 = scmp.eq.s32.totalorder %s26, 0
    %p313 = por %p311, %p312
    %p314 = scmp.ne.s32.totalorder %s302, %s303
    %p315 = scmp.eq.s32.totalorder %s27, 1
    %p316 = por %p314, %p315
    %p318 = scmp.ne.s32.totalorder %s303, %s317
    %p319 = scmp.eq.s32.totalorder %s27, 0
    %p320 = por %p318, %p319
    %s322 = sadd.s32 %s321, 1
    %p325 = scmp.eq.s32.totalorder %s21, 1
    %p326 = scmp.ne.s32.totalorder %s321, %s323
    %p327 = scmp.eq.s32.totalorder %s21, 0
    %p328 = por %p326, %p327
    %p329 = scmp.ne.s32.totalorder %s321, %s323
    %p330 = scmp.eq.s32.totalorder %s26, 1
    %p331 = por %p329, %p330
    %p332 = scmp.ne.s32.totalorder %s323, %s324
    %p333 = scmp.eq.s32.totalorder %s26, 0
    %p334 = por %p332, %p333
    %p335 = scmp.ne.s32.totalorder %s323, %s324
    %p336 = scmp.eq.s32.totalorder %s27, 1
    %p337 = por %p335, %p336
    %p339 = scmp.ne.s32.totalorder %s324, %s338
    %p340 = scmp.eq.s32.totalorder %s27, 0
    %p341 = por %p339, %p340
    %s343 = sadd.s32 %s342, 1
    %p346 = scmp.eq.s32.totalorder %s21, 1
    %p347 = scmp.ne.s32.totalorder %s342, %s344
    %p348 = scmp.eq.s32.totalorder %s21, 0
    %p349 = por %p347, %p348
    %p350 = scmp.ne.s32.totalorder %s342, %s344
    %p351 = scmp.eq.s32.totalorder %s26, 1
    %p352 = por %p350, %p351
    %p353 = scmp.ne.s32.totalorder %s344, %s345
    %p354 = scmp.eq.s32.totalorder %s26, 0
    %p355 = por %p353, %p354
    %p356 = scmp.ne.s32.totalorder %s344, %s345
    %p357 = scmp.eq.s32.totalorder %s27, 1
    %p358 = por %p356, %p357
    %p360 = scmp.ne.s32.totalorder %s345, %s359
    %p361 = scmp.eq.s32.totalorder %s27, 0
    %p362 = por %p360, %p361
    %s364 = sadd.s32 %s363, 1
    %p367 = scmp.eq.s32.totalorder %s21, 1
    %p368 = scmp.ne.s32.totalorder %s363, %s365
    %p369 = scmp.eq.s32.totalorder %s21, 0
    %p370 = por %p368, %p369
    %p371 = scmp.ne.s32.totalorder %s363, %s365
    %p372 = scmp.eq.s32.totalorder %s26, 1
    %p373 = por %p371, %p372
    %p374 = scmp.ne.s32.totalorder %s365, %s366
    %p375 = scmp.eq.s32.totalorder %s26, 0
    %p376 = por %p374, %p375
    %p377 = scmp.ne.s32.totalorder %s365, %s366
    %p378 = scmp.eq.s32.totalorder %s27, 1
    %p379 = por %p377, %p378
    %p381 = scmp.ne.s32.totalorder %s366, %s380
    %p382 = scmp.eq.s32.totalorder %s27, 0
    %p383 = por %p381, %p382
    %s384 = ssub.s32 %s21, %s28
    %p385 = scmp.eq.s32.totalorder %s384, 0
    %s387 = sadd.s32 %s386, 1
    %s388 = scalar_select %p385, %s386, %s387
    %p391 = pneg %p385
    %p392 = scmp.eq.s32.totalorder %s21, 1
    %p393 = por %p391, %p392
    %p394 = scmp.ne.s32.totalorder %s386, %s389
    %p395 = scmp.eq.s32.totalorder %s21, 0
    %p396 = por %p394, %p395
    %p397 = scmp.ne.s32.totalorder %s386, %s389
    %p398 = scmp.eq.s32.totalorder %s26, 1
    %p399 = por %p397, %p398
    %p400 = scmp.ne.s32.totalorder %s389, %s390
    %p401 = scmp.eq.s32.totalorder %s26, 0
    %p402 = por %p400, %p401
    %p403 = scmp.ne.s32.totalorder %s389, %s390
    %p404 = scmp.eq.s32.totalorder %s27, 1
    %p405 = por %p403, %p404
    %p407 = scmp.ne.s32.totalorder %s390, %s406
    %p408 = scmp.eq.s32.totalorder %s27, 0
    %p409 = por %p407, %p408
    %p410 = scmp.le.s32.totalorder 1, %s21
    %p411 = scmp.lt.s32.totalorder %s21, 3
    %p412 = pnand %p410, %p411
    %p413 = pneg %p412
    // Predicated region
    $region9: #{_lambda_.4} parent=5 // pred_check
      _
    $region10: #{_lambda_.4} parent=5 // pred_check_branch
      %415 = sbr.rel (%p412) target = $region12
    $region11: #{_lambda_.4} parent=5 // pred_region
      %s416 = ssub.s32 %s21, 1
      // Predicated region
      $region13: #{_lambda_.4} parent=11 // pred_check
        %p417 = pneg %p146
      $region14: #{_lambda_.4} parent=11 // pred_check_branch
        %419 = sbr.rel (%p417) target = $region16
      $region15: #{_lambda_.4} parent=11 // pred_region
        _
      $region16: #{_lambda_.4} parent=11 // pred_fallthru
        _
      // Predicated region
      $region17: #{_lambda_.4} parent=11 // pred_check
        %p420 = pneg %p167
      $region18: #{_lambda_.4} parent=11 // pred_check_branch
        %422 = sbr.rel (%p420) target = $region20
      $region19: #{_lambda_.4} parent=11 // pred_region
        _
      $region20: #{_lambda_.4} parent=11 // pred_fallthru
        _
      // Predicated region
      $region21: #{_lambda_.4} parent=11 // pred_check
        %p423 = pneg %p292
      $region22: #{_lambda_.4} parent=11 // pred_check_branch
        %425 = sbr.rel (%p423) target = $region24
      $region23: #{_lambda_.4} parent=11 // pred_region
        _
      $region24: #{_lambda_.4} parent=11 // pred_fallthru
        _
      // Predicated region
      $region25: #{_lambda_.4} parent=11 // pred_check
        %p426 = pneg %p313
      $region26: #{_lambda_.4} parent=11 // pred_check_branch
        %428 = sbr.rel (%p426) target = $region28
      $region27: #{_lambda_.4} parent=11 // pred_region
        _
      $region28: #{_lambda_.4} parent=11 // pred_fallthru
        _
      // Predicated region
      $region29: #{_lambda_.4} parent=11 // pred_check
        %p429 = pneg %p334
      $region30: #{_lambda_.4} parent=11 // pred_check_branch
        %431 = sbr.rel (%p429) target = $region32
      $region31: #{_lambda_.4} parent=11 // pred_region
        _
      $region32: #{_lambda_.4} parent=11 // pred_fallthru
        _
      // Predicated region
      $region33: #{_lambda_.4} parent=11 // pred_check
        %p432 = pneg %p355
      $region34: #{_lambda_.4} parent=11 // pred_check_branch
        %434 = sbr.rel (%p432) target = $region36
      $region35: #{_lambda_.4} parent=11 // pred_region
        _
      $region36: #{_lambda_.4} parent=11 // pred_fallthru
        _
      // Predicated region
      $region37: #{_lambda_.4} parent=11 // pred_check
        %p435 = pneg %p376
      $region38: #{_lambda_.4} parent=11 // pred_check_branch
        %437 = sbr.rel (%p435) target = $region40
      $region39: #{_lambda_.4} parent=11 // pred_region
        _
      $region40: #{_lambda_.4} parent=11 // pred_fallthru
        _
    $region12: #{_lambda_.4} parent=5 // pred_fallthru
      _
    %p438 = scmp.lt.s32.totalorder %s21, 2
    // Predicated region
    $region41: #{_lambda_.4} parent=5 // pred_check
      %p439 = pneg %p438
    $region42: #{_lambda_.4} parent=5 // pred_check_branch
      %441 = sbr.rel (%p439) target = $region44
    $region43: #{_lambda_.4} parent=5 // pred_region
      // Predicated region
      $region45: #{_lambda_.4} parent=43 // pred_check
        %p442 = pneg %p41
      $region46: #{_lambda_.4} parent=43 // pred_check_branch
        %444 = sbr.rel (%p442) target = $region48
      $region47: #{_lambda_.4} parent=43 // pred_region
        %p445 = scmp.lt.s32.totalorder %s21, 1
        %s446 = scalar_select %p445, %s21, 1
        %s447 = smul.addr %s446, 2
        %s448 = smul.addr %s447, 8
        %s449 = scalar_lea.vmem %s0, %s448
      $region48: #{_lambda_.4} parent=43 // pred_fallthru
        _
      // Predicated region
      $region49: #{_lambda_.4} parent=43 // pred_check
        %p450 = pneg %p67
      $region50: #{_lambda_.4} parent=43 // pred_check_branch
        %452 = sbr.rel (%p450) target = $region52
      $region51: #{_lambda_.4} parent=43 // pred_region
        %p453 = scmp.lt.s32.totalorder %s21, 1
        %s454 = scalar_select %p453, %s21, 1
        %s455 = smul.addr %s454, 2
        %s456 = smul.addr %s455, 8
        %s457 = scalar_lea.vmem %s1, %s456
      $region52: #{_lambda_.4} parent=43 // pred_fallthru
        _
      // Predicated region
      $region53: #{_lambda_.4} parent=43 // pred_check
        %p458 = pneg %p93
      $region54: #{_lambda_.4} parent=43 // pred_check_branch
        %460 = sbr.rel (%p458) target = $region56
      $region55: #{_lambda_.4} parent=43 // pred_region
        %p461 = scmp.lt.s32.totalorder %s21, 1
        %s462 = scalar_select %p461, %s21, 1
        %s463 = smul.addr %s462, 2
        %s464 = smul.addr %s463, 4
        %s465 = scalar_lea.vmem %s2, %s464
      $region56: #{_lambda_.4} parent=43 // pred_fallthru
        _
      // Predicated region
      $region57: #{_lambda_.4} parent=43 // pred_check
        %p466 = pneg %p119
      $region58: #{_lambda_.4} parent=43 // pred_check_branch
        %468 = sbr.rel (%p466) target = $region60
      $region59: #{_lambda_.4} parent=43 // pred_region
        %p469 = scmp.lt.s32.totalorder %s21, 1
        %s470 = scalar_select %p469, %s21, 1
        %s471 = smul.addr %s470, 8
        %s472 = scalar_lea.vmem %s3, %s471
      $region60: #{_lambda_.4} parent=43 // pred_fallthru
        _
      // Predicated region
      $region61: #{_lambda_.4} parent=43 // pred_check
        %p473 = pneg %p187
      $region62: #{_lambda_.4} parent=43 // pred_check_branch
        %475 = sbr.rel (%p473) target = $region64
      $region63: #{_lambda_.4} parent=43 // pred_region
        %p476 = scmp.lt.s32.totalorder %s21, 1
        %s477 = scalar_select %p476, %s21, 1
        %s478 = smul.addr %s477, 4
        %s479 = scalar_lea.vmem %s6, %s478
      $region64: #{_lambda_.4} parent=43 // pred_fallthru
        _
      // Predicated region
      $region65: #{_lambda_.4} parent=43 // pred_check
        %p480 = pneg %p213
      $region66: #{_lambda_.4} parent=43 // pred_check_branch
        %482 = sbr.rel (%p480) target = $region68
      $region67: #{_lambda_.4} parent=43 // pred_region
        %p483 = scmp.lt.s32.totalorder %s21, 1
        %s484 = scalar_select %p483, %s21, 1
        %s485 = smul.addr %s484, 8
        %s486 = scalar_lea.vmem %s7, %s485
      $region68: #{_lambda_.4} parent=43 // pred_fallthru
        _
      // Predicated region
      $region69: #{_lambda_.4} parent=43 // pred_check
        %p487 = pneg %p239
      $region70: #{_lambda_.4} parent=43 // pred_check_branch
        %489 = sbr.rel (%p487) target = $region72
      $region71: #{_lambda_.4} parent=43 // pred_region
        %p490 = scmp.lt.s32.totalorder %s21, 1
        %s491 = scalar_select %p490, %s21, 1
        %s492 = smul.addr %s491, 4
        %s493 = scalar_lea.vmem %s8, %s492
      $region72: #{_lambda_.4} parent=43 // pred_fallthru
        _
      // Predicated region
      $region73: #{_lambda_.4} parent=43 // pred_check
        %p494 = pneg %p265
      $region74: #{_lambda_.4} parent=43 // pred_check_branch
        %496 = sbr.rel (%p494) target = $region76
      $region75: #{_lambda_.4} parent=43 // pred_region
        %p497 = scmp.lt.s32.totalorder %s21, 1
        %s498 = scalar_select %p497, %s21, 1
        %s499 = smul.addr %s498, 8
        %s500 = scalar_lea.vmem %s9, %s499
      $region76: #{_lambda_.4} parent=43 // pred_fallthru
        _
    $region44: #{_lambda_.4} parent=5 // pred_fallthru
      _
    %p501 = scmp.le.s32.totalorder 1, %s21
    %p502 = scmp.lt.s32.totalorder %s21, 3
    %p503 = pnand %p501, %p502
    %p504 = pneg %p503
    // Predicated region
    $region77: #{_lambda_.4} parent=5 // pred_check
      _
    $region78: #{_lambda_.4} parent=5 // pred_check_branch
      %506 = sbr.rel (%p503) target = $region80
    $region79: #{_lambda_.4} parent=5 // pred_region
      %s507 = ssub.s32 %s21, 1
      %p508 = scmp.lt.s32.totalorder %s26, 1
      %s509 = scalar_select %p508, %s26, 1
      %s510 = smul.addr %s509, 2
      %s511 = smul.addr %s510, 8
      %s512 = scalar_lea.vmem %s0, %s511
      %p513 = pneg %p47
      %p514 = pneg %p44
      %p515 = scmp.lt.s32.totalorder %s26, 1
      %s516 = scalar_select %p515, %s26, 1
      %s517 = smul.addr %s516, 2
      %s518 = smul.addr %s517, 8
      %s519 = scalar_lea.vmem %s1, %s518
      %p520 = pneg %p73
      %p521 = pneg %p70
      %p522 = scmp.lt.s32.totalorder %s26, 1
      %s523 = scalar_select %p522, %s26, 1
      %s524 = smul.addr %s523, 2
      %s525 = smul.addr %s524, 4
      %s526 = scalar_lea.vmem %s2, %s525
      %p527 = pneg %p99
      %p528 = pneg %p96
      %p529 = scmp.lt.s32.totalorder %s26, 1
      %s530 = scalar_select %p529, %s26, 1
      %s531 = smul.addr %s530, 8
      %s532 = scalar_lea.vmem %s3, %s531
      %p533 = pneg %p125
      %p534 = pneg %p122
      %p535 = pneg %p146
      %p536 = pneg %p143
      %p537 = pneg %p167
      %p538 = pneg %p164
      %p539 = scmp.lt.s32.totalorder %s26, 1
      %s540 = scalar_select %p539, %s26, 1
      %s541 = smul.addr %s540, 4
      %s542 = scalar_lea.vmem %s6, %s541
      %p543 = pneg %p193
      %p544 = pneg %p190
      %p545 = scmp.lt.s32.totalorder %s26, 1
      %s546 = scalar_select %p545, %s26, 1
      %s547 = smul.addr %s546, 8
      %s548 = scalar_lea.vmem %s7, %s547
      %p549 = pneg %p219
      %p550 = pneg %p216
      %p551 = scmp.lt.s32.totalorder %s26, 1
      %s552 = scalar_select %p551, %s26, 1
      %s553 = smul.addr %s552, 4
      %s554 = scalar_lea.vmem %s8, %s553
      %p555 = pneg %p245
      %p556 = pneg %p242
      %p557 = scmp.lt.s32.totalorder %s26, 1
      %s558 = scalar_select %p557, %s26, 1
      %s559 = smul.addr %s558, 8
      %s560 = scalar_lea.vmem %s9, %s559
      %p561 = pneg %p271
      %p562 = pneg %p268
      %p563 = pneg %p292
      %p564 = pneg %p289
      %p565 = pneg %p313
      %p566 = pneg %p310
      %p567 = pneg %p334
      %p568 = pneg %p331
      %p569 = pneg %p355
      %p570 = pneg %p352
      %p571 = pneg %p376
      %p572 = pneg %p373
      %p573 = pneg %p402
      %p574 = pneg %p399
      %p575 = scmp.lt.s32.totalorder %s26, 1
      %s576 = scalar_select %p575, %s26, 1
      %s577 = smul.addr %s576, 2
      %s578 = smul.addr %s577, 2
      %s579 = scalar_lea.vmem %s15, %s578
      %p580 = scmp.lt.s32.totalorder %s26, 1
      %s581 = scalar_select %p580, %s26, 1
      %s582 = smul.addr %s581, 2
      %s583 = smul.addr %s582, 8
      %s584 = scalar_lea.vmem %s0, %s583
      %p585 = scmp.lt.s32.totalorder %s26, 1
      %s586 = scalar_select %p585, %s26, 1
      %s587 = smul.addr %s586, 2
      %s588 = smul.addr %s587, 8
      %s589 = scalar_lea.vmem %s1, %s588
      %p590 = scmp.lt.s32.totalorder %s26, 1
      %s591 = scalar_select %p590, %s26, 1
      %s592 = smul.addr %s591, 2
      %s593 = smul.addr %s592, 4
      %s594 = scalar_lea.vmem %s2, %s593
      %p595 = scmp.lt.s32.totalorder %s26, 1
      %s596 = scalar_select %p595, %s26, 1
      %s597 = smul.addr %s596, 8
      %s598 = scalar_lea.vmem %s3, %s597
      %p599 = scmp.lt.s32.totalorder %s26, 1
      %s600 = scalar_select %p599, %s26, 1
      %s601 = smul.addr %s600, 4
      %s602 = scalar_lea.vmem %s6, %s601
      %p603 = scmp.lt.s32.totalorder %s26, 1
      %s604 = scalar_select %p603, %s26, 1
      %s605 = smul.addr %s604, 8
      %s606 = scalar_lea.vmem %s7, %s605
      %p607 = scmp.lt.s32.totalorder %s26, 1
      %s608 = scalar_select %p607, %s26, 1
      %s609 = smul.addr %s608, 4
      %s610 = scalar_lea.vmem %s8, %s609
      %p611 = scmp.lt.s32.totalorder %s26, 1
      %s612 = scalar_select %p611, %s26, 1
      %s613 = smul.addr %s612, 8
      %s614 = scalar_lea.vmem %s9, %s613
      %p615 = scmp.lt.s32.totalorder %s26, 1
      %s616 = scalar_select %p615, %s26, 1
      %s617 = smul.addr %s616, 2
      %s618 = smul.addr %s617, 2
      %s619 = scalar_lea.vmem %s15, %s618
      %v621 = vlaneseq
      %v622 = vand.u32 %v621, 127
      %v623 = vadd.s32 %v622, 128
      %vm624 = vcmp.lt.s32.totalorder %v622, 0
      %v625 = vsub.s32 0, %v622
      %v626 = vsel %vm624, %v625, %v622
      %v627 = vshrl.u32 %v626, 4
      %v628 = vand.u32 %v626, 15
      %v629 = vsub.s32 0, %v628
      %v630 = vsel %vm624, %v629, %v628
      %vm631 = vcmp.lt.s32.totalorder %v623, 0
      %v632 = vsub.s32 0, %v623
      %v633 = vsel %vm631, %v632, %v623
      %v634 = vshrl.u32 %v633, 4
      %v635 = vand.u32 %v633, 15
      %v636 = vsub.s32 0, %v635
      %v637 = vsel %vm631, %v636, %v635
      %vm638 = vcmp.ne.s32.totalorder %v630, 0
      %vm639 = vcmp.ne.s32.totalorder %v637, 0
      %vm640 = vcmp.lt.s32.totalorder %v630, 0
      %vm641 = vcmp.lt.s32.totalorder %v637, 0
      %vm642 = vmand %vm640, %vm638
      %vm643 = vmand %vm641, %vm639
      %v644 = vadd.s32 %v630, 16
      %v645 = vadd.s32 %v637, 16
      %v646 = vsel %vm642, %v644, %v630
      %v647 = vsel %vm643, %v645, %v637
      %648 = vst [vmem:[#allocation2] sm:$0xff] 0.0
      %649 = vst [vmem:[#allocation2 + $0x20] sm:$0xff] 0.0
      %650 = vst [vmem:[#allocation2 + $0x18] sm:$0xff] 0.0
      %651 = vst [vmem:[#allocation2 + $0x38] sm:$0xff] 0.0
      %v652 = vld [vmem:[%s584] sm:$0xff]
      %v653 = vld [vmem:[%s584 + $0x8] sm:$0xff]
      %654 = vst [vmem:[#allocation2 + $0x8] sm:$0xff] %v652
      %655 = vst [vmem:[#allocation2 + $0x10] sm:$0xff] %v653
      %v656 = vld [vmem:[%s589] sm:$0xff]
      %v657 = vld [vmem:[%s589 + $0x8] sm:$0xff]
      %658 = vst [vmem:[#allocation2 + $0x28] sm:$0xff] %v656
      %659 = vst [vmem:[#allocation2 + $0x30] sm:$0xff] %v657
      %v660 = vld [vmem:[%s594] sm:$0xff]
      %v661 = vld [vmem:[%s598] sm:$0xff]
      %v662 = vld [vmem:[#allocation2] sm:$0xff]
      %v663 = vld [vmem:[#allocation2 + $0x8] sm:$0xff]
      %v664 = vld [vmem:[#allocation2 + $0x10] sm:$0xff]
      %v665 = vld [vmem:[#allocation2 + $0x20] sm:$0xff]
      %v666 = vld [vmem:[#allocation2 + $0x28] sm:$0xff]
      %v667 = vld [vmem:[#allocation2 + $0x30] sm:$0xff]
      %v668 = vadd.s32 %v646, 4294967295
      %v669 = vadd.s32 %v647, 4294967295
      %vm670 = vcmp.ge.s32.totalorder %v668, 0
      %vm671 = vcmp.ge.s32.totalorder %v669, 0
      %vm672 = vcmp.lt.s32.totalorder %v668, 16
      %vm673 = vcmp.lt.s32.totalorder %v669, 16
      %vm674 = vmand %vm670, %vm672
      %vm675 = vmand %vm671, %vm673
      %v676 = vsel %vm674, 1, 0
      %v677 = vsel %vm675, 1, 0
      %vm678 = vcmp.eq.s32.totalorder %v676, 1
      %vm679 = vcmp.eq.s32.totalorder %v677, 1
      %686 = vrot.lane.b32.xlu0 %v662, 17
      %v687 = vpop.permute.xlu0 %686
      %688 = vrot.lane.b32.xlu0 %v663, 17
      %v689 = vpop.permute.xlu0 %688
      %690 = vrot.lane.b32.xlu0 %v664, 17
      %v691 = vpop.permute.xlu0 %690
      %692 = vrot.lane.b32.xlu0 %v665, 17
      %v693 = vpop.permute.xlu0 %692
      %694 = vrot.lane.b32.xlu0 %v666, 17
      %v695 = vpop.permute.xlu0 %694
      %696 = vrot.lane.b32.xlu0 %v667, 17
      %v697 = vpop.permute.xlu0 %696
      %vm698 = vcmask 138240
      %v699 = vsel %vm698, %v687, %v689
      %v700 = vsel %vm698, %v689, %v691
      %v701 = vsel %vm698, %v693, %v695
      %v702 = vsel %vm698, %v695, %v697
      %v707 = vsel %vm678, %v699, 0.0
      %v708 = vsel %vm679, %v700, 0.0
      %v709 = vsel %vm678, %v701, 0.0
      %v710 = vsel %vm679, %v702, 0.0
      %v711 = vadd.s32 %v646, 1
      %v712 = vadd.s32 %v647, 1
      %vm713 = vcmp.ge.s32.totalorder %v711, 0
      %vm714 = vcmp.ge.s32.totalorder %v712, 0
      %vm715 = vcmp.lt.s32.totalorder %v711, 16
      %vm716 = vcmp.lt.s32.totalorder %v712, 16
      %vm717 = vmand %vm713, %vm715
      %vm718 = vmand %vm714, %vm716
      %v719 = vsel %vm717, 1, 0
      %v720 = vsel %vm718, 1, 0
      %vm721 = vcmp.eq.s32.totalorder %v719, 1
      %vm722 = vcmp.eq.s32.totalorder %v720, 1
      %723 = vrot.lane.b32.xlu0 %v662, 15
      %v724 = vpop.permute.xlu0 %723
      %725 = vrot.lane.b32.xlu0 %v663, 15
      %v726 = vpop.permute.xlu0 %725
      %727 = vrot.lane.b32.xlu0 %v664, 15
      %v728 = vpop.permute.xlu0 %727
      %729 = vrot.lane.b32.xlu0 %v665, 15
      %v730 = vpop.permute.xlu0 %729
      %731 = vrot.lane.b32.xlu0 %v666, 15
      %v732 = vpop.permute.xlu0 %731
      %733 = vrot.lane.b32.xlu0 %v667, 15
      %v734 = vpop.permute.xlu0 %733
      %vm735 = vcmask 121856
      %v736 = vsel %vm735, %v724, %v726
      %v737 = vsel %vm735, %v726, %v728
      %v738 = vsel %vm735, %v730, %v732
      %v739 = vsel %vm735, %v732, %v734
      %v744 = vsel %vm721, %v736, 0.0
      %v745 = vsel %vm722, %v737, 0.0
      %v746 = vsel %vm721, %v738, 0.0
      %v747 = vsel %vm722, %v739, 0.0
      %748 = vrot.lane.b32.xlu0 %v662, 1
      %v749 = vpop.permute.xlu0 %748
      %750 = vrot.lane.b32.xlu0 %v663, 1
      %v751 = vpop.permute.xlu0 %750
      %752 = vrot.lane.b32.xlu0 %v664, 1
      %v753 = vpop.permute.xlu0 %752
      %754 = vrot.lane.b32.xlu0 %v665, 1
      %v755 = vpop.permute.xlu0 %754
      %756 = vrot.lane.b32.xlu0 %v666, 1
      %v757 = vpop.permute.xlu0 %756
      %758 = vrot.lane.b32.xlu0 %v667, 1
      %v759 = vpop.permute.xlu0 %758
      %vm760 = vcmask 7168
      %v761 = vsel %vm760, %v749, %v751
      %v762 = vsel %vm760, %v751, %v753
      %v763 = vsel %vm760, %v755, %v757
      %v764 = vsel %vm760, %v757, %v759
      %v769 = vsel %vm678, %v761, 0.0
      %v770 = vsel %vm679, %v762, 0.0
      %v771 = vsel %vm678, %v763, 0.0
      %v772 = vsel %vm679, %v764, 0.0
      %v773 = vld [vmem:[#allocation2 + $0x8] sm:$0xff]
      %v774 = vld [vmem:[#allocation2 + $0x10] sm:$0xff]
      %v775 = vld [vmem:[#allocation2 + $0x18] sm:$0xff]
      %v776 = vld [vmem:[#allocation2 + $0x28] sm:$0xff]
      %v777 = vld [vmem:[#allocation2 + $0x30] sm:$0xff]
      %v778 = vld [vmem:[#allocation2 + $0x38] sm:$0xff]
      %785 = vrot.lane.b32.xlu0 %v773, 127
      %v786 = vpop.permute.xlu0 %785
      %787 = vrot.lane.b32.xlu0 %v774, 127
      %v788 = vpop.permute.xlu0 %787
      %789 = vrot.lane.b32.xlu0 %v775, 127
      %v790 = vpop.permute.xlu0 %789
      %791 = vrot.lane.b32.xlu0 %v776, 127
      %v792 = vpop.permute.xlu0 %791
      %793 = vrot.lane.b32.xlu0 %v777, 127
      %v794 = vpop.permute.xlu0 %793
      %795 = vrot.lane.b32.xlu0 %v778, 127
      %v796 = vpop.permute.xlu0 %795
      %vm797 = vcmask 1039360
      %v798 = vsel %vm797, %v786, %v788
      %v799 = vsel %vm797, %v788, %v790
      %v800 = vsel %vm797, %v792, %v794
      %v801 = vsel %vm797, %v794, %v796
      %v806 = vsel %vm721, %v798, 0.0
      %v807 = vsel %vm722, %v799, 0.0
      %v808 = vsel %vm721, %v800, 0.0
      %v809 = vsel %vm722, %v801, 0.0
      %810 = vrot.lane.b32.xlu0 %v773, 113
      %v811 = vpop.permute.xlu0 %810
      %812 = vrot.lane.b32.xlu0 %v774, 113
      %v813 = vpop.permute.xlu0 %812
      %814 = vrot.lane.b32.xlu0 %v775, 113
      %v815 = vpop.permute.xlu0 %814
      %816 = vrot.lane.b32.xlu0 %v776, 113
      %v817 = vpop.permute.xlu0 %816
      %818 = vrot.lane.b32.xlu0 %v777, 113
      %v819 = vpop.permute.xlu0 %818
      %820 = vrot.lane.b32.xlu0 %v778, 113
      %v821 = vpop.permute.xlu0 %820
      %vm822 = vcmask 924672
      %v823 = vsel %vm822, %v811, %v813
      %v824 = vsel %vm822, %v813, %v815
      %v825 = vsel %vm822, %v817, %v819
      %v826 = vsel %vm822, %v819, %v821
      %v831 = vsel %vm678, %v823, 0.0
      %v832 = vsel %vm679, %v824, 0.0
      %v833 = vsel %vm678, %v825, 0.0
      %v834 = vsel %vm679, %v826, 0.0
      %835 = vrot.lane.b32.xlu0 %v773, 111
      %v836 = vpop.permute.xlu0 %835
      %837 = vrot.lane.b32.xlu0 %v774, 111
      %v838 = vpop.permute.xlu0 %837
      %839 = vrot.lane.b32.xlu0 %v775, 111
      %v840 = vpop.permute.xlu0 %839
      %841 = vrot.lane.b32.xlu0 %v776, 111
      %v842 = vpop.permute.xlu0 %841
      %843 = vrot.lane.b32.xlu0 %v777, 111
      %v844 = vpop.permute.xlu0 %843
      %845 = vrot.lane.b32.xlu0 %v778, 111
      %v846 = vpop.permute.xlu0 %845
      %vm847 = vcmask 908288
      %v848 = vsel %vm847, %v836, %v838
      %v849 = vsel %vm847, %v838, %v840
      %v850 = vsel %vm847, %v842, %v844
      %v851 = vsel %vm847, %v844, %v846
      %v856 = vsel %vm721, %v848, 0.0
      %v857 = vsel %vm722, %v849, 0.0
      %v858 = vsel %vm721, %v850, 0.0
      %v859 = vsel %vm722, %v851, 0.0
      %860 = vrot.lane.b32.xlu0 %v662, 16
      %v861 = vpop.permute.xlu0 %860
      %862 = vrot.lane.b32.xlu0 %v663, 16
      %v863 = vpop.permute.xlu0 %862
      %864 = vrot.lane.b32.xlu0 %v664, 16
      %v865 = vpop.permute.xlu0 %864
      %866 = vrot.lane.b32.xlu0 %v665, 16
      %v867 = vpop.permute.xlu0 %866
      %868 = vrot.lane.b32.xlu0 %v666, 16
      %v869 = vpop.permute.xlu0 %868
      %870 = vrot.lane.b32.xlu0 %v667, 16
      %v871 = vpop.permute.xlu0 %870
      %vm872 = vcmask 130048
      %v873 = vsel %vm872, %v861, %v863
      %v874 = vsel %vm872, %v863, %v865
      %v875 = vsel %vm872, %v867, %v869
      %v876 = vsel %vm872, %v869, %v871
      %881 = vrot.lane.b32.xlu0 %v773, 112
      %v882 = vpop.permute.xlu0 %881
      %883 = vrot.lane.b32.xlu0 %v774, 112
      %v884 = vpop.permute.xlu0 %883
      %885 = vrot.lane.b32.xlu0 %v775, 112
      %v886 = vpop.permute.xlu0 %885
      %887 = vrot.lane.b32.xlu0 %v776, 112
      %v888 = vpop.permute.xlu0 %887
      %889 = vrot.lane.b32.xlu0 %v777, 112
      %v890 = vpop.permute.xlu0 %889
      %891 = vrot.lane.b32.xlu0 %v778, 112
      %v892 = vpop.permute.xlu0 %891
      %vm893 = vcmask 916480
      %v894 = vsel %vm893, %v882, %v884
      %v895 = vsel %vm893, %v884, %v886
      %v896 = vsel %vm893, %v888, %v890
      %v897 = vsel %vm893, %v890, %v892
      %v902 = vpack.c.bf16 %v709, %v707
      %v903 = vpack.c.bf16 %v710, %v708
      %v904 = vpack.c.bf16 %v875, %v873
      %v905 = vpack.c.bf16 %v876, %v874
      %v906 = vpack.c.bf16 %v746, %v744
      %v907 = vpack.c.bf16 %v747, %v745
      %v908 = vpack.c.bf16 %v771, %v769
      %v909 = vpack.c.bf16 %v772, %v770
      %v910 = vpack.c.bf16 %v666, %v663
      %v911 = vpack.c.bf16 %v667, %v664
      %v912 = vpack.c.bf16 %v808, %v806
      %v913 = vpack.c.bf16 %v809, %v807
      %v914 = vpack.c.bf16 %v833, %v831
      %v915 = vpack.c.bf16 %v834, %v832
      %v916 = vpack.c.bf16 %v896, %v894
      %v917 = vpack.c.bf16 %v897, %v895
      %v918 = vpack.c.bf16 %v858, %v856
      %v919 = vpack.c.bf16 %v859, %v857
      %921 = vset.pattern.permute.xlu0 0
      %922 = vperm.xlu0 %921, %v661
      %v923 = vpop.permute.xlu0 %922
      %v926 = vunpack.c.l.b16 %v660
      %v927 = vunpack.c.h.b16 %v660
      %v928 = vpack.c.b16 %v926, %v926
      %v929 = vpack.c.b16 %v927, %v927
      %v932 = vsel %vm872, %v929, 0
      %934 = vmatprep.subr.bf16.mxu0 %v903
      %935 = vmatpush1.bf16.msra.mxu0 %v902
      %936 = vmatprep.subr.bf16.mxu0 %v905
      %937 = vmatpush1.bf16.msra.mxu0 %v904
      %938 = vmatprep.subr.bf16.mxu0 %v907
      %939 = vmatpush1.bf16.msra.mxu0 %v906
      %940 = vmatprep.subr.bf16.mxu0 %v909
      %941 = vmatpush1.bf16.msra.mxu0 %v908
      %942 = vmatprep.subr.bf16.mxu0 %v911
      %943 = vmatpush1.bf16.msra.mxu0 %v910
      %944 = vmatprep.subr.bf16.mxu0 %v913
      %945 = vmatpush1.bf16.msra.mxu0 %v912
      %946 = vmatprep.subr.bf16.mxu0 %v915
      %947 = vmatpush1.bf16.msra.mxu0 %v914
      %948 = vmatprep.subr.bf16.mxu0 %v917
      %949 = vmatpush1.bf16.msra.mxu0 %v916
      %950 = vmatprep.subr.bf16.mxu0 %v919
      %951 = vmatpush1.bf16.msra.mxu0 %v918
      %952 = vmatprep.subr.bf16.mxu0 0
      %953 = vmatpush1.bf16.msra.mxu0 0
      %954 = vmatprep.subr.bf16.mxu0 0
      %955 = vmatpush1.bf16.msra.mxu0 0
      %956 = vmatprep.subr.bf16.mxu0 0
      %957 = vmatpush1.bf16.msra.mxu0 0
      %958 = vmatprep.subr.bf16.mxu0 0
      %959 = vmatpush1.bf16.msra.mxu0 0
      %960 = vmatprep.subr.bf16.mxu0 0
      %961 = vmatpush1.bf16.msra.mxu0 0
      %962 = vmatprep.subr.bf16.mxu0 0
      %963 = vmatpush1.bf16.msra.mxu0 0
      %964 = vmatprep.subr.bf16.mxu0 0
      %965 = vmatpush1.bf16.msra.mxu0 0
      %966 = vmatprep.mubr.bf16.mxu0 %v932
      %967 = vmatmul.mubr.bf16.gmra.mrb[0].mxu0 %v928
      %v968 = vpop.f32.mrb[0].mxu0
      %v969 = vadd.f32 %v923, %v968
      %v970 = vpop.f32.mrb[0].mxu0
      %v971 = vadd.f32 %v923, %v970
      %v972 = vpop.f32.mrb[0].mxu0
      %v973 = vpop.f32.mrb[0].mxu0
      %974 = vdwg.mxu0
      %v975 = vld [vmem:[%s4] sm:$0xff]
      %v976 = vld [vmem:[%s5] sm:$0xff]
      %v977 = vrot.slane %v969, 4
      %v978 = vadd.f32 %v969, %v977
      %v979 = vrot.slane %v978, 2
      %v980 = vadd.f32 %v978, %v979
      %v981 = vrot.slane %v980, 1
      %v982 = vadd.f32 %v980, %v981
      %v983 = vrot.slane %v971, 4
      %v984 = vadd.f32 %v971, %v983
      %v985 = vrot.slane %v984, 2
      %v986 = vadd.f32 %v984, %v985
      %v987 = vrot.slane %v986, 1
      %v988 = vadd.f32 %v986, %v987
      %v989 = vrcp.pop 8.0
      %v990 = vmul.f32 %v982, %v989
      %v991 = vmul.f32 %v988, %v989
      %v992 = vsub.f32 %v969, %v990
      %v993 = vsub.f32 %v971, %v991
      %v994 = vmul.f32 %v992, %v992
      %v995 = vmul.f32 %v993, %v993
      %v996 = vrot.slane %v994, 4
      %v997 = vadd.f32 %v994, %v996
      %v998 = vrot.slane %v997, 2
      %v999 = vadd.f32 %v997, %v998
      %v1000 = vrot.slane %v999, 1
      %v1001 = vadd.f32 %v999, %v1000
      %v1002 = vrot.slane %v995, 4
      %v1003 = vadd.f32 %v995, %v1002
      %v1004 = vrot.slane %v1003, 2
      %v1005 = vadd.f32 %v1003, %v1004
      %v1006 = vrot.slane %v1005, 1
      %v1007 = vadd.f32 %v1005, %v1006
      %v1008 = vmul.f32 %v1001, %v989
      %v1009 = vmul.f32 %v1007, %v989
      %v1010 = vadd.f32 %v1008, 1e-06
      %v1011 = vadd.f32 %v1009, 1e-06
      %v1012 = vrsqrt.pop %v1010
      %v1013 = vrsqrt.pop %v1011
      %v1014 = vmul.f32 %v992, %v1012
      %v1015 = vmul.f32 %v993, %v1013
      %1017 = vset.pattern.permute.xlu0 0
      %1018 = vperm.xlu0 %1017, %v975
      %v1019 = vpop.permute.xlu0 %1018
      %v1021 = vmul.f32 %v1014, %v1019
      %v1022 = vmul.f32 %v1015, %v1019
      %1024 = vset.pattern.permute.xlu0 0
      %1025 = vperm.xlu0 %1024, %v976
      %v1026 = vpop.permute.xlu0 %1025
      %v1028 = vadd.f32 %v1021, %v1026
      %v1029 = vadd.f32 %v1022, %v1026
      %v1030 = vld [vmem:[%s602] sm:$0xf]
      %v1031 = vld [vmem:[%s606] sm:$0xff]
      %1032 = vst [vmem:[#allocation2 + $0x8] sm:$0xff] %v1028
      %1033 = vst [vmem:[#allocation2 + $0x10] sm:$0xff] %v1029
      %v1034 = vld [vmem:[#allocation2] sm:$0xff]
      %v1035 = vld [vmem:[#allocation2 + $0x8] sm:$0xff]
      %v1036 = vld [vmem:[#allocation2 + $0x10] sm:$0xff]
      %1040 = vrot.lane.b32.xlu0 %v1034, 17
      %v1041 = vpop.permute.xlu0 %1040
      %1042 = vrot.lane.b32.xlu0 %v1035, 17
      %v1043 = vpop.permute.xlu0 %1042
      %1044 = vrot.lane.b32.xlu0 %v1036, 17
      %v1045 = vpop.permute.xlu0 %1044
      %v1046 = vsel %vm698, %v1041, %v1043
      %v1047 = vsel %vm698, %v1043, %v1045
      %v1050 = vsel %vm678, %v1046, 0.0
      %v1051 = vsel %vm679, %v1047, 0.0
      %1052 = vrot.lane.b32.xlu0 %v1034, 15
      %v1053 = vpop.permute.xlu0 %1052
      %1054 = vrot.lane.b32.xlu0 %v1035, 15
      %v1055 = vpop.permute.xlu0 %1054
      %1056 = vrot.lane.b32.xlu0 %v1036, 15
      %v1057 = vpop.permute.xlu0 %1056
      %v1058 = vsel %vm735, %v1053, %v1055
      %v1059 = vsel %vm735, %v1055, %v1057
      %v1062 = vsel %vm721, %v1058, 0.0
      %v1063 = vsel %vm722, %v1059, 0.0
      %1064 = vrot.lane.b32.xlu0 %v1034, 1
      %v1065 = vpop.permute.xlu0 %1064
      %1066 = vrot.lane.b32.xlu0 %v1035, 1
      %v1067 = vpop.permute.xlu0 %1066
      %1068 = vrot.lane.b32.xlu0 %v1036, 1
      %v1069 = vpop.permute.xlu0 %1068
      %v1070 = vsel %vm760, %v1065, %v1067
      %v1071 = vsel %vm760, %v1067, %v1069
      %v1074 = vsel %vm678, %v1070, 0.0
      %v1075 = vsel %vm679, %v1071, 0.0
      %v1076 = vld [vmem:[#allocation2 + $0x18] sm:$0xff]
      %1078 = vrot.lane.b32.xlu0 %v1035, 127
      %v1079 = vpop.permute.xlu0 %1078
      %1080 = vrot.lane.b32.xlu0 %v1036, 127
      %v1081 = vpop.permute.xlu0 %1080
      %1082 = vrot.lane.b32.xlu0 %v1076, 127
      %v1083 = vpop.permute.xlu0 %1082
      %v1084 = vsel %vm797, %v1079, %v1081
      %v1085 = vsel %vm797, %v1081, %v1083
      %v1088 = vsel %vm721, %v1084, 0.0
      %v1089 = vsel %vm722, %v1085, 0.0
      %1090 = vrot.lane.b32.xlu0 %v1035, 113
      %v1091 = vpop.permute.xlu0 %1090
      %1092 = vrot.lane.b32.xlu0 %v1036, 113
      %v1093 = vpop.permute.xlu0 %1092
      %1094 = vrot.lane.b32.xlu0 %v1076, 113
      %v1095 = vpop.permute.xlu0 %1094
      %v1096 = vsel %vm822, %v1091, %v1093
      %v1097 = vsel %vm822, %v1093, %v1095
      %v1100 = vsel %vm678, %v1096, 0.0
      %v1101 = vsel %vm679, %v1097, 0.0
      %1102 = vrot.lane.b32.xlu0 %v1035, 111
      %v1103 = vpop.permute.xlu0 %1102
      %1104 = vrot.lane.b32.xlu0 %v1036, 111
      %v1105 = vpop.permute.xlu0 %1104
      %1106 = vrot.lane.b32.xlu0 %v1076, 111
      %v1107 = vpop.permute.xlu0 %1106
      %v1108 = vsel %vm847, %v1103, %v1105
      %v1109 = vsel %vm847, %v1105, %v1107
      %v1112 = vsel %vm721, %v1108, 0.0
      %v1113 = vsel %vm722, %v1109, 0.0
      %1114 = vrot.lane.b32.xlu0 %v1034, 16
      %v1115 = vpop.permute.xlu0 %1114
      %1116 = vrot.lane.b32.xlu0 %v1035, 16
      %v1117 = vpop.permute.xlu0 %1116
      %1118 = vrot.lane.b32.xlu0 %v1036, 16
      %v1119 = vpop.permute.xlu0 %1118
      %v1120 = vsel %vm872, %v1115, %v1117
      %v1121 = vsel %vm872, %v1117, %v1119
      %1124 = vrot.lane.b32.xlu0 %v1035, 112
      %v1125 = vpop.permute.xlu0 %1124
      %1126 = vrot.lane.b32.xlu0 %v1036, 112
      %v1127 = vpop.permute.xlu0 %1126
      %1128 = vrot.lane.b32.xlu0 %v1076, 112
      %v1129 = vpop.permute.xlu0 %1128
      %v1130 = vsel %vm893, %v1125, %v1127
      %v1131 = vsel %vm893, %v1127, %v1129
      %v1134 = vpack.c.bf16 %v1120, %v1050
      %v1135 = vpack.c.bf16 %v1121, %v1051
      %v1136 = vpack.c.bf16 %v1074, %v1062
      %v1137 = vpack.c.bf16 %v1075, %v1063
      %v1138 = vpack.c.bf16 %v1088, %v1035
      %v1139 = vpack.c.bf16 %v1089, %v1036
      %v1140 = vpack.c.bf16 %v1130, %v1100
      %v1141 = vpack.c.bf16 %v1131, %v1101
      %v1142 = vpack.c.bf16 %v1112, %v1112
      %v1143 = vpack.c.bf16 %v1113, %v1113
      %1145 = vset.pattern.permute.xlu0 0
      %1146 = vperm.xlu0 %1145, %v1031
      %v1147 = vpop.permute.xlu0 %1146
      %vm1149 = vcmask 588800
      %v1151 = vsel %vm1149, %v1030, 0
      %vm1153 = vcmask 1043456
      %v1155 = vsel %vm1153, %v1142, 0
      %v1158 = vsel %vm1153, %v1143, 0
      %1160 = vmatprep.subr.bf16.mxu0 %v1135
      %1161 = vmatpush1.bf16.msra.mxu0 %v1134
      %1162 = vmatprep.subr.bf16.mxu0 %v1137
      %1163 = vmatpush1.bf16.msra.mxu0 %v1136
      %1164 = vmatprep.subr.bf16.mxu0 %v1139
      %1165 = vmatpush1.bf16.msra.mxu0 %v1138
      %1166 = vmatprep.subr.bf16.mxu0 %v1141
      %1167 = vmatpush1.bf16.msra.mxu0 %v1140
      %1168 = vmatprep.subr.bf16.mxu0 %v1158
      %1169 = vmatpush1.bf16.msra.mxu0 %v1155
      %1170 = vmatprep.subr.bf16.mxu0 0
      %1171 = vmatpush1.bf16.msra.mxu0 0
      %1172 = vmatprep.subr.bf16.mxu0 0
      %1173 = vmatpush1.bf16.msra.mxu0 0
      %1174 = vmatprep.subr.bf16.mxu0 0
      %1175 = vmatpush1.bf16.msra.mxu0 0
      %1176 = vmatprep.subr.bf16.mxu0 0
      %1177 = vmatpush1.bf16.msra.mxu0 0
      %1178 = vmatprep.subr.bf16.mxu0 0
      %1179 = vmatpush1.bf16.msra.mxu0 0
      %1180 = vmatprep.subr.bf16.mxu0 0
      %1181 = vmatpush1.bf16.msra.mxu0 0
      %1182 = vmatprep.subr.bf16.mxu0 0
      %1183 = vmatpush1.bf16.msra.mxu0 0
      %1184 = vmatprep.subr.bf16.mxu0 0
      %1185 = vmatpush1.bf16.msra.mxu0 0
      %1186 = vmatprep.subr.bf16.mxu0 0
      %1187 = vmatpush1.bf16.msra.mxu0 0
      %1188 = vmatprep.subr.bf16.mxu0 0
      %1189 = vmatpush1.bf16.msra.mxu0 0
      %1190 = vmatprep.subr.bf16.mxu0 0
      %1191 = vmatpush1.bf16.msra.mxu0 0
      %1192 = vmatprep.mubr.bf16.mxu0 0
      %1193 = vmatmul.mubr.bf16.gmra.mrb[0].mxu0 %v1151
      %v1194 = vpop.f32.mrb[0].mxu0
      %v1195 = vadd.f32 %v1147, %v1194
      %v1196 = vpop.f32.mrb[0].mxu0
      %v1197 = vadd.f32 %v1147, %v1196
      %v1198 = vpop.f32.mrb[0].mxu0
      %v1199 = vpop.f32.mrb[0].mxu0
      %1200 = vdwg.mxu0
      %vm1201 = vcmp.ge.f32.partialorder %v1195, 0.0
      %vm1202 = vcmp.ge.f32.partialorder %v1197, 0.0
      %v1203 = vmul.f32 %v1195, 0.01
      %v1204 = vmul.f32 %v1197, 0.01
      %v1205 = vsel %vm1201, %v1195, %v1203
      %v1206 = vsel %vm1202, %v1197, %v1204
      %v1207 = vld [vmem:[%s610] sm:$0xf]
      %v1208 = vld [vmem:[%s614] sm:$0xff]
      %1209 = vst [vmem:[#allocation2 + $0x8] sm:$0xff] %v1205
      %1210 = vst [vmem:[#allocation2 + $0x10] sm:$0xff] %v1206
      %v1211 = vld [vmem:[#allocation2] sm:$0xff]
      %v1212 = vld [vmem:[#allocation2 + $0x8] sm:$0xff]
      %v1213 = vld [vmem:[#allocation2 + $0x10] sm:$0xff]
      %1217 = vrot.lane.b32.xlu0 %v1211, 17
      %v1218 = vpop.permute.xlu0 %1217
      %1219 = vrot.lane.b32.xlu0 %v1212, 17
      %v1220 = vpop.permute.xlu0 %1219
      %1221 = vrot.lane.b32.xlu0 %v1213, 17
      %v1222 = vpop.permute.xlu0 %1221
      %v1223 = vsel %vm698, %v1218, %v1220
      %v1224 = vsel %vm698, %v1220, %v1222
      %v1227 = vsel %vm678, %v1223, 0.0
      %v1228 = vsel %vm679, %v1224, 0.0
      %1229 = vrot.lane.b32.xlu0 %v1211, 15
      %v1230 = vpop.permute.xlu0 %1229
      %1231 = vrot.lane.b32.xlu0 %v1212, 15
      %v1232 = vpop.permute.xlu0 %1231
      %1233 = vrot.lane.b32.xlu0 %v1213, 15
      %v1234 = vpop.permute.xlu0 %1233
      %v1235 = vsel %vm735, %v1230, %v1232
      %v1236 = vsel %vm735, %v1232, %v1234
      %v1239 = vsel %vm721, %v1235, 0.0
      %v1240 = vsel %vm722, %v1236, 0.0
      %1241 = vrot.lane.b32.xlu0 %v1211, 1
      %v1242 = vpop.permute.xlu0 %1241
      %1243 = vrot.lane.b32.xlu0 %v1212, 1
      %v1244 = vpop.permute.xlu0 %1243
      %1245 = vrot.lane.b32.xlu0 %v1213, 1
      %v1246 = vpop.permute.xlu0 %1245
      %v1247 = vsel %vm760, %v1242, %v1244
      %v1248 = vsel %vm760, %v1244, %v1246
      %v1251 = vsel %vm678, %v1247, 0.0
      %v1252 = vsel %vm679, %v1248, 0.0
      %v1253 = vld [vmem:[#allocation2 + $0x18] sm:$0xff]
      %1255 = vrot.lane.b32.xlu0 %v1212, 127
      %v1256 = vpop.permute.xlu0 %1255
      %1257 = vrot.lane.b32.xlu0 %v1213, 127
      %v1258 = vpop.permute.xlu0 %1257
      %1259 = vrot.lane.b32.xlu0 %v1253, 127
      %v1260 = vpop.permute.xlu0 %1259
      %v1261 = vsel %vm797, %v1256, %v1258
      %v1262 = vsel %vm797, %v1258, %v1260
      %v1265 = vsel %vm721, %v1261, 0.0
      %v1266 = vsel %vm722, %v1262, 0.0
      %1267 = vrot.lane.b32.xlu0 %v1212, 113
      %v1268 = vpop.permute.xlu0 %1267
      %1269 = vrot.lane.b32.xlu0 %v1213, 113
      %v1270 = vpop.permute.xlu0 %1269
      %1271 = vrot.lane.b32.xlu0 %v1253, 113
      %v1272 = vpop.permute.xlu0 %1271
      %v1273 = vsel %vm822, %v1268, %v1270
      %v1274 = vsel %vm822, %v1270, %v1272
      %v1277 = vsel %vm678, %v1273, 0.0
      %v1278 = vsel %vm679, %v1274, 0.0
      %1279 = vrot.lane.b32.xlu0 %v1212, 111
      %v1280 = vpop.permute.xlu0 %1279
      %1281 = vrot.lane.b32.xlu0 %v1213, 111
      %v1282 = vpop.permute.xlu0 %1281
      %1283 = vrot.lane.b32.xlu0 %v1253, 111
      %v1284 = vpop.permute.xlu0 %1283
      %v1285 = vsel %vm847, %v1280, %v1282
      %v1286 = vsel %vm847, %v1282, %v1284
      %v1289 = vsel %vm721, %v1285, 0.0
      %v1290 = vsel %vm722, %v1286, 0.0
      %1291 = vrot.lane.b32.xlu0 %v1211, 16
      %v1292 = vpop.permute.xlu0 %1291
      %1293 = vrot.lane.b32.xlu0 %v1212, 16
      %v1294 = vpop.permute.xlu0 %1293
      %1295 = vrot.lane.b32.xlu0 %v1213, 16
      %v1296 = vpop.permute.xlu0 %1295
      %v1297 = vsel %vm872, %v1292, %v1294
      %v1298 = vsel %vm872, %v1294, %v1296
      %1301 = vrot.lane.b32.xlu0 %v1212, 112
      %v1302 = vpop.permute.xlu0 %1301
      %1303 = vrot.lane.b32.xlu0 %v1213, 112
      %v1304 = vpop.permute.xlu0 %1303
      %1305 = vrot.lane.b32.xlu0 %v1253, 112
      %v1306 = vpop.permute.xlu0 %1305
      %v1307 = vsel %vm893, %v1302, %v1304
      %v1308 = vsel %vm893, %v1304, %v1306
      %v1311 = vpack.c.bf16 %v1297, %v1227
      %v1312 = vpack.c.bf16 %v1298, %v1228
      %v1313 = vpack.c.bf16 %v1251, %v1239
      %v1314 = vpack.c.bf16 %v1252, %v1240
      %v1315 = vpack.c.bf16 %v1265, %v1212
      %v1316 = vpack.c.bf16 %v1266, %v1213
      %v1317 = vpack.c.bf16 %v1307, %v1277
      %v1318 = vpack.c.bf16 %v1308, %v1278
      %v1319 = vpack.c.bf16 %v1289, %v1289
      %v1320 = vpack.c.bf16 %v1290, %v1290
      %1322 = vset.pattern.permute.xlu0 0
      %1323 = vperm.xlu0 %1322, %v1208
      %v1324 = vpop.permute.xlu0 %1323
      %v1327 = vsel %vm1149, %v1207, 0
      %v1330 = vsel %vm1153, %v1319, 0
      %v1333 = vsel %vm1153, %v1320, 0
      %1335 = vmatprep.subr.bf16.mxu0 %v1312
      %1336 = vmatpush1.bf16.msra.mxu0 %v1311
      %1337 = vmatprep.subr.bf16.mxu0 %v1314
      %1338 = vmatpush1.bf16.msra.mxu0 %v1313
      %1339 = vmatprep.subr.bf16.mxu0 %v1316
      %1340 = vmatpush1.bf16.msra.mxu0 %v1315
      %1341 = vmatprep.subr.bf16.mxu0 %v1318
      %1342 = vmatpush1.bf16.msra.mxu0 %v1317
      %1343 = vmatprep.subr.bf16.mxu0 %v1333
      %1344 = vmatpush1.bf16.msra.mxu0 %v1330
      %1345 = vmatprep.subr.bf16.mxu0 0
      %1346 = vmatpush1.bf16.msra.mxu0 0
      %1347 = vmatprep.subr.bf16.mxu0 0
      %1348 = vmatpush1.bf16.msra.mxu0 0
      %1349 = vmatprep.subr.bf16.mxu0 0
      %1350 = vmatpush1.bf16.msra.mxu0 0
      %1351 = vmatprep.subr.bf16.mxu0 0
      %1352 = vmatpush1.bf16.msra.mxu0 0
      %1353 = vmatprep.subr.bf16.mxu0 0
      %1354 = vmatpush1.bf16.msra.mxu0 0
      %1355 = vmatprep.subr.bf16.mxu0 0
      %1356 = vmatpush1.bf16.msra.mxu0 0
      %1357 = vmatprep.subr.bf16.mxu0 0
      %1358 = vmatpush1.bf16.msra.mxu0 0
      %1359 = vmatprep.subr.bf16.mxu0 0
      %1360 = vmatpush1.bf16.msra.mxu0 0
      %1361 = vmatprep.subr.bf16.mxu0 0
      %1362 = vmatpush1.bf16.msra.mxu0 0
      %1363 = vmatprep.subr.bf16.mxu0 0
      %1364 = vmatpush1.bf16.msra.mxu0 0
      %1365 = vmatprep.subr.bf16.mxu0 0
      %1366 = vmatpush1.bf16.msra.mxu0 0
      %1367 = vmatprep.mubr.bf16.mxu0 0
      %1368 = vmatmul.mubr.bf16.gmra.mrb[0].mxu0 %v1327
      %v1369 = vpop.f32.mrb[0].mxu0
      %v1370 = vadd.f32 %v1324, %v1369
      %v1371 = vpop.f32.mrb[0].mxu0
      %v1372 = vadd.f32 %v1324, %v1371
      %v1373 = vpop.f32.mrb[0].mxu0
      %v1374 = vpop.f32.mrb[0].mxu0
      %1375 = vdwg.mxu0
      %v1376 = vld [vmem:[%s10] sm:$0xff]
      %1378 = vset.pattern.permute.xlu0 0
      %1379 = vperm.xlu0 %1378, %v1376
      %v1380 = vpop.permute.xlu0 %1379
      %v1382 = vmul.f32 %v1380, %v1370
      %v1383 = vmul.f32 %v1380, %v1372
      %v1384 = vadd.f32 %v969, %v1382
      %v1385 = vadd.f32 %v971, %v1383
      %v1386 = vld [vmem:[%s11] sm:$0xff]
      %v1387 = vld [vmem:[%s12] sm:$0xff]
      %v1388 = vrot.slane %v1384, 4
      %v1389 = vadd.f32 %v1384, %v1388
      %v1390 = vrot.slane %v1389, 2
      %v1391 = vadd.f32 %v1389, %v1390
      %v1392 = vrot.slane %v1391, 1
      %v1393 = vadd.f32 %v1391, %v1392
      %v1394 = vrot.slane %v1385, 4
      %v1395 = vadd.f32 %v1385, %v1394
      %v1396 = vrot.slane %v1395, 2
      %v1397 = vadd.f32 %v1395, %v1396
      %v1398 = vrot.slane %v1397, 1
      %v1399 = vadd.f32 %v1397, %v1398
      %v1400 = vmul.f32 %v1393, %v989
      %v1401 = vmul.f32 %v1399, %v989
      %v1402 = vsub.f32 %v1384, %v1400
      %v1403 = vsub.f32 %v1385, %v1401
      %v1404 = vmul.f32 %v1402, %v1402
      %v1405 = vmul.f32 %v1403, %v1403
      %v1406 = vrot.slane %v1404, 4
      %v1407 = vadd.f32 %v1404, %v1406
      %v1408 = vrot.slane %v1407, 2
      %v1409 = vadd.f32 %v1407, %v1408
      %v1410 = vrot.slane %v1409, 1
      %v1411 = vadd.f32 %v1409, %v1410
      %v1412 = vrot.slane %v1405, 4
      %v1413 = vadd.f32 %v1405, %v1412
      %v1414 = vrot.slane %v1413, 2
      %v1415 = vadd.f32 %v1413, %v1414
      %v1416 = vrot.slane %v1415, 1
      %v1417 = vadd.f32 %v1415, %v1416
      %v1418 = vmul.f32 %v1411, %v989
      %v1419 = vmul.f32 %v1417, %v989
      %v1420 = vadd.f32 %v1418, 1e-06
      %v1421 = vadd.f32 %v1419, 1e-06
      %v1422 = vrsqrt.pop %v1420
      %v1423 = vrsqrt.pop %v1421
      %v1424 = vmul.f32 %v1402, %v1422
      %v1425 = vmul.f32 %v1403, %v1423
      %1427 = vset.pattern.permute.xlu0 0
      %1428 = vperm.xlu0 %1427, %v1386
      %v1429 = vpop.permute.xlu0 %1428
      %v1431 = vmul.f32 %v1424, %v1429
      %v1432 = vmul.f32 %v1425, %v1429
      %1434 = vset.pattern.permute.xlu0 0
      %1435 = vperm.xlu0 %1434, %v1387
      %v1436 = vpop.permute.xlu0 %1435
      %v1438 = vadd.f32 %v1431, %v1436
      %v1439 = vadd.f32 %v1432, %v1436
      %v1440 = vld [vmem:[%s13] sm:$0x3]
      %v1441 = vpack.c.bf16 %v1440, %v1440
      %v1442 = vld [vmem:[%s14] sm:$0x3]
      %1443 = vst [vmem:[#allocation2 + $0x8] sm:$0xff] %v1438
      %1444 = vst [vmem:[#allocation2 + $0x10] sm:$0xff] %v1439
      %v1445 = vld [vmem:[#allocation2] sm:$0xff]
      %v1446 = vld [vmem:[#allocation2 + $0x8] sm:$0xff]
      %v1447 = vld [vmem:[#allocation2 + $0x10] sm:$0xff]
      %1451 = vrot.lane.b32.xlu0 %v1445, 17
      %v1452 = vpop.permute.xlu0 %1451
      %1453 = vrot.lane.b32.xlu0 %v1446, 17
      %v1454 = vpop.permute.xlu0 %1453
      %1455 = vrot.lane.b32.xlu0 %v1447, 17
      %v1456 = vpop.permute.xlu0 %1455
      %v1457 = vsel %vm698, %v1452, %v1454
      %v1458 = vsel %vm698, %v1454, %v1456
      %v1461 = vsel %vm678, %v1457, 0.0
      %v1462 = vsel %vm679, %v1458, 0.0
      %1463 = vrot.lane.b32.xlu0 %v1445, 15
      %v1464 = vpop.permute.xlu0 %1463
      %1465 = vrot.lane.b32.xlu0 %v1446, 15
      %v1466 = vpop.permute.xlu0 %1465
      %1467 = vrot.lane.b32.xlu0 %v1447, 15
      %v1468 = vpop.permute.xlu0 %1467
      %v1469 = vsel %vm735, %v1464, %v1466
      %v1470 = vsel %vm735, %v1466, %v1468
      %v1473 = vsel %vm721, %v1469, 0.0
      %v1474 = vsel %vm722, %v1470, 0.0
      %1475 = vrot.lane.b32.xlu0 %v1445, 1
      %v1476 = vpop.permute.xlu0 %1475
      %1477 = vrot.lane.b32.xlu0 %v1446, 1
      %v1478 = vpop.permute.xlu0 %1477
      %1479 = vrot.lane.b32.xlu0 %v1447, 1
      %v1480 = vpop.permute.xlu0 %1479
      %v1481 = vsel %vm760, %v1476, %v1478
      %v1482 = vsel %vm760, %v1478, %v1480
      %v1485 = vsel %vm678, %v1481, 0.0
      %v1486 = vsel %vm679, %v1482, 0.0
      %v1487 = vld [vmem:[#allocation2 + $0x18] sm:$0xff]
      %1489 = vrot.lane.b32.xlu0 %v1446, 127
      %v1490 = vpop.permute.xlu0 %1489
      %1491 = vrot.lane.b32.xlu0 %v1447, 127
      %v1492 = vpop.permute.xlu0 %1491
      %1493 = vrot.lane.b32.xlu0 %v1487, 127
      %v1494 = vpop.permute.xlu0 %1493
      %v1495 = vsel %vm797, %v1490, %v1492
      %v1496 = vsel %vm797, %v1492, %v1494
      %v1499 = vsel %vm721, %v1495, 0.0
      %v1500 = vsel %vm722, %v1496, 0.0
      %1501 = vrot.lane.b32.xlu0 %v1446, 113
      %v1502 = vpop.permute.xlu0 %1501
      %1503 = vrot.lane.b32.xlu0 %v1447, 113
      %v1504 = vpop.permute.xlu0 %1503
      %1505 = vrot.lane.b32.xlu0 %v1487, 113
      %v1506 = vpop.permute.xlu0 %1505
      %v1507 = vsel %vm822, %v1502, %v1504
      %v1508 = vsel %vm822, %v1504, %v1506
      %v1511 = vsel %vm678, %v1507, 0.0
      %v1512 = vsel %vm679, %v1508, 0.0
      %1513 = vrot.lane.b32.xlu0 %v1446, 111
      %v1514 = vpop.permute.xlu0 %1513
      %1515 = vrot.lane.b32.xlu0 %v1447, 111
      %v1516 = vpop.permute.xlu0 %1515
      %1517 = vrot.lane.b32.xlu0 %v1487, 111
      %v1518 = vpop.permute.xlu0 %1517
      %v1519 = vsel %vm847, %v1514, %v1516
      %v1520 = vsel %vm847, %v1516, %v1518
      %v1523 = vsel %vm721, %v1519, 0.0
      %v1524 = vsel %vm722, %v1520, 0.0
      %1525 = vrot.lane.b32.xlu0 %v1445, 16
      %v1526 = vpop.permute.xlu0 %1525
      %1527 = vrot.lane.b32.xlu0 %v1446, 16
      %v1528 = vpop.permute.xlu0 %1527
      %1529 = vrot.lane.b32.xlu0 %v1447, 16
      %v1530 = vpop.permute.xlu0 %1529
      %v1531 = vsel %vm872, %v1526, %v1528
      %v1532 = vsel %vm872, %v1528, %v1530
      %1535 = vrot.lane.b32.xlu0 %v1446, 112
      %v1536 = vpop.permute.xlu0 %1535
      %1537 = vrot.lane.b32.xlu0 %v1447, 112
      %v1538 = vpop.permute.xlu0 %1537
      %1539 = vrot.lane.b32.xlu0 %v1487, 112
      %v1540 = vpop.permute.xlu0 %1539
      %v1541 = vsel %vm893, %v1536, %v1538
      %v1542 = vsel %vm893, %v1538, %v1540
      %v1545 = vpack.c.bf16 %v1531, %v1461
      %v1546 = vpack.c.bf16 %v1532, %v1462
      %v1547 = vpack.c.bf16 %v1485, %v1473
      %v1548 = vpack.c.bf16 %v1486, %v1474
      %v1549 = vpack.c.bf16 %v1499, %v1446
      %v1550 = vpack.c.bf16 %v1500, %v1447
      %v1551 = vpack.c.bf16 %v1541, %v1511
      %v1552 = vpack.c.bf16 %v1542, %v1512
      %v1553 = vpack.c.bf16 %v1523, %v1523
      %v1554 = vpack.c.bf16 %v1524, %v1524
      %1556 = vset.pattern.permute.xlu0 0
      %1557 = vperm.xlu0 %1556, %v1442
      %v1558 = vpop.permute.xlu0 %1557
      %v1561 = vsel %vm1149, %v1441, 0
      %v1564 = vsel %vm1153, %v1553, 0
      %v1567 = vsel %vm1153, %v1554, 0
      %1569 = vmatprep.subr.bf16.mxu0 %v1546
      %1570 = vmatpush1.bf16.msra.mxu0 %v1545
      %1571 = vmatprep.subr.bf16.mxu0 %v1548
      %1572 = vmatpush1.bf16.msra.mxu0 %v1547
      %1573 = vmatprep.subr.bf16.mxu0 %v1550
      %1574 = vmatpush1.bf16.msra.mxu0 %v1549
      %1575 = vmatprep.subr.bf16.mxu0 %v1552
      %1576 = vmatpush1.bf16.msra.mxu0 %v1551
      %1577 = vmatprep.subr.bf16.mxu0 %v1567
      %1578 = vmatpush1.bf16.msra.mxu0 %v1564
      %1579 = vmatprep.subr.bf16.mxu0 0
      %1580 = vmatpush1.bf16.msra.mxu0 0
      %1581 = vmatprep.subr.bf16.mxu0 0
      %1582 = vmatpush1.bf16.msra.mxu0 0
      %1583 = vmatprep.subr.bf16.mxu0 0
      %1584 = vmatpush1.bf16.msra.mxu0 0
      %1585 = vmatprep.subr.bf16.mxu0 0
      %1586 = vmatpush1.bf16.msra.mxu0 0
      %1587 = vmatprep.subr.bf16.mxu0 0
      %1588 = vmatpush1.bf16.msra.mxu0 0
      %1589 = vmatprep.subr.bf16.mxu0 0
      %1590 = vmatpush1.bf16.msra.mxu0 0
      %1591 = vmatprep.subr.bf16.mxu0 0
      %1592 = vmatpush1.bf16.msra.mxu0 0
      %1593 = vmatprep.subr.bf16.mxu0 0
      %1594 = vmatpush1.bf16.msra.mxu0 0
      %1595 = vmatprep.subr.bf16.mxu0 0
      %1596 = vmatpush1.bf16.msra.mxu0 0
      %1597 = vmatprep.subr.bf16.mxu0 0
      %1598 = vmatpush1.bf16.msra.mxu0 0
      %1599 = vmatprep.subr.bf16.mxu0 0
      %1600 = vmatpush1.bf16.msra.mxu0 0
      %1601 = vmatprep.mubr.bf16.mxu0 0
      %1602 = vmatmul.mubr.bf16.gmra.mrb[0].mxu0 %v1561
      %v1603 = vpop.f32.mrb[0].mxu0
      %v1604 = vadd.f32 %v1558, %v1603
      %v1605 = vpop.f32.mrb[0].mxu0
      %v1606 = vadd.f32 %v1558, %v1605
      %v1607 = vpop.f32.mrb[0].mxu0
      %v1608 = vpop.f32.mrb[0].mxu0
      %1609 = vdwg.mxu0
      %vm1610 = vcmp.ge.f32.partialorder %v1604, 0.0
      %vm1611 = vcmp.ge.f32.partialorder %v1606, 0.0
      %v1612 = vmul.f32 %v1604, 0.01
      %v1613 = vmul.f32 %v1606, 0.01
      %v1614 = vsel %vm1610, %v1604, %v1612
      %v1615 = vsel %vm1611, %v1606, %v1613
      %v1618 = vcombine.low %v1614, %v1615
      %v1620 = vunpack.c.l.s4 1983009808
      %v1621 = vunpack.c.0.s8 %v1620
      %v1622 = vlaneseq
      %v1623 = vshrl.u32 %v1622, 7
      %v1624 = vsub.s32 %v1621, %v1623
      %v1625 = vrot.slane %v1618, %v1624
      %1627 = vst [vmem:[%s619] sm:$0xf] %v1625
      %p1628 = scmp.lt.s32.totalorder %s26, 1
      %s1629 = scalar_select %p1628, %s26, 1
      %s1630 = smul.addr %s1629, 2
      %s1631 = smul.addr %s1630, 2
      %s1632 = scalar_lea.vmem %s15, %s1631
      // Predicated region
      $region81: #{_lambda_.4} parent=79 // pred_check
        %p1633 = pneg %p399
      $region82: #{_lambda_.4} parent=79 // pred_check_branch
        %1635 = sbr.rel (%p1633) target = $region84
      $region83: #{_lambda_.4} parent=79 // pred_region
        _
      $region84: #{_lambda_.4} parent=79 // pred_fallthru
        _
    $region80: #{_lambda_.4} parent=5 // pred_fallthru
      _
    %p1636 = scmp.le.s32.totalorder 2, %s21
    // Predicated region
    $region85: #{_lambda_.4} parent=5 // pred_check
      %p1637 = pneg %p1636
    $region86: #{_lambda_.4} parent=5 // pred_check_branch
      %1639 = sbr.rel (%p1637) target = $region88
    $region87: #{_lambda_.4} parent=5 // pred_region
      %s1640 = ssub.s32 %s21, 2
      // Predicated region
      $region89: #{_lambda_.4} parent=87 // pred_check
        %p1641 = pneg %p405
      $region90: #{_lambda_.4} parent=87 // pred_check_branch
        %1643 = sbr.rel (%p1641) target = $region92
      $region91: #{_lambda_.4} parent=87 // pred_region
        %p1644 = scmp.lt.s32.totalorder %s27, 1
        %s1645 = scalar_select %p1644, %s27, 1
        %s1646 = smul.addr %s1645, 2
        %s1647 = smul.addr %s1646, 2
        %s1648 = scalar_lea.vmem %s15, %s1647
      $region92: #{_lambda_.4} parent=87 // pred_fallthru
        _
    $region88: #{_lambda_.4} parent=5 // pred_fallthru
      _
  $region6: #{_lambda_.4} parent=0 // loop_footer
    %s25 = sadd.s32 1, %s21
  $region7: #{_lambda_.4} parent=0 // loop_footer_branch
    %20 = sbr.rel target = $region3
  $region8: #{_lambda_.4} parent=0 // loop_exit
    _

</llo_original>
